<compile_context>
chip_gen: v7x
topology: tpu7x:2x2x1
jax: 0.10.0
libtpu: 0.0.40
codegen_flags: <defaults>
</compile_context>

<pallas_src>
import jax
import jax.numpy as jnp
import numpy as np
from jax.experimental import pallas as pl
from jax.experimental.pallas import tpu as pltpu

BN_EPS = 1e-5          # nn.BatchNorm1d default eps
LRELU_SLOPE = 0.2
D_IN = 848             # hard-coded in the PyTorch module (fc1 = Linear(848, 1024))
H1, H2, H3 = 1024, 512, 256


def _discriminator_kernel(mu_ref, img_ref, w1a_ref, w1b_ref, b1_ref,
                          w2_ref, b2_ref, w3_ref, b3_ref, w4_ref,
                          gamma_ref, beta_ref, b4_ref, out_ref):
    """Whole forward in one invocation; weights single-buffered in VMEM.

    mu_ref:  (B, 2, mu_dim)  f32     img_ref: (B, 2, img_dim) f32
    w*:      bf16 (MXU layers), f32 row vector for fc4
    gamma/beta/b4: SMEM scalars      out_ref: (B, 2) f32
    """
    mu_all = mu_ref[...]              # (B, 2, mu_dim)  f32
    img_all = img_ref[...]            # (B, 2, img_dim) f32
    b4 = b4_ref[0]

    def bn_lrelu(h, gamma, beta):
        # Training-mode BatchNorm1d for one channel: biased mean/var over the
        # whole (B, feat) block.  Two-pass variance (mean of squared deviation)
        # avoids E[x^2] - mean^2 cancellation.  All f32.
        inv_n = 1.0 / (h.shape[0] * h.shape[1])
        m = jnp.sum(h) * inv_n
        d = h - m
        v = jnp.sum(d * d) * inv_n
        y = d * (jax.lax.rsqrt(v + BN_EPS) * gamma) + beta
        return jnp.where(y > 0, y, LRELU_SLOPE * y)

    def dense(h, w_ref, b_ref):
        # bf16 operands into the MXU, f32 accumulation, f32 bias/epilogue.
        return jnp.dot(h.astype(jnp.bfloat16), w_ref[...],
                       preferred_element_type=jnp.float32) + b_ref[...]

    outs = []
    for c in range(2):                # static unroll over the two BN channels
        gamma = gamma_ref[c]          # scalar f32 from SMEM
        beta = beta_ref[c]
        # fc1 on the un-concatenated input: [mu | img] @ w1 == mu@w1a + img@w1b,
        # so the wrapper never materializes a concatenated / transposed input.
        h = (jnp.dot(mu_all[:, c, :].astype(jnp.bfloat16), w1a_ref[...],
                     preferred_element_type=jnp.float32)
             + jnp.dot(img_all[:, c, :].astype(jnp.bfloat16), w1b_ref[...],
                       preferred_element_type=jnp.float32)
             + b1_ref[...])
        h = bn_lrelu(h, gamma, beta)                          # (B, 1024)
        h = bn_lrelu(dense(h, w2_ref, b2_ref), gamma, beta)   # (B, 512)
        h = bn_lrelu(dense(h, w3_ref, b3_ref), gamma, beta)   # (B, 256)
        # fc4 has N=1: VPU multiply+reduce in f32 instead of an MXU tile.
        logits = jnp.sum(h * w4_ref[...], axis=-1, keepdims=True) + b4
        outs.append(jax.nn.sigmoid(logits))                   # (B, 1)
    out_ref[...] = jnp.concatenate(outs, axis=1)              # (B, 2)


def paper_discriminator(img, mu, kparams):
    """img: (B, 2, H, W), mu: (B, 2, mu_dim). Returns (B, 2, 1) like PyTorch.

    `kparams` must come from prepare_params(): the one-time bf16 cast / fc1
    split / bias reshaping is hoisted out of this per-call forward path."""
    B = img.shape[0]
    assert img.shape[1] == 2 and mu.shape[1] == 2
    img_flat = img.reshape(B, 2, -1)          # trailing-dim collapse: free, no copy
    mu_dim, img_dim = mu.shape[-1], img_flat.shape[-1]
    assert mu_dim + img_dim == D_IN, (mu_dim, img_dim)
    assert kparams["w1a"].shape == (mu_dim, H1)
    assert kparams["w1b"].shape == (img_dim, H1)

    vmem = pl.BlockSpec(memory_space=pltpu.MemorySpace.VMEM)
    smem = pl.BlockSpec(memory_space=pltpu.MemorySpace.SMEM)

    out2 = pl.pallas_call(
        _discriminator_kernel,
        out_shape=jax.ShapeDtypeStruct((B, 2), jnp.float32),
        in_specs=[vmem, vmem,                 # mu, img_flat (f32)
                  vmem, vmem, vmem,           # fc1: w1a, w1b (bf16), b1 (f32)
                  vmem, vmem,                 # fc2
                  vmem, vmem,                 # fc3
                  vmem,                       # fc4 weight row (f32, VPU path)
                  smem, smem, smem],          # bn gamma, bn beta, fc4 bias
        out_specs=vmem,
    )(
        mu.astype(jnp.float32), img_flat.astype(jnp.float32),
        kparams["w1a"], kparams["w1b"], kparams["b1"],
        kparams["w2"], kparams["b2"],
        kparams["w3"], kparams["b3"],
        kparams["w4"],
        kparams["bn_gamma"], kparams["bn_beta"], kparams["b4"],
    )
    return out2[:, :, None]                   # (B, 2, 1) — free reshape


def init_params(key, mu_dim=592, img_flat=256):
    """Deterministic synthetic master weights (PyTorch-Linear-style init), f32."""
    d_in = mu_dim + img_flat
    assert d_in == D_IN
    ks = jax.random.split(key, 10)

    def lin(kw, kb, fin, fout):
        bound = 1.0 / np.sqrt(fin)
        w = jax.random.uniform(kw, (fin, fout), jnp.float32, -bound, bound)
        b = jax.random.uniform(kb, (fout,), jnp.float32, -bound, bound)
        return w, b

    w1, b1 = lin(ks[0], ks[1], d_in, H1)
    w2, b2 = lin(ks[2], ks[3], H1, H2)
    w3, b3 = lin(ks[4], ks[5], H2, H3)
    w4, b4 = lin(ks[6], ks[7], H3, 1)
    # PyTorch initializes BN gamma=1 / beta=0; perturb them so the test
    # actually exercises the affine path (forward semantics unchanged).
    gamma = 1.0 + 0.1 * jax.random.normal(ks[8], (2,), jnp.float32)
    beta = 0.1 * jax.random.normal(ks[9], (2,), jnp.float32)
    return dict(w1=w1, b1=b1, w2=w2, b2=b2, w3=w3, b3=b3, w4=w4, b4=b4,
                bn_gamma=gamma, bn_beta=beta)


def prepare_params(params, mu_dim):
    """One-time conversion to the kernel layout (hoisted out of the forward
    path): bf16 weights for the MXU layers, fc1 split at the mu|img column
    boundary, (1, N) bias rows, BN affine + fc4 bias as SMEM scalars."""
    w1 = params["w1"]
    return dict(
        w1a=w1[:mu_dim].astype(jnp.bfloat16),       # (mu_dim, 1024)
        w1b=w1[mu_dim:].astype(jnp.bfloat16),       # (img_dim, 1024)
        b1=params["b1"].reshape(1, H1),
        w2=params["w2"].astype(jnp.bfloat16),
        b2=params["b2"].reshape(1, H2),
        w3=params["w3"].astype(jnp.bfloat16),
        b3=params["b3"].reshape(1, H3),
        w4=params["w4"].reshape(1, H3).astype(jnp.float32),   # fc4 stays f32
        b4=params["b4"].reshape(1),
        bn_gamma=params["bn_gamma"],
        bn_beta=params["bn_beta"],
    )


def reference(img, mu, params, *, bf16_matmul):
    """Pure-JAX forward mirroring the PyTorch module (training-mode BN).

    bf16_matmul=True applies the same bf16 weight/activation quantization the
    kernel uses at the MXU boundary; False is the straight f32 path."""
    B = img.shape[0]
    h = jnp.concatenate([mu, img.reshape(B, 2, -1)], axis=2).astype(jnp.float32)
    gamma = params["bn_gamma"][None, :, None]
    beta = params["bn_beta"][None, :, None]

    def dense(h3, w, b):
        if bf16_matmul:
            h3, w = h3.astype(jnp.bfloat16), w.astype(jnp.bfloat16)
        return jnp.einsum("bcf,fo->bco", h3, w,
                          preferred_element_type=jnp.float32) + b

    def bn_lrelu(h3):
        m = jnp.mean(h3, axis=(0, 2), keepdims=True)
        d = h3 - m
        v = jnp.mean(d * d, axis=(0, 2), keepdims=True)
        y = d * jax.lax.rsqrt(v + BN_EPS) * gamma + beta
        return jnp.where(y > 0, y, LRELU_SLOPE * y)

    h = bn_lrelu(dense(h, params["w1"], params["b1"]))
    h = bn_lrelu(dense(h, params["w2"], params["b2"]))
    h = bn_lrelu(dense(h, params["w3"], params["b3"]))
    logits = jnp.einsum("bcf,fo->bco", h, params["w4"],
                        preferred_element_type=jnp.float32) + params["b4"]
    return jax.nn.sigmoid(logits)              # (B, 2, 1)


if __name__ == "__main__":
    key = jax.random.PRNGKey(0)
    k_img, k_mu, k_par = jax.random.split(key, 3)

    B = 2
    MU_DIM = 592   # 848 - 16*16, so fc1 sees the module's hard-coded 848 features
    img = jax.random.normal(k_img, (B, 2, 16, 16), jnp.float32)
    mu = jax.random.normal(k_mu, (B, 2, MU_DIM), jnp.float32)

    master = init_params(k_par, mu_dim=MU_DIM, img_flat=16 * 16)
    kparams = prepare_params(master, mu_dim=MU_DIM)   # one-time, not per call

    valid = jax.block_until_ready(paper_discriminator(img, mu, kparams))
    assert valid.shape == (B, 2, 1), valid.shape

    # Strict check vs a JAX reference applying the same bf16 MXU quantization.
    ref_q = jax.block_until_ready(reference(img, mu, master, bf16_matmul=True))
    np.testing.assert_allclose(np.asarray(valid), np.asarray(ref_q),
                               rtol=2e-4, atol=2e-4)

    # Loose sanity check vs the full-f32 PyTorch-equivalent forward (bf16
    # weights only perturb the sigmoid outputs at the ~1e-3 level).
    ref_f32 = jax.block_until_ready(reference(img, mu, master, bf16_matmul=False))
    np.testing.assert_allclose(np.asarray(valid), np.asarray(ref_f32),
                               rtol=5e-2, atol=5e-2)

    print("KERNEL_OK")
</pallas_src>

<mosaic_0001>
module attributes {stable_mosaic.version = 11 : i64} {
  func.func @_discriminator_kernel(%arg0: memref<2x2x592xf32, #tpu.memory_space<vmem>>, %arg1: memref<2x2x256xf32, #tpu.memory_space<vmem>>, %arg2: memref<592x1024xbf16, #tpu.memory_space<vmem>>, %arg3: memref<256x1024xbf16, #tpu.memory_space<vmem>>, %arg4: memref<1x1024xf32, #tpu.memory_space<vmem>>, %arg5: memref<1024x512xbf16, #tpu.memory_space<vmem>>, %arg6: memref<1x512xf32, #tpu.memory_space<vmem>>, %arg7: memref<512x256xbf16, #tpu.memory_space<vmem>>, %arg8: memref<1x256xf32, #tpu.memory_space<vmem>>, %arg9: memref<1x256xf32, #tpu.memory_space<vmem>>, %arg10: memref<2xf32, #tpu.memory_space<smem>>, %arg11: memref<2xf32, #tpu.memory_space<smem>>, %arg12: memref<1xf32, #tpu.memory_space<smem>>, %arg13: memref<2x2xf32, #tpu.memory_space<vmem>>) attributes {dimension_semantics = [], scalar_prefetch = 0 : i64, scratch_operands = 0 : i64, tpu.core_type = #tpu.core_type<tc>} {
    %c0 = arith.constant 0 : index
    %c0_0 = arith.constant 0 : index
    %c0_1 = arith.constant 0 : index
    %0 = vector.load %arg0[%c0, %c0_0, %c0_1] : memref<2x2x592xf32, #tpu.memory_space<vmem>>, vector<2x2x592xf32>
    %c0_2 = arith.constant 0 : index
    %c0_3 = arith.constant 0 : index
    %c0_4 = arith.constant 0 : index
    %1 = vector.load %arg1[%c0_2, %c0_3, %c0_4] : memref<2x2x256xf32, #tpu.memory_space<vmem>>, vector<2x2x256xf32>
    %c0_5 = arith.constant 0 : index
    %2 = memref.load %arg12[%c0_5] : memref<1xf32, #tpu.memory_space<smem>>
    %c0_6 = arith.constant 0 : index
    %3 = memref.load %arg10[%c0_6] : memref<2xf32, #tpu.memory_space<smem>>
    %c0_7 = arith.constant 0 : index
    %4 = memref.load %arg11[%c0_7] : memref<2xf32, #tpu.memory_space<smem>>
    %5 = vector.extract_strided_slice %0 {offsets = [0, 0, 0], sizes = [2, 1, 592], strides = [1, 1, 1]} : vector<2x2x592xf32> to vector<2x1x592xf32>
    %6 = vector.shape_cast %5 : vector<2x1x592xf32> to vector<2x592xf32>
    %7 = arith.truncf %6 : vector<2x592xf32> to vector<2x592xbf16>
    %c0_8 = arith.constant 0 : index
    %c0_9 = arith.constant 0 : index
    %8 = vector.load %arg2[%c0_8, %c0_9] : memref<592x1024xbf16, #tpu.memory_space<vmem>>, vector<592x1024xbf16>
    %cst = arith.constant dense<0.000000e+00> : vector<2x1024xf32>
    %9 = tpu.matmul %7, %8, %cst {dimension_numbers = #tpu.dot_dimension_numbers<[1], [0], [0], [1], [0, 0, 1, 1], [], []>} : vector<2x592xbf16>, vector<592x1024xbf16>, vector<2x1024xf32> -> vector<2x1024xf32>
    %10 = vector.extract_strided_slice %1 {offsets = [0, 0, 0], sizes = [2, 1, 256], strides = [1, 1, 1]} : vector<2x2x256xf32> to vector<2x1x256xf32>
    %11 = vector.shape_cast %10 : vector<2x1x256xf32> to vector<2x256xf32>
    %12 = arith.truncf %11 : vector<2x256xf32> to vector<2x256xbf16>
    %c0_10 = arith.constant 0 : index
    %c0_11 = arith.constant 0 : index
    %13 = vector.load %arg3[%c0_10, %c0_11] : memref<256x1024xbf16, #tpu.memory_space<vmem>>, vector<256x1024xbf16>
    %cst_12 = arith.constant dense<0.000000e+00> : vector<2x1024xf32>
    %14 = tpu.matmul %12, %13, %cst_12 {dimension_numbers = #tpu.dot_dimension_numbers<[1], [0], [0], [1], [0, 0, 1, 1], [], []>} : vector<2x256xbf16>, vector<256x1024xbf16>, vector<2x1024xf32> -> vector<2x1024xf32>
    %15 = arith.addf %9, %14 : vector<2x1024xf32>
    %c0_13 = arith.constant 0 : index
    %c0_14 = arith.constant 0 : index
    %16 = vector.load %arg4[%c0_13, %c0_14] : memref<1x1024xf32, #tpu.memory_space<vmem>>, vector<1x1024xf32>
    %17 = vector.broadcast %16 : vector<1x1024xf32> to vector<2x1024xf32>
    %18 = arith.addf %15, %17 : vector<2x1024xf32>
    %19 = vector.shape_cast %18 : vector<2x1024xf32> to vector<1x2x1024xf32>
    %cst_15 = arith.constant dense<0.000000e+00> : vector<1xf32>
    %20 = vector.multi_reduction <add>, %19, %cst_15 [1, 2] : vector<1x2x1024xf32> to vector<1xf32>
    %21 = vector.shape_cast %20 : vector<1xf32> to vector<1x1x1xf32>
    %22 = vector.extract %21[0, 0, 0] : f32 from vector<1x1x1xf32>
    %cst_16 = arith.constant 4.8828125E-4 : f32
    %23 = arith.mulf %22, %cst_16 : f32
    %24 = vector.broadcast %23 : f32 to vector<2x1024xf32>
    %25 = arith.subf %18, %24 : vector<2x1024xf32>
    %26 = arith.mulf %25, %25 : vector<2x1024xf32>
    %27 = vector.shape_cast %26 : vector<2x1024xf32> to vector<1x2x1024xf32>
    %cst_17 = arith.constant dense<0.000000e+00> : vector<1xf32>
    %28 = vector.multi_reduction <add>, %27, %cst_17 [1, 2] : vector<1x2x1024xf32> to vector<1xf32>
    %29 = vector.shape_cast %28 : vector<1xf32> to vector<1x1x1xf32>
    %30 = vector.extract %29[0, 0, 0] : f32 from vector<1x1x1xf32>
    %cst_18 = arith.constant 4.8828125E-4 : f32
    %31 = arith.mulf %30, %cst_18 : f32
    %cst_19 = arith.constant 9.99999974E-6 : f32
    %32 = arith.addf %31, %cst_19 : f32
    %33 = math.rsqrt %32 : f32
    %34 = arith.mulf %33, %3 : f32
    %35 = vector.broadcast %34 : f32 to vector<2x1024xf32>
    %36 = arith.mulf %25, %35 : vector<2x1024xf32>
    %37 = vector.broadcast %4 : f32 to vector<2x1024xf32>
    %38 = arith.addf %36, %37 : vector<2x1024xf32>
    %cst_20 = arith.constant 0.000000e+00 : f32
    %39 = vector.broadcast %cst_20 : f32 to vector<2x1024xf32>
    %40 = arith.cmpf ogt, %38, %39 : vector<2x1024xf32>
    %cst_21 = arith.constant 2.000000e-01 : f32
    %41 = vector.broadcast %cst_21 : f32 to vector<2x1024xf32>
    %42 = arith.mulf %41, %38 : vector<2x1024xf32>
    %43 = arith.select %40, %38, %42 : vector<2x1024xi1>, vector<2x1024xf32>
    %44 = arith.truncf %43 : vector<2x1024xf32> to vector<2x1024xbf16>
    %c0_22 = arith.constant 0 : index
    %c0_23 = arith.constant 0 : index
    %45 = vector.load %arg5[%c0_22, %c0_23] : memref<1024x512xbf16, #tpu.memory_space<vmem>>, vector<1024x512xbf16>
    %cst_24 = arith.constant dense<0.000000e+00> : vector<2x512xf32>
    %46 = tpu.matmul %44, %45, %cst_24 {dimension_numbers = #tpu.dot_dimension_numbers<[1], [0], [0], [1], [0, 0, 1, 1], [], []>} : vector<2x1024xbf16>, vector<1024x512xbf16>, vector<2x512xf32> -> vector<2x512xf32>
    %c0_25 = arith.constant 0 : index
    %c0_26 = arith.constant 0 : index
    %47 = vector.load %arg6[%c0_25, %c0_26] : memref<1x512xf32, #tpu.memory_space<vmem>>, vector<1x512xf32>
    %48 = vector.broadcast %47 : vector<1x512xf32> to vector<2x512xf32>
    %49 = arith.addf %46, %48 : vector<2x512xf32>
    %50 = vector.shape_cast %49 : vector<2x512xf32> to vector<1x2x512xf32>
    %cst_27 = arith.constant dense<0.000000e+00> : vector<1xf32>
    %51 = vector.multi_reduction <add>, %50, %cst_27 [1, 2] : vector<1x2x512xf32> to vector<1xf32>
    %52 = vector.shape_cast %51 : vector<1xf32> to vector<1x1x1xf32>
    %53 = vector.extract %52[0, 0, 0] : f32 from vector<1x1x1xf32>
    %cst_28 = arith.constant 9.765625E-4 : f32
    %54 = arith.mulf %53, %cst_28 : f32
    %55 = vector.broadcast %54 : f32 to vector<2x512xf32>
    %56 = arith.subf %49, %55 : vector<2x512xf32>
    %57 = arith.mulf %56, %56 : vector<2x512xf32>
    %58 = vector.shape_cast %57 : vector<2x512xf32> to vector<1x2x512xf32>
    %cst_29 = arith.constant dense<0.000000e+00> : vector<1xf32>
    %59 = vector.multi_reduction <add>, %58, %cst_29 [1, 2] : vector<1x2x512xf32> to vector<1xf32>
    %60 = vector.shape_cast %59 : vector<1xf32> to vector<1x1x1xf32>
    %61 = vector.extract %60[0, 0, 0] : f32 from vector<1x1x1xf32>
    %cst_30 = arith.constant 9.765625E-4 : f32
    %62 = arith.mulf %61, %cst_30 : f32
    %cst_31 = arith.constant 9.99999974E-6 : f32
    %63 = arith.addf %62, %cst_31 : f32
    %64 = math.rsqrt %63 : f32
    %65 = arith.mulf %64, %3 : f32
    %66 = vector.broadcast %65 : f32 to vector<2x512xf32>
    %67 = arith.mulf %56, %66 : vector<2x512xf32>
    %68 = vector.broadcast %4 : f32 to vector<2x512xf32>
    %69 = arith.addf %67, %68 : vector<2x512xf32>
    %cst_32 = arith.constant 0.000000e+00 : f32
    %70 = vector.broadcast %cst_32 : f32 to vector<2x512xf32>
    %71 = arith.cmpf ogt, %69, %70 : vector<2x512xf32>
    %cst_33 = arith.constant 2.000000e-01 : f32
    %72 = vector.broadcast %cst_33 : f32 to vector<2x512xf32>
    %73 = arith.mulf %72, %69 : vector<2x512xf32>
    %74 = arith.select %71, %69, %73 : vector<2x512xi1>, vector<2x512xf32>
    %75 = arith.truncf %74 : vector<2x512xf32> to vector<2x512xbf16>
    %c0_34 = arith.constant 0 : index
    %c0_35 = arith.constant 0 : index
    %76 = vector.load %arg7[%c0_34, %c0_35] : memref<512x256xbf16, #tpu.memory_space<vmem>>, vector<512x256xbf16>
    %cst_36 = arith.constant dense<0.000000e+00> : vector<2x256xf32>
    %77 = tpu.matmul %75, %76, %cst_36 {dimension_numbers = #tpu.dot_dimension_numbers<[1], [0], [0], [1], [0, 0, 1, 1], [], []>} : vector<2x512xbf16>, vector<512x256xbf16>, vector<2x256xf32> -> vector<2x256xf32>
    %c0_37 = arith.constant 0 : index
    %c0_38 = arith.constant 0 : index
    %78 = vector.load %arg8[%c0_37, %c0_38] : memref<1x256xf32, #tpu.memory_space<vmem>>, vector<1x256xf32>
    %79 = vector.broadcast %78 : vector<1x256xf32> to vector<2x256xf32>
    %80 = arith.addf %77, %79 : vector<2x256xf32>
    %81 = vector.shape_cast %80 : vector<2x256xf32> to vector<1x2x256xf32>
    %cst_39 = arith.constant dense<0.000000e+00> : vector<1xf32>
    %82 = vector.multi_reduction <add>, %81, %cst_39 [1, 2] : vector<1x2x256xf32> to vector<1xf32>
    %83 = vector.shape_cast %82 : vector<1xf32> to vector<1x1x1xf32>
    %84 = vector.extract %83[0, 0, 0] : f32 from vector<1x1x1xf32>
    %cst_40 = arith.constant 0.001953125 : f32
    %85 = arith.mulf %84, %cst_40 : f32
    %86 = vector.broadcast %85 : f32 to vector<2x256xf32>
    %87 = arith.subf %80, %86 : vector<2x256xf32>
    %88 = arith.mulf %87, %87 : vector<2x256xf32>
    %89 = vector.shape_cast %88 : vector<2x256xf32> to vector<1x2x256xf32>
    %cst_41 = arith.constant dense<0.000000e+00> : vector<1xf32>
    %90 = vector.multi_reduction <add>, %89, %cst_41 [1, 2] : vector<1x2x256xf32> to vector<1xf32>
    %91 = vector.shape_cast %90 : vector<1xf32> to vector<1x1x1xf32>
    %92 = vector.extract %91[0, 0, 0] : f32 from vector<1x1x1xf32>
    %cst_42 = arith.constant 0.001953125 : f32
    %93 = arith.mulf %92, %cst_42 : f32
    %cst_43 = arith.constant 9.99999974E-6 : f32
    %94 = arith.addf %93, %cst_43 : f32
    %95 = math.rsqrt %94 : f32
    %96 = arith.mulf %95, %3 : f32
    %97 = vector.broadcast %96 : f32 to vector<2x256xf32>
    %98 = arith.mulf %87, %97 : vector<2x256xf32>
    %99 = vector.broadcast %4 : f32 to vector<2x256xf32>
    %100 = arith.addf %98, %99 : vector<2x256xf32>
    %cst_44 = arith.constant 0.000000e+00 : f32
    %101 = vector.broadcast %cst_44 : f32 to vector<2x256xf32>
    %102 = arith.cmpf ogt, %100, %101 : vector<2x256xf32>
    %cst_45 = arith.constant 2.000000e-01 : f32
    %103 = vector.broadcast %cst_45 : f32 to vector<2x256xf32>
    %104 = arith.mulf %103, %100 : vector<2x256xf32>
    %105 = arith.select %102, %100, %104 : vector<2x256xi1>, vector<2x256xf32>
    %c0_46 = arith.constant 0 : index
    %c0_47 = arith.constant 0 : index
    %106 = vector.load %arg9[%c0_46, %c0_47] : memref<1x256xf32, #tpu.memory_space<vmem>>, vector<1x256xf32>
    %107 = vector.broadcast %106 : vector<1x256xf32> to vector<2x256xf32>
    %108 = arith.mulf %105, %107 : vector<2x256xf32>
    %cst_48 = arith.constant dense<0.000000e+00> : vector<2xf32>
    %109 = vector.multi_reduction <add>, %108, %cst_48 [1] : vector<2x256xf32> to vector<2xf32>
    %110 = vector.shape_cast %109 : vector<2xf32> to vector<2x1xf32>
    %111 = vector.broadcast %2 : f32 to vector<2x1xf32>
    %112 = arith.addf %110, %111 : vector<2x1xf32>
    %113 = arith.negf %112 : vector<2x1xf32>
    %114 = math.exp %113 : vector<2x1xf32>
    %cst_49 = arith.constant 1.000000e+00 : f32
    %115 = vector.broadcast %cst_49 : f32 to vector<2x1xf32>
    %116 = arith.addf %115, %114 : vector<2x1xf32>
    %117 = arith.divf %115, %116 : vector<2x1xf32>
    %c1 = arith.constant 1 : index
    %118 = memref.load %arg10[%c1] : memref<2xf32, #tpu.memory_space<smem>>
    %c1_50 = arith.constant 1 : index
    %119 = memref.load %arg11[%c1_50] : memref<2xf32, #tpu.memory_space<smem>>
    %120 = vector.extract_strided_slice %0 {offsets = [0, 1, 0], sizes = [2, 1, 592], strides = [1, 1, 1]} : vector<2x2x592xf32> to vector<2x1x592xf32>
    %121 = vector.shape_cast %120 : vector<2x1x592xf32> to vector<2x592xf32>
    %122 = arith.truncf %121 : vector<2x592xf32> to vector<2x592xbf16>
    %c0_51 = arith.constant 0 : index
    %c0_52 = arith.constant 0 : index
    %123 = vector.load %arg2[%c0_51, %c0_52] : memref<592x1024xbf16, #tpu.memory_space<vmem>>, vector<592x1024xbf16>
    %cst_53 = arith.constant dense<0.000000e+00> : vector<2x1024xf32>
    %124 = tpu.matmul %122, %123, %cst_53 {dimension_numbers = #tpu.dot_dimension_numbers<[1], [0], [0], [1], [0, 0, 1, 1], [], []>} : vector<2x592xbf16>, vector<592x1024xbf16>, vector<2x1024xf32> -> vector<2x1024xf32>
    %125 = vector.extract_strided_slice %1 {offsets = [0, 1, 0], sizes = [2, 1, 256], strides = [1, 1, 1]} : vector<2x2x256xf32> to vector<2x1x256xf32>
    %126 = vector.shape_cast %125 : vector<2x1x256xf32> to vector<2x256xf32>
    %127 = arith.truncf %126 : vector<2x256xf32> to vector<2x256xbf16>
    %c0_54 = arith.constant 0 : index
    %c0_55 = arith.constant 0 : index
    %128 = vector.load %arg3[%c0_54, %c0_55] : memref<256x1024xbf16, #tpu.memory_space<vmem>>, vector<256x1024xbf16>
    %cst_56 = arith.constant dense<0.000000e+00> : vector<2x1024xf32>
    %129 = tpu.matmul %127, %128, %cst_56 {dimension_numbers = #tpu.dot_dimension_numbers<[1], [0], [0], [1], [0, 0, 1, 1], [], []>} : vector<2x256xbf16>, vector<256x1024xbf16>, vector<2x1024xf32> -> vector<2x1024xf32>
    %130 = arith.addf %124, %129 : vector<2x1024xf32>
    %c0_57 = arith.constant 0 : index
    %c0_58 = arith.constant 0 : index
    %131 = vector.load %arg4[%c0_57, %c0_58] : memref<1x1024xf32, #tpu.memory_space<vmem>>, vector<1x1024xf32>
    %132 = vector.broadcast %131 : vector<1x1024xf32> to vector<2x1024xf32>
    %133 = arith.addf %130, %132 : vector<2x1024xf32>
    %134 = vector.shape_cast %133 : vector<2x1024xf32> to vector<1x2x1024xf32>
    %cst_59 = arith.constant dense<0.000000e+00> : vector<1xf32>
    %135 = vector.multi_reduction <add>, %134, %cst_59 [1, 2] : vector<1x2x1024xf32> to vector<1xf32>
    %136 = vector.shape_cast %135 : vector<1xf32> to vector<1x1x1xf32>
    %137 = vector.extract %136[0, 0, 0] : f32 from vector<1x1x1xf32>
    %cst_60 = arith.constant 4.8828125E-4 : f32
    %138 = arith.mulf %137, %cst_60 : f32
    %139 = vector.broadcast %138 : f32 to vector<2x1024xf32>
    %140 = arith.subf %133, %139 : vector<2x1024xf32>
    %141 = arith.mulf %140, %140 : vector<2x1024xf32>
    %142 = vector.shape_cast %141 : vector<2x1024xf32> to vector<1x2x1024xf32>
    %cst_61 = arith.constant dense<0.000000e+00> : vector<1xf32>
    %143 = vector.multi_reduction <add>, %142, %cst_61 [1, 2] : vector<1x2x1024xf32> to vector<1xf32>
    %144 = vector.shape_cast %143 : vector<1xf32> to vector<1x1x1xf32>
    %145 = vector.extract %144[0, 0, 0] : f32 from vector<1x1x1xf32>
    %cst_62 = arith.constant 4.8828125E-4 : f32
    %146 = arith.mulf %145, %cst_62 : f32
    %cst_63 = arith.constant 9.99999974E-6 : f32
    %147 = arith.addf %146, %cst_63 : f32
    %148 = math.rsqrt %147 : f32
    %149 = arith.mulf %148, %118 : f32
    %150 = vector.broadcast %149 : f32 to vector<2x1024xf32>
    %151 = arith.mulf %140, %150 : vector<2x1024xf32>
    %152 = vector.broadcast %119 : f32 to vector<2x1024xf32>
    %153 = arith.addf %151, %152 : vector<2x1024xf32>
    %cst_64 = arith.constant 0.000000e+00 : f32
    %154 = vector.broadcast %cst_64 : f32 to vector<2x1024xf32>
    %155 = arith.cmpf ogt, %153, %154 : vector<2x1024xf32>
    %cst_65 = arith.constant 2.000000e-01 : f32
    %156 = vector.broadcast %cst_65 : f32 to vector<2x1024xf32>
    %157 = arith.mulf %156, %153 : vector<2x1024xf32>
    %158 = arith.select %155, %153, %157 : vector<2x1024xi1>, vector<2x1024xf32>
    %159 = arith.truncf %158 : vector<2x1024xf32> to vector<2x1024xbf16>
    %c0_66 = arith.constant 0 : index
    %c0_67 = arith.constant 0 : index
    %160 = vector.load %arg5[%c0_66, %c0_67] : memref<1024x512xbf16, #tpu.memory_space<vmem>>, vector<1024x512xbf16>
    %cst_68 = arith.constant dense<0.000000e+00> : vector<2x512xf32>
    %161 = tpu.matmul %159, %160, %cst_68 {dimension_numbers = #tpu.dot_dimension_numbers<[1], [0], [0], [1], [0, 0, 1, 1], [], []>} : vector<2x1024xbf16>, vector<1024x512xbf16>, vector<2x512xf32> -> vector<2x512xf32>
    %c0_69 = arith.constant 0 : index
    %c0_70 = arith.constant 0 : index
    %162 = vector.load %arg6[%c0_69, %c0_70] : memref<1x512xf32, #tpu.memory_space<vmem>>, vector<1x512xf32>
    %163 = vector.broadcast %162 : vector<1x512xf32> to vector<2x512xf32>
    %164 = arith.addf %161, %163 : vector<2x512xf32>
    %165 = vector.shape_cast %164 : vector<2x512xf32> to vector<1x2x512xf32>
    %cst_71 = arith.constant dense<0.000000e+00> : vector<1xf32>
    %166 = vector.multi_reduction <add>, %165, %cst_71 [1, 2] : vector<1x2x512xf32> to vector<1xf32>
    %167 = vector.shape_cast %166 : vector<1xf32> to vector<1x1x1xf32>
    %168 = vector.extract %167[0, 0, 0] : f32 from vector<1x1x1xf32>
    %cst_72 = arith.constant 9.765625E-4 : f32
    %169 = arith.mulf %168, %cst_72 : f32
    %170 = vector.broadcast %169 : f32 to vector<2x512xf32>
    %171 = arith.subf %164, %170 : vector<2x512xf32>
    %172 = arith.mulf %171, %171 : vector<2x512xf32>
    %173 = vector.shape_cast %172 : vector<2x512xf32> to vector<1x2x512xf32>
    %cst_73 = arith.constant dense<0.000000e+00> : vector<1xf32>
    %174 = vector.multi_reduction <add>, %173, %cst_73 [1, 2] : vector<1x2x512xf32> to vector<1xf32>
    %175 = vector.shape_cast %174 : vector<1xf32> to vector<1x1x1xf32>
    %176 = vector.extract %175[0, 0, 0] : f32 from vector<1x1x1xf32>
    %cst_74 = arith.constant 9.765625E-4 : f32
    %177 = arith.mulf %176, %cst_74 : f32
    %cst_75 = arith.constant 9.99999974E-6 : f32
    %178 = arith.addf %177, %cst_75 : f32
    %179 = math.rsqrt %178 : f32
    %180 = arith.mulf %179, %118 : f32
    %181 = vector.broadcast %180 : f32 to vector<2x512xf32>
    %182 = arith.mulf %171, %181 : vector<2x512xf32>
    %183 = vector.broadcast %119 : f32 to vector<2x512xf32>
    %184 = arith.addf %182, %183 : vector<2x512xf32>
    %cst_76 = arith.constant 0.000000e+00 : f32
    %185 = vector.broadcast %cst_76 : f32 to vector<2x512xf32>
    %186 = arith.cmpf ogt, %184, %185 : vector<2x512xf32>
    %cst_77 = arith.constant 2.000000e-01 : f32
    %187 = vector.broadcast %cst_77 : f32 to vector<2x512xf32>
    %188 = arith.mulf %187, %184 : vector<2x512xf32>
    %189 = arith.select %186, %184, %188 : vector<2x512xi1>, vector<2x512xf32>
    %190 = arith.truncf %189 : vector<2x512xf32> to vector<2x512xbf16>
    %c0_78 = arith.constant 0 : index
    %c0_79 = arith.constant 0 : index
    %191 = vector.load %arg7[%c0_78, %c0_79] : memref<512x256xbf16, #tpu.memory_space<vmem>>, vector<512x256xbf16>
    %cst_80 = arith.constant dense<0.000000e+00> : vector<2x256xf32>
    %192 = tpu.matmul %190, %191, %cst_80 {dimension_numbers = #tpu.dot_dimension_numbers<[1], [0], [0], [1], [0, 0, 1, 1], [], []>} : vector<2x512xbf16>, vector<512x256xbf16>, vector<2x256xf32> -> vector<2x256xf32>
    %c0_81 = arith.constant 0 : index
    %c0_82 = arith.constant 0 : index
    %193 = vector.load %arg8[%c0_81, %c0_82] : memref<1x256xf32, #tpu.memory_space<vmem>>, vector<1x256xf32>
    %194 = vector.broadcast %193 : vector<1x256xf32> to vector<2x256xf32>
    %195 = arith.addf %192, %194 : vector<2x256xf32>
    %196 = vector.shape_cast %195 : vector<2x256xf32> to vector<1x2x256xf32>
    %cst_83 = arith.constant dense<0.000000e+00> : vector<1xf32>
    %197 = vector.multi_reduction <add>, %196, %cst_83 [1, 2] : vector<1x2x256xf32> to vector<1xf32>
    %198 = vector.shape_cast %197 : vector<1xf32> to vector<1x1x1xf32>
    %199 = vector.extract %198[0, 0, 0] : f32 from vector<1x1x1xf32>
    %cst_84 = arith.constant 0.001953125 : f32
    %200 = arith.mulf %199, %cst_84 : f32
    %201 = vector.broadcast %200 : f32 to vector<2x256xf32>
    %202 = arith.subf %195, %201 : vector<2x256xf32>
    %203 = arith.mulf %202, %202 : vector<2x256xf32>
    %204 = vector.shape_cast %203 : vector<2x256xf32> to vector<1x2x256xf32>
    %cst_85 = arith.constant dense<0.000000e+00> : vector<1xf32>
    %205 = vector.multi_reduction <add>, %204, %cst_85 [1, 2] : vector<1x2x256xf32> to vector<1xf32>
    %206 = vector.shape_cast %205 : vector<1xf32> to vector<1x1x1xf32>
    %207 = vector.extract %206[0, 0, 0] : f32 from vector<1x1x1xf32>
    %cst_86 = arith.constant 0.001953125 : f32
    %208 = arith.mulf %207, %cst_86 : f32
    %cst_87 = arith.constant 9.99999974E-6 : f32
    %209 = arith.addf %208, %cst_87 : f32
    %210 = math.rsqrt %209 : f32
    %211 = arith.mulf %210, %118 : f32
    %212 = vector.broadcast %211 : f32 to vector<2x256xf32>
    %213 = arith.mulf %202, %212 : vector<2x256xf32>
    %214 = vector.broadcast %119 : f32 to vector<2x256xf32>
    %215 = arith.addf %213, %214 : vector<2x256xf32>
    %cst_88 = arith.constant 0.000000e+00 : f32
    %216 = vector.broadcast %cst_88 : f32 to vector<2x256xf32>
    %217 = arith.cmpf ogt, %215, %216 : vector<2x256xf32>
    %cst_89 = arith.constant 2.000000e-01 : f32
    %218 = vector.broadcast %cst_89 : f32 to vector<2x256xf32>
    %219 = arith.mulf %218, %215 : vector<2x256xf32>
    %220 = arith.select %217, %215, %219 : vector<2x256xi1>, vector<2x256xf32>
    %c0_90 = arith.constant 0 : index
    %c0_91 = arith.constant 0 : index
    %221 = vector.load %arg9[%c0_90, %c0_91] : memref<1x256xf32, #tpu.memory_space<vmem>>, vector<1x256xf32>
    %222 = vector.broadcast %221 : vector<1x256xf32> to vector<2x256xf32>
    %223 = arith.mulf %220, %222 : vector<2x256xf32>
    %cst_92 = arith.constant dense<0.000000e+00> : vector<2xf32>
    %224 = vector.multi_reduction <add>, %223, %cst_92 [1] : vector<2x256xf32> to vector<2xf32>
    %225 = vector.shape_cast %224 : vector<2xf32> to vector<2x1xf32>
    %226 = vector.broadcast %2 : f32 to vector<2x1xf32>
    %227 = arith.addf %225, %226 : vector<2x1xf32>
    %228 = arith.negf %227 : vector<2x1xf32>
    %229 = math.exp %228 : vector<2x1xf32>
    %cst_93 = arith.constant 1.000000e+00 : f32
    %230 = vector.broadcast %cst_93 : f32 to vector<2x1xf32>
    %231 = arith.addf %230, %229 : vector<2x1xf32>
    %232 = arith.divf %230, %231 : vector<2x1xf32>
    %233 = tpu.concatenate %117, %232 in 1 : vector<2x1xf32>, vector<2x1xf32> -> vector<2x2xf32>
    %c0_94 = arith.constant 0 : index
    %c0_95 = arith.constant 0 : index
    %234 = vector.load %arg13[%c0_94, %c0_95] : memref<2x2xf32, #tpu.memory_space<vmem>>, vector<2x2xf32>
    tpu.vector_store %arg13[%c0_94, %c0_95], %233 {strides = array<i32>} : memref<2x2xf32, #tpu.memory_space<vmem>>, vector<2x2xf32>,
    return
  }
}

</mosaic_0001>

<llo_original>
// kernel: tpu_custom_call.1
$region0: #{tpu_custom_call.1}
  #allocation0 [shape = 'u32[]', space=smem, size = 0x4, offset = 0x4, fixed_abs, tag = 'smem constant byte address 0x4 - core index']
  #allocation1 [shape = 'u32[144,128]{1,0:T(1,128)}', space=vmem, size = 0x12000, scoped, tag = 'internal scratch']
  #allocation2 [shape = 'f32[1]{0:T(128)S(6)}', space=smem, size = 0x200, scoped, tag = 'scoped memory for tpu_custom_call.1']
  %s0 = inlined_call_operand.hbm [shape: f32[2,2,592], index: 0, kind: input, shape index: {}]
  %s1 = inlined_call_operand.hbm [shape: f32[2,2,256], index: 1, kind: input, shape index: {}]
  %s2 = inlined_call_operand.hbm [shape: bf16[592,1024], index: 2, kind: input, shape index: {}]
  %s3 = inlined_call_operand.hbm [shape: bf16[256,1024], index: 3, kind: input, shape index: {}]
  %s4 = inlined_call_operand.hbm [shape: f32[1,1024], index: 4, kind: input, shape index: {}]
  %s5 = inlined_call_operand.hbm [shape: bf16[1024,512], index: 5, kind: input, shape index: {}]
  %s6 = inlined_call_operand.hbm [shape: f32[1,512], index: 6, kind: input, shape index: {}]
  %s7 = inlined_call_operand.hbm [shape: bf16[512,256], index: 7, kind: input, shape index: {}]
  %s8 = inlined_call_operand.hbm [shape: f32[1,256], index: 8, kind: input, shape index: {}]
  %s9 = inlined_call_operand.hbm [shape: f32[1,256], index: 9, kind: input, shape index: {}]
  %s10 = inlined_call_operand.hbm [shape: f32[2], index: 10, kind: input, shape index: {}]
  %s11 = inlined_call_operand.hbm [shape: f32[2], index: 11, kind: input, shape index: {}]
  %s12 = inlined_call_operand.<no memory space> [shape: f32[1], index: 12, kind: input, shape index: {}]
  %s13 = inlined_call_operand.hbm [shape: f32[2,2], index: 13, kind: output, shape index: {}]
  %s14 = sld [smem:[#allocation0]]
  $region110: #{tpu_custom_call.1} parent=0
    _
  %s16 = ssub.s32 1, %s14
  %s17 = scalar_select 0, %s16, %s14
  %18 = sst [smem:[#allocation2]] %s12
  $region1: #{tpu_custom_call.1} parent=0
    #allocation3 [shape = 'u8[10240]{0}', space=vmem, size = 0x2800, scoped, tag = 'input window, operand 0, single buffered']
    #allocation4 [shape = 's32[1]{0}', space=sflag, size = 0x4, scoped, tag = 'scoped memory for tpu_custom_call.1']
    #allocation5 [shape = 's32[1]{0}', space=sflag, size = 0x4, scoped, tag = 'scoped memory for tpu_custom_call.1']
    #allocation6 [shape = 's32[1]{0}', space=sflag, size = 0x4, scoped, tag = 'scoped memory for tpu_custom_call.1']
    #allocation7 [shape = 'u8[4096]{0}', space=vmem, size = 0x1000, scoped, tag = 'input window, operand 1, single buffered']
    #allocation8 [shape = 's32[1]{0}', space=sflag, size = 0x4, scoped, tag = 'scoped memory for tpu_custom_call.1']
    #allocation9 [shape = 'u8[1212416]{0}', space=vmem, size = 0x128000, scoped, tag = 'input window, operand 2, single buffered']
    #allocation10 [shape = 'u8[524288]{0}', space=vmem, size = 0x80000, scoped, tag = 'input window, operand 3, single buffered']
    #allocation11 [shape = 's32[1]{0}', space=sflag, size = 0x4, scoped, tag = 'scoped memory for tpu_custom_call.1']
    #allocation12 [shape = 'u8[4096]{0}', space=vmem, size = 0x1000, scoped, tag = 'input window, operand 4, single buffered']
    #allocation13 [shape = 'u8[1048576]{0}', space=vmem, size = 0x100000, scoped, tag = 'input window, operand 5, single buffered']
    #allocation14 [shape = 's32[1]{0}', space=sflag, size = 0x4, scoped, tag = 'scoped memory for tpu_custom_call.1']
    #allocation15 [shape = 'u8[2048]{0}', space=vmem, size = 0x800, scoped, tag = 'input window, operand 6, single buffered']
    #allocation16 [shape = 'u8[262144]{0}', space=vmem, size = 0x40000, scoped, tag = 'input window, operand 7, single buffered']
    #allocation17 [shape = 's32[1]{0}', space=sflag, size = 0x4, scoped, tag = 'scoped memory for tpu_custom_call.1']
    #allocation18 [shape = 'u8[1024]{0}', space=vmem, size = 0x400, scoped, tag = 'input window, operand 8, single buffered']
    #allocation19 [shape = 'u8[1024]{0}', space=vmem, size = 0x400, scoped, tag = 'input window, operand 9, single buffered']
    #allocation20 [shape = 's32[1]{0}', space=sflag, size = 0x4, scoped, tag = 'scoped memory for tpu_custom_call.1']
    #allocation21 [shape = 'u8[512]{0}', space=smem, size = 0x200, scoped, tag = 'input window, operand 10, single buffered']
    #allocation22 [shape = 'u8[512]{0}', space=smem, size = 0x200, scoped, tag = 'input window, operand 11, single buffered']
    #allocation23 [shape = 's32[1]{0}', space=sflag, size = 0x4, scoped, tag = 'scoped memory for tpu_custom_call.1']
    #allocation24 [shape = 'u8[1024]{0}', space=vmem, size = 0x400, scoped, tag = 'output window, operand 0, single buffered']
    %19 = vsyncpa [#allocation4], 0
    %20 = vsyncpa [#allocation8], 0
    %21 = vsyncpa [#allocation11], 0
    %22 = vsyncpa [#allocation14], 0
    %23 = vsyncpa [#allocation17], 0
    %24 = vsyncpa [#allocation20], 0
    %25 = vsyncpa [#allocation6], 0
    %26 = vsyncpa [#allocation23], 0
    %27 = vsyncpa [#allocation5], 0
    // Predicated region
    $region2: #{tpu_custom_call.1} parent=1 // pred_check
      _
    $region3: #{tpu_custom_call.1} parent=1 // pred_check_branch
      %29 = sbr.rel (0) target = $region5
    $region4: #{tpu_custom_call.1} parent=1 // pred_region
      %s31 = ssub.s32 320, 320
      %32 = vsyncadd [#allocation4], %s31
      %s33 = sshll.u32 [#allocation3], 4
      %s34 = int_to_ptr.vmem [resolvable:$true] %s33
      %39 = dma.hbm_to_vmem [thread:$0]  %s0, 320, %s34, [#allocation4], 160, 160, 10
    $region5: #{tpu_custom_call.1} parent=1 // pred_fallthru
      _
    // Predicated region
    $region6: #{tpu_custom_call.1} parent=1 // pred_check
      _
    $region7: #{tpu_custom_call.1} parent=1 // pred_check_branch
      %41 = sbr.rel (0) target = $region9
    $region8: #{tpu_custom_call.1} parent=1 // pred_region
      %s43 = ssub.s32 128, 128
      %44 = vsyncadd [#allocation8], %s43
      %s45 = sshll.u32 [#allocation7], 4
      %s46 = int_to_ptr.vmem [resolvable:$true] %s45
      %51 = dma.hbm_to_vmem [thread:$0]  %s1, 128, %s46, [#allocation8], 64, 64, 4
    $region9: #{tpu_custom_call.1} parent=1 // pred_fallthru
      _
    // Predicated region
    $region10: #{tpu_custom_call.1} parent=1 // pred_check
      _
    $region11: #{tpu_custom_call.1} parent=1 // pred_check_branch
      %53 = sbr.rel (0) target = $region13
    $region12: #{tpu_custom_call.1} parent=1 // pred_region
      %s55 = ssub.s32 37888, 37888
      %56 = vsyncadd [#allocation8], %s55
      %s57 = sshll.u32 [#allocation9], 4
      %s58 = int_to_ptr.vmem [resolvable:$true] %s57
      %63 = dma.hbm_to_vmem [thread:$0]  %s2, 37888, %s58, [#allocation8], 512, 512, 32
    $region13: #{tpu_custom_call.1} parent=1 // pred_fallthru
      _
    // Predicated region
    $region14: #{tpu_custom_call.1} parent=1 // pred_check
      _
    $region15: #{tpu_custom_call.1} parent=1 // pred_check_branch
      %65 = sbr.rel (0) target = $region17
    $region16: #{tpu_custom_call.1} parent=1 // pred_region
      %s67 = ssub.s32 16384, 16384
      %68 = vsyncadd [#allocation11], %s67
      %s69 = sshll.u32 [#allocation10], 4
      %s70 = int_to_ptr.vmem [resolvable:$true] %s69
      %75 = dma.hbm_to_vmem [thread:$0]  %s3, 16384, %s70, [#allocation11], 512, 512, 32
    $region17: #{tpu_custom_call.1} parent=1 // pred_fallthru
      _
    // Predicated region
    $region18: #{tpu_custom_call.1} parent=1 // pred_check
      _
    $region19: #{tpu_custom_call.1} parent=1 // pred_check_branch
      %77 = sbr.rel (0) target = $region21
    $region20: #{tpu_custom_call.1} parent=1 // pred_region
      %s79 = ssub.s32 128, 128
      %80 = vsyncadd [#allocation11], %s79
      %s82 = sshll.u32 [#allocation12], 4
      %s83 = int_to_ptr.vmem [resolvable:$true] %s82
      %85 = dma.hbm_to_vmem [thread:$0]  %s4, 128, %s83, [#allocation11]
    $region21: #{tpu_custom_call.1} parent=1 // pred_fallthru
      _
    // Predicated region
    $region22: #{tpu_custom_call.1} parent=1 // pred_check
      _
    $region23: #{tpu_custom_call.1} parent=1 // pred_check_branch
      %87 = sbr.rel (0) target = $region25
    $region24: #{tpu_custom_call.1} parent=1 // pred_region
      %s89 = ssub.s32 32768, 32768
      %90 = vsyncadd [#allocation14], %s89
      %s91 = sshll.u32 [#allocation13], 4
      %s92 = int_to_ptr.vmem [resolvable:$true] %s91
      %97 = dma.hbm_to_vmem [thread:$0]  %s5, 32768, %s92, [#allocation14], 256, 256, 16
    $region25: #{tpu_custom_call.1} parent=1 // pred_fallthru
      _
    // Predicated region
    $region26: #{tpu_custom_call.1} parent=1 // pred_check
      _
    $region27: #{tpu_custom_call.1} parent=1 // pred_check_branch
      %99 = sbr.rel (0) target = $region29
    $region28: #{tpu_custom_call.1} parent=1 // pred_region
      %s101 = ssub.s32 64, 64
      %102 = vsyncadd [#allocation14], %s101
      %s104 = sshll.u32 [#allocation15], 4
      %s105 = int_to_ptr.vmem [resolvable:$true] %s104
      %107 = dma.hbm_to_vmem [thread:$0]  %s6, 64, %s105, [#allocation14]
    $region29: #{tpu_custom_call.1} parent=1 // pred_fallthru
      _
    // Predicated region
    $region30: #{tpu_custom_call.1} parent=1 // pred_check
      _
    $region31: #{tpu_custom_call.1} parent=1 // pred_check_branch
      %109 = sbr.rel (0) target = $region33
    $region32: #{tpu_custom_call.1} parent=1 // pred_region
      %s111 = ssub.s32 8192, 8192
      %112 = vsyncadd [#allocation17], %s111
      %s113 = sshll.u32 [#allocation16], 4
      %s114 = int_to_ptr.vmem [resolvable:$true] %s113
      %119 = dma.hbm_to_vmem [thread:$0]  %s7, 8192, %s114, [#allocation17], 128, 128, 8
    $region33: #{tpu_custom_call.1} parent=1 // pred_fallthru
      _
    // Predicated region
    $region34: #{tpu_custom_call.1} parent=1 // pred_check
      _
    $region35: #{tpu_custom_call.1} parent=1 // pred_check_branch
      %121 = sbr.rel (0) target = $region37
    $region36: #{tpu_custom_call.1} parent=1 // pred_region
      %s123 = ssub.s32 32, 32
      %124 = vsyncadd [#allocation17], %s123
      %s126 = sshll.u32 [#allocation18], 4
      %s127 = int_to_ptr.vmem [resolvable:$true] %s126
      %129 = dma.hbm_to_vmem [thread:$0]  %s8, 32, %s127, [#allocation17]
    $region37: #{tpu_custom_call.1} parent=1 // pred_fallthru
      _
    // Predicated region
    $region38: #{tpu_custom_call.1} parent=1 // pred_check
      _
    $region39: #{tpu_custom_call.1} parent=1 // pred_check_branch
      %131 = sbr.rel (0) target = $region41
    $region40: #{tpu_custom_call.1} parent=1 // pred_region
      %s133 = ssub.s32 32, 32
      %134 = vsyncadd [#allocation20], %s133
      %s136 = sshll.u32 [#allocation19], 4
      %s137 = int_to_ptr.vmem [resolvable:$true] %s136
      %139 = dma.hbm_to_vmem [thread:$0]  %s9, 32, %s137, [#allocation20]
    $region41: #{tpu_custom_call.1} parent=1 // pred_fallthru
      _
    // Predicated region
    $region42: #{tpu_custom_call.1} parent=1 // pred_check
      _
    $region43: #{tpu_custom_call.1} parent=1 // pred_check_branch
      %141 = sbr.rel (0) target = $region45
    $region44: #{tpu_custom_call.1} parent=1 // pred_region
      %s143 = ssub.s32 16, 16
      %144 = vsyncadd [#allocation6], %s143
      %147 = dma.hbm_to_smem %s10, 16, [#allocation21], [#allocation6]
    $region45: #{tpu_custom_call.1} parent=1 // pred_fallthru
      _
    // Predicated region
    $region46: #{tpu_custom_call.1} parent=1 // pred_check
      _
    $region47: #{tpu_custom_call.1} parent=1 // pred_check_branch
      %149 = sbr.rel (0) target = $region49
    $region48: #{tpu_custom_call.1} parent=1 // pred_region
      %s151 = ssub.s32 16, 16
      %152 = vsyncadd [#allocation23], %s151
      %155 = dma.hbm_to_smem %s11, 16, [#allocation22], [#allocation23]
    $region49: #{tpu_custom_call.1} parent=1 // pred_fallthru
      _
    // Predicated region
    $region50: #{tpu_custom_call.1} parent=1 // pred_check
      _
    $region51: #{tpu_custom_call.1} parent=1 // pred_check_branch
      %157 = sbr.rel (0) target = $region53
    $region52: #{tpu_custom_call.1} parent=1 // pred_region
      _
    $region53: #{tpu_custom_call.1} parent=1 // pred_fallthru
      _
    // Predicated region
    $region54: #{tpu_custom_call.1} parent=1 // pred_check
      _
    $region55: #{tpu_custom_call.1} parent=1 // pred_check_branch
      %159 = sbr.rel (0) target = $region57
    $region56: #{tpu_custom_call.1} parent=1 // pred_region
      %160 = dma.done [#allocation4], 320
    $region57: #{tpu_custom_call.1} parent=1 // pred_fallthru
      _
    // Predicated region
    $region58: #{tpu_custom_call.1} parent=1 // pred_check
      _
    $region59: #{tpu_custom_call.1} parent=1 // pred_check_branch
      %162 = sbr.rel (0) target = $region61
    $region60: #{tpu_custom_call.1} parent=1 // pred_region
      %163 = dma.done [#allocation8], 128
    $region61: #{tpu_custom_call.1} parent=1 // pred_fallthru
      _
    // Predicated region
    $region62: #{tpu_custom_call.1} parent=1 // pred_check
      _
    $region63: #{tpu_custom_call.1} parent=1 // pred_check_branch
      %165 = sbr.rel (0) target = $region65
    $region64: #{tpu_custom_call.1} parent=1 // pred_region
      %166 = dma.done [#allocation8], 37888
    $region65: #{tpu_custom_call.1} parent=1 // pred_fallthru
      _
    // Predicated region
    $region66: #{tpu_custom_call.1} parent=1 // pred_check
      _
    $region67: #{tpu_custom_call.1} parent=1 // pred_check_branch
      %168 = sbr.rel (0) target = $region69
    $region68: #{tpu_custom_call.1} parent=1 // pred_region
      %169 = dma.done [#allocation11], 16384
    $region69: #{tpu_custom_call.1} parent=1 // pred_fallthru
      _
    // Predicated region
    $region70: #{tpu_custom_call.1} parent=1 // pred_check
      _
    $region71: #{tpu_custom_call.1} parent=1 // pred_check_branch
      %171 = sbr.rel (0) target = $region73
    $region72: #{tpu_custom_call.1} parent=1 // pred_region
      %172 = dma.done [#allocation11], 128
    $region73: #{tpu_custom_call.1} parent=1 // pred_fallthru
      _
    // Predicated region
    $region74: #{tpu_custom_call.1} parent=1 // pred_check
      _
    $region75: #{tpu_custom_call.1} parent=1 // pred_check_branch
      %174 = sbr.rel (0) target = $region77
    $region76: #{tpu_custom_call.1} parent=1 // pred_region
      %175 = dma.done [#allocation14], 32768
    $region77: #{tpu_custom_call.1} parent=1 // pred_fallthru
      _
    // Predicated region
    $region78: #{tpu_custom_call.1} parent=1 // pred_check
      _
    $region79: #{tpu_custom_call.1} parent=1 // pred_check_branch
      %177 = sbr.rel (0) target = $region81
    $region80: #{tpu_custom_call.1} parent=1 // pred_region
      %178 = dma.done [#allocation14], 64
    $region81: #{tpu_custom_call.1} parent=1 // pred_fallthru
      _
    // Predicated region
    $region82: #{tpu_custom_call.1} parent=1 // pred_check
      _
    $region83: #{tpu_custom_call.1} parent=1 // pred_check_branch
      %180 = sbr.rel (0) target = $region85
    $region84: #{tpu_custom_call.1} parent=1 // pred_region
      %181 = dma.done [#allocation17], 8192
    $region85: #{tpu_custom_call.1} parent=1 // pred_fallthru
      _
    // Predicated region
    $region86: #{tpu_custom_call.1} parent=1 // pred_check
      _
    $region87: #{tpu_custom_call.1} parent=1 // pred_check_branch
      %183 = sbr.rel (0) target = $region89
    $region88: #{tpu_custom_call.1} parent=1 // pred_region
      %184 = dma.done [#allocation17], 32
    $region89: #{tpu_custom_call.1} parent=1 // pred_fallthru
      _
    // Predicated region
    $region90: #{tpu_custom_call.1} parent=1 // pred_check
      _
    $region91: #{tpu_custom_call.1} parent=1 // pred_check_branch
      %186 = sbr.rel (0) target = $region93
    $region92: #{tpu_custom_call.1} parent=1 // pred_region
      %187 = dma.done [#allocation20], 32
    $region93: #{tpu_custom_call.1} parent=1 // pred_fallthru
      _
    // Predicated region
    $region94: #{tpu_custom_call.1} parent=1 // pred_check
      _
    $region95: #{tpu_custom_call.1} parent=1 // pred_check_branch
      %189 = sbr.rel (0) target = $region97
    $region96: #{tpu_custom_call.1} parent=1 // pred_region
      %190 = dma.done [#allocation6], 16
    $region97: #{tpu_custom_call.1} parent=1 // pred_fallthru
      _
    // Predicated region
    $region98: #{tpu_custom_call.1} parent=1 // pred_check
      _
    $region99: #{tpu_custom_call.1} parent=1 // pred_check_branch
      %192 = sbr.rel (0) target = $region101
    $region100: #{tpu_custom_call.1} parent=1 // pred_region
      %193 = dma.done [#allocation23], 16
    $region101: #{tpu_custom_call.1} parent=1 // pred_fallthru
      _
    %194 = sfence
    %v196 = vld [vmem:[#allocation3] sm:$0xff]
    %v197 = vld [vmem:[#allocation3 + $0x8] sm:$0x3]
    %v198 = vld [vmem:[#allocation3 + $0xa] sm:$0xff]
    %v199 = vld [vmem:[#allocation3 + $0x12] sm:$0x3]
    %v200 = vld [vmem:[#allocation7] sm:$0xf]
    %v201 = vld [vmem:[#allocation7 + $0x4] sm:$0xf]
    %s202 = sld [smem:[#allocation2]]
    %s203 = sld [smem:[#allocation21]]
    %s204 = sld [smem:[#allocation22]]
    %v209 = vlaneseq
    %v210 = vshrl.u32 %v209, 7
    %v211 = vsub.s32 0, %v210
    %v212 = vrot.slane %v196, %v211
    %v213 = vlaneseq
    %v214 = vshrl.u32 %v213, 7
    %v215 = vsub.s32 2, %v214
    %v216 = vrot.slane %v196, %v215
    %v217 = vlaneseq
    %v218 = vshrl.u32 %v217, 7
    %v219 = vsub.s32 4, %v218
    %v220 = vrot.slane %v196, %v219
    %v221 = vlaneseq
    %v222 = vshrl.u32 %v221, 7
    %v223 = vsub.s32 6, %v222
    %v224 = vrot.slane %v196, %v223
    %v225 = vlaneseq
    %v226 = vshrl.u32 %v225, 7
    %v227 = vsub.s32 0, %v226
    %v228 = vrot.slane %v197, %v227
    %v229 = vlaneseq
    %v230 = vshrl.u32 %v229, 7
    %v231 = vsub.s32 0, %v230
    %v232 = vrot.slane %v198, %v231
    %v233 = vlaneseq
    %v234 = vshrl.u32 %v233, 7
    %v235 = vsub.s32 2, %v234
    %v236 = vrot.slane %v198, %v235
    %v237 = vlaneseq
    %v238 = vshrl.u32 %v237, 7
    %v239 = vsub.s32 4, %v238
    %v240 = vrot.slane %v198, %v239
    %v241 = vlaneseq
    %v242 = vshrl.u32 %v241, 7
    %v243 = vsub.s32 6, %v242
    %v244 = vrot.slane %v198, %v243
    %v245 = vlaneseq
    %v246 = vshrl.u32 %v245, 7
    %v247 = vsub.s32 0, %v246
    %v248 = vrot.slane %v199, %v247
    %v259 = vpack.c.bf16 %v212, %v212
    %v260 = vpack.c.bf16 %v216, %v216
    %v261 = vpack.c.bf16 %v220, %v220
    %v262 = vpack.c.bf16 %v224, %v224
    %v263 = vpack.c.bf16 %v228, %v228
    %v264 = vpack.c.bf16 %v232, %v232
    %v265 = vpack.c.bf16 %v236, %v236
    %v266 = vpack.c.bf16 %v240, %v240
    %v267 = vpack.c.bf16 %v244, %v244
    %v268 = vpack.c.bf16 %v248, %v248
    %v269 = vld [vmem:[#allocation9] sm:$0xff]
    %v270 = vld [vmem:[#allocation9 + $0x8] sm:$0xff]
    %v271 = vld [vmem:[#allocation9 + $0x10] sm:$0xff]
    %v272 = vld [vmem:[#allocation9 + $0x18] sm:$0xff]
    %v273 = vld [vmem:[#allocation9 + $0x20] sm:$0xff]
    %v274 = vld [vmem:[#allocation9 + $0x28] sm:$0xff]
    %v275 = vld [vmem:[#allocation9 + $0x30] sm:$0xff]
    %v276 = vld [vmem:[#allocation9 + $0x38] sm:$0xff]
    %v277 = vld [vmem:[#allocation9 + $0x40] sm:$0xff]
    %v278 = vld [vmem:[#allocation9 + $0x48] sm:$0xff]
    %v279 = vld [vmem:[#allocation9 + $0x50] sm:$0xff]
    %v280 = vld [vmem:[#allocation9 + $0x58] sm:$0xff]
    %v281 = vld [vmem:[#allocation9 + $0x60] sm:$0xff]
    %v282 = vld [vmem:[#allocation9 + $0x68] sm:$0xff]
    %v283 = vld [vmem:[#allocation9 + $0x70] sm:$0xff]
    %v284 = vld [vmem:[#allocation9 + $0x78] sm:$0xff]
    %v285 = vld [vmem:[#allocation9 + $0x80] sm:$0xff]
    %v286 = vld [vmem:[#allocation9 + $0x88] sm:$0xff]
    %v287 = vld [vmem:[#allocation9 + $0x90] sm:$0xff]
    %v288 = vld [vmem:[#allocation9 + $0x98] sm:$0xff]
    %v289 = vld [vmem:[#allocation9 + $0xa0] sm:$0xff]
    %v290 = vld [vmem:[#allocation9 + $0xa8] sm:$0xff]
    %v291 = vld [vmem:[#allocation9 + $0xb0] sm:$0xff]
    %v292 = vld [vmem:[#allocation9 + $0xb8] sm:$0xff]
    %v293 = vld [vmem:[#allocation9 + $0xc0] sm:$0xff]
    %v294 = vld [vmem:[#allocation9 + $0xc8] sm:$0xff]
    %v295 = vld [vmem:[#allocation9 + $0xd0] sm:$0xff]
    %v296 = vld [vmem:[#allocation9 + $0xd8] sm:$0xff]
    %v297 = vld [vmem:[#allocation9 + $0xe0] sm:$0xff]
    %v298 = vld [vmem:[#allocation9 + $0xe8] sm:$0xff]
    %v299 = vld [vmem:[#allocation9 + $0xf0] sm:$0xff]
    %v300 = vld [vmem:[#allocation9 + $0xf8] sm:$0xff]
    %v301 = vld [vmem:[#allocation9 + $0x100] sm:$0xff]
    %v302 = vld [vmem:[#allocation9 + $0x108] sm:$0xff]
    %v303 = vld [vmem:[#allocation9 + $0x110] sm:$0xff]
    %v304 = vld [vmem:[#allocation9 + $0x118] sm:$0xff]
    %v305 = vld [vmem:[#allocation9 + $0x120] sm:$0xff]
    %v306 = vld [vmem:[#allocation9 + $0x128] sm:$0xff]
    %v307 = vld [vmem:[#allocation9 + $0x130] sm:$0xff]
    %v308 = vld [vmem:[#allocation9 + $0x138] sm:$0xff]
    %v309 = vld [vmem:[#allocation9 + $0x140] sm:$0xff]
    %v310 = vld [vmem:[#allocation9 + $0x148] sm:$0xff]
    %v311 = vld [vmem:[#allocation9 + $0x150] sm:$0xff]
    %v312 = vld [vmem:[#allocation9 + $0x158] sm:$0xff]
    %v313 = vld [vmem:[#allocation9 + $0x160] sm:$0xff]
    %v314 = vld [vmem:[#allocation9 + $0x168] sm:$0xff]
    %v315 = vld [vmem:[#allocation9 + $0x170] sm:$0xff]
    %v316 = vld [vmem:[#allocation9 + $0x178] sm:$0xff]
    %v317 = vld [vmem:[#allocation9 + $0x180] sm:$0xff]
    %v318 = vld [vmem:[#allocation9 + $0x188] sm:$0xff]
    %v319 = vld [vmem:[#allocation9 + $0x190] sm:$0xff]
    %v320 = vld [vmem:[#allocation9 + $0x198] sm:$0xff]
    %v321 = vld [vmem:[#allocation9 + $0x1a0] sm:$0xff]
    %v322 = vld [vmem:[#allocation9 + $0x1a8] sm:$0xff]
    %v323 = vld [vmem:[#allocation9 + $0x1b0] sm:$0xff]
    %v324 = vld [vmem:[#allocation9 + $0x1b8] sm:$0xff]
    %v325 = vld [vmem:[#allocation9 + $0x1c0] sm:$0xff]
    %v326 = vld [vmem:[#allocation9 + $0x1c8] sm:$0xff]
    %v327 = vld [vmem:[#allocation9 + $0x1d0] sm:$0xff]
    %v328 = vld [vmem:[#allocation9 + $0x1d8] sm:$0xff]
    %v329 = vld [vmem:[#allocation9 + $0x1e0] sm:$0xff]
    %v330 = vld [vmem:[#allocation9 + $0x1e8] sm:$0xff]
    %v331 = vld [vmem:[#allocation9 + $0x1f0] sm:$0xff]
    %v332 = vld [vmem:[#allocation9 + $0x1f8] sm:$0xff]
    %v333 = vld [vmem:[#allocation9 + $0x200] sm:$0xff]
    %v334 = vld [vmem:[#allocation9 + $0x208] sm:$0xff]
    %v335 = vld [vmem:[#allocation9 + $0x210] sm:$0xff]
    %v336 = vld [vmem:[#allocation9 + $0x218] sm:$0xff]
    %v337 = vld [vmem:[#allocation9 + $0x220] sm:$0xff]
    %v338 = vld [vmem:[#allocation9 + $0x228] sm:$0xff]
    %v339 = vld [vmem:[#allocation9 + $0x230] sm:$0xff]
    %v340 = vld [vmem:[#allocation9 + $0x238] sm:$0xff]
    %v341 = vld [vmem:[#allocation9 + $0x240] sm:$0xff]
    %v342 = vld [vmem:[#allocation9 + $0x248] sm:$0xff]
    %v343 = vld [vmem:[#allocation9 + $0x250] sm:$0xff]
    %v344 = vld [vmem:[#allocation9 + $0x258] sm:$0xff]
    %v345 = vld [vmem:[#allocation9 + $0x260] sm:$0xff]
    %v346 = vld [vmem:[#allocation9 + $0x268] sm:$0xff]
    %v347 = vld [vmem:[#allocation9 + $0x270] sm:$0xff]
    %v348 = vld [vmem:[#allocation9 + $0x278] sm:$0xff]
    %v349 = vld [vmem:[#allocation9 + $0x280] sm:$0xff]
    %v350 = vld [vmem:[#allocation9 + $0x288] sm:$0xff]
    %v351 = vld [vmem:[#allocation9 + $0x290] sm:$0xff]
    %v352 = vld [vmem:[#allocation9 + $0x298] sm:$0xff]
    %v353 = vld [vmem:[#allocation9 + $0x2a0] sm:$0xff]
    %v354 = vld [vmem:[#allocation9 + $0x2a8] sm:$0xff]
    %v355 = vld [vmem:[#allocation9 + $0x2b0] sm:$0xff]
    %v356 = vld [vmem:[#allocation9 + $0x2b8] sm:$0xff]
    %v357 = vld [vmem:[#allocation9 + $0x2c0] sm:$0xff]
    %v358 = vld [vmem:[#allocation9 + $0x2c8] sm:$0xff]
    %v359 = vld [vmem:[#allocation9 + $0x2d0] sm:$0xff]
    %v360 = vld [vmem:[#allocation9 + $0x2d8] sm:$0xff]
    %v361 = vld [vmem:[#allocation9 + $0x2e0] sm:$0xff]
    %v362 = vld [vmem:[#allocation9 + $0x2e8] sm:$0xff]
    %v363 = vld [vmem:[#allocation9 + $0x2f0] sm:$0xff]
    %v364 = vld [vmem:[#allocation9 + $0x2f8] sm:$0xff]
    %v365 = vld [vmem:[#allocation9 + $0x300] sm:$0xff]
    %v366 = vld [vmem:[#allocation9 + $0x308] sm:$0xff]
    %v367 = vld [vmem:[#allocation9 + $0x310] sm:$0xff]
    %v368 = vld [vmem:[#allocation9 + $0x318] sm:$0xff]
    %v369 = vld [vmem:[#allocation9 + $0x320] sm:$0xff]
    %v370 = vld [vmem:[#allocation9 + $0x328] sm:$0xff]
    %v371 = vld [vmem:[#allocation9 + $0x330] sm:$0xff]
    %v372 = vld [vmem:[#allocation9 + $0x338] sm:$0xff]
    %v373 = vld [vmem:[#allocation9 + $0x340] sm:$0xff]
    %v374 = vld [vmem:[#allocation9 + $0x348] sm:$0xff]
    %v375 = vld [vmem:[#allocation9 + $0x350] sm:$0xff]
    %v376 = vld [vmem:[#allocation9 + $0x358] sm:$0xff]
    %v377 = vld [vmem:[#allocation9 + $0x360] sm:$0xff]
    %v378 = vld [vmem:[#allocation9 + $0x368] sm:$0xff]
    %v379 = vld [vmem:[#allocation9 + $0x370] sm:$0xff]
    %v380 = vld [vmem:[#allocation9 + $0x378] sm:$0xff]
    %v381 = vld [vmem:[#allocation9 + $0x380] sm:$0xff]
    %v382 = vld [vmem:[#allocation9 + $0x388] sm:$0xff]
    %v383 = vld [vmem:[#allocation9 + $0x390] sm:$0xff]
    %v384 = vld [vmem:[#allocation9 + $0x398] sm:$0xff]
    %v385 = vld [vmem:[#allocation9 + $0x3a0] sm:$0xff]
    %v386 = vld [vmem:[#allocation9 + $0x3a8] sm:$0xff]
    %v387 = vld [vmem:[#allocation9 + $0x3b0] sm:$0xff]
    %v388 = vld [vmem:[#allocation9 + $0x3b8] sm:$0xff]
    %v389 = vld [vmem:[#allocation9 + $0x3c0] sm:$0xff]
    %v390 = vld [vmem:[#allocation9 + $0x3c8] sm:$0xff]
    %v391 = vld [vmem:[#allocation9 + $0x3d0] sm:$0xff]
    %v392 = vld [vmem:[#allocation9 + $0x3d8] sm:$0xff]
    %v393 = vld [vmem:[#allocation9 + $0x3e0] sm:$0xff]
    %v394 = vld [vmem:[#allocation9 + $0x3e8] sm:$0xff]
    %v395 = vld [vmem:[#allocation9 + $0x3f0] sm:$0xff]
    %v396 = vld [vmem:[#allocation9 + $0x3f8] sm:$0xff]
    %v397 = vld [vmem:[#allocation9 + $0x400] sm:$0xff]
    %v398 = vld [vmem:[#allocation9 + $0x408] sm:$0xff]
    %v399 = vld [vmem:[#allocation9 + $0x410] sm:$0xff]
    %v400 = vld [vmem:[#allocation9 + $0x418] sm:$0xff]
    %v401 = vld [vmem:[#allocation9 + $0x420] sm:$0xff]
    %v402 = vld [vmem:[#allocation9 + $0x428] sm:$0xff]
    %v403 = vld [vmem:[#allocation9 + $0x430] sm:$0xff]
    %v404 = vld [vmem:[#allocation9 + $0x438] sm:$0xff]
    %v405 = vld [vmem:[#allocation9 + $0x440] sm:$0xff]
    %v406 = vld [vmem:[#allocation9 + $0x448] sm:$0xff]
    %v407 = vld [vmem:[#allocation9 + $0x450] sm:$0xff]
    %v408 = vld [vmem:[#allocation9 + $0x458] sm:$0xff]
    %v409 = vld [vmem:[#allocation9 + $0x460] sm:$0xff]
    %v410 = vld [vmem:[#allocation9 + $0x468] sm:$0xff]
    %v411 = vld [vmem:[#allocation9 + $0x470] sm:$0xff]
    %v412 = vld [vmem:[#allocation9 + $0x478] sm:$0xff]
    %v413 = vld [vmem:[#allocation9 + $0x480] sm:$0xff]
    %v414 = vld [vmem:[#allocation9 + $0x488] sm:$0xff]
    %v415 = vld [vmem:[#allocation9 + $0x490] sm:$0xff]
    %v416 = vld [vmem:[#allocation9 + $0x498] sm:$0xff]
    %v417 = vld [vmem:[#allocation9 + $0x4a0] sm:$0xff]
    %v418 = vld [vmem:[#allocation9 + $0x4a8] sm:$0xff]
    %v419 = vld [vmem:[#allocation9 + $0x4b0] sm:$0xff]
    %v420 = vld [vmem:[#allocation9 + $0x4b8] sm:$0xff]
    %v421 = vld [vmem:[#allocation9 + $0x4c0] sm:$0xff]
    %v422 = vld [vmem:[#allocation9 + $0x4c8] sm:$0xff]
    %v423 = vld [vmem:[#allocation9 + $0x4d0] sm:$0xff]
    %v424 = vld [vmem:[#allocation9 + $0x4d8] sm:$0xff]
    %v425 = vld [vmem:[#allocation9 + $0x4e0] sm:$0xff]
    %v426 = vld [vmem:[#allocation9 + $0x4e8] sm:$0xff]
    %v427 = vld [vmem:[#allocation9 + $0x4f0] sm:$0xff]
    %v428 = vld [vmem:[#allocation9 + $0x4f8] sm:$0xff]
    %v429 = vld [vmem:[#allocation9 + $0x500] sm:$0xff]
    %v430 = vld [vmem:[#allocation9 + $0x508] sm:$0xff]
    %v431 = vld [vmem:[#allocation9 + $0x510] sm:$0xff]
    %v432 = vld [vmem:[#allocation9 + $0x518] sm:$0xff]
    %v433 = vld [vmem:[#allocation9 + $0x520] sm:$0xff]
    %v434 = vld [vmem:[#allocation9 + $0x528] sm:$0xff]
    %v435 = vld [vmem:[#allocation9 + $0x530] sm:$0xff]
    %v436 = vld [vmem:[#allocation9 + $0x538] sm:$0xff]
    %v437 = vld [vmem:[#allocation9 + $0x540] sm:$0xff]
    %v438 = vld [vmem:[#allocation9 + $0x548] sm:$0xff]
    %v439 = vld [vmem:[#allocation9 + $0x550] sm:$0xff]
    %v440 = vld [vmem:[#allocation9 + $0x558] sm:$0xff]
    %v441 = vld [vmem:[#allocation9 + $0x560] sm:$0xff]
    %v442 = vld [vmem:[#allocation9 + $0x568] sm:$0xff]
    %v443 = vld [vmem:[#allocation9 + $0x570] sm:$0xff]
    %v444 = vld [vmem:[#allocation9 + $0x578] sm:$0xff]
    %v445 = vld [vmem:[#allocation9 + $0x580] sm:$0xff]
    %v446 = vld [vmem:[#allocation9 + $0x588] sm:$0xff]
    %v447 = vld [vmem:[#allocation9 + $0x590] sm:$0xff]
    %v448 = vld [vmem:[#allocation9 + $0x598] sm:$0xff]
    %v449 = vld [vmem:[#allocation9 + $0x5a0] sm:$0xff]
    %v450 = vld [vmem:[#allocation9 + $0x5a8] sm:$0xff]
    %v451 = vld [vmem:[#allocation9 + $0x5b0] sm:$0xff]
    %v452 = vld [vmem:[#allocation9 + $0x5b8] sm:$0xff]
    %v453 = vld [vmem:[#allocation9 + $0x5c0] sm:$0xff]
    %v454 = vld [vmem:[#allocation9 + $0x5c8] sm:$0xff]
    %v455 = vld [vmem:[#allocation9 + $0x5d0] sm:$0xff]
    %v456 = vld [vmem:[#allocation9 + $0x5d8] sm:$0xff]
    %v457 = vld [vmem:[#allocation9 + $0x5e0] sm:$0xff]
    %v458 = vld [vmem:[#allocation9 + $0x5e8] sm:$0xff]
    %v459 = vld [vmem:[#allocation9 + $0x5f0] sm:$0xff]
    %v460 = vld [vmem:[#allocation9 + $0x5f8] sm:$0xff]
    %v461 = vld [vmem:[#allocation9 + $0x600] sm:$0xff]
    %v462 = vld [vmem:[#allocation9 + $0x608] sm:$0xff]
    %v463 = vld [vmem:[#allocation9 + $0x610] sm:$0xff]
    %v464 = vld [vmem:[#allocation9 + $0x618] sm:$0xff]
    %v465 = vld [vmem:[#allocation9 + $0x620] sm:$0xff]
    %v466 = vld [vmem:[#allocation9 + $0x628] sm:$0xff]
    %v467 = vld [vmem:[#allocation9 + $0x630] sm:$0xff]
    %v468 = vld [vmem:[#allocation9 + $0x638] sm:$0xff]
    %v469 = vld [vmem:[#allocation9 + $0x640] sm:$0xff]
    %v470 = vld [vmem:[#allocation9 + $0x648] sm:$0xff]
    %v471 = vld [vmem:[#allocation9 + $0x650] sm:$0xff]
    %v472 = vld [vmem:[#allocation9 + $0x658] sm:$0xff]
    %v473 = vld [vmem:[#allocation9 + $0x660] sm:$0xff]
    %v474 = vld [vmem:[#allocation9 + $0x668] sm:$0xff]
    %v475 = vld [vmem:[#allocation9 + $0x670] sm:$0xff]
    %v476 = vld [vmem:[#allocation9 + $0x678] sm:$0xff]
    %v477 = vld [vmem:[#allocation9 + $0x680] sm:$0xff]
    %v478 = vld [vmem:[#allocation9 + $0x688] sm:$0xff]
    %v479 = vld [vmem:[#allocation9 + $0x690] sm:$0xff]
    %v480 = vld [vmem:[#allocation9 + $0x698] sm:$0xff]
    %v481 = vld [vmem:[#allocation9 + $0x6a0] sm:$0xff]
    %v482 = vld [vmem:[#allocation9 + $0x6a8] sm:$0xff]
    %v483 = vld [vmem:[#allocation9 + $0x6b0] sm:$0xff]
    %v484 = vld [vmem:[#allocation9 + $0x6b8] sm:$0xff]
    %v485 = vld [vmem:[#allocation9 + $0x6c0] sm:$0xff]
    %v486 = vld [vmem:[#allocation9 + $0x6c8] sm:$0xff]
    %v487 = vld [vmem:[#allocation9 + $0x6d0] sm:$0xff]
    %v488 = vld [vmem:[#allocation9 + $0x6d8] sm:$0xff]
    %v489 = vld [vmem:[#allocation9 + $0x6e0] sm:$0xff]
    %v490 = vld [vmem:[#allocation9 + $0x6e8] sm:$0xff]
    %v491 = vld [vmem:[#allocation9 + $0x6f0] sm:$0xff]
    %v492 = vld [vmem:[#allocation9 + $0x6f8] sm:$0xff]
    %v493 = vld [vmem:[#allocation9 + $0x700] sm:$0xff]
    %v494 = vld [vmem:[#allocation9 + $0x708] sm:$0xff]
    %v495 = vld [vmem:[#allocation9 + $0x710] sm:$0xff]
    %v496 = vld [vmem:[#allocation9 + $0x718] sm:$0xff]
    %v497 = vld [vmem:[#allocation9 + $0x720] sm:$0xff]
    %v498 = vld [vmem:[#allocation9 + $0x728] sm:$0xff]
    %v499 = vld [vmem:[#allocation9 + $0x730] sm:$0xff]
    %v500 = vld [vmem:[#allocation9 + $0x738] sm:$0xff]
    %v501 = vld [vmem:[#allocation9 + $0x740] sm:$0xff]
    %v502 = vld [vmem:[#allocation9 + $0x748] sm:$0xff]
    %v503 = vld [vmem:[#allocation9 + $0x750] sm:$0xff]
    %v504 = vld [vmem:[#allocation9 + $0x758] sm:$0xff]
    %v505 = vld [vmem:[#allocation9 + $0x760] sm:$0xff]
    %v506 = vld [vmem:[#allocation9 + $0x768] sm:$0xff]
    %v507 = vld [vmem:[#allocation9 + $0x770] sm:$0xff]
    %v508 = vld [vmem:[#allocation9 + $0x778] sm:$0xff]
    %v509 = vld [vmem:[#allocation9 + $0x780] sm:$0xff]
    %v510 = vld [vmem:[#allocation9 + $0x788] sm:$0xff]
    %v511 = vld [vmem:[#allocation9 + $0x790] sm:$0xff]
    %v512 = vld [vmem:[#allocation9 + $0x798] sm:$0xff]
    %v513 = vld [vmem:[#allocation9 + $0x7a0] sm:$0xff]
    %v514 = vld [vmem:[#allocation9 + $0x7a8] sm:$0xff]
    %v515 = vld [vmem:[#allocation9 + $0x7b0] sm:$0xff]
    %v516 = vld [vmem:[#allocation9 + $0x7b8] sm:$0xff]
    %v517 = vld [vmem:[#allocation9 + $0x7c0] sm:$0xff]
    %v518 = vld [vmem:[#allocation9 + $0x7c8] sm:$0xff]
    %v519 = vld [vmem:[#allocation9 + $0x7d0] sm:$0xff]
    %v520 = vld [vmem:[#allocation9 + $0x7d8] sm:$0xff]
    %v521 = vld [vmem:[#allocation9 + $0x7e0] sm:$0xff]
    %v522 = vld [vmem:[#allocation9 + $0x7e8] sm:$0xff]
    %v523 = vld [vmem:[#allocation9 + $0x7f0] sm:$0xff]
    %v524 = vld [vmem:[#allocation9 + $0x7f8] sm:$0xff]
    %v525 = vld [vmem:[#allocation9 + $0x800] sm:$0xff]
    %v526 = vld [vmem:[#allocation9 + $0x808] sm:$0xff]
    %v527 = vld [vmem:[#allocation9 + $0x810] sm:$0xff]
    %v528 = vld [vmem:[#allocation9 + $0x818] sm:$0xff]
    %v529 = vld [vmem:[#allocation9 + $0x820] sm:$0xff]
    %v530 = vld [vmem:[#allocation9 + $0x828] sm:$0xff]
    %v531 = vld [vmem:[#allocation9 + $0x830] sm:$0xff]
    %v532 = vld [vmem:[#allocation9 + $0x838] sm:$0xff]
    %v533 = vld [vmem:[#allocation9 + $0x840] sm:$0xff]
    %v534 = vld [vmem:[#allocation9 + $0x848] sm:$0xff]
    %v535 = vld [vmem:[#allocation9 + $0x850] sm:$0xff]
    %v536 = vld [vmem:[#allocation9 + $0x858] sm:$0xff]
    %v537 = vld [vmem:[#allocation9 + $0x860] sm:$0xff]
    %v538 = vld [vmem:[#allocation9 + $0x868] sm:$0xff]
    %v539 = vld [vmem:[#allocation9 + $0x870] sm:$0xff]
    %v540 = vld [vmem:[#allocation9 + $0x878] sm:$0xff]
    %v541 = vld [vmem:[#allocation9 + $0x880] sm:$0xff]
    %v542 = vld [vmem:[#allocation9 + $0x888] sm:$0xff]
    %v543 = vld [vmem:[#allocation9 + $0x890] sm:$0xff]
    %v544 = vld [vmem:[#allocation9 + $0x898] sm:$0xff]
    %v545 = vld [vmem:[#allocation9 + $0x8a0] sm:$0xff]
    %v546 = vld [vmem:[#allocation9 + $0x8a8] sm:$0xff]
    %v547 = vld [vmem:[#allocation9 + $0x8b0] sm:$0xff]
    %v548 = vld [vmem:[#allocation9 + $0x8b8] sm:$0xff]
    %v549 = vld [vmem:[#allocation9 + $0x8c0] sm:$0xff]
    %v550 = vld [vmem:[#allocation9 + $0x8c8] sm:$0xff]
    %v551 = vld [vmem:[#allocation9 + $0x8d0] sm:$0xff]
    %v552 = vld [vmem:[#allocation9 + $0x8d8] sm:$0xff]
    %v553 = vld [vmem:[#allocation9 + $0x8e0] sm:$0xff]
    %v554 = vld [vmem:[#allocation9 + $0x8e8] sm:$0xff]
    %v555 = vld [vmem:[#allocation9 + $0x8f0] sm:$0xff]
    %v556 = vld [vmem:[#allocation9 + $0x8f8] sm:$0xff]
    %v557 = vld [vmem:[#allocation9 + $0x900] sm:$0xff]
    %v558 = vld [vmem:[#allocation9 + $0x908] sm:$0xff]
    %v559 = vld [vmem:[#allocation9 + $0x910] sm:$0xff]
    %v560 = vld [vmem:[#allocation9 + $0x918] sm:$0xff]
    %v561 = vld [vmem:[#allocation9 + $0x920] sm:$0xff]
    %v562 = vld [vmem:[#allocation9 + $0x928] sm:$0xff]
    %v563 = vld [vmem:[#allocation9 + $0x930] sm:$0xff]
    %v564 = vld [vmem:[#allocation9 + $0x938] sm:$0xff]
    %v567 = vlaneseq
    %v568 = vshrl.u32 %v567, 7
    %v569 = vsub.s32 0, %v568
    %v570 = vrot.slane %v200, %v569
    %v571 = vlaneseq
    %v572 = vshrl.u32 %v571, 7
    %v573 = vsub.s32 2, %v572
    %v574 = vrot.slane %v200, %v573
    %v575 = vlaneseq
    %v576 = vshrl.u32 %v575, 7
    %v577 = vsub.s32 0, %v576
    %v578 = vrot.slane %v201, %v577
    %v579 = vlaneseq
    %v580 = vshrl.u32 %v579, 7
    %v581 = vsub.s32 2, %v580
    %v582 = vrot.slane %v201, %v581
    %v587 = vpack.c.bf16 %v570, %v570
    %v588 = vpack.c.bf16 %v574, %v574
    %v589 = vpack.c.bf16 %v578, %v578
    %v590 = vpack.c.bf16 %v582, %v582
    %v591 = vld [vmem:[#allocation10] sm:$0xff]
    %v592 = vld [vmem:[#allocation10 + $0x8] sm:$0xff]
    %v593 = vld [vmem:[#allocation10 + $0x10] sm:$0xff]
    %v594 = vld [vmem:[#allocation10 + $0x18] sm:$0xff]
    %v595 = vld [vmem:[#allocation10 + $0x20] sm:$0xff]
    %v596 = vld [vmem:[#allocation10 + $0x28] sm:$0xff]
    %v597 = vld [vmem:[#allocation10 + $0x30] sm:$0xff]
    %v598 = vld [vmem:[#allocation10 + $0x38] sm:$0xff]
    %v599 = vld [vmem:[#allocation10 + $0x40] sm:$0xff]
    %v600 = vld [vmem:[#allocation10 + $0x48] sm:$0xff]
    %v601 = vld [vmem:[#allocation10 + $0x50] sm:$0xff]
    %v602 = vld [vmem:[#allocation10 + $0x58] sm:$0xff]
    %v603 = vld [vmem:[#allocation10 + $0x60] sm:$0xff]
    %v604 = vld [vmem:[#allocation10 + $0x68] sm:$0xff]
    %v605 = vld [vmem:[#allocation10 + $0x70] sm:$0xff]
    %v606 = vld [vmem:[#allocation10 + $0x78] sm:$0xff]
    %v607 = vld [vmem:[#allocation10 + $0x80] sm:$0xff]
    %v608 = vld [vmem:[#allocation10 + $0x88] sm:$0xff]
    %v609 = vld [vmem:[#allocation10 + $0x90] sm:$0xff]
    %v610 = vld [vmem:[#allocation10 + $0x98] sm:$0xff]
    %v611 = vld [vmem:[#allocation10 + $0xa0] sm:$0xff]
    %v612 = vld [vmem:[#allocation10 + $0xa8] sm:$0xff]
    %v613 = vld [vmem:[#allocation10 + $0xb0] sm:$0xff]
    %v614 = vld [vmem:[#allocation10 + $0xb8] sm:$0xff]
    %v615 = vld [vmem:[#allocation10 + $0xc0] sm:$0xff]
    %v616 = vld [vmem:[#allocation10 + $0xc8] sm:$0xff]
    %v617 = vld [vmem:[#allocation10 + $0xd0] sm:$0xff]
    %v618 = vld [vmem:[#allocation10 + $0xd8] sm:$0xff]
    %v619 = vld [vmem:[#allocation10 + $0xe0] sm:$0xff]
    %v620 = vld [vmem:[#allocation10 + $0xe8] sm:$0xff]
    %v621 = vld [vmem:[#allocation10 + $0xf0] sm:$0xff]
    %v622 = vld [vmem:[#allocation10 + $0xf8] sm:$0xff]
    %v623 = vld [vmem:[#allocation10 + $0x100] sm:$0xff]
    %v624 = vld [vmem:[#allocation10 + $0x108] sm:$0xff]
    %v625 = vld [vmem:[#allocation10 + $0x110] sm:$0xff]
    %v626 = vld [vmem:[#allocation10 + $0x118] sm:$0xff]
    %v627 = vld [vmem:[#allocation10 + $0x120] sm:$0xff]
    %v628 = vld [vmem:[#allocation10 + $0x128] sm:$0xff]
    %v629 = vld [vmem:[#allocation10 + $0x130] sm:$0xff]
    %v630 = vld [vmem:[#allocation10 + $0x138] sm:$0xff]
    %v631 = vld [vmem:[#allocation10 + $0x140] sm:$0xff]
    %v632 = vld [vmem:[#allocation10 + $0x148] sm:$0xff]
    %v633 = vld [vmem:[#allocation10 + $0x150] sm:$0xff]
    %v634 = vld [vmem:[#allocation10 + $0x158] sm:$0xff]
    %v635 = vld [vmem:[#allocation10 + $0x160] sm:$0xff]
    %v636 = vld [vmem:[#allocation10 + $0x168] sm:$0xff]
    %v637 = vld [vmem:[#allocation10 + $0x170] sm:$0xff]
    %v638 = vld [vmem:[#allocation10 + $0x178] sm:$0xff]
    %v639 = vld [vmem:[#allocation10 + $0x180] sm:$0xff]
    %v640 = vld [vmem:[#allocation10 + $0x188] sm:$0xff]
    %v641 = vld [vmem:[#allocation10 + $0x190] sm:$0xff]
    %v642 = vld [vmem:[#allocation10 + $0x198] sm:$0xff]
    %v643 = vld [vmem:[#allocation10 + $0x1a0] sm:$0xff]
    %v644 = vld [vmem:[#allocation10 + $0x1a8] sm:$0xff]
    %v645 = vld [vmem:[#allocation10 + $0x1b0] sm:$0xff]
    %v646 = vld [vmem:[#allocation10 + $0x1b8] sm:$0xff]
    %v647 = vld [vmem:[#allocation10 + $0x1c0] sm:$0xff]
    %v648 = vld [vmem:[#allocation10 + $0x1c8] sm:$0xff]
    %v649 = vld [vmem:[#allocation10 + $0x1d0] sm:$0xff]
    %v650 = vld [vmem:[#allocation10 + $0x1d8] sm:$0xff]
    %v651 = vld [vmem:[#allocation10 + $0x1e0] sm:$0xff]
    %v652 = vld [vmem:[#allocation10 + $0x1e8] sm:$0xff]
    %v653 = vld [vmem:[#allocation10 + $0x1f0] sm:$0xff]
    %v654 = vld [vmem:[#allocation10 + $0x1f8] sm:$0xff]
    %v655 = vld [vmem:[#allocation10 + $0x200] sm:$0xff]
    %v656 = vld [vmem:[#allocation10 + $0x208] sm:$0xff]
    %v657 = vld [vmem:[#allocation10 + $0x210] sm:$0xff]
    %v658 = vld [vmem:[#allocation10 + $0x218] sm:$0xff]
    %v659 = vld [vmem:[#allocation10 + $0x220] sm:$0xff]
    %v660 = vld [vmem:[#allocation10 + $0x228] sm:$0xff]
    %v661 = vld [vmem:[#allocation10 + $0x230] sm:$0xff]
    %v662 = vld [vmem:[#allocation10 + $0x238] sm:$0xff]
    %v663 = vld [vmem:[#allocation10 + $0x240] sm:$0xff]
    %v664 = vld [vmem:[#allocation10 + $0x248] sm:$0xff]
    %v665 = vld [vmem:[#allocation10 + $0x250] sm:$0xff]
    %v666 = vld [vmem:[#allocation10 + $0x258] sm:$0xff]
    %v667 = vld [vmem:[#allocation10 + $0x260] sm:$0xff]
    %v668 = vld [vmem:[#allocation10 + $0x268] sm:$0xff]
    %v669 = vld [vmem:[#allocation10 + $0x270] sm:$0xff]
    %v670 = vld [vmem:[#allocation10 + $0x278] sm:$0xff]
    %v671 = vld [vmem:[#allocation10 + $0x280] sm:$0xff]
    %v672 = vld [vmem:[#allocation10 + $0x288] sm:$0xff]
    %v673 = vld [vmem:[#allocation10 + $0x290] sm:$0xff]
    %v674 = vld [vmem:[#allocation10 + $0x298] sm:$0xff]
    %v675 = vld [vmem:[#allocation10 + $0x2a0] sm:$0xff]
    %v676 = vld [vmem:[#allocation10 + $0x2a8] sm:$0xff]
    %v677 = vld [vmem:[#allocation10 + $0x2b0] sm:$0xff]
    %v678 = vld [vmem:[#allocation10 + $0x2b8] sm:$0xff]
    %v679 = vld [vmem:[#allocation10 + $0x2c0] sm:$0xff]
    %v680 = vld [vmem:[#allocation10 + $0x2c8] sm:$0xff]
    %v681 = vld [vmem:[#allocation10 + $0x2d0] sm:$0xff]
    %v682 = vld [vmem:[#allocation10 + $0x2d8] sm:$0xff]
    %v683 = vld [vmem:[#allocation10 + $0x2e0] sm:$0xff]
    %v684 = vld [vmem:[#allocation10 + $0x2e8] sm:$0xff]
    %v685 = vld [vmem:[#allocation10 + $0x2f0] sm:$0xff]
    %v686 = vld [vmem:[#allocation10 + $0x2f8] sm:$0xff]
    %v687 = vld [vmem:[#allocation10 + $0x300] sm:$0xff]
    %v688 = vld [vmem:[#allocation10 + $0x308] sm:$0xff]
    %v689 = vld [vmem:[#allocation10 + $0x310] sm:$0xff]
    %v690 = vld [vmem:[#allocation10 + $0x318] sm:$0xff]
    %v691 = vld [vmem:[#allocation10 + $0x320] sm:$0xff]
    %v692 = vld [vmem:[#allocation10 + $0x328] sm:$0xff]
    %v693 = vld [vmem:[#allocation10 + $0x330] sm:$0xff]
    %v694 = vld [vmem:[#allocation10 + $0x338] sm:$0xff]
    %v695 = vld [vmem:[#allocation10 + $0x340] sm:$0xff]
    %v696 = vld [vmem:[#allocation10 + $0x348] sm:$0xff]
    %v697 = vld [vmem:[#allocation10 + $0x350] sm:$0xff]
    %v698 = vld [vmem:[#allocation10 + $0x358] sm:$0xff]
    %v699 = vld [vmem:[#allocation10 + $0x360] sm:$0xff]
    %v700 = vld [vmem:[#allocation10 + $0x368] sm:$0xff]
    %v701 = vld [vmem:[#allocation10 + $0x370] sm:$0xff]
    %v702 = vld [vmem:[#allocation10 + $0x378] sm:$0xff]
    %v703 = vld [vmem:[#allocation10 + $0x380] sm:$0xff]
    %v704 = vld [vmem:[#allocation10 + $0x388] sm:$0xff]
    %v705 = vld [vmem:[#allocation10 + $0x390] sm:$0xff]
    %v706 = vld [vmem:[#allocation10 + $0x398] sm:$0xff]
    %v707 = vld [vmem:[#allocation10 + $0x3a0] sm:$0xff]
    %v708 = vld [vmem:[#allocation10 + $0x3a8] sm:$0xff]
    %v709 = vld [vmem:[#allocation10 + $0x3b0] sm:$0xff]
    %v710 = vld [vmem:[#allocation10 + $0x3b8] sm:$0xff]
    %v711 = vld [vmem:[#allocation10 + $0x3c0] sm:$0xff]
    %v712 = vld [vmem:[#allocation10 + $0x3c8] sm:$0xff]
    %v713 = vld [vmem:[#allocation10 + $0x3d0] sm:$0xff]
    %v714 = vld [vmem:[#allocation10 + $0x3d8] sm:$0xff]
    %v715 = vld [vmem:[#allocation10 + $0x3e0] sm:$0xff]
    %v716 = vld [vmem:[#allocation10 + $0x3e8] sm:$0xff]
    %v717 = vld [vmem:[#allocation10 + $0x3f0] sm:$0xff]
    %v718 = vld [vmem:[#allocation10 + $0x3f8] sm:$0xff]
    %v723 = vunpack.c.l.b16 %v587
    %v724 = vunpack.c.l.b16 %v588
    %v725 = vunpack.c.l.b16 %v589
    %v726 = vunpack.c.l.b16 %v590
    %v727 = vrot.slane %v725, 7
    %vm728 = vcmask 1041409
    %v729 = vsel %vm728, %v727, %v723
    %v730 = vrot.slane %v726, 7
    %v731 = vsel %vm728, %v730, %v724
    %v732 = vpack.c.b16 %v729, %v729
    %v733 = vpack.c.b16 %v731, %v731
    %v864 = vunpack.c.l.b16 %v591
    %v865 = vunpack.c.h.b16 %v591
    %v866 = vunpack.c.l.b16 %v592
    %v867 = vunpack.c.h.b16 %v592
    %v868 = vunpack.c.l.b16 %v593
    %v869 = vunpack.c.h.b16 %v593
    %v870 = vunpack.c.l.b16 %v594
    %v871 = vunpack.c.h.b16 %v594
    %v872 = vunpack.c.l.b16 %v595
    %v873 = vunpack.c.h.b16 %v595
    %v874 = vunpack.c.l.b16 %v596
    %v875 = vunpack.c.h.b16 %v596
    %v876 = vunpack.c.l.b16 %v597
    %v877 = vunpack.c.h.b16 %v597
    %v878 = vunpack.c.l.b16 %v598
    %v879 = vunpack.c.h.b16 %v598
    %v880 = vunpack.c.l.b16 %v599
    %v881 = vunpack.c.h.b16 %v599
    %v882 = vunpack.c.l.b16 %v600
    %v883 = vunpack.c.h.b16 %v600
    %v884 = vunpack.c.l.b16 %v601
    %v885 = vunpack.c.h.b16 %v601
    %v886 = vunpack.c.l.b16 %v602
    %v887 = vunpack.c.h.b16 %v602
    %v888 = vunpack.c.l.b16 %v603
    %v889 = vunpack.c.h.b16 %v603
    %v890 = vunpack.c.l.b16 %v604
    %v891 = vunpack.c.h.b16 %v604
    %v892 = vunpack.c.l.b16 %v605
    %v893 = vunpack.c.h.b16 %v605
    %v894 = vunpack.c.l.b16 %v606
    %v895 = vunpack.c.h.b16 %v606
    %v896 = vunpack.c.l.b16 %v607
    %v897 = vunpack.c.h.b16 %v607
    %v898 = vunpack.c.l.b16 %v608
    %v899 = vunpack.c.h.b16 %v608
    %v900 = vunpack.c.l.b16 %v609
    %v901 = vunpack.c.h.b16 %v609
    %v902 = vunpack.c.l.b16 %v610
    %v903 = vunpack.c.h.b16 %v610
    %v904 = vunpack.c.l.b16 %v611
    %v905 = vunpack.c.h.b16 %v611
    %v906 = vunpack.c.l.b16 %v612
    %v907 = vunpack.c.h.b16 %v612
    %v908 = vunpack.c.l.b16 %v613
    %v909 = vunpack.c.h.b16 %v613
    %v910 = vunpack.c.l.b16 %v614
    %v911 = vunpack.c.h.b16 %v614
    %v912 = vunpack.c.l.b16 %v615
    %v913 = vunpack.c.h.b16 %v615
    %v914 = vunpack.c.l.b16 %v616
    %v915 = vunpack.c.h.b16 %v616
    %v916 = vunpack.c.l.b16 %v617
    %v917 = vunpack.c.h.b16 %v617
    %v918 = vunpack.c.l.b16 %v618
    %v919 = vunpack.c.h.b16 %v618
    %v920 = vunpack.c.l.b16 %v619
    %v921 = vunpack.c.h.b16 %v619
    %v922 = vunpack.c.l.b16 %v620
    %v923 = vunpack.c.h.b16 %v620
    %v924 = vunpack.c.l.b16 %v621
    %v925 = vunpack.c.h.b16 %v621
    %v926 = vunpack.c.l.b16 %v622
    %v927 = vunpack.c.h.b16 %v622
    %v928 = vunpack.c.l.b16 %v623
    %v929 = vunpack.c.h.b16 %v623
    %v930 = vunpack.c.l.b16 %v624
    %v931 = vunpack.c.h.b16 %v624
    %v932 = vunpack.c.l.b16 %v625
    %v933 = vunpack.c.h.b16 %v625
    %v934 = vunpack.c.l.b16 %v626
    %v935 = vunpack.c.h.b16 %v626
    %v936 = vunpack.c.l.b16 %v627
    %v937 = vunpack.c.h.b16 %v627
    %v938 = vunpack.c.l.b16 %v628
    %v939 = vunpack.c.h.b16 %v628
    %v940 = vunpack.c.l.b16 %v629
    %v941 = vunpack.c.h.b16 %v629
    %v942 = vunpack.c.l.b16 %v630
    %v943 = vunpack.c.h.b16 %v630
    %v944 = vunpack.c.l.b16 %v631
    %v945 = vunpack.c.h.b16 %v631
    %v946 = vunpack.c.l.b16 %v632
    %v947 = vunpack.c.h.b16 %v632
    %v948 = vunpack.c.l.b16 %v633
    %v949 = vunpack.c.h.b16 %v633
    %v950 = vunpack.c.l.b16 %v634
    %v951 = vunpack.c.h.b16 %v634
    %v952 = vunpack.c.l.b16 %v635
    %v953 = vunpack.c.h.b16 %v635
    %v954 = vunpack.c.l.b16 %v636
    %v955 = vunpack.c.h.b16 %v636
    %v956 = vunpack.c.l.b16 %v637
    %v957 = vunpack.c.h.b16 %v637
    %v958 = vunpack.c.l.b16 %v638
    %v959 = vunpack.c.h.b16 %v638
    %v960 = vunpack.c.l.b16 %v639
    %v961 = vunpack.c.h.b16 %v639
    %v962 = vunpack.c.l.b16 %v640
    %v963 = vunpack.c.h.b16 %v640
    %v964 = vunpack.c.l.b16 %v641
    %v965 = vunpack.c.h.b16 %v641
    %v966 = vunpack.c.l.b16 %v642
    %v967 = vunpack.c.h.b16 %v642
    %v968 = vunpack.c.l.b16 %v643
    %v969 = vunpack.c.h.b16 %v643
    %v970 = vunpack.c.l.b16 %v644
    %v971 = vunpack.c.h.b16 %v644
    %v972 = vunpack.c.l.b16 %v645
    %v973 = vunpack.c.h.b16 %v645
    %v974 = vunpack.c.l.b16 %v646
    %v975 = vunpack.c.h.b16 %v646
    %v976 = vunpack.c.l.b16 %v647
    %v977 = vunpack.c.h.b16 %v647
    %v978 = vunpack.c.l.b16 %v648
    %v979 = vunpack.c.h.b16 %v648
    %v980 = vunpack.c.l.b16 %v649
    %v981 = vunpack.c.h.b16 %v649
    %v982 = vunpack.c.l.b16 %v650
    %v983 = vunpack.c.h.b16 %v650
    %v984 = vunpack.c.l.b16 %v651
    %v985 = vunpack.c.h.b16 %v651
    %v986 = vunpack.c.l.b16 %v652
    %v987 = vunpack.c.h.b16 %v652
    %v988 = vunpack.c.l.b16 %v653
    %v989 = vunpack.c.h.b16 %v653
    %v990 = vunpack.c.l.b16 %v654
    %v991 = vunpack.c.h.b16 %v654
    %v992 = vunpack.c.l.b16 %v655
    %v993 = vunpack.c.h.b16 %v655
    %v994 = vunpack.c.l.b16 %v656
    %v995 = vunpack.c.h.b16 %v656
    %v996 = vunpack.c.l.b16 %v657
    %v997 = vunpack.c.h.b16 %v657
    %v998 = vunpack.c.l.b16 %v658
    %v999 = vunpack.c.h.b16 %v658
    %v1000 = vunpack.c.l.b16 %v659
    %v1001 = vunpack.c.h.b16 %v659
    %v1002 = vunpack.c.l.b16 %v660
    %v1003 = vunpack.c.h.b16 %v660
    %v1004 = vunpack.c.l.b16 %v661
    %v1005 = vunpack.c.h.b16 %v661
    %v1006 = vunpack.c.l.b16 %v662
    %v1007 = vunpack.c.h.b16 %v662
    %v1008 = vunpack.c.l.b16 %v663
    %v1009 = vunpack.c.h.b16 %v663
    %v1010 = vunpack.c.l.b16 %v664
    %v1011 = vunpack.c.h.b16 %v664
    %v1012 = vunpack.c.l.b16 %v665
    %v1013 = vunpack.c.h.b16 %v665
    %v1014 = vunpack.c.l.b16 %v666
    %v1015 = vunpack.c.h.b16 %v666
    %v1016 = vunpack.c.l.b16 %v667
    %v1017 = vunpack.c.h.b16 %v667
    %v1018 = vunpack.c.l.b16 %v668
    %v1019 = vunpack.c.h.b16 %v668
    %v1020 = vunpack.c.l.b16 %v669
    %v1021 = vunpack.c.h.b16 %v669
    %v1022 = vunpack.c.l.b16 %v670
    %v1023 = vunpack.c.h.b16 %v670
    %v1024 = vunpack.c.l.b16 %v671
    %v1025 = vunpack.c.h.b16 %v671
    %v1026 = vunpack.c.l.b16 %v672
    %v1027 = vunpack.c.h.b16 %v672
    %v1028 = vunpack.c.l.b16 %v673
    %v1029 = vunpack.c.h.b16 %v673
    %v1030 = vunpack.c.l.b16 %v674
    %v1031 = vunpack.c.h.b16 %v674
    %v1032 = vunpack.c.l.b16 %v675
    %v1033 = vunpack.c.h.b16 %v675
    %v1034 = vunpack.c.l.b16 %v676
    %v1035 = vunpack.c.h.b16 %v676
    %v1036 = vunpack.c.l.b16 %v677
    %v1037 = vunpack.c.h.b16 %v677
    %v1038 = vunpack.c.l.b16 %v678
    %v1039 = vunpack.c.h.b16 %v678
    %v1040 = vunpack.c.l.b16 %v679
    %v1041 = vunpack.c.h.b16 %v679
    %v1042 = vunpack.c.l.b16 %v680
    %v1043 = vunpack.c.h.b16 %v680
    %v1044 = vunpack.c.l.b16 %v681
    %v1045 = vunpack.c.h.b16 %v681
    %v1046 = vunpack.c.l.b16 %v682
    %v1047 = vunpack.c.h.b16 %v682
    %v1048 = vunpack.c.l.b16 %v683
    %v1049 = vunpack.c.h.b16 %v683
    %v1050 = vunpack.c.l.b16 %v684
    %v1051 = vunpack.c.h.b16 %v684
    %v1052 = vunpack.c.l.b16 %v685
    %v1053 = vunpack.c.h.b16 %v685
    %v1054 = vunpack.c.l.b16 %v686
    %v1055 = vunpack.c.h.b16 %v686
    %v1056 = vunpack.c.l.b16 %v687
    %v1057 = vunpack.c.h.b16 %v687
    %v1058 = vunpack.c.l.b16 %v688
    %v1059 = vunpack.c.h.b16 %v688
    %v1060 = vunpack.c.l.b16 %v689
    %v1061 = vunpack.c.h.b16 %v689
    %v1062 = vunpack.c.l.b16 %v690
    %v1063 = vunpack.c.h.b16 %v690
    %v1064 = vunpack.c.l.b16 %v691
    %v1065 = vunpack.c.h.b16 %v691
    %v1066 = vunpack.c.l.b16 %v692
    %v1067 = vunpack.c.h.b16 %v692
    %v1068 = vunpack.c.l.b16 %v693
    %v1069 = vunpack.c.h.b16 %v693
    %v1070 = vunpack.c.l.b16 %v694
    %v1071 = vunpack.c.h.b16 %v694
    %v1072 = vunpack.c.l.b16 %v695
    %v1073 = vunpack.c.h.b16 %v695
    %v1074 = vunpack.c.l.b16 %v696
    %v1075 = vunpack.c.h.b16 %v696
    %v1076 = vunpack.c.l.b16 %v697
    %v1077 = vunpack.c.h.b16 %v697
    %v1078 = vunpack.c.l.b16 %v698
    %v1079 = vunpack.c.h.b16 %v698
    %v1080 = vunpack.c.l.b16 %v699
    %v1081 = vunpack.c.h.b16 %v699
    %v1082 = vunpack.c.l.b16 %v700
    %v1083 = vunpack.c.h.b16 %v700
    %v1084 = vunpack.c.l.b16 %v701
    %v1085 = vunpack.c.h.b16 %v701
    %v1086 = vunpack.c.l.b16 %v702
    %v1087 = vunpack.c.h.b16 %v702
    %v1088 = vunpack.c.l.b16 %v703
    %v1089 = vunpack.c.h.b16 %v703
    %v1090 = vunpack.c.l.b16 %v704
    %v1091 = vunpack.c.h.b16 %v704
    %v1092 = vunpack.c.l.b16 %v705
    %v1093 = vunpack.c.h.b16 %v705
    %v1094 = vunpack.c.l.b16 %v706
    %v1095 = vunpack.c.h.b16 %v706
    %v1096 = vunpack.c.l.b16 %v707
    %v1097 = vunpack.c.h.b16 %v707
    %v1098 = vunpack.c.l.b16 %v708
    %v1099 = vunpack.c.h.b16 %v708
    %v1100 = vunpack.c.l.b16 %v709
    %v1101 = vunpack.c.h.b16 %v709
    %v1102 = vunpack.c.l.b16 %v710
    %v1103 = vunpack.c.h.b16 %v710
    %v1104 = vunpack.c.l.b16 %v711
    %v1105 = vunpack.c.h.b16 %v711
    %v1106 = vunpack.c.l.b16 %v712
    %v1107 = vunpack.c.h.b16 %v712
    %v1108 = vunpack.c.l.b16 %v713
    %v1109 = vunpack.c.h.b16 %v713
    %v1110 = vunpack.c.l.b16 %v714
    %v1111 = vunpack.c.h.b16 %v714
    %v1112 = vunpack.c.l.b16 %v715
    %v1113 = vunpack.c.h.b16 %v715
    %v1114 = vunpack.c.l.b16 %v716
    %v1115 = vunpack.c.h.b16 %v716
    %v1116 = vunpack.c.l.b16 %v717
    %v1117 = vunpack.c.h.b16 %v717
    %v1118 = vunpack.c.l.b16 %v718
    %v1119 = vunpack.c.h.b16 %v718
    %v1120 = vpack.c.b16 %v872, %v864
    %v1121 = vpack.c.b16 %v873, %v865
    %v1122 = vpack.c.b16 %v874, %v866
    %v1123 = vpack.c.b16 %v875, %v867
    %v1124 = vpack.c.b16 %v876, %v868
    %v1125 = vpack.c.b16 %v877, %v869
    %v1126 = vpack.c.b16 %v878, %v870
    %v1127 = vpack.c.b16 %v879, %v871
    %v1128 = vpack.c.b16 %v888, %v880
    %v1129 = vpack.c.b16 %v889, %v881
    %v1130 = vpack.c.b16 %v890, %v882
    %v1131 = vpack.c.b16 %v891, %v883
    %v1132 = vpack.c.b16 %v892, %v884
    %v1133 = vpack.c.b16 %v893, %v885
    %v1134 = vpack.c.b16 %v894, %v886
    %v1135 = vpack.c.b16 %v895, %v887
    %v1136 = vpack.c.b16 %v904, %v896
    %v1137 = vpack.c.b16 %v905, %v897
    %v1138 = vpack.c.b16 %v906, %v898
    %v1139 = vpack.c.b16 %v907, %v899
    %v1140 = vpack.c.b16 %v908, %v900
    %v1141 = vpack.c.b16 %v909, %v901
    %v1142 = vpack.c.b16 %v910, %v902
    %v1143 = vpack.c.b16 %v911, %v903
    %v1144 = vpack.c.b16 %v920, %v912
    %v1145 = vpack.c.b16 %v921, %v913
    %v1146 = vpack.c.b16 %v922, %v914
    %v1147 = vpack.c.b16 %v923, %v915
    %v1148 = vpack.c.b16 %v924, %v916
    %v1149 = vpack.c.b16 %v925, %v917
    %v1150 = vpack.c.b16 %v926, %v918
    %v1151 = vpack.c.b16 %v927, %v919
    %v1152 = vpack.c.b16 %v936, %v928
    %v1153 = vpack.c.b16 %v937, %v929
    %v1154 = vpack.c.b16 %v938, %v930
    %v1155 = vpack.c.b16 %v939, %v931
    %v1156 = vpack.c.b16 %v940, %v932
    %v1157 = vpack.c.b16 %v941, %v933
    %v1158 = vpack.c.b16 %v942, %v934
    %v1159 = vpack.c.b16 %v943, %v935
    %v1160 = vpack.c.b16 %v952, %v944
    %v1161 = vpack.c.b16 %v953, %v945
    %v1162 = vpack.c.b16 %v954, %v946
    %v1163 = vpack.c.b16 %v955, %v947
    %v1164 = vpack.c.b16 %v956, %v948
    %v1165 = vpack.c.b16 %v957, %v949
    %v1166 = vpack.c.b16 %v958, %v950
    %v1167 = vpack.c.b16 %v959, %v951
    %v1168 = vpack.c.b16 %v968, %v960
    %v1169 = vpack.c.b16 %v969, %v961
    %v1170 = vpack.c.b16 %v970, %v962
    %v1171 = vpack.c.b16 %v971, %v963
    %v1172 = vpack.c.b16 %v972, %v964
    %v1173 = vpack.c.b16 %v973, %v965
    %v1174 = vpack.c.b16 %v974, %v966
    %v1175 = vpack.c.b16 %v975, %v967
    %v1176 = vpack.c.b16 %v984, %v976
    %v1177 = vpack.c.b16 %v985, %v977
    %v1178 = vpack.c.b16 %v986, %v978
    %v1179 = vpack.c.b16 %v987, %v979
    %v1180 = vpack.c.b16 %v988, %v980
    %v1181 = vpack.c.b16 %v989, %v981
    %v1182 = vpack.c.b16 %v990, %v982
    %v1183 = vpack.c.b16 %v991, %v983
    %v1184 = vpack.c.b16 %v1000, %v992
    %v1185 = vpack.c.b16 %v1001, %v993
    %v1186 = vpack.c.b16 %v1002, %v994
    %v1187 = vpack.c.b16 %v1003, %v995
    %v1188 = vpack.c.b16 %v1004, %v996
    %v1189 = vpack.c.b16 %v1005, %v997
    %v1190 = vpack.c.b16 %v1006, %v998
    %v1191 = vpack.c.b16 %v1007, %v999
    %v1192 = vpack.c.b16 %v1016, %v1008
    %v1193 = vpack.c.b16 %v1017, %v1009
    %v1194 = vpack.c.b16 %v1018, %v1010
    %v1195 = vpack.c.b16 %v1019, %v1011
    %v1196 = vpack.c.b16 %v1020, %v1012
    %v1197 = vpack.c.b16 %v1021, %v1013
    %v1198 = vpack.c.b16 %v1022, %v1014
    %v1199 = vpack.c.b16 %v1023, %v1015
    %v1200 = vpack.c.b16 %v1032, %v1024
    %v1201 = vpack.c.b16 %v1033, %v1025
    %v1202 = vpack.c.b16 %v1034, %v1026
    %v1203 = vpack.c.b16 %v1035, %v1027
    %v1204 = vpack.c.b16 %v1036, %v1028
    %v1205 = vpack.c.b16 %v1037, %v1029
    %v1206 = vpack.c.b16 %v1038, %v1030
    %v1207 = vpack.c.b16 %v1039, %v1031
    %v1208 = vpack.c.b16 %v1048, %v1040
    %v1209 = vpack.c.b16 %v1049, %v1041
    %v1210 = vpack.c.b16 %v1050, %v1042
    %v1211 = vpack.c.b16 %v1051, %v1043
    %v1212 = vpack.c.b16 %v1052, %v1044
    %v1213 = vpack.c.b16 %v1053, %v1045
    %v1214 = vpack.c.b16 %v1054, %v1046
    %v1215 = vpack.c.b16 %v1055, %v1047
    %v1216 = vpack.c.b16 %v1064, %v1056
    %v1217 = vpack.c.b16 %v1065, %v1057
    %v1218 = vpack.c.b16 %v1066, %v1058
    %v1219 = vpack.c.b16 %v1067, %v1059
    %v1220 = vpack.c.b16 %v1068, %v1060
    %v1221 = vpack.c.b16 %v1069, %v1061
    %v1222 = vpack.c.b16 %v1070, %v1062
    %v1223 = vpack.c.b16 %v1071, %v1063
    %v1224 = vpack.c.b16 %v1080, %v1072
    %v1225 = vpack.c.b16 %v1081, %v1073
    %v1226 = vpack.c.b16 %v1082, %v1074
    %v1227 = vpack.c.b16 %v1083, %v1075
    %v1228 = vpack.c.b16 %v1084, %v1076
    %v1229 = vpack.c.b16 %v1085, %v1077
    %v1230 = vpack.c.b16 %v1086, %v1078
    %v1231 = vpack.c.b16 %v1087, %v1079
    %v1232 = vpack.c.b16 %v1096, %v1088
    %v1233 = vpack.c.b16 %v1097, %v1089
    %v1234 = vpack.c.b16 %v1098, %v1090
    %v1235 = vpack.c.b16 %v1099, %v1091
    %v1236 = vpack.c.b16 %v1100, %v1092
    %v1237 = vpack.c.b16 %v1101, %v1093
    %v1238 = vpack.c.b16 %v1102, %v1094
    %v1239 = vpack.c.b16 %v1103, %v1095
    %v1240 = vpack.c.b16 %v1112, %v1104
    %v1241 = vpack.c.b16 %v1113, %v1105
    %v1242 = vpack.c.b16 %v1114, %v1106
    %v1243 = vpack.c.b16 %v1115, %v1107
    %v1244 = vpack.c.b16 %v1116, %v1108
    %v1245 = vpack.c.b16 %v1117, %v1109
    %v1246 = vpack.c.b16 %v1118, %v1110
    %v1247 = vpack.c.b16 %v1119, %v1111
    %1376 = vmatprep.subr.bf16.mxu0 %v1121
    %1377 = vmatpush1.bf16.msra.mxu0 %v1120
    %1378 = vmatprep.subr.bf16.mxu0 %v1129
    %1379 = vmatpush1.bf16.msra.mxu0 %v1128
    %1380 = vmatprep.subr.bf16.mxu0 %v1137
    %1381 = vmatpush1.bf16.msra.mxu0 %v1136
    %1382 = vmatprep.subr.bf16.mxu0 %v1145
    %1383 = vmatpush1.bf16.msra.mxu0 %v1144
    %1384 = vmatprep.subr.bf16.mxu0 %v1153
    %1385 = vmatpush1.bf16.msra.mxu0 %v1152
    %1386 = vmatprep.subr.bf16.mxu0 %v1161
    %1387 = vmatpush1.bf16.msra.mxu0 %v1160
    %1388 = vmatprep.subr.bf16.mxu0 %v1169
    %1389 = vmatpush1.bf16.msra.mxu0 %v1168
    %1390 = vmatprep.subr.bf16.mxu0 %v1177
    %1391 = vmatpush1.bf16.msra.mxu0 %v1176
    %1392 = vmatprep.subr.bf16.mxu0 %v1185
    %1393 = vmatpush1.bf16.msra.mxu0 %v1184
    %1394 = vmatprep.subr.bf16.mxu0 %v1193
    %1395 = vmatpush1.bf16.msra.mxu0 %v1192
    %1396 = vmatprep.subr.bf16.mxu0 %v1201
    %1397 = vmatpush1.bf16.msra.mxu0 %v1200
    %1398 = vmatprep.subr.bf16.mxu0 %v1209
    %1399 = vmatpush1.bf16.msra.mxu0 %v1208
    %1400 = vmatprep.subr.bf16.mxu0 %v1217
    %1401 = vmatpush1.bf16.msra.mxu0 %v1216
    %1402 = vmatprep.subr.bf16.mxu0 %v1225
    %1403 = vmatpush1.bf16.msra.mxu0 %v1224
    %1404 = vmatprep.subr.bf16.mxu0 %v1233
    %1405 = vmatpush1.bf16.msra.mxu0 %v1232
    %1406 = vmatprep.subr.bf16.mxu0 %v1241
    %1407 = vmatpush1.bf16.msra.mxu0 %v1240
    %1408 = vmatprep.mubr.bf16.mxu0 %v733
    %1409 = vmatmul.mubr.bf16.gmra.mrb[0].mxu0 %v732
    %v1410 = vpop.f32.mrb[0].mxu0
    %v1411 = vadd.f32 0.0, %v1410
    %v1412 = vpop.f32.mrb[0].mxu0
    %v1413 = vadd.f32 0.0, %v1412
    %v1414 = vpop.f32.mrb[0].mxu0
    %v1415 = vpop.f32.mrb[0].mxu0
    %1416 = vdwg.mxu0
    %1417 = vmatprep.subr.bf16.mxu0 %v1123
    %1418 = vmatpush1.bf16.msra.mxu0 %v1122
    %1419 = vmatprep.subr.bf16.mxu0 %v1131
    %1420 = vmatpush1.bf16.msra.mxu0 %v1130
    %1421 = vmatprep.subr.bf16.mxu0 %v1139
    %1422 = vmatpush1.bf16.msra.mxu0 %v1138
    %1423 = vmatprep.subr.bf16.mxu0 %v1147
    %1424 = vmatpush1.bf16.msra.mxu0 %v1146
    %1425 = vmatprep.subr.bf16.mxu0 %v1155
    %1426 = vmatpush1.bf16.msra.mxu0 %v1154
    %1427 = vmatprep.subr.bf16.mxu0 %v1163
    %1428 = vmatpush1.bf16.msra.mxu0 %v1162
    %1429 = vmatprep.subr.bf16.mxu0 %v1171
    %1430 = vmatpush1.bf16.msra.mxu0 %v1170
    %1431 = vmatprep.subr.bf16.mxu0 %v1179
    %1432 = vmatpush1.bf16.msra.mxu0 %v1178
    %1433 = vmatprep.subr.bf16.mxu0 %v1187
    %1434 = vmatpush1.bf16.msra.mxu0 %v1186
    %1435 = vmatprep.subr.bf16.mxu0 %v1195
    %1436 = vmatpush1.bf16.msra.mxu0 %v1194
    %1437 = vmatprep.subr.bf16.mxu0 %v1203
    %1438 = vmatpush1.bf16.msra.mxu0 %v1202
    %1439 = vmatprep.subr.bf16.mxu0 %v1211
    %1440 = vmatpush1.bf16.msra.mxu0 %v1210
    %1441 = vmatprep.subr.bf16.mxu0 %v1219
    %1442 = vmatpush1.bf16.msra.mxu0 %v1218
    %1443 = vmatprep.subr.bf16.mxu0 %v1227
    %1444 = vmatpush1.bf16.msra.mxu0 %v1226
    %1445 = vmatprep.subr.bf16.mxu0 %v1235
    %1446 = vmatpush1.bf16.msra.mxu0 %v1234
    %1447 = vmatprep.subr.bf16.mxu0 %v1243
    %1448 = vmatpush1.bf16.msra.mxu0 %v1242
    %1449 = vmatprep.mubr.bf16.mxu0 %v733
    %1450 = vmatmul.mubr.bf16.gmra.mrb[0].mxu0 %v732
    %v1451 = vpop.f32.mrb[0].mxu0
    %v1452 = vadd.f32 0.0, %v1451
    %v1453 = vpop.f32.mrb[0].mxu0
    %v1454 = vadd.f32 0.0, %v1453
    %v1455 = vpop.f32.mrb[0].mxu0
    %v1456 = vpop.f32.mrb[0].mxu0
    %1457 = vdwg.mxu0
    %1458 = vmatprep.subr.bf16.mxu0 %v1125
    %1459 = vmatpush1.bf16.msra.mxu0 %v1124
    %1460 = vmatprep.subr.bf16.mxu0 %v1133
    %1461 = vmatpush1.bf16.msra.mxu0 %v1132
    %1462 = vmatprep.subr.bf16.mxu0 %v1141
    %1463 = vmatpush1.bf16.msra.mxu0 %v1140
    %1464 = vmatprep.subr.bf16.mxu0 %v1149
    %1465 = vmatpush1.bf16.msra.mxu0 %v1148
    %1466 = vmatprep.subr.bf16.mxu0 %v1157
    %1467 = vmatpush1.bf16.msra.mxu0 %v1156
    %1468 = vmatprep.subr.bf16.mxu0 %v1165
    %1469 = vmatpush1.bf16.msra.mxu0 %v1164
    %1470 = vmatprep.subr.bf16.mxu0 %v1173
    %1471 = vmatpush1.bf16.msra.mxu0 %v1172
    %1472 = vmatprep.subr.bf16.mxu0 %v1181
    %1473 = vmatpush1.bf16.msra.mxu0 %v1180
    %1474 = vmatprep.subr.bf16.mxu0 %v1189
    %1475 = vmatpush1.bf16.msra.mxu0 %v1188
    %1476 = vmatprep.subr.bf16.mxu0 %v1197
    %1477 = vmatpush1.bf16.msra.mxu0 %v1196
    %1478 = vmatprep.subr.bf16.mxu0 %v1205
    %1479 = vmatpush1.bf16.msra.mxu0 %v1204
    %1480 = vmatprep.subr.bf16.mxu0 %v1213
    %1481 = vmatpush1.bf16.msra.mxu0 %v1212
    %1482 = vmatprep.subr.bf16.mxu0 %v1221
    %1483 = vmatpush1.bf16.msra.mxu0 %v1220
    %1484 = vmatprep.subr.bf16.mxu0 %v1229
    %1485 = vmatpush1.bf16.msra.mxu0 %v1228
    %1486 = vmatprep.subr.bf16.mxu0 %v1237
    %1487 = vmatpush1.bf16.msra.mxu0 %v1236
    %1488 = vmatprep.subr.bf16.mxu0 %v1245
    %1489 = vmatpush1.bf16.msra.mxu0 %v1244
    %1490 = vmatprep.mubr.bf16.mxu0 %v733
    %1491 = vmatmul.mubr.bf16.gmra.mrb[0].mxu0 %v732
    %v1492 = vpop.f32.mrb[0].mxu0
    %v1493 = vadd.f32 0.0, %v1492
    %v1494 = vpop.f32.mrb[0].mxu0
    %v1495 = vadd.f32 0.0, %v1494
    %v1496 = vpop.f32.mrb[0].mxu0
    %v1497 = vpop.f32.mrb[0].mxu0
    %1498 = vdwg.mxu0
    %1499 = vmatprep.subr.bf16.mxu0 %v1127
    %1500 = vmatpush1.bf16.msra.mxu0 %v1126
    %1501 = vmatprep.subr.bf16.mxu0 %v1135
    %1502 = vmatpush1.bf16.msra.mxu0 %v1134
    %1503 = vmatprep.subr.bf16.mxu0 %v1143
    %1504 = vmatpush1.bf16.msra.mxu0 %v1142
    %1505 = vmatprep.subr.bf16.mxu0 %v1151
    %1506 = vmatpush1.bf16.msra.mxu0 %v1150
    %1507 = vmatprep.subr.bf16.mxu0 %v1159
    %1508 = vmatpush1.bf16.msra.mxu0 %v1158
    %1509 = vmatprep.subr.bf16.mxu0 %v1167
    %1510 = vmatpush1.bf16.msra.mxu0 %v1166
    %1511 = vmatprep.subr.bf16.mxu0 %v1175
    %1512 = vmatpush1.bf16.msra.mxu0 %v1174
    %1513 = vmatprep.subr.bf16.mxu0 %v1183
    %1514 = vmatpush1.bf16.msra.mxu0 %v1182
    %1515 = vmatprep.subr.bf16.mxu0 %v1191
    %1516 = vmatpush1.bf16.msra.mxu0 %v1190
    %1517 = vmatprep.subr.bf16.mxu0 %v1199
    %1518 = vmatpush1.bf16.msra.mxu0 %v1198
    %1519 = vmatprep.subr.bf16.mxu0 %v1207
    %1520 = vmatpush1.bf16.msra.mxu0 %v1206
    %1521 = vmatprep.subr.bf16.mxu0 %v1215
    %1522 = vmatpush1.bf16.msra.mxu0 %v1214
    %1523 = vmatprep.subr.bf16.mxu0 %v1223
    %1524 = vmatpush1.bf16.msra.mxu0 %v1222
    %1525 = vmatprep.subr.bf16.mxu0 %v1231
    %1526 = vmatpush1.bf16.msra.mxu0 %v1230
    %1527 = vmatprep.subr.bf16.mxu0 %v1239
    %1528 = vmatpush1.bf16.msra.mxu0 %v1238
    %1529 = vmatprep.subr.bf16.mxu0 %v1247
    %1530 = vmatpush1.bf16.msra.mxu0 %v1246
    %1531 = vmatprep.mubr.bf16.mxu0 %v733
    %1532 = vmatmul.mubr.bf16.gmra.mrb[0].mxu0 %v732
    %v1533 = vpop.f32.mrb[0].mxu0
    %v1534 = vadd.f32 0.0, %v1533
    %v1535 = vpop.f32.mrb[0].mxu0
    %v1536 = vadd.f32 0.0, %v1535
    %v1537 = vpop.f32.mrb[0].mxu0
    %v1538 = vpop.f32.mrb[0].mxu0
    %1539 = vdwg.mxu0
    %v1550 = vunpack.c.l.b16 %v259
    %v1551 = vunpack.c.l.b16 %v260
    %v1552 = vunpack.c.l.b16 %v261
    %v1553 = vunpack.c.l.b16 %v262
    %v1554 = vunpack.c.l.b16 %v263
    %v1555 = vunpack.c.l.b16 %v264
    %v1556 = vunpack.c.l.b16 %v265
    %v1557 = vunpack.c.l.b16 %v266
    %v1558 = vunpack.c.l.b16 %v267
    %v1559 = vunpack.c.l.b16 %v268
    %v1560 = vrot.slane %v1555, 7
    %v1561 = vsel %vm728, %v1560, %v1550
    %v1562 = vrot.slane %v1556, 7
    %v1563 = vsel %vm728, %v1562, %v1551
    %v1564 = vrot.slane %v1557, 7
    %v1565 = vsel %vm728, %v1564, %v1552
    %v1566 = vrot.slane %v1558, 7
    %v1567 = vsel %vm728, %v1566, %v1553
    %v1568 = vrot.slane %v1559, 7
    %v1569 = vsel %vm728, %v1568, %v1554
    %v1570 = vpack.c.b16 %v1561, %v1561
    %v1571 = vpack.c.b16 %v1563, %v1563
    %v1572 = vpack.c.b16 %v1565, %v1565
    %v1573 = vpack.c.b16 %v1567, %v1567
    %v1574 = vpack.c.b16 %v1569, %v1569
    %v1875 = vunpack.c.l.b16 %v269
    %v1876 = vunpack.c.h.b16 %v269
    %v1877 = vunpack.c.l.b16 %v270
    %v1878 = vunpack.c.h.b16 %v270
    %v1879 = vunpack.c.l.b16 %v271
    %v1880 = vunpack.c.h.b16 %v271
    %v1881 = vunpack.c.l.b16 %v272
    %v1882 = vunpack.c.h.b16 %v272
    %v1883 = vunpack.c.l.b16 %v273
    %v1884 = vunpack.c.h.b16 %v273
    %v1885 = vunpack.c.l.b16 %v274
    %v1886 = vunpack.c.h.b16 %v274
    %v1887 = vunpack.c.l.b16 %v275
    %v1888 = vunpack.c.h.b16 %v275
    %v1889 = vunpack.c.l.b16 %v276
    %v1890 = vunpack.c.h.b16 %v276
    %v1891 = vunpack.c.l.b16 %v277
    %v1892 = vunpack.c.h.b16 %v277
    %v1893 = vunpack.c.l.b16 %v278
    %v1894 = vunpack.c.h.b16 %v278
    %v1895 = vunpack.c.l.b16 %v279
    %v1896 = vunpack.c.h.b16 %v279
    %v1897 = vunpack.c.l.b16 %v280
    %v1898 = vunpack.c.h.b16 %v280
    %v1899 = vunpack.c.l.b16 %v281
    %v1900 = vunpack.c.h.b16 %v281
    %v1901 = vunpack.c.l.b16 %v282
    %v1902 = vunpack.c.h.b16 %v282
    %v1903 = vunpack.c.l.b16 %v283
    %v1904 = vunpack.c.h.b16 %v283
    %v1905 = vunpack.c.l.b16 %v284
    %v1906 = vunpack.c.h.b16 %v284
    %v1907 = vunpack.c.l.b16 %v285
    %v1908 = vunpack.c.h.b16 %v285
    %v1909 = vunpack.c.l.b16 %v286
    %v1910 = vunpack.c.h.b16 %v286
    %v1911 = vunpack.c.l.b16 %v287
    %v1912 = vunpack.c.h.b16 %v287
    %v1913 = vunpack.c.l.b16 %v288
    %v1914 = vunpack.c.h.b16 %v288
    %v1915 = vunpack.c.l.b16 %v289
    %v1916 = vunpack.c.h.b16 %v289
    %v1917 = vunpack.c.l.b16 %v290
    %v1918 = vunpack.c.h.b16 %v290
    %v1919 = vunpack.c.l.b16 %v291
    %v1920 = vunpack.c.h.b16 %v291
    %v1921 = vunpack.c.l.b16 %v292
    %v1922 = vunpack.c.h.b16 %v292
    %v1923 = vunpack.c.l.b16 %v293
    %v1924 = vunpack.c.h.b16 %v293
    %v1925 = vunpack.c.l.b16 %v294
    %v1926 = vunpack.c.h.b16 %v294
    %v1927 = vunpack.c.l.b16 %v295
    %v1928 = vunpack.c.h.b16 %v295
    %v1929 = vunpack.c.l.b16 %v296
    %v1930 = vunpack.c.h.b16 %v296
    %v1931 = vunpack.c.l.b16 %v297
    %v1932 = vunpack.c.h.b16 %v297
    %v1933 = vunpack.c.l.b16 %v298
    %v1934 = vunpack.c.h.b16 %v298
    %v1935 = vunpack.c.l.b16 %v299
    %v1936 = vunpack.c.h.b16 %v299
    %v1937 = vunpack.c.l.b16 %v300
    %v1938 = vunpack.c.h.b16 %v300
    %v1939 = vunpack.c.l.b16 %v301
    %v1940 = vunpack.c.h.b16 %v301
    %v1941 = vunpack.c.l.b16 %v302
    %v1942 = vunpack.c.h.b16 %v302
    %v1943 = vunpack.c.l.b16 %v303
    %v1944 = vunpack.c.h.b16 %v303
    %v1945 = vunpack.c.l.b16 %v304
    %v1946 = vunpack.c.h.b16 %v304
    %v1947 = vunpack.c.l.b16 %v305
    %v1948 = vunpack.c.h.b16 %v305
    %v1949 = vunpack.c.l.b16 %v306
    %v1950 = vunpack.c.h.b16 %v306
    %v1951 = vunpack.c.l.b16 %v307
    %v1952 = vunpack.c.h.b16 %v307
    %v1953 = vunpack.c.l.b16 %v308
    %v1954 = vunpack.c.h.b16 %v308
    %v1955 = vunpack.c.l.b16 %v309
    %v1956 = vunpack.c.h.b16 %v309
    %v1957 = vunpack.c.l.b16 %v310
    %v1958 = vunpack.c.h.b16 %v310
    %v1959 = vunpack.c.l.b16 %v311
    %v1960 = vunpack.c.h.b16 %v311
    %v1961 = vunpack.c.l.b16 %v312
    %v1962 = vunpack.c.h.b16 %v312
    %v1963 = vunpack.c.l.b16 %v313
    %v1964 = vunpack.c.h.b16 %v313
    %v1965 = vunpack.c.l.b16 %v314
    %v1966 = vunpack.c.h.b16 %v314
    %v1967 = vunpack.c.l.b16 %v315
    %v1968 = vunpack.c.h.b16 %v315
    %v1969 = vunpack.c.l.b16 %v316
    %v1970 = vunpack.c.h.b16 %v316
    %v1971 = vunpack.c.l.b16 %v317
    %v1972 = vunpack.c.h.b16 %v317
    %v1973 = vunpack.c.l.b16 %v318
    %v1974 = vunpack.c.h.b16 %v318
    %v1975 = vunpack.c.l.b16 %v319
    %v1976 = vunpack.c.h.b16 %v319
    %v1977 = vunpack.c.l.b16 %v320
    %v1978 = vunpack.c.h.b16 %v320
    %v1979 = vunpack.c.l.b16 %v321
    %v1980 = vunpack.c.h.b16 %v321
    %v1981 = vunpack.c.l.b16 %v322
    %v1982 = vunpack.c.h.b16 %v322
    %v1983 = vunpack.c.l.b16 %v323
    %v1984 = vunpack.c.h.b16 %v323
    %v1985 = vunpack.c.l.b16 %v324
    %v1986 = vunpack.c.h.b16 %v324
    %v1987 = vunpack.c.l.b16 %v325
    %v1988 = vunpack.c.h.b16 %v325
    %v1989 = vunpack.c.l.b16 %v326
    %v1990 = vunpack.c.h.b16 %v326
    %v1991 = vunpack.c.l.b16 %v327
    %v1992 = vunpack.c.h.b16 %v327
    %v1993 = vunpack.c.l.b16 %v328
    %v1994 = vunpack.c.h.b16 %v328
    %v1995 = vunpack.c.l.b16 %v329
    %v1996 = vunpack.c.h.b16 %v329
    %v1997 = vunpack.c.l.b16 %v330
    %v1998 = vunpack.c.h.b16 %v330
    %v1999 = vunpack.c.l.b16 %v331
    %v2000 = vunpack.c.h.b16 %v331
    %v2001 = vunpack.c.l.b16 %v332
    %v2002 = vunpack.c.h.b16 %v332
    %v2003 = vunpack.c.l.b16 %v333
    %v2004 = vunpack.c.h.b16 %v333
    %v2005 = vunpack.c.l.b16 %v334
    %v2006 = vunpack.c.h.b16 %v334
    %v2007 = vunpack.c.l.b16 %v335
    %v2008 = vunpack.c.h.b16 %v335
    %v2009 = vunpack.c.l.b16 %v336
    %v2010 = vunpack.c.h.b16 %v336
    %v2011 = vunpack.c.l.b16 %v337
    %v2012 = vunpack.c.h.b16 %v337
    %v2013 = vunpack.c.l.b16 %v338
    %v2014 = vunpack.c.h.b16 %v338
    %v2015 = vunpack.c.l.b16 %v339
    %v2016 = vunpack.c.h.b16 %v339
    %v2017 = vunpack.c.l.b16 %v340
    %v2018 = vunpack.c.h.b16 %v340
    %v2019 = vunpack.c.l.b16 %v341
    %v2020 = vunpack.c.h.b16 %v341
    %v2021 = vunpack.c.l.b16 %v342
    %v2022 = vunpack.c.h.b16 %v342
    %v2023 = vunpack.c.l.b16 %v343
    %v2024 = vunpack.c.h.b16 %v343
    %v2025 = vunpack.c.l.b16 %v344
    %v2026 = vunpack.c.h.b16 %v344
    %v2027 = vunpack.c.l.b16 %v345
    %v2028 = vunpack.c.h.b16 %v345
    %v2029 = vunpack.c.l.b16 %v346
    %v2030 = vunpack.c.h.b16 %v346
    %v2031 = vunpack.c.l.b16 %v347
    %v2032 = vunpack.c.h.b16 %v347
    %v2033 = vunpack.c.l.b16 %v348
    %v2034 = vunpack.c.h.b16 %v348
    %v2035 = vunpack.c.l.b16 %v349
    %v2036 = vunpack.c.h.b16 %v349
    %v2037 = vunpack.c.l.b16 %v350
    %v2038 = vunpack.c.h.b16 %v350
    %v2039 = vunpack.c.l.b16 %v351
    %v2040 = vunpack.c.h.b16 %v351
    %v2041 = vunpack.c.l.b16 %v352
    %v2042 = vunpack.c.h.b16 %v352
    %v2043 = vunpack.c.l.b16 %v353
    %v2044 = vunpack.c.h.b16 %v353
    %v2045 = vunpack.c.l.b16 %v354
    %v2046 = vunpack.c.h.b16 %v354
    %v2047 = vunpack.c.l.b16 %v355
    %v2048 = vunpack.c.h.b16 %v355
    %v2049 = vunpack.c.l.b16 %v356
    %v2050 = vunpack.c.h.b16 %v356
    %v2051 = vunpack.c.l.b16 %v357
    %v2052 = vunpack.c.h.b16 %v357
    %v2053 = vunpack.c.l.b16 %v358
    %v2054 = vunpack.c.h.b16 %v358
    %v2055 = vunpack.c.l.b16 %v359
    %v2056 = vunpack.c.h.b16 %v359
    %v2057 = vunpack.c.l.b16 %v360
    %v2058 = vunpack.c.h.b16 %v360
    %v2059 = vunpack.c.l.b16 %v361
    %v2060 = vunpack.c.h.b16 %v361
    %v2061 = vunpack.c.l.b16 %v362
    %v2062 = vunpack.c.h.b16 %v362
    %v2063 = vunpack.c.l.b16 %v363
    %v2064 = vunpack.c.h.b16 %v363
    %v2065 = vunpack.c.l.b16 %v364
    %v2066 = vunpack.c.h.b16 %v364
    %v2067 = vunpack.c.l.b16 %v365
    %v2068 = vunpack.c.h.b16 %v365
    %v2069 = vunpack.c.l.b16 %v366
    %v2070 = vunpack.c.h.b16 %v366
    %v2071 = vunpack.c.l.b16 %v367
    %v2072 = vunpack.c.h.b16 %v367
    %v2073 = vunpack.c.l.b16 %v368
    %v2074 = vunpack.c.h.b16 %v368
    %v2075 = vunpack.c.l.b16 %v369
    %v2076 = vunpack.c.h.b16 %v369
    %v2077 = vunpack.c.l.b16 %v370
    %v2078 = vunpack.c.h.b16 %v370
    %v2079 = vunpack.c.l.b16 %v371
    %v2080 = vunpack.c.h.b16 %v371
    %v2081 = vunpack.c.l.b16 %v372
    %v2082 = vunpack.c.h.b16 %v372
    %v2083 = vunpack.c.l.b16 %v373
    %v2084 = vunpack.c.h.b16 %v373
    %v2085 = vunpack.c.l.b16 %v374
    %v2086 = vunpack.c.h.b16 %v374
    %v2087 = vunpack.c.l.b16 %v375
    %v2088 = vunpack.c.h.b16 %v375
    %v2089 = vunpack.c.l.b16 %v376
    %v2090 = vunpack.c.h.b16 %v376
    %v2091 = vunpack.c.l.b16 %v377
    %v2092 = vunpack.c.h.b16 %v377
    %v2093 = vunpack.c.l.b16 %v378
    %v2094 = vunpack.c.h.b16 %v378
    %v2095 = vunpack.c.l.b16 %v379
    %v2096 = vunpack.c.h.b16 %v379
    %v2097 = vunpack.c.l.b16 %v380
    %v2098 = vunpack.c.h.b16 %v380
    %v2099 = vunpack.c.l.b16 %v381
    %v2100 = vunpack.c.h.b16 %v381
    %v2101 = vunpack.c.l.b16 %v382
    %v2102 = vunpack.c.h.b16 %v382
    %v2103 = vunpack.c.l.b16 %v383
    %v2104 = vunpack.c.h.b16 %v383
    %v2105 = vunpack.c.l.b16 %v384
    %v2106 = vunpack.c.h.b16 %v384
    %v2107 = vunpack.c.l.b16 %v385
    %v2108 = vunpack.c.h.b16 %v385
    %v2109 = vunpack.c.l.b16 %v386
    %v2110 = vunpack.c.h.b16 %v386
    %v2111 = vunpack.c.l.b16 %v387
    %v2112 = vunpack.c.h.b16 %v387
    %v2113 = vunpack.c.l.b16 %v388
    %v2114 = vunpack.c.h.b16 %v388
    %v2115 = vunpack.c.l.b16 %v389
    %v2116 = vunpack.c.h.b16 %v389
    %v2117 = vunpack.c.l.b16 %v390
    %v2118 = vunpack.c.h.b16 %v390
    %v2119 = vunpack.c.l.b16 %v391
    %v2120 = vunpack.c.h.b16 %v391
    %v2121 = vunpack.c.l.b16 %v392
    %v2122 = vunpack.c.h.b16 %v392
    %v2123 = vunpack.c.l.b16 %v393
    %v2124 = vunpack.c.h.b16 %v393
    %v2125 = vunpack.c.l.b16 %v394
    %v2126 = vunpack.c.h.b16 %v394
    %v2127 = vunpack.c.l.b16 %v395
    %v2128 = vunpack.c.h.b16 %v395
    %v2129 = vunpack.c.l.b16 %v396
    %v2130 = vunpack.c.h.b16 %v396
    %v2131 = vunpack.c.l.b16 %v397
    %v2132 = vunpack.c.h.b16 %v397
    %v2133 = vunpack.c.l.b16 %v398
    %v2134 = vunpack.c.h.b16 %v398
    %v2135 = vunpack.c.l.b16 %v399
    %v2136 = vunpack.c.h.b16 %v399
    %v2137 = vunpack.c.l.b16 %v400
    %v2138 = vunpack.c.h.b16 %v400
    %v2139 = vunpack.c.l.b16 %v401
    %v2140 = vunpack.c.h.b16 %v401
    %v2141 = vunpack.c.l.b16 %v402
    %v2142 = vunpack.c.h.b16 %v402
    %v2143 = vunpack.c.l.b16 %v403
    %v2144 = vunpack.c.h.b16 %v403
    %v2145 = vunpack.c.l.b16 %v404
    %v2146 = vunpack.c.h.b16 %v404
    %v2147 = vunpack.c.l.b16 %v405
    %v2148 = vunpack.c.h.b16 %v405
    %v2149 = vunpack.c.l.b16 %v406
    %v2150 = vunpack.c.h.b16 %v406
    %v2151 = vunpack.c.l.b16 %v407
    %v2152 = vunpack.c.h.b16 %v407
    %v2153 = vunpack.c.l.b16 %v408
    %v2154 = vunpack.c.h.b16 %v408
    %v2155 = vunpack.c.l.b16 %v409
    %v2156 = vunpack.c.h.b16 %v409
    %v2157 = vunpack.c.l.b16 %v410
    %v2158 = vunpack.c.h.b16 %v410
    %v2159 = vunpack.c.l.b16 %v411
    %v2160 = vunpack.c.h.b16 %v411
    %v2161 = vunpack.c.l.b16 %v412
    %v2162 = vunpack.c.h.b16 %v412
    %v2163 = vunpack.c.l.b16 %v413
    %v2164 = vunpack.c.h.b16 %v413
    %v2165 = vunpack.c.l.b16 %v414
    %v2166 = vunpack.c.h.b16 %v414
    %v2167 = vunpack.c.l.b16 %v415
    %v2168 = vunpack.c.h.b16 %v415
    %v2169 = vunpack.c.l.b16 %v416
    %v2170 = vunpack.c.h.b16 %v416
    %v2171 = vunpack.c.l.b16 %v417
    %v2172 = vunpack.c.h.b16 %v417
    %v2173 = vunpack.c.l.b16 %v418
    %v2174 = vunpack.c.h.b16 %v418
    %v2175 = vunpack.c.l.b16 %v419
    %v2176 = vunpack.c.h.b16 %v419
    %v2177 = vunpack.c.l.b16 %v420
    %v2178 = vunpack.c.h.b16 %v420
    %v2179 = vunpack.c.l.b16 %v421
    %v2180 = vunpack.c.h.b16 %v421
    %v2181 = vunpack.c.l.b16 %v422
    %v2182 = vunpack.c.h.b16 %v422
    %v2183 = vunpack.c.l.b16 %v423
    %v2184 = vunpack.c.h.b16 %v423
    %v2185 = vunpack.c.l.b16 %v424
    %v2186 = vunpack.c.h.b16 %v424
    %v2187 = vunpack.c.l.b16 %v425
    %v2188 = vunpack.c.h.b16 %v425
    %v2189 = vunpack.c.l.b16 %v426
    %v2190 = vunpack.c.h.b16 %v426
    %v2191 = vunpack.c.l.b16 %v427
    %v2192 = vunpack.c.h.b16 %v427
    %v2193 = vunpack.c.l.b16 %v428
    %v2194 = vunpack.c.h.b16 %v428
    %v2195 = vunpack.c.l.b16 %v429
    %v2196 = vunpack.c.h.b16 %v429
    %v2197 = vunpack.c.l.b16 %v430
    %v2198 = vunpack.c.h.b16 %v430
    %v2199 = vunpack.c.l.b16 %v431
    %v2200 = vunpack.c.h.b16 %v431
    %v2201 = vunpack.c.l.b16 %v432
    %v2202 = vunpack.c.h.b16 %v432
    %v2203 = vunpack.c.l.b16 %v433
    %v2204 = vunpack.c.h.b16 %v433
    %v2205 = vunpack.c.l.b16 %v434
    %v2206 = vunpack.c.h.b16 %v434
    %v2207 = vunpack.c.l.b16 %v435
    %v2208 = vunpack.c.h.b16 %v435
    %v2209 = vunpack.c.l.b16 %v436
    %v2210 = vunpack.c.h.b16 %v436
    %v2211 = vunpack.c.l.b16 %v437
    %v2212 = vunpack.c.h.b16 %v437
    %v2213 = vunpack.c.l.b16 %v438
    %v2214 = vunpack.c.h.b16 %v438
    %v2215 = vunpack.c.l.b16 %v439
    %v2216 = vunpack.c.h.b16 %v439
    %v2217 = vunpack.c.l.b16 %v440
    %v2218 = vunpack.c.h.b16 %v440
    %v2219 = vunpack.c.l.b16 %v441
    %v2220 = vunpack.c.h.b16 %v441
    %v2221 = vunpack.c.l.b16 %v442
    %v2222 = vunpack.c.h.b16 %v442
    %v2223 = vunpack.c.l.b16 %v443
    %v2224 = vunpack.c.h.b16 %v443
    %v2225 = vunpack.c.l.b16 %v444
    %v2226 = vunpack.c.h.b16 %v444
    %v2227 = vunpack.c.l.b16 %v445
    %v2228 = vunpack.c.h.b16 %v445
    %v2229 = vunpack.c.l.b16 %v446
    %v2230 = vunpack.c.h.b16 %v446
    %v2231 = vunpack.c.l.b16 %v447
    %v2232 = vunpack.c.h.b16 %v447
    %v2233 = vunpack.c.l.b16 %v448
    %v2234 = vunpack.c.h.b16 %v448
    %v2235 = vunpack.c.l.b16 %v449
    %v2236 = vunpack.c.h.b16 %v449
    %v2237 = vunpack.c.l.b16 %v450
    %v2238 = vunpack.c.h.b16 %v450
    %v2239 = vunpack.c.l.b16 %v451
    %v2240 = vunpack.c.h.b16 %v451
    %v2241 = vunpack.c.l.b16 %v452
    %v2242 = vunpack.c.h.b16 %v452
    %v2243 = vunpack.c.l.b16 %v453
    %v2244 = vunpack.c.h.b16 %v453
    %v2245 = vunpack.c.l.b16 %v454
    %v2246 = vunpack.c.h.b16 %v454
    %v2247 = vunpack.c.l.b16 %v455
    %v2248 = vunpack.c.h.b16 %v455
    %v2249 = vunpack.c.l.b16 %v456
    %v2250 = vunpack.c.h.b16 %v456
    %v2251 = vunpack.c.l.b16 %v457
    %v2252 = vunpack.c.h.b16 %v457
    %v2253 = vunpack.c.l.b16 %v458
    %v2254 = vunpack.c.h.b16 %v458
    %v2255 = vunpack.c.l.b16 %v459
    %v2256 = vunpack.c.h.b16 %v459
    %v2257 = vunpack.c.l.b16 %v460
    %v2258 = vunpack.c.h.b16 %v460
    %v2259 = vunpack.c.l.b16 %v461
    %v2260 = vunpack.c.h.b16 %v461
    %v2261 = vunpack.c.l.b16 %v462
    %v2262 = vunpack.c.h.b16 %v462
    %v2263 = vunpack.c.l.b16 %v463
    %v2264 = vunpack.c.h.b16 %v463
    %v2265 = vunpack.c.l.b16 %v464
    %v2266 = vunpack.c.h.b16 %v464
    %v2267 = vunpack.c.l.b16 %v465
    %v2268 = vunpack.c.h.b16 %v465
    %v2269 = vunpack.c.l.b16 %v466
    %v2270 = vunpack.c.h.b16 %v466
    %v2271 = vunpack.c.l.b16 %v467
    %v2272 = vunpack.c.h.b16 %v467
    %v2273 = vunpack.c.l.b16 %v468
    %v2274 = vunpack.c.h.b16 %v468
    %v2275 = vunpack.c.l.b16 %v469
    %v2276 = vunpack.c.h.b16 %v469
    %v2277 = vunpack.c.l.b16 %v470
    %v2278 = vunpack.c.h.b16 %v470
    %v2279 = vunpack.c.l.b16 %v471
    %v2280 = vunpack.c.h.b16 %v471
    %v2281 = vunpack.c.l.b16 %v472
    %v2282 = vunpack.c.h.b16 %v472
    %v2283 = vunpack.c.l.b16 %v473
    %v2284 = vunpack.c.h.b16 %v473
    %v2285 = vunpack.c.l.b16 %v474
    %v2286 = vunpack.c.h.b16 %v474
    %v2287 = vunpack.c.l.b16 %v475
    %v2288 = vunpack.c.h.b16 %v475
    %v2289 = vunpack.c.l.b16 %v476
    %v2290 = vunpack.c.h.b16 %v476
    %v2291 = vunpack.c.l.b16 %v477
    %v2292 = vunpack.c.h.b16 %v477
    %v2293 = vunpack.c.l.b16 %v478
    %v2294 = vunpack.c.h.b16 %v478
    %v2295 = vunpack.c.l.b16 %v479
    %v2296 = vunpack.c.h.b16 %v479
    %v2297 = vunpack.c.l.b16 %v480
    %v2298 = vunpack.c.h.b16 %v480
    %v2299 = vunpack.c.l.b16 %v481
    %v2300 = vunpack.c.h.b16 %v481
    %v2301 = vunpack.c.l.b16 %v482
    %v2302 = vunpack.c.h.b16 %v482
    %v2303 = vunpack.c.l.b16 %v483
    %v2304 = vunpack.c.h.b16 %v483
    %v2305 = vunpack.c.l.b16 %v484
    %v2306 = vunpack.c.h.b16 %v484
    %v2307 = vunpack.c.l.b16 %v485
    %v2308 = vunpack.c.h.b16 %v485
    %v2309 = vunpack.c.l.b16 %v486
    %v2310 = vunpack.c.h.b16 %v486
    %v2311 = vunpack.c.l.b16 %v487
    %v2312 = vunpack.c.h.b16 %v487
    %v2313 = vunpack.c.l.b16 %v488
    %v2314 = vunpack.c.h.b16 %v488
    %v2315 = vunpack.c.l.b16 %v489
    %v2316 = vunpack.c.h.b16 %v489
    %v2317 = vunpack.c.l.b16 %v490
    %v2318 = vunpack.c.h.b16 %v490
    %v2319 = vunpack.c.l.b16 %v491
    %v2320 = vunpack.c.h.b16 %v491
    %v2321 = vunpack.c.l.b16 %v492
    %v2322 = vunpack.c.h.b16 %v492
    %v2323 = vunpack.c.l.b16 %v493
    %v2324 = vunpack.c.h.b16 %v493
    %v2325 = vunpack.c.l.b16 %v494
    %v2326 = vunpack.c.h.b16 %v494
    %v2327 = vunpack.c.l.b16 %v495
    %v2328 = vunpack.c.h.b16 %v495
    %v2329 = vunpack.c.l.b16 %v496
    %v2330 = vunpack.c.h.b16 %v496
    %v2331 = vunpack.c.l.b16 %v497
    %v2332 = vunpack.c.h.b16 %v497
    %v2333 = vunpack.c.l.b16 %v498
    %v2334 = vunpack.c.h.b16 %v498
    %v2335 = vunpack.c.l.b16 %v499
    %v2336 = vunpack.c.h.b16 %v499
    %v2337 = vunpack.c.l.b16 %v500
    %v2338 = vunpack.c.h.b16 %v500
    %v2339 = vunpack.c.l.b16 %v501
    %v2340 = vunpack.c.h.b16 %v501
    %v2341 = vunpack.c.l.b16 %v502
    %v2342 = vunpack.c.h.b16 %v502
    %v2343 = vunpack.c.l.b16 %v503
    %v2344 = vunpack.c.h.b16 %v503
    %v2345 = vunpack.c.l.b16 %v504
    %v2346 = vunpack.c.h.b16 %v504
    %v2347 = vunpack.c.l.b16 %v505
    %v2348 = vunpack.c.h.b16 %v505
    %v2349 = vunpack.c.l.b16 %v506
    %v2350 = vunpack.c.h.b16 %v506
    %v2351 = vunpack.c.l.b16 %v507
    %v2352 = vunpack.c.h.b16 %v507
    %v2353 = vunpack.c.l.b16 %v508
    %v2354 = vunpack.c.h.b16 %v508
    %v2355 = vunpack.c.l.b16 %v509
    %v2356 = vunpack.c.h.b16 %v509
    %v2357 = vunpack.c.l.b16 %v510
    %v2358 = vunpack.c.h.b16 %v510
    %v2359 = vunpack.c.l.b16 %v511
    %v2360 = vunpack.c.h.b16 %v511
    %v2361 = vunpack.c.l.b16 %v512
    %v2362 = vunpack.c.h.b16 %v512
    %v2363 = vunpack.c.l.b16 %v513
    %v2364 = vunpack.c.h.b16 %v513
    %v2365 = vunpack.c.l.b16 %v514
    %v2366 = vunpack.c.h.b16 %v514
    %v2367 = vunpack.c.l.b16 %v515
    %v2368 = vunpack.c.h.b16 %v515
    %v2369 = vunpack.c.l.b16 %v516
    %v2370 = vunpack.c.h.b16 %v516
    %v2371 = vunpack.c.l.b16 %v517
    %v2372 = vunpack.c.h.b16 %v517
    %v2373 = vunpack.c.l.b16 %v518
    %v2374 = vunpack.c.h.b16 %v518
    %v2375 = vunpack.c.l.b16 %v519
    %v2376 = vunpack.c.h.b16 %v519
    %v2377 = vunpack.c.l.b16 %v520
    %v2378 = vunpack.c.h.b16 %v520
    %v2379 = vunpack.c.l.b16 %v521
    %v2380 = vunpack.c.h.b16 %v521
    %v2381 = vunpack.c.l.b16 %v522
    %v2382 = vunpack.c.h.b16 %v522
    %v2383 = vunpack.c.l.b16 %v523
    %v2384 = vunpack.c.h.b16 %v523
    %v2385 = vunpack.c.l.b16 %v524
    %v2386 = vunpack.c.h.b16 %v524
    %v2387 = vunpack.c.l.b16 %v525
    %v2388 = vunpack.c.h.b16 %v525
    %v2389 = vunpack.c.l.b16 %v526
    %v2390 = vunpack.c.h.b16 %v526
    %v2391 = vunpack.c.l.b16 %v527
    %v2392 = vunpack.c.h.b16 %v527
    %v2393 = vunpack.c.l.b16 %v528
    %v2394 = vunpack.c.h.b16 %v528
    %v2395 = vunpack.c.l.b16 %v529
    %v2396 = vunpack.c.h.b16 %v529
    %v2397 = vunpack.c.l.b16 %v530
    %v2398 = vunpack.c.h.b16 %v530
    %v2399 = vunpack.c.l.b16 %v531
    %v2400 = vunpack.c.h.b16 %v531
    %v2401 = vunpack.c.l.b16 %v532
    %v2402 = vunpack.c.h.b16 %v532
    %v2403 = vunpack.c.l.b16 %v533
    %v2404 = vunpack.c.h.b16 %v533
    %v2405 = vunpack.c.l.b16 %v534
    %v2406 = vunpack.c.h.b16 %v534
    %v2407 = vunpack.c.l.b16 %v535
    %v2408 = vunpack.c.h.b16 %v535
    %v2409 = vunpack.c.l.b16 %v536
    %v2410 = vunpack.c.h.b16 %v536
    %v2411 = vunpack.c.l.b16 %v537
    %v2412 = vunpack.c.h.b16 %v537
    %v2413 = vunpack.c.l.b16 %v538
    %v2414 = vunpack.c.h.b16 %v538
    %v2415 = vunpack.c.l.b16 %v539
    %v2416 = vunpack.c.h.b16 %v539
    %v2417 = vunpack.c.l.b16 %v540
    %v2418 = vunpack.c.h.b16 %v540
    %v2419 = vunpack.c.l.b16 %v541
    %v2420 = vunpack.c.h.b16 %v541
    %v2421 = vunpack.c.l.b16 %v542
    %v2422 = vunpack.c.h.b16 %v542
    %v2423 = vunpack.c.l.b16 %v543
    %v2424 = vunpack.c.h.b16 %v543
    %v2425 = vunpack.c.l.b16 %v544
    %v2426 = vunpack.c.h.b16 %v544
    %v2427 = vunpack.c.l.b16 %v545
    %v2428 = vunpack.c.h.b16 %v545
    %v2429 = vunpack.c.l.b16 %v546
    %v2430 = vunpack.c.h.b16 %v546
    %v2431 = vunpack.c.l.b16 %v547
    %v2432 = vunpack.c.h.b16 %v547
    %v2433 = vunpack.c.l.b16 %v548
    %v2434 = vunpack.c.h.b16 %v548
    %v2435 = vunpack.c.l.b16 %v549
    %v2436 = vunpack.c.h.b16 %v549
    %v2437 = vunpack.c.l.b16 %v550
    %v2438 = vunpack.c.h.b16 %v550
    %v2439 = vunpack.c.l.b16 %v551
    %v2440 = vunpack.c.h.b16 %v551
    %v2441 = vunpack.c.l.b16 %v552
    %v2442 = vunpack.c.h.b16 %v552
    %v2443 = vunpack.c.l.b16 %v553
    %v2444 = vunpack.c.h.b16 %v553
    %v2445 = vunpack.c.l.b16 %v554
    %v2446 = vunpack.c.h.b16 %v554
    %v2447 = vunpack.c.l.b16 %v555
    %v2448 = vunpack.c.h.b16 %v555
    %v2449 = vunpack.c.l.b16 %v556
    %v2450 = vunpack.c.h.b16 %v556
    %v2451 = vunpack.c.l.b16 %v557
    %v2452 = vunpack.c.h.b16 %v557
    %v2453 = vunpack.c.l.b16 %v558
    %v2454 = vunpack.c.h.b16 %v558
    %v2455 = vunpack.c.l.b16 %v559
    %v2456 = vunpack.c.h.b16 %v559
    %v2457 = vunpack.c.l.b16 %v560
    %v2458 = vunpack.c.h.b16 %v560
    %v2459 = vunpack.c.l.b16 %v561
    %v2460 = vunpack.c.h.b16 %v561
    %v2461 = vunpack.c.l.b16 %v562
    %v2462 = vunpack.c.h.b16 %v562
    %v2463 = vunpack.c.l.b16 %v563
    %v2464 = vunpack.c.h.b16 %v563
    %v2465 = vunpack.c.l.b16 %v564
    %v2466 = vunpack.c.h.b16 %v564
    %v2467 = vpack.c.b16 %v1883, %v1875
    %v2468 = vpack.c.b16 %v1884, %v1876
    %v2469 = vpack.c.b16 %v1885, %v1877
    %v2470 = vpack.c.b16 %v1886, %v1878
    %v2471 = vpack.c.b16 %v1887, %v1879
    %v2472 = vpack.c.b16 %v1888, %v1880
    %v2473 = vpack.c.b16 %v1889, %v1881
    %v2474 = vpack.c.b16 %v1890, %v1882
    %v2475 = vpack.c.b16 %v1899, %v1891
    %v2476 = vpack.c.b16 %v1900, %v1892
    %v2477 = vpack.c.b16 %v1901, %v1893
    %v2478 = vpack.c.b16 %v1902, %v1894
    %v2479 = vpack.c.b16 %v1903, %v1895
    %v2480 = vpack.c.b16 %v1904, %v1896
    %v2481 = vpack.c.b16 %v1905, %v1897
    %v2482 = vpack.c.b16 %v1906, %v1898
    %v2483 = vpack.c.b16 %v1915, %v1907
    %v2484 = vpack.c.b16 %v1916, %v1908
    %v2485 = vpack.c.b16 %v1917, %v1909
    %v2486 = vpack.c.b16 %v1918, %v1910
    %v2487 = vpack.c.b16 %v1919, %v1911
    %v2488 = vpack.c.b16 %v1920, %v1912
    %v2489 = vpack.c.b16 %v1921, %v1913
    %v2490 = vpack.c.b16 %v1922, %v1914
    %v2491 = vpack.c.b16 %v1931, %v1923
    %v2492 = vpack.c.b16 %v1932, %v1924
    %v2493 = vpack.c.b16 %v1933, %v1925
    %v2494 = vpack.c.b16 %v1934, %v1926
    %v2495 = vpack.c.b16 %v1935, %v1927
    %v2496 = vpack.c.b16 %v1936, %v1928
    %v2497 = vpack.c.b16 %v1937, %v1929
    %v2498 = vpack.c.b16 %v1938, %v1930
    %v2499 = vpack.c.b16 %v1947, %v1939
    %v2500 = vpack.c.b16 %v1948, %v1940
    %v2501 = vpack.c.b16 %v1949, %v1941
    %v2502 = vpack.c.b16 %v1950, %v1942
    %v2503 = vpack.c.b16 %v1951, %v1943
    %v2504 = vpack.c.b16 %v1952, %v1944
    %v2505 = vpack.c.b16 %v1953, %v1945
    %v2506 = vpack.c.b16 %v1954, %v1946
    %v2507 = vpack.c.b16 %v1963, %v1955
    %v2508 = vpack.c.b16 %v1964, %v1956
    %v2509 = vpack.c.b16 %v1965, %v1957
    %v2510 = vpack.c.b16 %v1966, %v1958
    %v2511 = vpack.c.b16 %v1967, %v1959
    %v2512 = vpack.c.b16 %v1968, %v1960
    %v2513 = vpack.c.b16 %v1969, %v1961
    %v2514 = vpack.c.b16 %v1970, %v1962
    %v2515 = vpack.c.b16 %v1979, %v1971
    %v2516 = vpack.c.b16 %v1980, %v1972
    %v2517 = vpack.c.b16 %v1981, %v1973
    %v2518 = vpack.c.b16 %v1982, %v1974
    %v2519 = vpack.c.b16 %v1983, %v1975
    %v2520 = vpack.c.b16 %v1984, %v1976
    %v2521 = vpack.c.b16 %v1985, %v1977
    %v2522 = vpack.c.b16 %v1986, %v1978
    %v2523 = vpack.c.b16 %v1995, %v1987
    %v2524 = vpack.c.b16 %v1996, %v1988
    %v2525 = vpack.c.b16 %v1997, %v1989
    %v2526 = vpack.c.b16 %v1998, %v1990
    %v2527 = vpack.c.b16 %v1999, %v1991
    %v2528 = vpack.c.b16 %v2000, %v1992
    %v2529 = vpack.c.b16 %v2001, %v1993
    %v2530 = vpack.c.b16 %v2002, %v1994
    %v2531 = vpack.c.b16 %v2011, %v2003
    %v2532 = vpack.c.b16 %v2012, %v2004
    %v2533 = vpack.c.b16 %v2013, %v2005
    %v2534 = vpack.c.b16 %v2014, %v2006
    %v2535 = vpack.c.b16 %v2015, %v2007
    %v2536 = vpack.c.b16 %v2016, %v2008
    %v2537 = vpack.c.b16 %v2017, %v2009
    %v2538 = vpack.c.b16 %v2018, %v2010
    %v2539 = vpack.c.b16 %v2027, %v2019
    %v2540 = vpack.c.b16 %v2028, %v2020
    %v2541 = vpack.c.b16 %v2029, %v2021
    %v2542 = vpack.c.b16 %v2030, %v2022
    %v2543 = vpack.c.b16 %v2031, %v2023
    %v2544 = vpack.c.b16 %v2032, %v2024
    %v2545 = vpack.c.b16 %v2033, %v2025
    %v2546 = vpack.c.b16 %v2034, %v2026
    %v2547 = vpack.c.b16 %v2043, %v2035
    %v2548 = vpack.c.b16 %v2044, %v2036
    %v2549 = vpack.c.b16 %v2045, %v2037
    %v2550 = vpack.c.b16 %v2046, %v2038
    %v2551 = vpack.c.b16 %v2047, %v2039
    %v2552 = vpack.c.b16 %v2048, %v2040
    %v2553 = vpack.c.b16 %v2049, %v2041
    %v2554 = vpack.c.b16 %v2050, %v2042
    %v2555 = vpack.c.b16 %v2059, %v2051
    %v2556 = vpack.c.b16 %v2060, %v2052
    %v2557 = vpack.c.b16 %v2061, %v2053
    %v2558 = vpack.c.b16 %v2062, %v2054
    %v2559 = vpack.c.b16 %v2063, %v2055
    %v2560 = vpack.c.b16 %v2064, %v2056
    %v2561 = vpack.c.b16 %v2065, %v2057
    %v2562 = vpack.c.b16 %v2066, %v2058
    %v2563 = vpack.c.b16 %v2075, %v2067
    %v2564 = vpack.c.b16 %v2076, %v2068
    %v2565 = vpack.c.b16 %v2077, %v2069
    %v2566 = vpack.c.b16 %v2078, %v2070
    %v2567 = vpack.c.b16 %v2079, %v2071
    %v2568 = vpack.c.b16 %v2080, %v2072
    %v2569 = vpack.c.b16 %v2081, %v2073
    %v2570 = vpack.c.b16 %v2082, %v2074
    %v2571 = vpack.c.b16 %v2091, %v2083
    %v2572 = vpack.c.b16 %v2092, %v2084
    %v2573 = vpack.c.b16 %v2093, %v2085
    %v2574 = vpack.c.b16 %v2094, %v2086
    %v2575 = vpack.c.b16 %v2095, %v2087
    %v2576 = vpack.c.b16 %v2096, %v2088
    %v2577 = vpack.c.b16 %v2097, %v2089
    %v2578 = vpack.c.b16 %v2098, %v2090
    %v2579 = vpack.c.b16 %v2107, %v2099
    %v2580 = vpack.c.b16 %v2108, %v2100
    %v2581 = vpack.c.b16 %v2109, %v2101
    %v2582 = vpack.c.b16 %v2110, %v2102
    %v2583 = vpack.c.b16 %v2111, %v2103
    %v2584 = vpack.c.b16 %v2112, %v2104
    %v2585 = vpack.c.b16 %v2113, %v2105
    %v2586 = vpack.c.b16 %v2114, %v2106
    %v2587 = vpack.c.b16 %v2123, %v2115
    %v2588 = vpack.c.b16 %v2124, %v2116
    %v2589 = vpack.c.b16 %v2125, %v2117
    %v2590 = vpack.c.b16 %v2126, %v2118
    %v2591 = vpack.c.b16 %v2127, %v2119
    %v2592 = vpack.c.b16 %v2128, %v2120
    %v2593 = vpack.c.b16 %v2129, %v2121
    %v2594 = vpack.c.b16 %v2130, %v2122
    %v2595 = vpack.c.b16 %v2139, %v2131
    %v2596 = vpack.c.b16 %v2140, %v2132
    %v2597 = vpack.c.b16 %v2141, %v2133
    %v2598 = vpack.c.b16 %v2142, %v2134
    %v2599 = vpack.c.b16 %v2143, %v2135
    %v2600 = vpack.c.b16 %v2144, %v2136
    %v2601 = vpack.c.b16 %v2145, %v2137
    %v2602 = vpack.c.b16 %v2146, %v2138
    %v2603 = vpack.c.b16 %v2155, %v2147
    %v2604 = vpack.c.b16 %v2156, %v2148
    %v2605 = vpack.c.b16 %v2157, %v2149
    %v2606 = vpack.c.b16 %v2158, %v2150
    %v2607 = vpack.c.b16 %v2159, %v2151
    %v2608 = vpack.c.b16 %v2160, %v2152
    %v2609 = vpack.c.b16 %v2161, %v2153
    %v2610 = vpack.c.b16 %v2162, %v2154
    %v2611 = vpack.c.b16 %v2171, %v2163
    %v2612 = vpack.c.b16 %v2172, %v2164
    %v2613 = vpack.c.b16 %v2173, %v2165
    %v2614 = vpack.c.b16 %v2174, %v2166
    %v2615 = vpack.c.b16 %v2175, %v2167
    %v2616 = vpack.c.b16 %v2176, %v2168
    %v2617 = vpack.c.b16 %v2177, %v2169
    %v2618 = vpack.c.b16 %v2178, %v2170
    %v2619 = vpack.c.b16 %v2187, %v2179
    %v2620 = vpack.c.b16 %v2188, %v2180
    %v2621 = vpack.c.b16 %v2189, %v2181
    %v2622 = vpack.c.b16 %v2190, %v2182
    %v2623 = vpack.c.b16 %v2191, %v2183
    %v2624 = vpack.c.b16 %v2192, %v2184
    %v2625 = vpack.c.b16 %v2193, %v2185
    %v2626 = vpack.c.b16 %v2194, %v2186
    %v2627 = vpack.c.b16 %v2203, %v2195
    %v2628 = vpack.c.b16 %v2204, %v2196
    %v2629 = vpack.c.b16 %v2205, %v2197
    %v2630 = vpack.c.b16 %v2206, %v2198
    %v2631 = vpack.c.b16 %v2207, %v2199
    %v2632 = vpack.c.b16 %v2208, %v2200
    %v2633 = vpack.c.b16 %v2209, %v2201
    %v2634 = vpack.c.b16 %v2210, %v2202
    %v2635 = vpack.c.b16 %v2219, %v2211
    %v2636 = vpack.c.b16 %v2220, %v2212
    %v2637 = vpack.c.b16 %v2221, %v2213
    %v2638 = vpack.c.b16 %v2222, %v2214
    %v2639 = vpack.c.b16 %v2223, %v2215
    %v2640 = vpack.c.b16 %v2224, %v2216
    %v2641 = vpack.c.b16 %v2225, %v2217
    %v2642 = vpack.c.b16 %v2226, %v2218
    %v2643 = vpack.c.b16 %v2235, %v2227
    %v2644 = vpack.c.b16 %v2236, %v2228
    %v2645 = vpack.c.b16 %v2237, %v2229
    %v2646 = vpack.c.b16 %v2238, %v2230
    %v2647 = vpack.c.b16 %v2239, %v2231
    %v2648 = vpack.c.b16 %v2240, %v2232
    %v2649 = vpack.c.b16 %v2241, %v2233
    %v2650 = vpack.c.b16 %v2242, %v2234
    %v2651 = vpack.c.b16 %v2251, %v2243
    %v2652 = vpack.c.b16 %v2252, %v2244
    %v2653 = vpack.c.b16 %v2253, %v2245
    %v2654 = vpack.c.b16 %v2254, %v2246
    %v2655 = vpack.c.b16 %v2255, %v2247
    %v2656 = vpack.c.b16 %v2256, %v2248
    %v2657 = vpack.c.b16 %v2257, %v2249
    %v2658 = vpack.c.b16 %v2258, %v2250
    %v2659 = vpack.c.b16 %v2267, %v2259
    %v2660 = vpack.c.b16 %v2268, %v2260
    %v2661 = vpack.c.b16 %v2269, %v2261
    %v2662 = vpack.c.b16 %v2270, %v2262
    %v2663 = vpack.c.b16 %v2271, %v2263
    %v2664 = vpack.c.b16 %v2272, %v2264
    %v2665 = vpack.c.b16 %v2273, %v2265
    %v2666 = vpack.c.b16 %v2274, %v2266
    %v2667 = vpack.c.b16 %v2283, %v2275
    %v2668 = vpack.c.b16 %v2284, %v2276
    %v2669 = vpack.c.b16 %v2285, %v2277
    %v2670 = vpack.c.b16 %v2286, %v2278
    %v2671 = vpack.c.b16 %v2287, %v2279
    %v2672 = vpack.c.b16 %v2288, %v2280
    %v2673 = vpack.c.b16 %v2289, %v2281
    %v2674 = vpack.c.b16 %v2290, %v2282
    %v2675 = vpack.c.b16 %v2299, %v2291
    %v2676 = vpack.c.b16 %v2300, %v2292
    %v2677 = vpack.c.b16 %v2301, %v2293
    %v2678 = vpack.c.b16 %v2302, %v2294
    %v2679 = vpack.c.b16 %v2303, %v2295
    %v2680 = vpack.c.b16 %v2304, %v2296
    %v2681 = vpack.c.b16 %v2305, %v2297
    %v2682 = vpack.c.b16 %v2306, %v2298
    %v2683 = vpack.c.b16 %v2315, %v2307
    %v2684 = vpack.c.b16 %v2316, %v2308
    %v2685 = vpack.c.b16 %v2317, %v2309
    %v2686 = vpack.c.b16 %v2318, %v2310
    %v2687 = vpack.c.b16 %v2319, %v2311
    %v2688 = vpack.c.b16 %v2320, %v2312
    %v2689 = vpack.c.b16 %v2321, %v2313
    %v2690 = vpack.c.b16 %v2322, %v2314
    %v2691 = vpack.c.b16 %v2331, %v2323
    %v2692 = vpack.c.b16 %v2332, %v2324
    %v2693 = vpack.c.b16 %v2333, %v2325
    %v2694 = vpack.c.b16 %v2334, %v2326
    %v2695 = vpack.c.b16 %v2335, %v2327
    %v2696 = vpack.c.b16 %v2336, %v2328
    %v2697 = vpack.c.b16 %v2337, %v2329
    %v2698 = vpack.c.b16 %v2338, %v2330
    %v2699 = vpack.c.b16 %v2347, %v2339
    %v2700 = vpack.c.b16 %v2348, %v2340
    %v2701 = vpack.c.b16 %v2349, %v2341
    %v2702 = vpack.c.b16 %v2350, %v2342
    %v2703 = vpack.c.b16 %v2351, %v2343
    %v2704 = vpack.c.b16 %v2352, %v2344
    %v2705 = vpack.c.b16 %v2353, %v2345
    %v2706 = vpack.c.b16 %v2354, %v2346
    %v2707 = vpack.c.b16 %v2363, %v2355
    %v2708 = vpack.c.b16 %v2364, %v2356
    %v2709 = vpack.c.b16 %v2365, %v2357
    %v2710 = vpack.c.b16 %v2366, %v2358
    %v2711 = vpack.c.b16 %v2367, %v2359
    %v2712 = vpack.c.b16 %v2368, %v2360
    %v2713 = vpack.c.b16 %v2369, %v2361
    %v2714 = vpack.c.b16 %v2370, %v2362
    %v2715 = vpack.c.b16 %v2379, %v2371
    %v2716 = vpack.c.b16 %v2380, %v2372
    %v2717 = vpack.c.b16 %v2381, %v2373
    %v2718 = vpack.c.b16 %v2382, %v2374
    %v2719 = vpack.c.b16 %v2383, %v2375
    %v2720 = vpack.c.b16 %v2384, %v2376
    %v2721 = vpack.c.b16 %v2385, %v2377
    %v2722 = vpack.c.b16 %v2386, %v2378
    %v2723 = vpack.c.b16 %v2395, %v2387
    %v2724 = vpack.c.b16 %v2396, %v2388
    %v2725 = vpack.c.b16 %v2397, %v2389
    %v2726 = vpack.c.b16 %v2398, %v2390
    %v2727 = vpack.c.b16 %v2399, %v2391
    %v2728 = vpack.c.b16 %v2400, %v2392
    %v2729 = vpack.c.b16 %v2401, %v2393
    %v2730 = vpack.c.b16 %v2402, %v2394
    %v2731 = vpack.c.b16 %v2411, %v2403
    %v2732 = vpack.c.b16 %v2412, %v2404
    %v2733 = vpack.c.b16 %v2413, %v2405
    %v2734 = vpack.c.b16 %v2414, %v2406
    %v2735 = vpack.c.b16 %v2415, %v2407
    %v2736 = vpack.c.b16 %v2416, %v2408
    %v2737 = vpack.c.b16 %v2417, %v2409
    %v2738 = vpack.c.b16 %v2418, %v2410
    %v2739 = vpack.c.b16 %v2427, %v2419
    %v2740 = vpack.c.b16 %v2428, %v2420
    %v2741 = vpack.c.b16 %v2429, %v2421
    %v2742 = vpack.c.b16 %v2430, %v2422
    %v2743 = vpack.c.b16 %v2431, %v2423
    %v2744 = vpack.c.b16 %v2432, %v2424
    %v2745 = vpack.c.b16 %v2433, %v2425
    %v2746 = vpack.c.b16 %v2434, %v2426
    %v2747 = vpack.c.b16 %v2443, %v2435
    %v2748 = vpack.c.b16 %v2444, %v2436
    %v2749 = vpack.c.b16 %v2445, %v2437
    %v2750 = vpack.c.b16 %v2446, %v2438
    %v2751 = vpack.c.b16 %v2447, %v2439
    %v2752 = vpack.c.b16 %v2448, %v2440
    %v2753 = vpack.c.b16 %v2449, %v2441
    %v2754 = vpack.c.b16 %v2450, %v2442
    %v2755 = vpack.c.b16 %v2459, %v2451
    %v2756 = vpack.c.b16 %v2460, %v2452
    %v2757 = vpack.c.b16 %v2461, %v2453
    %v2758 = vpack.c.b16 %v2462, %v2454
    %v2759 = vpack.c.b16 %v2463, %v2455
    %v2760 = vpack.c.b16 %v2464, %v2456
    %v2761 = vpack.c.b16 %v2465, %v2457
    %v2762 = vpack.c.b16 %v2466, %v2458
    %vm3059 = vcmask 654336
    %v3061 = vsel %vm3059, %v1574, 0
    %3063 = vmatprep.subr.bf16.mxu0 %v2468
    %3064 = vmatpush1.bf16.msra.mxu0 %v2467
    %3065 = vmatprep.subr.bf16.mxu0 %v2476
    %3066 = vmatpush1.bf16.msra.mxu0 %v2475
    %3067 = vmatprep.subr.bf16.mxu0 %v2484
    %3068 = vmatpush1.bf16.msra.mxu0 %v2483
    %3069 = vmatprep.subr.bf16.mxu0 %v2492
    %3070 = vmatpush1.bf16.msra.mxu0 %v2491
    %3071 = vmatprep.subr.bf16.mxu0 %v2500
    %3072 = vmatpush1.bf16.msra.mxu0 %v2499
    %3073 = vmatprep.subr.bf16.mxu0 %v2508
    %3074 = vmatpush1.bf16.msra.mxu0 %v2507
    %3075 = vmatprep.subr.bf16.mxu0 %v2516
    %3076 = vmatpush1.bf16.msra.mxu0 %v2515
    %3077 = vmatprep.subr.bf16.mxu0 %v2524
    %3078 = vmatpush1.bf16.msra.mxu0 %v2523
    %3079 = vmatprep.subr.bf16.mxu0 %v2532
    %3080 = vmatpush1.bf16.msra.mxu0 %v2531
    %3081 = vmatprep.subr.bf16.mxu0 %v2540
    %3082 = vmatpush1.bf16.msra.mxu0 %v2539
    %3083 = vmatprep.subr.bf16.mxu0 %v2548
    %3084 = vmatpush1.bf16.msra.mxu0 %v2547
    %3085 = vmatprep.subr.bf16.mxu0 %v2556
    %3086 = vmatpush1.bf16.msra.mxu0 %v2555
    %3087 = vmatprep.subr.bf16.mxu0 %v2564
    %3088 = vmatpush1.bf16.msra.mxu0 %v2563
    %3089 = vmatprep.subr.bf16.mxu0 %v2572
    %3090 = vmatpush1.bf16.msra.mxu0 %v2571
    %3091 = vmatprep.subr.bf16.mxu0 %v2580
    %3092 = vmatpush1.bf16.msra.mxu0 %v2579
    %3093 = vmatprep.subr.bf16.mxu0 %v2588
    %3094 = vmatpush1.bf16.msra.mxu0 %v2587
    %3095 = vmatprep.mubr.bf16.mxu0 %v1571
    %3096 = vmatmul.mubr.bf16.gmra.mrb[0].mxu0 %v1570
    %v3097 = vpop.f32.mrb[0].mxu0
    %v3098 = vadd.f32 %v1411, %v3097
    %v3099 = vpop.f32.mrb[0].mxu0
    %v3100 = vadd.f32 %v1413, %v3099
    %v3101 = vpop.f32.mrb[0].mxu0
    %v3102 = vpop.f32.mrb[0].mxu0
    %3103 = vdwg.mxu0
    %3104 = vmatprep.subr.bf16.mxu0 %v2596
    %3105 = vmatpush1.bf16.msra.mxu0 %v2595
    %3106 = vmatprep.subr.bf16.mxu0 %v2604
    %3107 = vmatpush1.bf16.msra.mxu0 %v2603
    %3108 = vmatprep.subr.bf16.mxu0 %v2612
    %3109 = vmatpush1.bf16.msra.mxu0 %v2611
    %3110 = vmatprep.subr.bf16.mxu0 %v2620
    %3111 = vmatpush1.bf16.msra.mxu0 %v2619
    %3112 = vmatprep.subr.bf16.mxu0 %v2628
    %3113 = vmatpush1.bf16.msra.mxu0 %v2627
    %3114 = vmatprep.subr.bf16.mxu0 %v2636
    %3115 = vmatpush1.bf16.msra.mxu0 %v2635
    %3116 = vmatprep.subr.bf16.mxu0 %v2644
    %3117 = vmatpush1.bf16.msra.mxu0 %v2643
    %3118 = vmatprep.subr.bf16.mxu0 %v2652
    %3119 = vmatpush1.bf16.msra.mxu0 %v2651
    %3120 = vmatprep.subr.bf16.mxu0 %v2660
    %3121 = vmatpush1.bf16.msra.mxu0 %v2659
    %3122 = vmatprep.subr.bf16.mxu0 %v2668
    %3123 = vmatpush1.bf16.msra.mxu0 %v2667
    %3124 = vmatprep.subr.bf16.mxu0 %v2676
    %3125 = vmatpush1.bf16.msra.mxu0 %v2675
    %3126 = vmatprep.subr.bf16.mxu0 %v2684
    %3127 = vmatpush1.bf16.msra.mxu0 %v2683
    %3128 = vmatprep.subr.bf16.mxu0 %v2692
    %3129 = vmatpush1.bf16.msra.mxu0 %v2691
    %3130 = vmatprep.subr.bf16.mxu0 %v2700
    %3131 = vmatpush1.bf16.msra.mxu0 %v2699
    %3132 = vmatprep.subr.bf16.mxu0 %v2708
    %3133 = vmatpush1.bf16.msra.mxu0 %v2707
    %3134 = vmatprep.subr.bf16.mxu0 %v2716
    %3135 = vmatpush1.bf16.msra.mxu0 %v2715
    %3136 = vmatprep.mubr.bf16.mxu0 %v1573
    %3137 = vmatmul.mubr.bf16.gmra.mrb[0].mxu0 %v1572
    %v3138 = vpop.f32.mrb[0].mxu0
    %v3139 = vadd.f32 %v3098, %v3138
    %v3140 = vpop.f32.mrb[0].mxu0
    %v3141 = vadd.f32 %v3100, %v3140
    %v3142 = vpop.f32.mrb[0].mxu0
    %v3143 = vpop.f32.mrb[0].mxu0
    %3144 = vdwg.mxu0
    %3145 = vmatprep.subr.bf16.mxu0 %v2724
    %3146 = vmatpush1.bf16.msra.mxu0 %v2723
    %3147 = vmatprep.subr.bf16.mxu0 %v2732
    %3148 = vmatpush1.bf16.msra.mxu0 %v2731
    %3149 = vmatprep.subr.bf16.mxu0 %v2740
    %3150 = vmatpush1.bf16.msra.mxu0 %v2739
    %3151 = vmatprep.subr.bf16.mxu0 %v2748
    %3152 = vmatpush1.bf16.msra.mxu0 %v2747
    %3153 = vmatprep.subr.bf16.mxu0 %v2756
    %3154 = vmatpush1.bf16.msra.mxu0 %v2755
    %3155 = vmatprep.subr.bf16.mxu0 0
    %3156 = vmatpush1.bf16.msra.mxu0 0
    %3157 = vmatprep.subr.bf16.mxu0 0
    %3158 = vmatpush1.bf16.msra.mxu0 0
    %3159 = vmatprep.subr.bf16.mxu0 0
    %3160 = vmatpush1.bf16.msra.mxu0 0
    %3161 = vmatprep.subr.bf16.mxu0 0
    %3162 = vmatpush1.bf16.msra.mxu0 0
    %3163 = vmatprep.subr.bf16.mxu0 0
    %3164 = vmatpush1.bf16.msra.mxu0 0
    %3165 = vmatprep.subr.bf16.mxu0 0
    %3166 = vmatpush1.bf16.msra.mxu0 0
    %3167 = vmatprep.subr.bf16.mxu0 0
    %3168 = vmatpush1.bf16.msra.mxu0 0
    %3169 = vmatprep.subr.bf16.mxu0 0
    %3170 = vmatpush1.bf16.msra.mxu0 0
    %3171 = vmatprep.subr.bf16.mxu0 0
    %3172 = vmatpush1.bf16.msra.mxu0 0
    %3173 = vmatprep.subr.bf16.mxu0 0
    %3174 = vmatpush1.bf16.msra.mxu0 0
    %3175 = vmatprep.subr.bf16.mxu0 0
    %3176 = vmatpush1.bf16.msra.mxu0 0
    %3177 = vmatprep.mubr.bf16.mxu0 0
    %3178 = vmatmul.mubr.bf16.gmra.mrb[0].mxu0 %v3061
    %v3179 = vpop.f32.mrb[0].mxu0
    %v3180 = vadd.f32 %v3139, %v3179
    %v3181 = vpop.f32.mrb[0].mxu0
    %v3182 = vadd.f32 %v3141, %v3181
    %v3183 = vpop.f32.mrb[0].mxu0
    %v3184 = vpop.f32.mrb[0].mxu0
    %3185 = vdwg.mxu0
    %3186 = vmatprep.subr.bf16.mxu0 %v2470
    %3187 = vmatpush1.bf16.msra.mxu0 %v2469
    %3188 = vmatprep.subr.bf16.mxu0 %v2478
    %3189 = vmatpush1.bf16.msra.mxu0 %v2477
    %3190 = vmatprep.subr.bf16.mxu0 %v2486
    %3191 = vmatpush1.bf16.msra.mxu0 %v2485
    %3192 = vmatprep.subr.bf16.mxu0 %v2494
    %3193 = vmatpush1.bf16.msra.mxu0 %v2493
    %3194 = vmatprep.subr.bf16.mxu0 %v2502
    %3195 = vmatpush1.bf16.msra.mxu0 %v2501
    %3196 = vmatprep.subr.bf16.mxu0 %v2510
    %3197 = vmatpush1.bf16.msra.mxu0 %v2509
    %3198 = vmatprep.subr.bf16.mxu0 %v2518
    %3199 = vmatpush1.bf16.msra.mxu0 %v2517
    %3200 = vmatprep.subr.bf16.mxu0 %v2526
    %3201 = vmatpush1.bf16.msra.mxu0 %v2525
    %3202 = vmatprep.subr.bf16.mxu0 %v2534
    %3203 = vmatpush1.bf16.msra.mxu0 %v2533
    %3204 = vmatprep.subr.bf16.mxu0 %v2542
    %3205 = vmatpush1.bf16.msra.mxu0 %v2541
    %3206 = vmatprep.subr.bf16.mxu0 %v2550
    %3207 = vmatpush1.bf16.msra.mxu0 %v2549
    %3208 = vmatprep.subr.bf16.mxu0 %v2558
    %3209 = vmatpush1.bf16.msra.mxu0 %v2557
    %3210 = vmatprep.subr.bf16.mxu0 %v2566
    %3211 = vmatpush1.bf16.msra.mxu0 %v2565
    %3212 = vmatprep.subr.bf16.mxu0 %v2574
    %3213 = vmatpush1.bf16.msra.mxu0 %v2573
    %3214 = vmatprep.subr.bf16.mxu0 %v2582
    %3215 = vmatpush1.bf16.msra.mxu0 %v2581
    %3216 = vmatprep.subr.bf16.mxu0 %v2590
    %3217 = vmatpush1.bf16.msra.mxu0 %v2589
    %3218 = vmatprep.mubr.bf16.mxu0 %v1571
    %3219 = vmatmul.mubr.bf16.gmra.mrb[0].mxu0 %v1570
    %v3220 = vpop.f32.mrb[0].mxu0
    %v3221 = vadd.f32 %v1452, %v3220
    %v3222 = vpop.f32.mrb[0].mxu0
    %v3223 = vadd.f32 %v1454, %v3222
    %v3224 = vpop.f32.mrb[0].mxu0
    %v3225 = vpop.f32.mrb[0].mxu0
    %3226 = vdwg.mxu0
    %3227 = vmatprep.subr.bf16.mxu0 %v2598
    %3228 = vmatpush1.bf16.msra.mxu0 %v2597
    %3229 = vmatprep.subr.bf16.mxu0 %v2606
    %3230 = vmatpush1.bf16.msra.mxu0 %v2605
    %3231 = vmatprep.subr.bf16.mxu0 %v2614
    %3232 = vmatpush1.bf16.msra.mxu0 %v2613
    %3233 = vmatprep.subr.bf16.mxu0 %v2622
    %3234 = vmatpush1.bf16.msra.mxu0 %v2621
    %3235 = vmatprep.subr.bf16.mxu0 %v2630
    %3236 = vmatpush1.bf16.msra.mxu0 %v2629
    %3237 = vmatprep.subr.bf16.mxu0 %v2638
    %3238 = vmatpush1.bf16.msra.mxu0 %v2637
    %3239 = vmatprep.subr.bf16.mxu0 %v2646
    %3240 = vmatpush1.bf16.msra.mxu0 %v2645
    %3241 = vmatprep.subr.bf16.mxu0 %v2654
    %3242 = vmatpush1.bf16.msra.mxu0 %v2653
    %3243 = vmatprep.subr.bf16.mxu0 %v2662
    %3244 = vmatpush1.bf16.msra.mxu0 %v2661
    %3245 = vmatprep.subr.bf16.mxu0 %v2670
    %3246 = vmatpush1.bf16.msra.mxu0 %v2669
    %3247 = vmatprep.subr.bf16.mxu0 %v2678
    %3248 = vmatpush1.bf16.msra.mxu0 %v2677
    %3249 = vmatprep.subr.bf16.mxu0 %v2686
    %3250 = vmatpush1.bf16.msra.mxu0 %v2685
    %3251 = vmatprep.subr.bf16.mxu0 %v2694
    %3252 = vmatpush1.bf16.msra.mxu0 %v2693
    %3253 = vmatprep.subr.bf16.mxu0 %v2702
    %3254 = vmatpush1.bf16.msra.mxu0 %v2701
    %3255 = vmatprep.subr.bf16.mxu0 %v2710
    %3256 = vmatpush1.bf16.msra.mxu0 %v2709
    %3257 = vmatprep.subr.bf16.mxu0 %v2718
    %3258 = vmatpush1.bf16.msra.mxu0 %v2717
    %3259 = vmatprep.mubr.bf16.mxu0 %v1573
    %3260 = vmatmul.mubr.bf16.gmra.mrb[0].mxu0 %v1572
    %v3261 = vpop.f32.mrb[0].mxu0
    %v3262 = vadd.f32 %v3221, %v3261
    %v3263 = vpop.f32.mrb[0].mxu0
    %v3264 = vadd.f32 %v3223, %v3263
    %v3265 = vpop.f32.mrb[0].mxu0
    %v3266 = vpop.f32.mrb[0].mxu0
    %3267 = vdwg.mxu0
    %3268 = vmatprep.subr.bf16.mxu0 %v2726
    %3269 = vmatpush1.bf16.msra.mxu0 %v2725
    %3270 = vmatprep.subr.bf16.mxu0 %v2734
    %3271 = vmatpush1.bf16.msra.mxu0 %v2733
    %3272 = vmatprep.subr.bf16.mxu0 %v2742
    %3273 = vmatpush1.bf16.msra.mxu0 %v2741
    %3274 = vmatprep.subr.bf16.mxu0 %v2750
    %3275 = vmatpush1.bf16.msra.mxu0 %v2749
    %3276 = vmatprep.subr.bf16.mxu0 %v2758
    %3277 = vmatpush1.bf16.msra.mxu0 %v2757
    %3278 = vmatprep.subr.bf16.mxu0 0
    %3279 = vmatpush1.bf16.msra.mxu0 0
    %3280 = vmatprep.subr.bf16.mxu0 0
    %3281 = vmatpush1.bf16.msra.mxu0 0
    %3282 = vmatprep.subr.bf16.mxu0 0
    %3283 = vmatpush1.bf16.msra.mxu0 0
    %3284 = vmatprep.subr.bf16.mxu0 0
    %3285 = vmatpush1.bf16.msra.mxu0 0
    %3286 = vmatprep.subr.bf16.mxu0 0
    %3287 = vmatpush1.bf16.msra.mxu0 0
    %3288 = vmatprep.subr.bf16.mxu0 0
    %3289 = vmatpush1.bf16.msra.mxu0 0
    %3290 = vmatprep.subr.bf16.mxu0 0
    %3291 = vmatpush1.bf16.msra.mxu0 0
    %3292 = vmatprep.subr.bf16.mxu0 0
    %3293 = vmatpush1.bf16.msra.mxu0 0
    %3294 = vmatprep.subr.bf16.mxu0 0
    %3295 = vmatpush1.bf16.msra.mxu0 0
    %3296 = vmatprep.subr.bf16.mxu0 0
    %3297 = vmatpush1.bf16.msra.mxu0 0
    %3298 = vmatprep.subr.bf16.mxu0 0
    %3299 = vmatpush1.bf16.msra.mxu0 0
    %3300 = vmatprep.mubr.bf16.mxu0 0
    %3301 = vmatmul.mubr.bf16.gmra.mrb[0].mxu0 %v3061
    %v3302 = vpop.f32.mrb[0].mxu0
    %v3303 = vadd.f32 %v3262, %v3302
    %v3304 = vpop.f32.mrb[0].mxu0
    %v3305 = vadd.f32 %v3264, %v3304
    %v3306 = vpop.f32.mrb[0].mxu0
    %v3307 = vpop.f32.mrb[0].mxu0
    %3308 = vdwg.mxu0
    %3309 = vmatprep.subr.bf16.mxu0 %v2472
    %3310 = vmatpush1.bf16.msra.mxu0 %v2471
    %3311 = vmatprep.subr.bf16.mxu0 %v2480
    %3312 = vmatpush1.bf16.msra.mxu0 %v2479
    %3313 = vmatprep.subr.bf16.mxu0 %v2488
    %3314 = vmatpush1.bf16.msra.mxu0 %v2487
    %3315 = vmatprep.subr.bf16.mxu0 %v2496
    %3316 = vmatpush1.bf16.msra.mxu0 %v2495
    %3317 = vmatprep.subr.bf16.mxu0 %v2504
    %3318 = vmatpush1.bf16.msra.mxu0 %v2503
    %3319 = vmatprep.subr.bf16.mxu0 %v2512
    %3320 = vmatpush1.bf16.msra.mxu0 %v2511
    %3321 = vmatprep.subr.bf16.mxu0 %v2520
    %3322 = vmatpush1.bf16.msra.mxu0 %v2519
    %3323 = vmatprep.subr.bf16.mxu0 %v2528
    %3324 = vmatpush1.bf16.msra.mxu0 %v2527
    %3325 = vmatprep.subr.bf16.mxu0 %v2536
    %3326 = vmatpush1.bf16.msra.mxu0 %v2535
    %3327 = vmatprep.subr.bf16.mxu0 %v2544
    %3328 = vmatpush1.bf16.msra.mxu0 %v2543
    %3329 = vmatprep.subr.bf16.mxu0 %v2552
    %3330 = vmatpush1.bf16.msra.mxu0 %v2551
    %3331 = vmatprep.subr.bf16.mxu0 %v2560
    %3332 = vmatpush1.bf16.msra.mxu0 %v2559
    %3333 = vmatprep.subr.bf16.mxu0 %v2568
    %3334 = vmatpush1.bf16.msra.mxu0 %v2567
    %3335 = vmatprep.subr.bf16.mxu0 %v2576
    %3336 = vmatpush1.bf16.msra.mxu0 %v2575
    %3337 = vmatprep.subr.bf16.mxu0 %v2584
    %3338 = vmatpush1.bf16.msra.mxu0 %v2583
    %3339 = vmatprep.subr.bf16.mxu0 %v2592
    %3340 = vmatpush1.bf16.msra.mxu0 %v2591
    %3341 = vmatprep.mubr.bf16.mxu0 %v1571
    %3342 = vmatmul.mubr.bf16.gmra.mrb[0].mxu0 %v1570
    %v3343 = vpop.f32.mrb[0].mxu0
    %v3344 = vadd.f32 %v1493, %v3343
    %v3345 = vpop.f32.mrb[0].mxu0
    %v3346 = vadd.f32 %v1495, %v3345
    %v3347 = vpop.f32.mrb[0].mxu0
    %v3348 = vpop.f32.mrb[0].mxu0
    %3349 = vdwg.mxu0
    %3350 = vmatprep.subr.bf16.mxu0 %v2600
    %3351 = vmatpush1.bf16.msra.mxu0 %v2599
    %3352 = vmatprep.subr.bf16.mxu0 %v2608
    %3353 = vmatpush1.bf16.msra.mxu0 %v2607
    %3354 = vmatprep.subr.bf16.mxu0 %v2616
    %3355 = vmatpush1.bf16.msra.mxu0 %v2615
    %3356 = vmatprep.subr.bf16.mxu0 %v2624
    %3357 = vmatpush1.bf16.msra.mxu0 %v2623
    %3358 = vmatprep.subr.bf16.mxu0 %v2632
    %3359 = vmatpush1.bf16.msra.mxu0 %v2631
    %3360 = vmatprep.subr.bf16.mxu0 %v2640
    %3361 = vmatpush1.bf16.msra.mxu0 %v2639
    %3362 = vmatprep.subr.bf16.mxu0 %v2648
    %3363 = vmatpush1.bf16.msra.mxu0 %v2647
    %3364 = vmatprep.subr.bf16.mxu0 %v2656
    %3365 = vmatpush1.bf16.msra.mxu0 %v2655
    %3366 = vmatprep.subr.bf16.mxu0 %v2664
    %3367 = vmatpush1.bf16.msra.mxu0 %v2663
    %3368 = vmatprep.subr.bf16.mxu0 %v2672
    %3369 = vmatpush1.bf16.msra.mxu0 %v2671
    %3370 = vmatprep.subr.bf16.mxu0 %v2680
    %3371 = vmatpush1.bf16.msra.mxu0 %v2679
    %3372 = vmatprep.subr.bf16.mxu0 %v2688
    %3373 = vmatpush1.bf16.msra.mxu0 %v2687
    %3374 = vmatprep.subr.bf16.mxu0 %v2696
    %3375 = vmatpush1.bf16.msra.mxu0 %v2695
    %3376 = vmatprep.subr.bf16.mxu0 %v2704
    %3377 = vmatpush1.bf16.msra.mxu0 %v2703
    %3378 = vmatprep.subr.bf16.mxu0 %v2712
    %3379 = vmatpush1.bf16.msra.mxu0 %v2711
    %3380 = vmatprep.subr.bf16.mxu0 %v2720
    %3381 = vmatpush1.bf16.msra.mxu0 %v2719
    %3382 = vmatprep.mubr.bf16.mxu0 %v1573
    %3383 = vmatmul.mubr.bf16.gmra.mrb[0].mxu0 %v1572
    %v3384 = vpop.f32.mrb[0].mxu0
    %v3385 = vadd.f32 %v3344, %v3384
    %v3386 = vpop.f32.mrb[0].mxu0
    %v3387 = vadd.f32 %v3346, %v3386
    %v3388 = vpop.f32.mrb[0].mxu0
    %v3389 = vpop.f32.mrb[0].mxu0
    %3390 = vdwg.mxu0
    %3391 = vmatprep.subr.bf16.mxu0 %v2728
    %3392 = vmatpush1.bf16.msra.mxu0 %v2727
    %3393 = vmatprep.subr.bf16.mxu0 %v2736
    %3394 = vmatpush1.bf16.msra.mxu0 %v2735
    %3395 = vmatprep.subr.bf16.mxu0 %v2744
    %3396 = vmatpush1.bf16.msra.mxu0 %v2743
    %3397 = vmatprep.subr.bf16.mxu0 %v2752
    %3398 = vmatpush1.bf16.msra.mxu0 %v2751
    %3399 = vmatprep.subr.bf16.mxu0 %v2760
    %3400 = vmatpush1.bf16.msra.mxu0 %v2759
    %3401 = vmatprep.subr.bf16.mxu0 0
    %3402 = vmatpush1.bf16.msra.mxu0 0
    %3403 = vmatprep.subr.bf16.mxu0 0
    %3404 = vmatpush1.bf16.msra.mxu0 0
    %3405 = vmatprep.subr.bf16.mxu0 0
    %3406 = vmatpush1.bf16.msra.mxu0 0
    %3407 = vmatprep.subr.bf16.mxu0 0
    %3408 = vmatpush1.bf16.msra.mxu0 0
    %3409 = vmatprep.subr.bf16.mxu0 0
    %3410 = vmatpush1.bf16.msra.mxu0 0
    %3411 = vmatprep.subr.bf16.mxu0 0
    %3412 = vmatpush1.bf16.msra.mxu0 0
    %3413 = vmatprep.subr.bf16.mxu0 0
    %3414 = vmatpush1.bf16.msra.mxu0 0
    %3415 = vmatprep.subr.bf16.mxu0 0
    %3416 = vmatpush1.bf16.msra.mxu0 0
    %3417 = vmatprep.subr.bf16.mxu0 0
    %3418 = vmatpush1.bf16.msra.mxu0 0
    %3419 = vmatprep.subr.bf16.mxu0 0
    %3420 = vmatpush1.bf16.msra.mxu0 0
    %3421 = vmatprep.subr.bf16.mxu0 0
    %3422 = vmatpush1.bf16.msra.mxu0 0
    %3423 = vmatprep.mubr.bf16.mxu0 0
    %3424 = vmatmul.mubr.bf16.gmra.mrb[0].mxu0 %v3061
    %v3425 = vpop.f32.mrb[0].mxu0
    %v3426 = vadd.f32 %v3385, %v3425
    %v3427 = vpop.f32.mrb[0].mxu0
    %v3428 = vadd.f32 %v3387, %v3427
    %v3429 = vpop.f32.mrb[0].mxu0
    %v3430 = vpop.f32.mrb[0].mxu0
    %3431 = vdwg.mxu0
    %3432 = vmatprep.subr.bf16.mxu0 %v2474
    %3433 = vmatpush1.bf16.msra.mxu0 %v2473
    %3434 = vmatprep.subr.bf16.mxu0 %v2482
    %3435 = vmatpush1.bf16.msra.mxu0 %v2481
    %3436 = vmatprep.subr.bf16.mxu0 %v2490
    %3437 = vmatpush1.bf16.msra.mxu0 %v2489
    %3438 = vmatprep.subr.bf16.mxu0 %v2498
    %3439 = vmatpush1.bf16.msra.mxu0 %v2497
    %3440 = vmatprep.subr.bf16.mxu0 %v2506
    %3441 = vmatpush1.bf16.msra.mxu0 %v2505
    %3442 = vmatprep.subr.bf16.mxu0 %v2514
    %3443 = vmatpush1.bf16.msra.mxu0 %v2513
    %3444 = vmatprep.subr.bf16.mxu0 %v2522
    %3445 = vmatpush1.bf16.msra.mxu0 %v2521
    %3446 = vmatprep.subr.bf16.mxu0 %v2530
    %3447 = vmatpush1.bf16.msra.mxu0 %v2529
    %3448 = vmatprep.subr.bf16.mxu0 %v2538
    %3449 = vmatpush1.bf16.msra.mxu0 %v2537
    %3450 = vmatprep.subr.bf16.mxu0 %v2546
    %3451 = vmatpush1.bf16.msra.mxu0 %v2545
    %3452 = vmatprep.subr.bf16.mxu0 %v2554
    %3453 = vmatpush1.bf16.msra.mxu0 %v2553
    %3454 = vmatprep.subr.bf16.mxu0 %v2562
    %3455 = vmatpush1.bf16.msra.mxu0 %v2561
    %3456 = vmatprep.subr.bf16.mxu0 %v2570
    %3457 = vmatpush1.bf16.msra.mxu0 %v2569
    %3458 = vmatprep.subr.bf16.mxu0 %v2578
    %3459 = vmatpush1.bf16.msra.mxu0 %v2577
    %3460 = vmatprep.subr.bf16.mxu0 %v2586
    %3461 = vmatpush1.bf16.msra.mxu0 %v2585
    %3462 = vmatprep.subr.bf16.mxu0 %v2594
    %3463 = vmatpush1.bf16.msra.mxu0 %v2593
    %3464 = vmatprep.mubr.bf16.mxu0 %v1571
    %3465 = vmatmul.mubr.bf16.gmra.mrb[0].mxu0 %v1570
    %v3466 = vpop.f32.mrb[0].mxu0
    %v3467 = vadd.f32 %v1534, %v3466
    %v3468 = vpop.f32.mrb[0].mxu0
    %v3469 = vadd.f32 %v1536, %v3468
    %v3470 = vpop.f32.mrb[0].mxu0
    %v3471 = vpop.f32.mrb[0].mxu0
    %3472 = vdwg.mxu0
    %3473 = vmatprep.subr.bf16.mxu0 %v2602
    %3474 = vmatpush1.bf16.msra.mxu0 %v2601
    %3475 = vmatprep.subr.bf16.mxu0 %v2610
    %3476 = vmatpush1.bf16.msra.mxu0 %v2609
    %3477 = vmatprep.subr.bf16.mxu0 %v2618
    %3478 = vmatpush1.bf16.msra.mxu0 %v2617
    %3479 = vmatprep.subr.bf16.mxu0 %v2626
    %3480 = vmatpush1.bf16.msra.mxu0 %v2625
    %3481 = vmatprep.subr.bf16.mxu0 %v2634
    %3482 = vmatpush1.bf16.msra.mxu0 %v2633
    %3483 = vmatprep.subr.bf16.mxu0 %v2642
    %3484 = vmatpush1.bf16.msra.mxu0 %v2641
    %3485 = vmatprep.subr.bf16.mxu0 %v2650
    %3486 = vmatpush1.bf16.msra.mxu0 %v2649
    %3487 = vmatprep.subr.bf16.mxu0 %v2658
    %3488 = vmatpush1.bf16.msra.mxu0 %v2657
    %3489 = vmatprep.subr.bf16.mxu0 %v2666
    %3490 = vmatpush1.bf16.msra.mxu0 %v2665
    %3491 = vmatprep.subr.bf16.mxu0 %v2674
    %3492 = vmatpush1.bf16.msra.mxu0 %v2673
    %3493 = vmatprep.subr.bf16.mxu0 %v2682
    %3494 = vmatpush1.bf16.msra.mxu0 %v2681
    %3495 = vmatprep.subr.bf16.mxu0 %v2690
    %3496 = vmatpush1.bf16.msra.mxu0 %v2689
    %3497 = vmatprep.subr.bf16.mxu0 %v2698
    %3498 = vmatpush1.bf16.msra.mxu0 %v2697
    %3499 = vmatprep.subr.bf16.mxu0 %v2706
    %3500 = vmatpush1.bf16.msra.mxu0 %v2705
    %3501 = vmatprep.subr.bf16.mxu0 %v2714
    %3502 = vmatpush1.bf16.msra.mxu0 %v2713
    %3503 = vmatprep.subr.bf16.mxu0 %v2722
    %3504 = vmatpush1.bf16.msra.mxu0 %v2721
    %3505 = vmatprep.mubr.bf16.mxu0 %v1573
    %3506 = vmatmul.mubr.bf16.gmra.mrb[0].mxu0 %v1572
    %v3507 = vpop.f32.mrb[0].mxu0
    %v3508 = vadd.f32 %v3467, %v3507
    %v3509 = vpop.f32.mrb[0].mxu0
    %v3510 = vadd.f32 %v3469, %v3509
    %v3511 = vpop.f32.mrb[0].mxu0
    %v3512 = vpop.f32.mrb[0].mxu0
    %3513 = vdwg.mxu0
    %3514 = vmatprep.subr.bf16.mxu0 %v2730
    %3515 = vmatpush1.bf16.msra.mxu0 %v2729
    %3516 = vmatprep.subr.bf16.mxu0 %v2738
    %3517 = vmatpush1.bf16.msra.mxu0 %v2737
    %3518 = vmatprep.subr.bf16.mxu0 %v2746
    %3519 = vmatpush1.bf16.msra.mxu0 %v2745
    %3520 = vmatprep.subr.bf16.mxu0 %v2754
    %3521 = vmatpush1.bf16.msra.mxu0 %v2753
    %3522 = vmatprep.subr.bf16.mxu0 %v2762
    %3523 = vmatpush1.bf16.msra.mxu0 %v2761
    %3524 = vmatprep.subr.bf16.mxu0 0
    %3525 = vmatpush1.bf16.msra.mxu0 0
    %3526 = vmatprep.subr.bf16.mxu0 0
    %3527 = vmatpush1.bf16.msra.mxu0 0
    %3528 = vmatprep.subr.bf16.mxu0 0
    %3529 = vmatpush1.bf16.msra.mxu0 0
    %3530 = vmatprep.subr.bf16.mxu0 0
    %3531 = vmatpush1.bf16.msra.mxu0 0
    %3532 = vmatprep.subr.bf16.mxu0 0
    %3533 = vmatpush1.bf16.msra.mxu0 0
    %3534 = vmatprep.subr.bf16.mxu0 0
    %3535 = vmatpush1.bf16.msra.mxu0 0
    %3536 = vmatprep.subr.bf16.mxu0 0
    %3537 = vmatpush1.bf16.msra.mxu0 0
    %3538 = vmatprep.subr.bf16.mxu0 0
    %3539 = vmatpush1.bf16.msra.mxu0 0
    %3540 = vmatprep.subr.bf16.mxu0 0
    %3541 = vmatpush1.bf16.msra.mxu0 0
    %3542 = vmatprep.subr.bf16.mxu0 0
    %3543 = vmatpush1.bf16.msra.mxu0 0
    %3544 = vmatprep.subr.bf16.mxu0 0
    %3545 = vmatpush1.bf16.msra.mxu0 0
    %3546 = vmatprep.mubr.bf16.mxu0 0
    %3547 = vmatmul.mubr.bf16.gmra.mrb[0].mxu0 %v3061
    %v3548 = vpop.f32.mrb[0].mxu0
    %v3549 = vadd.f32 %v3508, %v3548
    %v3550 = vpop.f32.mrb[0].mxu0
    %v3551 = vadd.f32 %v3510, %v3550
    %v3552 = vpop.f32.mrb[0].mxu0
    %v3553 = vpop.f32.mrb[0].mxu0
    %3554 = vdwg.mxu0
    %v3555 = vld [vmem:[#allocation12] sm:$0xff]
    %v3557 = vlaneseq
    %v3558 = vshrl.u32 %v3557, 7
    %v3559 = vsub.s32 0, %v3558
    %v3560 = vrot.slane %v3555, %v3559
    %v3561 = vlaneseq
    %v3562 = vshrl.u32 %v3561, 7
    %v3563 = vsub.s32 1, %v3562
    %v3564 = vrot.slane %v3555, %v3563
    %v3565 = vlaneseq
    %v3566 = vshrl.u32 %v3565, 7
    %v3567 = vsub.s32 2, %v3566
    %v3568 = vrot.slane %v3555, %v3567
    %v3569 = vlaneseq
    %v3570 = vshrl.u32 %v3569, 7
    %v3571 = vsub.s32 3, %v3570
    %v3572 = vrot.slane %v3555, %v3571
    %v3573 = vlaneseq
    %v3574 = vshrl.u32 %v3573, 7
    %v3575 = vsub.s32 4, %v3574
    %v3576 = vrot.slane %v3555, %v3575
    %v3577 = vlaneseq
    %v3578 = vshrl.u32 %v3577, 7
    %v3579 = vsub.s32 5, %v3578
    %v3580 = vrot.slane %v3555, %v3579
    %v3581 = vlaneseq
    %v3582 = vshrl.u32 %v3581, 7
    %v3583 = vsub.s32 6, %v3582
    %v3584 = vrot.slane %v3555, %v3583
    %v3585 = vlaneseq
    %v3586 = vshrl.u32 %v3585, 7
    %v3587 = vsub.s32 7, %v3586
    %v3588 = vrot.slane %v3555, %v3587
    %v3597 = vadd.f32 %v3180, %v3560
    %v3598 = vadd.f32 %v3182, %v3564
    %v3599 = vadd.f32 %v3303, %v3568
    %v3600 = vadd.f32 %v3305, %v3572
    %v3601 = vadd.f32 %v3426, %v3576
    %v3602 = vadd.f32 %v3428, %v3580
    %v3603 = vadd.f32 %v3549, %v3584
    %v3604 = vadd.f32 %v3551, %v3588
    %vm3605 = vcmask 1041408
    %v3606 = vsel %vm3605, %v3597, 0.0
    %v3607 = vsel %vm3605, %v3598, 0.0
    %v3608 = vadd.f32 %v3606, %v3607
    %v3609 = vsel %vm3605, %v3599, 0.0
    %v3610 = vadd.f32 %v3608, %v3609
    %v3611 = vsel %vm3605, %v3600, 0.0
    %v3612 = vadd.f32 %v3610, %v3611
    %v3613 = vsel %vm3605, %v3601, 0.0
    %v3614 = vadd.f32 %v3612, %v3613
    %v3615 = vsel %vm3605, %v3602, 0.0
    %v3616 = vadd.f32 %v3614, %v3615
    %v3617 = vsel %vm3605, %v3603, 0.0
    %v3618 = vadd.f32 %v3616, %v3617
    %v3619 = vsel %vm3605, %v3604, 0.0
    %v3620 = vadd.f32 %v3618, %v3619
    %3621 = vadd.xlane.f32.xlu0 %v3620
    %v3622 = vpop.xlane.xlu0 %3621
    %v3623 = vrot.slane %v3622, 4
    %v3624 = vadd.f32 %v3622, %v3623
    %v3625 = vrot.slane %v3624, 2
    %v3626 = vadd.f32 %v3624, %v3625
    %v3627 = vrot.slane %v3626, 1
    %v3628 = vadd.f32 %v3626, %v3627
    %s3629 = vtos %v3628
    %s3630 = smul.f32 %s3629, 0.00048828125
    %v3631 = vstv %s3630
    %v3632 = vsub.f32 %v3597, %v3631
    %v3633 = vsub.f32 %v3598, %v3631
    %v3634 = vsub.f32 %v3599, %v3631
    %v3635 = vsub.f32 %v3600, %v3631
    %v3636 = vsub.f32 %v3601, %v3631
    %v3637 = vsub.f32 %v3602, %v3631
    %v3638 = vsub.f32 %v3603, %v3631
    %v3639 = vsub.f32 %v3604, %v3631
    %v3640 = vmul.f32 %v3632, %v3632
    %v3641 = vmul.f32 %v3633, %v3633
    %v3642 = vmul.f32 %v3634, %v3634
    %v3643 = vmul.f32 %v3635, %v3635
    %v3644 = vmul.f32 %v3636, %v3636
    %v3645 = vmul.f32 %v3637, %v3637
    %v3646 = vmul.f32 %v3638, %v3638
    %v3647 = vmul.f32 %v3639, %v3639
    %v3648 = vsel %vm3605, %v3640, 0.0
    %v3649 = vsel %vm3605, %v3641, 0.0
    %v3650 = vadd.f32 %v3648, %v3649
    %v3651 = vsel %vm3605, %v3642, 0.0
    %v3652 = vadd.f32 %v3650, %v3651
    %v3653 = vsel %vm3605, %v3643, 0.0
    %v3654 = vadd.f32 %v3652, %v3653
    %v3655 = vsel %vm3605, %v3644, 0.0
    %v3656 = vadd.f32 %v3654, %v3655
    %v3657 = vsel %vm3605, %v3645, 0.0
    %v3658 = vadd.f32 %v3656, %v3657
    %v3659 = vsel %vm3605, %v3646, 0.0
    %v3660 = vadd.f32 %v3658, %v3659
    %v3661 = vsel %vm3605, %v3647, 0.0
    %v3662 = vadd.f32 %v3660, %v3661
    %3663 = vadd.xlane.f32.xlu0 %v3662
    %v3664 = vpop.xlane.xlu0 %3663
    %v3665 = vrot.slane %v3664, 4
    %v3666 = vadd.f32 %v3664, %v3665
    %v3667 = vrot.slane %v3666, 2
    %v3668 = vadd.f32 %v3666, %v3667
    %v3669 = vrot.slane %v3668, 1
    %v3670 = vadd.f32 %v3668, %v3669
    %s3671 = vtos %v3670
    %s3672 = smul.f32 %s3671, 0.00048828125
    %s3673 = sadd.f32 %s3672, 1e-05
    %v3674 = vstv %s3673
    %v3675 = vrsqrt.pop %v3674
    %s3676 = vtos %v3675
    %s3677 = smul.f32 %s3676, %s203
    %v3678 = vstv %s3677
    %v3679 = vmul.f32 %v3632, %v3678
    %v3680 = vmul.f32 %v3633, %v3678
    %v3681 = vmul.f32 %v3634, %v3678
    %v3682 = vmul.f32 %v3635, %v3678
    %v3683 = vmul.f32 %v3636, %v3678
    %v3684 = vmul.f32 %v3637, %v3678
    %v3685 = vmul.f32 %v3638, %v3678
    %v3686 = vmul.f32 %v3639, %v3678
    %v3687 = vstv %s204
    %v3688 = vadd.f32 %v3679, %v3687
    %v3689 = vadd.f32 %v3680, %v3687
    %v3690 = vadd.f32 %v3681, %v3687
    %v3691 = vadd.f32 %v3682, %v3687
    %v3692 = vadd.f32 %v3683, %v3687
    %v3693 = vadd.f32 %v3684, %v3687
    %v3694 = vadd.f32 %v3685, %v3687
    %v3695 = vadd.f32 %v3686, %v3687
    %vm3696 = vcmp.gt.f32.partialorder %v3688, 0.0
    %vm3697 = vcmp.gt.f32.partialorder %v3689, 0.0
    %vm3698 = vcmp.gt.f32.partialorder %v3690, 0.0
    %vm3699 = vcmp.gt.f32.partialorder %v3691, 0.0
    %vm3700 = vcmp.gt.f32.partialorder %v3692, 0.0
    %vm3701 = vcmp.gt.f32.partialorder %v3693, 0.0
    %vm3702 = vcmp.gt.f32.partialorder %v3694, 0.0
    %vm3703 = vcmp.gt.f32.partialorder %v3695, 0.0
    %v3704 = vmul.f32 %v3688, 0.2
    %v3705 = vmul.f32 %v3689, 0.2
    %v3706 = vmul.f32 %v3690, 0.2
    %v3707 = vmul.f32 %v3691, 0.2
    %v3708 = vmul.f32 %v3692, 0.2
    %v3709 = vmul.f32 %v3693, 0.2
    %v3710 = vmul.f32 %v3694, 0.2
    %v3711 = vmul.f32 %v3695, 0.2
    %v3712 = vsel %vm3696, %v3688, %v3704
    %v3713 = vsel %vm3697, %v3689, %v3705
    %v3714 = vsel %vm3698, %v3690, %v3706
    %v3715 = vsel %vm3699, %v3691, %v3707
    %v3716 = vsel %vm3700, %v3692, %v3708
    %v3717 = vsel %vm3701, %v3693, %v3709
    %v3718 = vsel %vm3702, %v3694, %v3710
    %v3719 = vsel %vm3703, %v3695, %v3711
    %v3720 = vpack.c.bf16 %v3712, %v3712
    %v3721 = vpack.c.bf16 %v3713, %v3713
    %v3722 = vpack.c.bf16 %v3714, %v3714
    %v3723 = vpack.c.bf16 %v3715, %v3715
    %v3724 = vpack.c.bf16 %v3716, %v3716
    %v3725 = vpack.c.bf16 %v3717, %v3717
    %v3726 = vpack.c.bf16 %v3718, %v3718
    %v3727 = vpack.c.bf16 %v3719, %v3719
    %v3728 = vld [vmem:[#allocation13] sm:$0xff]
    %v3729 = vld [vmem:[#allocation13 + $0x8] sm:$0xff]
    %v3730 = vld [vmem:[#allocation13 + $0x10] sm:$0xff]
    %v3731 = vld [vmem:[#allocation13 + $0x18] sm:$0xff]
    %v3732 = vld [vmem:[#allocation13 + $0x20] sm:$0xff]
    %v3733 = vld [vmem:[#allocation13 + $0x28] sm:$0xff]
    %v3734 = vld [vmem:[#allocation13 + $0x30] sm:$0xff]
    %v3735 = vld [vmem:[#allocation13 + $0x38] sm:$0xff]
    %v3736 = vld [vmem:[#allocation13 + $0x40] sm:$0xff]
    %v3737 = vld [vmem:[#allocation13 + $0x48] sm:$0xff]
    %v3738 = vld [vmem:[#allocation13 + $0x50] sm:$0xff]
    %v3739 = vld [vmem:[#allocation13 + $0x58] sm:$0xff]
    %v3740 = vld [vmem:[#allocation13 + $0x60] sm:$0xff]
    %v3741 = vld [vmem:[#allocation13 + $0x68] sm:$0xff]
    %v3742 = vld [vmem:[#allocation13 + $0x70] sm:$0xff]
    %v3743 = vld [vmem:[#allocation13 + $0x78] sm:$0xff]
    %v3744 = vld [vmem:[#allocation13 + $0x80] sm:$0xff]
    %v3745 = vld [vmem:[#allocation13 + $0x88] sm:$0xff]
    %v3746 = vld [vmem:[#allocation13 + $0x90] sm:$0xff]
    %v3747 = vld [vmem:[#allocation13 + $0x98] sm:$0xff]
    %v3748 = vld [vmem:[#allocation13 + $0xa0] sm:$0xff]
    %v3749 = vld [vmem:[#allocation13 + $0xa8] sm:$0xff]
    %v3750 = vld [vmem:[#allocation13 + $0xb0] sm:$0xff]
    %v3751 = vld [vmem:[#allocation13 + $0xb8] sm:$0xff]
    %v3752 = vld [vmem:[#allocation13 + $0xc0] sm:$0xff]
    %v3753 = vld [vmem:[#allocation13 + $0xc8] sm:$0xff]
    %v3754 = vld [vmem:[#allocation13 + $0xd0] sm:$0xff]
    %v3755 = vld [vmem:[#allocation13 + $0xd8] sm:$0xff]
    %v3756 = vld [vmem:[#allocation13 + $0xe0] sm:$0xff]
    %v3757 = vld [vmem:[#allocation13 + $0xe8] sm:$0xff]
    %v3758 = vld [vmem:[#allocation13 + $0xf0] sm:$0xff]
    %v3759 = vld [vmem:[#allocation13 + $0xf8] sm:$0xff]
    %v3760 = vld [vmem:[#allocation13 + $0x100] sm:$0xff]
    %v3761 = vld [vmem:[#allocation13 + $0x108] sm:$0xff]
    %v3762 = vld [vmem:[#allocation13 + $0x110] sm:$0xff]
    %v3763 = vld [vmem:[#allocation13 + $0x118] sm:$0xff]
    %v3764 = vld [vmem:[#allocation13 + $0x120] sm:$0xff]
    %v3765 = vld [vmem:[#allocation13 + $0x128] sm:$0xff]
    %v3766 = vld [vmem:[#allocation13 + $0x130] sm:$0xff]
    %v3767 = vld [vmem:[#allocation13 + $0x138] sm:$0xff]
    %v3768 = vld [vmem:[#allocation13 + $0x140] sm:$0xff]
    %v3769 = vld [vmem:[#allocation13 + $0x148] sm:$0xff]
    %v3770 = vld [vmem:[#allocation13 + $0x150] sm:$0xff]
    %v3771 = vld [vmem:[#allocation13 + $0x158] sm:$0xff]
    %v3772 = vld [vmem:[#allocation13 + $0x160] sm:$0xff]
    %v3773 = vld [vmem:[#allocation13 + $0x168] sm:$0xff]
    %v3774 = vld [vmem:[#allocation13 + $0x170] sm:$0xff]
    %v3775 = vld [vmem:[#allocation13 + $0x178] sm:$0xff]
    %v3776 = vld [vmem:[#allocation13 + $0x180] sm:$0xff]
    %v3777 = vld [vmem:[#allocation13 + $0x188] sm:$0xff]
    %v3778 = vld [vmem:[#allocation13 + $0x190] sm:$0xff]
    %v3779 = vld [vmem:[#allocation13 + $0x198] sm:$0xff]
    %v3780 = vld [vmem:[#allocation13 + $0x1a0] sm:$0xff]
    %v3781 = vld [vmem:[#allocation13 + $0x1a8] sm:$0xff]
    %v3782 = vld [vmem:[#allocation13 + $0x1b0] sm:$0xff]
    %v3783 = vld [vmem:[#allocation13 + $0x1b8] sm:$0xff]
    %v3784 = vld [vmem:[#allocation13 + $0x1c0] sm:$0xff]
    %v3785 = vld [vmem:[#allocation13 + $0x1c8] sm:$0xff]
    %v3786 = vld [vmem:[#allocation13 + $0x1d0] sm:$0xff]
    %v3787 = vld [vmem:[#allocation13 + $0x1d8] sm:$0xff]
    %v3788 = vld [vmem:[#allocation13 + $0x1e0] sm:$0xff]
    %v3789 = vld [vmem:[#allocation13 + $0x1e8] sm:$0xff]
    %v3790 = vld [vmem:[#allocation13 + $0x1f0] sm:$0xff]
    %v3791 = vld [vmem:[#allocation13 + $0x1f8] sm:$0xff]
    %v3792 = vld [vmem:[#allocation13 + $0x200] sm:$0xff]
    %v3793 = vld [vmem:[#allocation13 + $0x208] sm:$0xff]
    %v3794 = vld [vmem:[#allocation13 + $0x210] sm:$0xff]
    %v3795 = vld [vmem:[#allocation13 + $0x218] sm:$0xff]
    %v3796 = vld [vmem:[#allocation13 + $0x220] sm:$0xff]
    %v3797 = vld [vmem:[#allocation13 + $0x228] sm:$0xff]
    %v3798 = vld [vmem:[#allocation13 + $0x230] sm:$0xff]
    %v3799 = vld [vmem:[#allocation13 + $0x238] sm:$0xff]
    %v3800 = vld [vmem:[#allocation13 + $0x240] sm:$0xff]
    %v3801 = vld [vmem:[#allocation13 + $0x248] sm:$0xff]
    %v3802 = vld [vmem:[#allocation13 + $0x250] sm:$0xff]
    %v3803 = vld [vmem:[#allocation13 + $0x258] sm:$0xff]
    %v3804 = vld [vmem:[#allocation13 + $0x260] sm:$0xff]
    %v3805 = vld [vmem:[#allocation13 + $0x268] sm:$0xff]
    %v3806 = vld [vmem:[#allocation13 + $0x270] sm:$0xff]
    %v3807 = vld [vmem:[#allocation13 + $0x278] sm:$0xff]
    %v3808 = vld [vmem:[#allocation13 + $0x280] sm:$0xff]
    %v3809 = vld [vmem:[#allocation13 + $0x288] sm:$0xff]
    %v3810 = vld [vmem:[#allocation13 + $0x290] sm:$0xff]
    %v3811 = vld [vmem:[#allocation13 + $0x298] sm:$0xff]
    %v3812 = vld [vmem:[#allocation13 + $0x2a0] sm:$0xff]
    %v3813 = vld [vmem:[#allocation13 + $0x2a8] sm:$0xff]
    %v3814 = vld [vmem:[#allocation13 + $0x2b0] sm:$0xff]
    %v3815 = vld [vmem:[#allocation13 + $0x2b8] sm:$0xff]
    %v3816 = vld [vmem:[#allocation13 + $0x2c0] sm:$0xff]
    %v3817 = vld [vmem:[#allocation13 + $0x2c8] sm:$0xff]
    %v3818 = vld [vmem:[#allocation13 + $0x2d0] sm:$0xff]
    %v3819 = vld [vmem:[#allocation13 + $0x2d8] sm:$0xff]
    %v3820 = vld [vmem:[#allocation13 + $0x2e0] sm:$0xff]
    %v3821 = vld [vmem:[#allocation13 + $0x2e8] sm:$0xff]
    %v3822 = vld [vmem:[#allocation13 + $0x2f0] sm:$0xff]
    %v3823 = vld [vmem:[#allocation13 + $0x2f8] sm:$0xff]
    %v3824 = vld [vmem:[#allocation13 + $0x300] sm:$0xff]
    %v3825 = vld [vmem:[#allocation13 + $0x308] sm:$0xff]
    %v3826 = vld [vmem:[#allocation13 + $0x310] sm:$0xff]
    %v3827 = vld [vmem:[#allocation13 + $0x318] sm:$0xff]
    %v3828 = vld [vmem:[#allocation13 + $0x320] sm:$0xff]
    %v3829 = vld [vmem:[#allocation13 + $0x328] sm:$0xff]
    %v3830 = vld [vmem:[#allocation13 + $0x330] sm:$0xff]
    %v3831 = vld [vmem:[#allocation13 + $0x338] sm:$0xff]
    %v3832 = vld [vmem:[#allocation13 + $0x340] sm:$0xff]
    %v3833 = vld [vmem:[#allocation13 + $0x348] sm:$0xff]
    %v3834 = vld [vmem:[#allocation13 + $0x350] sm:$0xff]
    %v3835 = vld [vmem:[#allocation13 + $0x358] sm:$0xff]
    %v3836 = vld [vmem:[#allocation13 + $0x360] sm:$0xff]
    %v3837 = vld [vmem:[#allocation13 + $0x368] sm:$0xff]
    %v3838 = vld [vmem:[#allocation13 + $0x370] sm:$0xff]
    %v3839 = vld [vmem:[#allocation13 + $0x378] sm:$0xff]
    %v3840 = vld [vmem:[#allocation13 + $0x380] sm:$0xff]
    %v3841 = vld [vmem:[#allocation13 + $0x388] sm:$0xff]
    %v3842 = vld [vmem:[#allocation13 + $0x390] sm:$0xff]
    %v3843 = vld [vmem:[#allocation13 + $0x398] sm:$0xff]
    %v3844 = vld [vmem:[#allocation13 + $0x3a0] sm:$0xff]
    %v3845 = vld [vmem:[#allocation13 + $0x3a8] sm:$0xff]
    %v3846 = vld [vmem:[#allocation13 + $0x3b0] sm:$0xff]
    %v3847 = vld [vmem:[#allocation13 + $0x3b8] sm:$0xff]
    %v3848 = vld [vmem:[#allocation13 + $0x3c0] sm:$0xff]
    %v3849 = vld [vmem:[#allocation13 + $0x3c8] sm:$0xff]
    %v3850 = vld [vmem:[#allocation13 + $0x3d0] sm:$0xff]
    %v3851 = vld [vmem:[#allocation13 + $0x3d8] sm:$0xff]
    %v3852 = vld [vmem:[#allocation13 + $0x3e0] sm:$0xff]
    %v3853 = vld [vmem:[#allocation13 + $0x3e8] sm:$0xff]
    %v3854 = vld [vmem:[#allocation13 + $0x3f0] sm:$0xff]
    %v3855 = vld [vmem:[#allocation13 + $0x3f8] sm:$0xff]
    %v3856 = vld [vmem:[#allocation13 + $0x400] sm:$0xff]
    %v3857 = vld [vmem:[#allocation13 + $0x408] sm:$0xff]
    %v3858 = vld [vmem:[#allocation13 + $0x410] sm:$0xff]
    %v3859 = vld [vmem:[#allocation13 + $0x418] sm:$0xff]
    %v3860 = vld [vmem:[#allocation13 + $0x420] sm:$0xff]
    %v3861 = vld [vmem:[#allocation13 + $0x428] sm:$0xff]
    %v3862 = vld [vmem:[#allocation13 + $0x430] sm:$0xff]
    %v3863 = vld [vmem:[#allocation13 + $0x438] sm:$0xff]
    %v3864 = vld [vmem:[#allocation13 + $0x440] sm:$0xff]
    %v3865 = vld [vmem:[#allocation13 + $0x448] sm:$0xff]
    %v3866 = vld [vmem:[#allocation13 + $0x450] sm:$0xff]
    %v3867 = vld [vmem:[#allocation13 + $0x458] sm:$0xff]
    %v3868 = vld [vmem:[#allocation13 + $0x460] sm:$0xff]
    %v3869 = vld [vmem:[#allocation13 + $0x468] sm:$0xff]
    %v3870 = vld [vmem:[#allocation13 + $0x470] sm:$0xff]
    %v3871 = vld [vmem:[#allocation13 + $0x478] sm:$0xff]
    %v3872 = vld [vmem:[#allocation13 + $0x480] sm:$0xff]
    %v3873 = vld [vmem:[#allocation13 + $0x488] sm:$0xff]
    %v3874 = vld [vmem:[#allocation13 + $0x490] sm:$0xff]
    %v3875 = vld [vmem:[#allocation13 + $0x498] sm:$0xff]
    %v3876 = vld [vmem:[#allocation13 + $0x4a0] sm:$0xff]
    %v3877 = vld [vmem:[#allocation13 + $0x4a8] sm:$0xff]
    %v3878 = vld [vmem:[#allocation13 + $0x4b0] sm:$0xff]
    %v3879 = vld [vmem:[#allocation13 + $0x4b8] sm:$0xff]
    %v3880 = vld [vmem:[#allocation13 + $0x4c0] sm:$0xff]
    %v3881 = vld [vmem:[#allocation13 + $0x4c8] sm:$0xff]
    %v3882 = vld [vmem:[#allocation13 + $0x4d0] sm:$0xff]
    %v3883 = vld [vmem:[#allocation13 + $0x4d8] sm:$0xff]
    %v3884 = vld [vmem:[#allocation13 + $0x4e0] sm:$0xff]
    %v3885 = vld [vmem:[#allocation13 + $0x4e8] sm:$0xff]
    %v3886 = vld [vmem:[#allocation13 + $0x4f0] sm:$0xff]
    %v3887 = vld [vmem:[#allocation13 + $0x4f8] sm:$0xff]
    %v3888 = vld [vmem:[#allocation13 + $0x500] sm:$0xff]
    %v3889 = vld [vmem:[#allocation13 + $0x508] sm:$0xff]
    %v3890 = vld [vmem:[#allocation13 + $0x510] sm:$0xff]
    %v3891 = vld [vmem:[#allocation13 + $0x518] sm:$0xff]
    %v3892 = vld [vmem:[#allocation13 + $0x520] sm:$0xff]
    %v3893 = vld [vmem:[#allocation13 + $0x528] sm:$0xff]
    %v3894 = vld [vmem:[#allocation13 + $0x530] sm:$0xff]
    %v3895 = vld [vmem:[#allocation13 + $0x538] sm:$0xff]
    %v3896 = vld [vmem:[#allocation13 + $0x540] sm:$0xff]
    %v3897 = vld [vmem:[#allocation13 + $0x548] sm:$0xff]
    %v3898 = vld [vmem:[#allocation13 + $0x550] sm:$0xff]
    %v3899 = vld [vmem:[#allocation13 + $0x558] sm:$0xff]
    %v3900 = vld [vmem:[#allocation13 + $0x560] sm:$0xff]
    %v3901 = vld [vmem:[#allocation13 + $0x568] sm:$0xff]
    %v3902 = vld [vmem:[#allocation13 + $0x570] sm:$0xff]
    %v3903 = vld [vmem:[#allocation13 + $0x578] sm:$0xff]
    %v3904 = vld [vmem:[#allocation13 + $0x580] sm:$0xff]
    %v3905 = vld [vmem:[#allocation13 + $0x588] sm:$0xff]
    %v3906 = vld [vmem:[#allocation13 + $0x590] sm:$0xff]
    %v3907 = vld [vmem:[#allocation13 + $0x598] sm:$0xff]
    %v3908 = vld [vmem:[#allocation13 + $0x5a0] sm:$0xff]
    %v3909 = vld [vmem:[#allocation13 + $0x5a8] sm:$0xff]
    %v3910 = vld [vmem:[#allocation13 + $0x5b0] sm:$0xff]
    %v3911 = vld [vmem:[#allocation13 + $0x5b8] sm:$0xff]
    %v3912 = vld [vmem:[#allocation13 + $0x5c0] sm:$0xff]
    %v3913 = vld [vmem:[#allocation13 + $0x5c8] sm:$0xff]
    %v3914 = vld [vmem:[#allocation13 + $0x5d0] sm:$0xff]
    %v3915 = vld [vmem:[#allocation13 + $0x5d8] sm:$0xff]
    %v3916 = vld [vmem:[#allocation13 + $0x5e0] sm:$0xff]
    %v3917 = vld [vmem:[#allocation13 + $0x5e8] sm:$0xff]
    %v3918 = vld [vmem:[#allocation13 + $0x5f0] sm:$0xff]
    %v3919 = vld [vmem:[#allocation13 + $0x5f8] sm:$0xff]
    %v3920 = vld [vmem:[#allocation13 + $0x600] sm:$0xff]
    %v3921 = vld [vmem:[#allocation13 + $0x608] sm:$0xff]
    %v3922 = vld [vmem:[#allocation13 + $0x610] sm:$0xff]
    %v3923 = vld [vmem:[#allocation13 + $0x618] sm:$0xff]
    %v3924 = vld [vmem:[#allocation13 + $0x620] sm:$0xff]
    %v3925 = vld [vmem:[#allocation13 + $0x628] sm:$0xff]
    %v3926 = vld [vmem:[#allocation13 + $0x630] sm:$0xff]
    %v3927 = vld [vmem:[#allocation13 + $0x638] sm:$0xff]
    %v3928 = vld [vmem:[#allocation13 + $0x640] sm:$0xff]
    %v3929 = vld [vmem:[#allocation13 + $0x648] sm:$0xff]
    %v3930 = vld [vmem:[#allocation13 + $0x650] sm:$0xff]
    %v3931 = vld [vmem:[#allocation13 + $0x658] sm:$0xff]
    %v3932 = vld [vmem:[#allocation13 + $0x660] sm:$0xff]
    %v3933 = vld [vmem:[#allocation13 + $0x668] sm:$0xff]
    %v3934 = vld [vmem:[#allocation13 + $0x670] sm:$0xff]
    %v3935 = vld [vmem:[#allocation13 + $0x678] sm:$0xff]
    %v3936 = vld [vmem:[#allocation13 + $0x680] sm:$0xff]
    %v3937 = vld [vmem:[#allocation13 + $0x688] sm:$0xff]
    %v3938 = vld [vmem:[#allocation13 + $0x690] sm:$0xff]
    %v3939 = vld [vmem:[#allocation13 + $0x698] sm:$0xff]
    %v3940 = vld [vmem:[#allocation13 + $0x6a0] sm:$0xff]
    %v3941 = vld [vmem:[#allocation13 + $0x6a8] sm:$0xff]
    %v3942 = vld [vmem:[#allocation13 + $0x6b0] sm:$0xff]
    %v3943 = vld [vmem:[#allocation13 + $0x6b8] sm:$0xff]
    %v3944 = vld [vmem:[#allocation13 + $0x6c0] sm:$0xff]
    %v3945 = vld [vmem:[#allocation13 + $0x6c8] sm:$0xff]
    %v3946 = vld [vmem:[#allocation13 + $0x6d0] sm:$0xff]
    %v3947 = vld [vmem:[#allocation13 + $0x6d8] sm:$0xff]
    %v3948 = vld [vmem:[#allocation13 + $0x6e0] sm:$0xff]
    %v3949 = vld [vmem:[#allocation13 + $0x6e8] sm:$0xff]
    %v3950 = vld [vmem:[#allocation13 + $0x6f0] sm:$0xff]
    %v3951 = vld [vmem:[#allocation13 + $0x6f8] sm:$0xff]
    %v3952 = vld [vmem:[#allocation13 + $0x700] sm:$0xff]
    %v3953 = vld [vmem:[#allocation13 + $0x708] sm:$0xff]
    %v3954 = vld [vmem:[#allocation13 + $0x710] sm:$0xff]
    %v3955 = vld [vmem:[#allocation13 + $0x718] sm:$0xff]
    %v3956 = vld [vmem:[#allocation13 + $0x720] sm:$0xff]
    %v3957 = vld [vmem:[#allocation13 + $0x728] sm:$0xff]
    %v3958 = vld [vmem:[#allocation13 + $0x730] sm:$0xff]
    %v3959 = vld [vmem:[#allocation13 + $0x738] sm:$0xff]
    %v3960 = vld [vmem:[#allocation13 + $0x740] sm:$0xff]
    %v3961 = vld [vmem:[#allocation13 + $0x748] sm:$0xff]
    %v3962 = vld [vmem:[#allocation13 + $0x750] sm:$0xff]
    %v3963 = vld [vmem:[#allocation13 + $0x758] sm:$0xff]
    %v3964 = vld [vmem:[#allocation13 + $0x760] sm:$0xff]
    %v3965 = vld [vmem:[#allocation13 + $0x768] sm:$0xff]
    %v3966 = vld [vmem:[#allocation13 + $0x770] sm:$0xff]
    %v3967 = vld [vmem:[#allocation13 + $0x778] sm:$0xff]
    %v3968 = vld [vmem:[#allocation13 + $0x780] sm:$0xff]
    %v3969 = vld [vmem:[#allocation13 + $0x788] sm:$0xff]
    %v3970 = vld [vmem:[#allocation13 + $0x790] sm:$0xff]
    %v3971 = vld [vmem:[#allocation13 + $0x798] sm:$0xff]
    %v3972 = vld [vmem:[#allocation13 + $0x7a0] sm:$0xff]
    %v3973 = vld [vmem:[#allocation13 + $0x7a8] sm:$0xff]
    %v3974 = vld [vmem:[#allocation13 + $0x7b0] sm:$0xff]
    %v3975 = vld [vmem:[#allocation13 + $0x7b8] sm:$0xff]
    %v3976 = vld [vmem:[#allocation13 + $0x7c0] sm:$0xff]
    %v3977 = vld [vmem:[#allocation13 + $0x7c8] sm:$0xff]
    %v3978 = vld [vmem:[#allocation13 + $0x7d0] sm:$0xff]
    %v3979 = vld [vmem:[#allocation13 + $0x7d8] sm:$0xff]
    %v3980 = vld [vmem:[#allocation13 + $0x7e0] sm:$0xff]
    %v3981 = vld [vmem:[#allocation13 + $0x7e8] sm:$0xff]
    %v3982 = vld [vmem:[#allocation13 + $0x7f0] sm:$0xff]
    %v3983 = vld [vmem:[#allocation13 + $0x7f8] sm:$0xff]
    %v3984 = vld [vmem:[#allocation15] sm:$0xf]
    %v3986 = vlaneseq
    %v3987 = vshrl.u32 %v3986, 7
    %v3988 = vsub.s32 0, %v3987
    %v3989 = vrot.slane %v3984, %v3988
    %v3990 = vlaneseq
    %v3991 = vshrl.u32 %v3990, 7
    %v3992 = vsub.s32 1, %v3991
    %v3993 = vrot.slane %v3984, %v3992
    %v3994 = vlaneseq
    %v3995 = vshrl.u32 %v3994, 7
    %v3996 = vsub.s32 2, %v3995
    %v3997 = vrot.slane %v3984, %v3996
    %v3998 = vlaneseq
    %v3999 = vshrl.u32 %v3998, 7
    %v4000 = vsub.s32 3, %v3999
    %v4001 = vrot.slane %v3984, %v4000
    %v4262 = vunpack.c.l.b16 %v3728
    %v4263 = vunpack.c.h.b16 %v3728
    %v4264 = vunpack.c.l.b16 %v3729
    %v4265 = vunpack.c.h.b16 %v3729
    %v4266 = vunpack.c.l.b16 %v3730
    %v4267 = vunpack.c.h.b16 %v3730
    %v4268 = vunpack.c.l.b16 %v3731
    %v4269 = vunpack.c.h.b16 %v3731
    %v4270 = vunpack.c.l.b16 %v3732
    %v4271 = vunpack.c.h.b16 %v3732
    %v4272 = vunpack.c.l.b16 %v3733
    %v4273 = vunpack.c.h.b16 %v3733
    %v4274 = vunpack.c.l.b16 %v3734
    %v4275 = vunpack.c.h.b16 %v3734
    %v4276 = vunpack.c.l.b16 %v3735
    %v4277 = vunpack.c.h.b16 %v3735
    %v4278 = vunpack.c.l.b16 %v3736
    %v4279 = vunpack.c.h.b16 %v3736
    %v4280 = vunpack.c.l.b16 %v3737
    %v4281 = vunpack.c.h.b16 %v3737
    %v4282 = vunpack.c.l.b16 %v3738
    %v4283 = vunpack.c.h.b16 %v3738
    %v4284 = vunpack.c.l.b16 %v3739
    %v4285 = vunpack.c.h.b16 %v3739
    %v4286 = vunpack.c.l.b16 %v3740
    %v4287 = vunpack.c.h.b16 %v3740
    %v4288 = vunpack.c.l.b16 %v3741
    %v4289 = vunpack.c.h.b16 %v3741
    %v4290 = vunpack.c.l.b16 %v3742
    %v4291 = vunpack.c.h.b16 %v3742
    %v4292 = vunpack.c.l.b16 %v3743
    %v4293 = vunpack.c.h.b16 %v3743
    %v4294 = vunpack.c.l.b16 %v3744
    %v4295 = vunpack.c.h.b16 %v3744
    %v4296 = vunpack.c.l.b16 %v3745
    %v4297 = vunpack.c.h.b16 %v3745
    %v4298 = vunpack.c.l.b16 %v3746
    %v4299 = vunpack.c.h.b16 %v3746
    %v4300 = vunpack.c.l.b16 %v3747
    %v4301 = vunpack.c.h.b16 %v3747
    %v4302 = vunpack.c.l.b16 %v3748
    %v4303 = vunpack.c.h.b16 %v3748
    %v4304 = vunpack.c.l.b16 %v3749
    %v4305 = vunpack.c.h.b16 %v3749
    %v4306 = vunpack.c.l.b16 %v3750
    %v4307 = vunpack.c.h.b16 %v3750
    %v4308 = vunpack.c.l.b16 %v3751
    %v4309 = vunpack.c.h.b16 %v3751
    %v4310 = vunpack.c.l.b16 %v3752
    %v4311 = vunpack.c.h.b16 %v3752
    %v4312 = vunpack.c.l.b16 %v3753
    %v4313 = vunpack.c.h.b16 %v3753
    %v4314 = vunpack.c.l.b16 %v3754
    %v4315 = vunpack.c.h.b16 %v3754
    %v4316 = vunpack.c.l.b16 %v3755
    %v4317 = vunpack.c.h.b16 %v3755
    %v4318 = vunpack.c.l.b16 %v3756
    %v4319 = vunpack.c.h.b16 %v3756
    %v4320 = vunpack.c.l.b16 %v3757
    %v4321 = vunpack.c.h.b16 %v3757
    %v4322 = vunpack.c.l.b16 %v3758
    %v4323 = vunpack.c.h.b16 %v3758
    %v4324 = vunpack.c.l.b16 %v3759
    %v4325 = vunpack.c.h.b16 %v3759
    %v4326 = vunpack.c.l.b16 %v3760
    %v4327 = vunpack.c.h.b16 %v3760
    %v4328 = vunpack.c.l.b16 %v3761
    %v4329 = vunpack.c.h.b16 %v3761
    %v4330 = vunpack.c.l.b16 %v3762
    %v4331 = vunpack.c.h.b16 %v3762
    %v4332 = vunpack.c.l.b16 %v3763
    %v4333 = vunpack.c.h.b16 %v3763
    %v4334 = vunpack.c.l.b16 %v3764
    %v4335 = vunpack.c.h.b16 %v3764
    %v4336 = vunpack.c.l.b16 %v3765
    %v4337 = vunpack.c.h.b16 %v3765
    %v4338 = vunpack.c.l.b16 %v3766
    %v4339 = vunpack.c.h.b16 %v3766
    %v4340 = vunpack.c.l.b16 %v3767
    %v4341 = vunpack.c.h.b16 %v3767
    %v4342 = vunpack.c.l.b16 %v3768
    %v4343 = vunpack.c.h.b16 %v3768
    %v4344 = vunpack.c.l.b16 %v3769
    %v4345 = vunpack.c.h.b16 %v3769
    %v4346 = vunpack.c.l.b16 %v3770
    %v4347 = vunpack.c.h.b16 %v3770
    %v4348 = vunpack.c.l.b16 %v3771
    %v4349 = vunpack.c.h.b16 %v3771
    %v4350 = vunpack.c.l.b16 %v3772
    %v4351 = vunpack.c.h.b16 %v3772
    %v4352 = vunpack.c.l.b16 %v3773
    %v4353 = vunpack.c.h.b16 %v3773
    %v4354 = vunpack.c.l.b16 %v3774
    %v4355 = vunpack.c.h.b16 %v3774
    %v4356 = vunpack.c.l.b16 %v3775
    %v4357 = vunpack.c.h.b16 %v3775
    %v4358 = vunpack.c.l.b16 %v3776
    %v4359 = vunpack.c.h.b16 %v3776
    %v4360 = vunpack.c.l.b16 %v3777
    %v4361 = vunpack.c.h.b16 %v3777
    %v4362 = vunpack.c.l.b16 %v3778
    %v4363 = vunpack.c.h.b16 %v3778
    %v4364 = vunpack.c.l.b16 %v3779
    %v4365 = vunpack.c.h.b16 %v3779
    %v4366 = vunpack.c.l.b16 %v3780
    %v4367 = vunpack.c.h.b16 %v3780
    %v4368 = vunpack.c.l.b16 %v3781
    %v4369 = vunpack.c.h.b16 %v3781
    %v4370 = vunpack.c.l.b16 %v3782
    %v4371 = vunpack.c.h.b16 %v3782
    %v4372 = vunpack.c.l.b16 %v3783
    %v4373 = vunpack.c.h.b16 %v3783
    %v4374 = vunpack.c.l.b16 %v3784
    %v4375 = vunpack.c.h.b16 %v3784
    %v4376 = vunpack.c.l.b16 %v3785
    %v4377 = vunpack.c.h.b16 %v3785
    %v4378 = vunpack.c.l.b16 %v3786
    %v4379 = vunpack.c.h.b16 %v3786
    %v4380 = vunpack.c.l.b16 %v3787
    %v4381 = vunpack.c.h.b16 %v3787
    %v4382 = vunpack.c.l.b16 %v3788
    %v4383 = vunpack.c.h.b16 %v3788
    %v4384 = vunpack.c.l.b16 %v3789
    %v4385 = vunpack.c.h.b16 %v3789
    %v4386 = vunpack.c.l.b16 %v3790
    %v4387 = vunpack.c.h.b16 %v3790
    %v4388 = vunpack.c.l.b16 %v3791
    %v4389 = vunpack.c.h.b16 %v3791
    %v4390 = vunpack.c.l.b16 %v3792
    %v4391 = vunpack.c.h.b16 %v3792
    %v4392 = vunpack.c.l.b16 %v3793
    %v4393 = vunpack.c.h.b16 %v3793
    %v4394 = vunpack.c.l.b16 %v3794
    %v4395 = vunpack.c.h.b16 %v3794
    %v4396 = vunpack.c.l.b16 %v3795
    %v4397 = vunpack.c.h.b16 %v3795
    %v4398 = vunpack.c.l.b16 %v3796
    %v4399 = vunpack.c.h.b16 %v3796
    %v4400 = vunpack.c.l.b16 %v3797
    %v4401 = vunpack.c.h.b16 %v3797
    %v4402 = vunpack.c.l.b16 %v3798
    %v4403 = vunpack.c.h.b16 %v3798
    %v4404 = vunpack.c.l.b16 %v3799
    %v4405 = vunpack.c.h.b16 %v3799
    %v4406 = vunpack.c.l.b16 %v3800
    %v4407 = vunpack.c.h.b16 %v3800
    %v4408 = vunpack.c.l.b16 %v3801
    %v4409 = vunpack.c.h.b16 %v3801
    %v4410 = vunpack.c.l.b16 %v3802
    %v4411 = vunpack.c.h.b16 %v3802
    %v4412 = vunpack.c.l.b16 %v3803
    %v4413 = vunpack.c.h.b16 %v3803
    %v4414 = vunpack.c.l.b16 %v3804
    %v4415 = vunpack.c.h.b16 %v3804
    %v4416 = vunpack.c.l.b16 %v3805
    %v4417 = vunpack.c.h.b16 %v3805
    %v4418 = vunpack.c.l.b16 %v3806
    %v4419 = vunpack.c.h.b16 %v3806
    %v4420 = vunpack.c.l.b16 %v3807
    %v4421 = vunpack.c.h.b16 %v3807
    %v4422 = vunpack.c.l.b16 %v3808
    %v4423 = vunpack.c.h.b16 %v3808
    %v4424 = vunpack.c.l.b16 %v3809
    %v4425 = vunpack.c.h.b16 %v3809
    %v4426 = vunpack.c.l.b16 %v3810
    %v4427 = vunpack.c.h.b16 %v3810
    %v4428 = vunpack.c.l.b16 %v3811
    %v4429 = vunpack.c.h.b16 %v3811
    %v4430 = vunpack.c.l.b16 %v3812
    %v4431 = vunpack.c.h.b16 %v3812
    %v4432 = vunpack.c.l.b16 %v3813
    %v4433 = vunpack.c.h.b16 %v3813
    %v4434 = vunpack.c.l.b16 %v3814
    %v4435 = vunpack.c.h.b16 %v3814
    %v4436 = vunpack.c.l.b16 %v3815
    %v4437 = vunpack.c.h.b16 %v3815
    %v4438 = vunpack.c.l.b16 %v3816
    %v4439 = vunpack.c.h.b16 %v3816
    %v4440 = vunpack.c.l.b16 %v3817
    %v4441 = vunpack.c.h.b16 %v3817
    %v4442 = vunpack.c.l.b16 %v3818
    %v4443 = vunpack.c.h.b16 %v3818
    %v4444 = vunpack.c.l.b16 %v3819
    %v4445 = vunpack.c.h.b16 %v3819
    %v4446 = vunpack.c.l.b16 %v3820
    %v4447 = vunpack.c.h.b16 %v3820
    %v4448 = vunpack.c.l.b16 %v3821
    %v4449 = vunpack.c.h.b16 %v3821
    %v4450 = vunpack.c.l.b16 %v3822
    %v4451 = vunpack.c.h.b16 %v3822
    %v4452 = vunpack.c.l.b16 %v3823
    %v4453 = vunpack.c.h.b16 %v3823
    %v4454 = vunpack.c.l.b16 %v3824
    %v4455 = vunpack.c.h.b16 %v3824
    %v4456 = vunpack.c.l.b16 %v3825
    %v4457 = vunpack.c.h.b16 %v3825
    %v4458 = vunpack.c.l.b16 %v3826
    %v4459 = vunpack.c.h.b16 %v3826
    %v4460 = vunpack.c.l.b16 %v3827
    %v4461 = vunpack.c.h.b16 %v3827
    %v4462 = vunpack.c.l.b16 %v3828
    %v4463 = vunpack.c.h.b16 %v3828
    %v4464 = vunpack.c.l.b16 %v3829
    %v4465 = vunpack.c.h.b16 %v3829
    %v4466 = vunpack.c.l.b16 %v3830
    %v4467 = vunpack.c.h.b16 %v3830
    %v4468 = vunpack.c.l.b16 %v3831
    %v4469 = vunpack.c.h.b16 %v3831
    %v4470 = vunpack.c.l.b16 %v3832
    %v4471 = vunpack.c.h.b16 %v3832
    %v4472 = vunpack.c.l.b16 %v3833
    %v4473 = vunpack.c.h.b16 %v3833
    %v4474 = vunpack.c.l.b16 %v3834
    %v4475 = vunpack.c.h.b16 %v3834
    %v4476 = vunpack.c.l.b16 %v3835
    %v4477 = vunpack.c.h.b16 %v3835
    %v4478 = vunpack.c.l.b16 %v3836
    %v4479 = vunpack.c.h.b16 %v3836
    %v4480 = vunpack.c.l.b16 %v3837
    %v4481 = vunpack.c.h.b16 %v3837
    %v4482 = vunpack.c.l.b16 %v3838
    %v4483 = vunpack.c.h.b16 %v3838
    %v4484 = vunpack.c.l.b16 %v3839
    %v4485 = vunpack.c.h.b16 %v3839
    %v4486 = vunpack.c.l.b16 %v3840
    %v4487 = vunpack.c.h.b16 %v3840
    %v4488 = vunpack.c.l.b16 %v3841
    %v4489 = vunpack.c.h.b16 %v3841
    %v4490 = vunpack.c.l.b16 %v3842
    %v4491 = vunpack.c.h.b16 %v3842
    %v4492 = vunpack.c.l.b16 %v3843
    %v4493 = vunpack.c.h.b16 %v3843
    %v4494 = vunpack.c.l.b16 %v3844
    %v4495 = vunpack.c.h.b16 %v3844
    %v4496 = vunpack.c.l.b16 %v3845
    %v4497 = vunpack.c.h.b16 %v3845
    %v4498 = vunpack.c.l.b16 %v3846
    %v4499 = vunpack.c.h.b16 %v3846
    %v4500 = vunpack.c.l.b16 %v3847
    %v4501 = vunpack.c.h.b16 %v3847
    %v4502 = vunpack.c.l.b16 %v3848
    %v4503 = vunpack.c.h.b16 %v3848
    %v4504 = vunpack.c.l.b16 %v3849
    %v4505 = vunpack.c.h.b16 %v3849
    %v4506 = vunpack.c.l.b16 %v3850
    %v4507 = vunpack.c.h.b16 %v3850
    %v4508 = vunpack.c.l.b16 %v3851
    %v4509 = vunpack.c.h.b16 %v3851
    %v4510 = vunpack.c.l.b16 %v3852
    %v4511 = vunpack.c.h.b16 %v3852
    %v4512 = vunpack.c.l.b16 %v3853
    %v4513 = vunpack.c.h.b16 %v3853
    %v4514 = vunpack.c.l.b16 %v3854
    %v4515 = vunpack.c.h.b16 %v3854
    %v4516 = vunpack.c.l.b16 %v3855
    %v4517 = vunpack.c.h.b16 %v3855
    %v4518 = vunpack.c.l.b16 %v3856
    %v4519 = vunpack.c.h.b16 %v3856
    %v4520 = vunpack.c.l.b16 %v3857
    %v4521 = vunpack.c.h.b16 %v3857
    %v4522 = vunpack.c.l.b16 %v3858
    %v4523 = vunpack.c.h.b16 %v3858
    %v4524 = vunpack.c.l.b16 %v3859
    %v4525 = vunpack.c.h.b16 %v3859
    %v4526 = vunpack.c.l.b16 %v3860
    %v4527 = vunpack.c.h.b16 %v3860
    %v4528 = vunpack.c.l.b16 %v3861
    %v4529 = vunpack.c.h.b16 %v3861
    %v4530 = vunpack.c.l.b16 %v3862
    %v4531 = vunpack.c.h.b16 %v3862
    %v4532 = vunpack.c.l.b16 %v3863
    %v4533 = vunpack.c.h.b16 %v3863
    %v4534 = vunpack.c.l.b16 %v3864
    %v4535 = vunpack.c.h.b16 %v3864
    %v4536 = vunpack.c.l.b16 %v3865
    %v4537 = vunpack.c.h.b16 %v3865
    %v4538 = vunpack.c.l.b16 %v3866
    %v4539 = vunpack.c.h.b16 %v3866
    %v4540 = vunpack.c.l.b16 %v3867
    %v4541 = vunpack.c.h.b16 %v3867
    %v4542 = vunpack.c.l.b16 %v3868
    %v4543 = vunpack.c.h.b16 %v3868
    %v4544 = vunpack.c.l.b16 %v3869
    %v4545 = vunpack.c.h.b16 %v3869
    %v4546 = vunpack.c.l.b16 %v3870
    %v4547 = vunpack.c.h.b16 %v3870
    %v4548 = vunpack.c.l.b16 %v3871
    %v4549 = vunpack.c.h.b16 %v3871
    %v4550 = vunpack.c.l.b16 %v3872
    %v4551 = vunpack.c.h.b16 %v3872
    %v4552 = vunpack.c.l.b16 %v3873
    %v4553 = vunpack.c.h.b16 %v3873
    %v4554 = vunpack.c.l.b16 %v3874
    %v4555 = vunpack.c.h.b16 %v3874
    %v4556 = vunpack.c.l.b16 %v3875
    %v4557 = vunpack.c.h.b16 %v3875
    %v4558 = vunpack.c.l.b16 %v3876
    %v4559 = vunpack.c.h.b16 %v3876
    %v4560 = vunpack.c.l.b16 %v3877
    %v4561 = vunpack.c.h.b16 %v3877
    %v4562 = vunpack.c.l.b16 %v3878
    %v4563 = vunpack.c.h.b16 %v3878
    %v4564 = vunpack.c.l.b16 %v3879
    %v4565 = vunpack.c.h.b16 %v3879
    %v4566 = vunpack.c.l.b16 %v3880
    %v4567 = vunpack.c.h.b16 %v3880
    %v4568 = vunpack.c.l.b16 %v3881
    %v4569 = vunpack.c.h.b16 %v3881
    %v4570 = vunpack.c.l.b16 %v3882
    %v4571 = vunpack.c.h.b16 %v3882
    %v4572 = vunpack.c.l.b16 %v3883
    %v4573 = vunpack.c.h.b16 %v3883
    %v4574 = vunpack.c.l.b16 %v3884
    %v4575 = vunpack.c.h.b16 %v3884
    %v4576 = vunpack.c.l.b16 %v3885
    %v4577 = vunpack.c.h.b16 %v3885
    %v4578 = vunpack.c.l.b16 %v3886
    %v4579 = vunpack.c.h.b16 %v3886
    %v4580 = vunpack.c.l.b16 %v3887
    %v4581 = vunpack.c.h.b16 %v3887
    %v4582 = vunpack.c.l.b16 %v3888
    %v4583 = vunpack.c.h.b16 %v3888
    %v4584 = vunpack.c.l.b16 %v3889
    %v4585 = vunpack.c.h.b16 %v3889
    %v4586 = vunpack.c.l.b16 %v3890
    %v4587 = vunpack.c.h.b16 %v3890
    %v4588 = vunpack.c.l.b16 %v3891
    %v4589 = vunpack.c.h.b16 %v3891
    %v4590 = vunpack.c.l.b16 %v3892
    %v4591 = vunpack.c.h.b16 %v3892
    %v4592 = vunpack.c.l.b16 %v3893
    %v4593 = vunpack.c.h.b16 %v3893
    %v4594 = vunpack.c.l.b16 %v3894
    %v4595 = vunpack.c.h.b16 %v3894
    %v4596 = vunpack.c.l.b16 %v3895
    %v4597 = vunpack.c.h.b16 %v3895
    %v4598 = vunpack.c.l.b16 %v3896
    %v4599 = vunpack.c.h.b16 %v3896
    %v4600 = vunpack.c.l.b16 %v3897
    %v4601 = vunpack.c.h.b16 %v3897
    %v4602 = vunpack.c.l.b16 %v3898
    %v4603 = vunpack.c.h.b16 %v3898
    %v4604 = vunpack.c.l.b16 %v3899
    %v4605 = vunpack.c.h.b16 %v3899
    %v4606 = vunpack.c.l.b16 %v3900
    %v4607 = vunpack.c.h.b16 %v3900
    %v4608 = vunpack.c.l.b16 %v3901
    %v4609 = vunpack.c.h.b16 %v3901
    %v4610 = vunpack.c.l.b16 %v3902
    %v4611 = vunpack.c.h.b16 %v3902
    %v4612 = vunpack.c.l.b16 %v3903
    %v4613 = vunpack.c.h.b16 %v3903
    %v4614 = vunpack.c.l.b16 %v3904
    %v4615 = vunpack.c.h.b16 %v3904
    %v4616 = vunpack.c.l.b16 %v3905
    %v4617 = vunpack.c.h.b16 %v3905
    %v4618 = vunpack.c.l.b16 %v3906
    %v4619 = vunpack.c.h.b16 %v3906
    %v4620 = vunpack.c.l.b16 %v3907
    %v4621 = vunpack.c.h.b16 %v3907
    %v4622 = vunpack.c.l.b16 %v3908
    %v4623 = vunpack.c.h.b16 %v3908
    %v4624 = vunpack.c.l.b16 %v3909
    %v4625 = vunpack.c.h.b16 %v3909
    %v4626 = vunpack.c.l.b16 %v3910
    %v4627 = vunpack.c.h.b16 %v3910
    %v4628 = vunpack.c.l.b16 %v3911
    %v4629 = vunpack.c.h.b16 %v3911
    %v4630 = vunpack.c.l.b16 %v3912
    %v4631 = vunpack.c.h.b16 %v3912
    %v4632 = vunpack.c.l.b16 %v3913
    %v4633 = vunpack.c.h.b16 %v3913
    %v4634 = vunpack.c.l.b16 %v3914
    %v4635 = vunpack.c.h.b16 %v3914
    %v4636 = vunpack.c.l.b16 %v3915
    %v4637 = vunpack.c.h.b16 %v3915
    %v4638 = vunpack.c.l.b16 %v3916
    %v4639 = vunpack.c.h.b16 %v3916
    %v4640 = vunpack.c.l.b16 %v3917
    %v4641 = vunpack.c.h.b16 %v3917
    %v4642 = vunpack.c.l.b16 %v3918
    %v4643 = vunpack.c.h.b16 %v3918
    %v4644 = vunpack.c.l.b16 %v3919
    %v4645 = vunpack.c.h.b16 %v3919
    %v4646 = vunpack.c.l.b16 %v3920
    %v4647 = vunpack.c.h.b16 %v3920
    %v4648 = vunpack.c.l.b16 %v3921
    %v4649 = vunpack.c.h.b16 %v3921
    %v4650 = vunpack.c.l.b16 %v3922
    %v4651 = vunpack.c.h.b16 %v3922
    %v4652 = vunpack.c.l.b16 %v3923
    %v4653 = vunpack.c.h.b16 %v3923
    %v4654 = vunpack.c.l.b16 %v3924
    %v4655 = vunpack.c.h.b16 %v3924
    %v4656 = vunpack.c.l.b16 %v3925
    %v4657 = vunpack.c.h.b16 %v3925
    %v4658 = vunpack.c.l.b16 %v3926
    %v4659 = vunpack.c.h.b16 %v3926
    %v4660 = vunpack.c.l.b16 %v3927
    %v4661 = vunpack.c.h.b16 %v3927
    %v4662 = vunpack.c.l.b16 %v3928
    %v4663 = vunpack.c.h.b16 %v3928
    %v4664 = vunpack.c.l.b16 %v3929
    %v4665 = vunpack.c.h.b16 %v3929
    %v4666 = vunpack.c.l.b16 %v3930
    %v4667 = vunpack.c.h.b16 %v3930
    %v4668 = vunpack.c.l.b16 %v3931
    %v4669 = vunpack.c.h.b16 %v3931
    %v4670 = vunpack.c.l.b16 %v3932
    %v4671 = vunpack.c.h.b16 %v3932
    %v4672 = vunpack.c.l.b16 %v3933
    %v4673 = vunpack.c.h.b16 %v3933
    %v4674 = vunpack.c.l.b16 %v3934
    %v4675 = vunpack.c.h.b16 %v3934
    %v4676 = vunpack.c.l.b16 %v3935
    %v4677 = vunpack.c.h.b16 %v3935
    %v4678 = vunpack.c.l.b16 %v3936
    %v4679 = vunpack.c.h.b16 %v3936
    %v4680 = vunpack.c.l.b16 %v3937
    %v4681 = vunpack.c.h.b16 %v3937
    %v4682 = vunpack.c.l.b16 %v3938
    %v4683 = vunpack.c.h.b16 %v3938
    %v4684 = vunpack.c.l.b16 %v3939
    %v4685 = vunpack.c.h.b16 %v3939
    %v4686 = vunpack.c.l.b16 %v3940
    %v4687 = vunpack.c.h.b16 %v3940
    %v4688 = vunpack.c.l.b16 %v3941
    %v4689 = vunpack.c.h.b16 %v3941
    %v4690 = vunpack.c.l.b16 %v3942
    %v4691 = vunpack.c.h.b16 %v3942
    %v4692 = vunpack.c.l.b16 %v3943
    %v4693 = vunpack.c.h.b16 %v3943
    %v4694 = vunpack.c.l.b16 %v3944
    %v4695 = vunpack.c.h.b16 %v3944
    %v4696 = vunpack.c.l.b16 %v3945
    %v4697 = vunpack.c.h.b16 %v3945
    %v4698 = vunpack.c.l.b16 %v3946
    %v4699 = vunpack.c.h.b16 %v3946
    %v4700 = vunpack.c.l.b16 %v3947
    %v4701 = vunpack.c.h.b16 %v3947
    %v4702 = vunpack.c.l.b16 %v3948
    %v4703 = vunpack.c.h.b16 %v3948
    %v4704 = vunpack.c.l.b16 %v3949
    %v4705 = vunpack.c.h.b16 %v3949
    %v4706 = vunpack.c.l.b16 %v3950
    %v4707 = vunpack.c.h.b16 %v3950
    %v4708 = vunpack.c.l.b16 %v3951
    %v4709 = vunpack.c.h.b16 %v3951
    %v4710 = vunpack.c.l.b16 %v3952
    %v4711 = vunpack.c.h.b16 %v3952
    %v4712 = vunpack.c.l.b16 %v3953
    %v4713 = vunpack.c.h.b16 %v3953
    %v4714 = vunpack.c.l.b16 %v3954
    %v4715 = vunpack.c.h.b16 %v3954
    %v4716 = vunpack.c.l.b16 %v3955
    %v4717 = vunpack.c.h.b16 %v3955
    %v4718 = vunpack.c.l.b16 %v3956
    %v4719 = vunpack.c.h.b16 %v3956
    %v4720 = vunpack.c.l.b16 %v3957
    %v4721 = vunpack.c.h.b16 %v3957
    %v4722 = vunpack.c.l.b16 %v3958
    %v4723 = vunpack.c.h.b16 %v3958
    %v4724 = vunpack.c.l.b16 %v3959
    %v4725 = vunpack.c.h.b16 %v3959
    %v4726 = vunpack.c.l.b16 %v3960
    %v4727 = vunpack.c.h.b16 %v3960
    %v4728 = vunpack.c.l.b16 %v3961
    %v4729 = vunpack.c.h.b16 %v3961
    %v4730 = vunpack.c.l.b16 %v3962
    %v4731 = vunpack.c.h.b16 %v3962
    %v4732 = vunpack.c.l.b16 %v3963
    %v4733 = vunpack.c.h.b16 %v3963
    %v4734 = vunpack.c.l.b16 %v3964
    %v4735 = vunpack.c.h.b16 %v3964
    %v4736 = vunpack.c.l.b16 %v3965
    %v4737 = vunpack.c.h.b16 %v3965
    %v4738 = vunpack.c.l.b16 %v3966
    %v4739 = vunpack.c.h.b16 %v3966
    %v4740 = vunpack.c.l.b16 %v3967
    %v4741 = vunpack.c.h.b16 %v3967
    %v4742 = vunpack.c.l.b16 %v3968
    %v4743 = vunpack.c.h.b16 %v3968
    %v4744 = vunpack.c.l.b16 %v3969
    %v4745 = vunpack.c.h.b16 %v3969
    %v4746 = vunpack.c.l.b16 %v3970
    %v4747 = vunpack.c.h.b16 %v3970
    %v4748 = vunpack.c.l.b16 %v3971
    %v4749 = vunpack.c.h.b16 %v3971
    %v4750 = vunpack.c.l.b16 %v3972
    %v4751 = vunpack.c.h.b16 %v3972
    %v4752 = vunpack.c.l.b16 %v3973
    %v4753 = vunpack.c.h.b16 %v3973
    %v4754 = vunpack.c.l.b16 %v3974
    %v4755 = vunpack.c.h.b16 %v3974
    %v4756 = vunpack.c.l.b16 %v3975
    %v4757 = vunpack.c.h.b16 %v3975
    %v4758 = vunpack.c.l.b16 %v3976
    %v4759 = vunpack.c.h.b16 %v3976
    %v4760 = vunpack.c.l.b16 %v3977
    %v4761 = vunpack.c.h.b16 %v3977
    %v4762 = vunpack.c.l.b16 %v3978
    %v4763 = vunpack.c.h.b16 %v3978
    %v4764 = vunpack.c.l.b16 %v3979
    %v4765 = vunpack.c.h.b16 %v3979
    %v4766 = vunpack.c.l.b16 %v3980
    %v4767 = vunpack.c.h.b16 %v3980
    %v4768 = vunpack.c.l.b16 %v3981
    %v4769 = vunpack.c.h.b16 %v3981
    %v4770 = vunpack.c.l.b16 %v3982
    %v4771 = vunpack.c.h.b16 %v3982
    %v4772 = vunpack.c.l.b16 %v3983
    %v4773 = vunpack.c.h.b16 %v3983
    %v4774 = vpack.c.b16 %v4266, %v4262
    %v4775 = vpack.c.b16 %v4267, %v4263
    %v4776 = vpack.c.b16 %v4268, %v4264
    %v4777 = vpack.c.b16 %v4269, %v4265
    %v4778 = vpack.c.b16 %v4274, %v4270
    %v4779 = vpack.c.b16 %v4275, %v4271
    %v4780 = vpack.c.b16 %v4276, %v4272
    %v4781 = vpack.c.b16 %v4277, %v4273
    %v4782 = vpack.c.b16 %v4282, %v4278
    %v4783 = vpack.c.b16 %v4283, %v4279
    %v4784 = vpack.c.b16 %v4284, %v4280
    %v4785 = vpack.c.b16 %v4285, %v4281
    %v4786 = vpack.c.b16 %v4290, %v4286
    %v4787 = vpack.c.b16 %v4291, %v4287
    %v4788 = vpack.c.b16 %v4292, %v4288
    %v4789 = vpack.c.b16 %v4293, %v4289
    %v4790 = vpack.c.b16 %v4298, %v4294
    %v4791 = vpack.c.b16 %v4299, %v4295
    %v4792 = vpack.c.b16 %v4300, %v4296
    %v4793 = vpack.c.b16 %v4301, %v4297
    %v4794 = vpack.c.b16 %v4306, %v4302
    %v4795 = vpack.c.b16 %v4307, %v4303
    %v4796 = vpack.c.b16 %v4308, %v4304
    %v4797 = vpack.c.b16 %v4309, %v4305
    %v4798 = vpack.c.b16 %v4314, %v4310
    %v4799 = vpack.c.b16 %v4315, %v4311
    %v4800 = vpack.c.b16 %v4316, %v4312
    %v4801 = vpack.c.b16 %v4317, %v4313
    %v4802 = vpack.c.b16 %v4322, %v4318
    %v4803 = vpack.c.b16 %v4323, %v4319
    %v4804 = vpack.c.b16 %v4324, %v4320
    %v4805 = vpack.c.b16 %v4325, %v4321
    %v4806 = vpack.c.b16 %v4330, %v4326
    %v4807 = vpack.c.b16 %v4331, %v4327
    %v4808 = vpack.c.b16 %v4332, %v4328
    %v4809 = vpack.c.b16 %v4333, %v4329
    %v4810 = vpack.c.b16 %v4338, %v4334
    %v4811 = vpack.c.b16 %v4339, %v4335
    %v4812 = vpack.c.b16 %v4340, %v4336
    %v4813 = vpack.c.b16 %v4341, %v4337
    %v4814 = vpack.c.b16 %v4346, %v4342
    %v4815 = vpack.c.b16 %v4347, %v4343
    %v4816 = vpack.c.b16 %v4348, %v4344
    %v4817 = vpack.c.b16 %v4349, %v4345
    %v4818 = vpack.c.b16 %v4354, %v4350
    %v4819 = vpack.c.b16 %v4355, %v4351
    %v4820 = vpack.c.b16 %v4356, %v4352
    %v4821 = vpack.c.b16 %v4357, %v4353
    %v4822 = vpack.c.b16 %v4362, %v4358
    %v4823 = vpack.c.b16 %v4363, %v4359
    %v4824 = vpack.c.b16 %v4364, %v4360
    %v4825 = vpack.c.b16 %v4365, %v4361
    %v4826 = vpack.c.b16 %v4370, %v4366
    %v4827 = vpack.c.b16 %v4371, %v4367
    %v4828 = vpack.c.b16 %v4372, %v4368
    %v4829 = vpack.c.b16 %v4373, %v4369
    %v4830 = vpack.c.b16 %v4378, %v4374
    %v4831 = vpack.c.b16 %v4379, %v4375
    %v4832 = vpack.c.b16 %v4380, %v4376
    %v4833 = vpack.c.b16 %v4381, %v4377
    %v4834 = vpack.c.b16 %v4386, %v4382
    %v4835 = vpack.c.b16 %v4387, %v4383
    %v4836 = vpack.c.b16 %v4388, %v4384
    %v4837 = vpack.c.b16 %v4389, %v4385
    %v4838 = vpack.c.b16 %v4394, %v4390
    %v4839 = vpack.c.b16 %v4395, %v4391
    %v4840 = vpack.c.b16 %v4396, %v4392
    %v4841 = vpack.c.b16 %v4397, %v4393
    %v4842 = vpack.c.b16 %v4402, %v4398
    %v4843 = vpack.c.b16 %v4403, %v4399
    %v4844 = vpack.c.b16 %v4404, %v4400
    %v4845 = vpack.c.b16 %v4405, %v4401
    %v4846 = vpack.c.b16 %v4410, %v4406
    %v4847 = vpack.c.b16 %v4411, %v4407
    %v4848 = vpack.c.b16 %v4412, %v4408
    %v4849 = vpack.c.b16 %v4413, %v4409
    %v4850 = vpack.c.b16 %v4418, %v4414
    %v4851 = vpack.c.b16 %v4419, %v4415
    %v4852 = vpack.c.b16 %v4420, %v4416
    %v4853 = vpack.c.b16 %v4421, %v4417
    %v4854 = vpack.c.b16 %v4426, %v4422
    %v4855 = vpack.c.b16 %v4427, %v4423
    %v4856 = vpack.c.b16 %v4428, %v4424
    %v4857 = vpack.c.b16 %v4429, %v4425
    %v4858 = vpack.c.b16 %v4434, %v4430
    %v4859 = vpack.c.b16 %v4435, %v4431
    %v4860 = vpack.c.b16 %v4436, %v4432
    %v4861 = vpack.c.b16 %v4437, %v4433
    %v4862 = vpack.c.b16 %v4442, %v4438
    %v4863 = vpack.c.b16 %v4443, %v4439
    %v4864 = vpack.c.b16 %v4444, %v4440
    %v4865 = vpack.c.b16 %v4445, %v4441
    %v4866 = vpack.c.b16 %v4450, %v4446
    %v4867 = vpack.c.b16 %v4451, %v4447
    %v4868 = vpack.c.b16 %v4452, %v4448
    %v4869 = vpack.c.b16 %v4453, %v4449
    %v4870 = vpack.c.b16 %v4458, %v4454
    %v4871 = vpack.c.b16 %v4459, %v4455
    %v4872 = vpack.c.b16 %v4460, %v4456
    %v4873 = vpack.c.b16 %v4461, %v4457
    %v4874 = vpack.c.b16 %v4466, %v4462
    %v4875 = vpack.c.b16 %v4467, %v4463
    %v4876 = vpack.c.b16 %v4468, %v4464
    %v4877 = vpack.c.b16 %v4469, %v4465
    %v4878 = vpack.c.b16 %v4474, %v4470
    %v4879 = vpack.c.b16 %v4475, %v4471
    %v4880 = vpack.c.b16 %v4476, %v4472
    %v4881 = vpack.c.b16 %v4477, %v4473
    %v4882 = vpack.c.b16 %v4482, %v4478
    %v4883 = vpack.c.b16 %v4483, %v4479
    %v4884 = vpack.c.b16 %v4484, %v4480
    %v4885 = vpack.c.b16 %v4485, %v4481
    %v4886 = vpack.c.b16 %v4490, %v4486
    %v4887 = vpack.c.b16 %v4491, %v4487
    %v4888 = vpack.c.b16 %v4492, %v4488
    %v4889 = vpack.c.b16 %v4493, %v4489
    %v4890 = vpack.c.b16 %v4498, %v4494
    %v4891 = vpack.c.b16 %v4499, %v4495
    %v4892 = vpack.c.b16 %v4500, %v4496
    %v4893 = vpack.c.b16 %v4501, %v4497
    %v4894 = vpack.c.b16 %v4506, %v4502
    %v4895 = vpack.c.b16 %v4507, %v4503
    %v4896 = vpack.c.b16 %v4508, %v4504
    %v4897 = vpack.c.b16 %v4509, %v4505
    %v4898 = vpack.c.b16 %v4514, %v4510
    %v4899 = vpack.c.b16 %v4515, %v4511
    %v4900 = vpack.c.b16 %v4516, %v4512
    %v4901 = vpack.c.b16 %v4517, %v4513
    %v4902 = vpack.c.b16 %v4522, %v4518
    %v4903 = vpack.c.b16 %v4523, %v4519
    %v4904 = vpack.c.b16 %v4524, %v4520
    %v4905 = vpack.c.b16 %v4525, %v4521
    %v4906 = vpack.c.b16 %v4530, %v4526
    %v4907 = vpack.c.b16 %v4531, %v4527
    %v4908 = vpack.c.b16 %v4532, %v4528
    %v4909 = vpack.c.b16 %v4533, %v4529
    %v4910 = vpack.c.b16 %v4538, %v4534
    %v4911 = vpack.c.b16 %v4539, %v4535
    %v4912 = vpack.c.b16 %v4540, %v4536
    %v4913 = vpack.c.b16 %v4541, %v4537
    %v4914 = vpack.c.b16 %v4546, %v4542
    %v4915 = vpack.c.b16 %v4547, %v4543
    %v4916 = vpack.c.b16 %v4548, %v4544
    %v4917 = vpack.c.b16 %v4549, %v4545
    %v4918 = vpack.c.b16 %v4554, %v4550
    %v4919 = vpack.c.b16 %v4555, %v4551
    %v4920 = vpack.c.b16 %v4556, %v4552
    %v4921 = vpack.c.b16 %v4557, %v4553
    %v4922 = vpack.c.b16 %v4562, %v4558
    %v4923 = vpack.c.b16 %v4563, %v4559
    %v4924 = vpack.c.b16 %v4564, %v4560
    %v4925 = vpack.c.b16 %v4565, %v4561
    %v4926 = vpack.c.b16 %v4570, %v4566
    %v4927 = vpack.c.b16 %v4571, %v4567
    %v4928 = vpack.c.b16 %v4572, %v4568
    %v4929 = vpack.c.b16 %v4573, %v4569
    %v4930 = vpack.c.b16 %v4578, %v4574
    %v4931 = vpack.c.b16 %v4579, %v4575
    %v4932 = vpack.c.b16 %v4580, %v4576
    %v4933 = vpack.c.b16 %v4581, %v4577
    %v4934 = vpack.c.b16 %v4586, %v4582
    %v4935 = vpack.c.b16 %v4587, %v4583
    %v4936 = vpack.c.b16 %v4588, %v4584
    %v4937 = vpack.c.b16 %v4589, %v4585
    %v4938 = vpack.c.b16 %v4594, %v4590
    %v4939 = vpack.c.b16 %v4595, %v4591
    %v4940 = vpack.c.b16 %v4596, %v4592
    %v4941 = vpack.c.b16 %v4597, %v4593
    %v4942 = vpack.c.b16 %v4602, %v4598
    %v4943 = vpack.c.b16 %v4603, %v4599
    %v4944 = vpack.c.b16 %v4604, %v4600
    %v4945 = vpack.c.b16 %v4605, %v4601
    %v4946 = vpack.c.b16 %v4610, %v4606
    %v4947 = vpack.c.b16 %v4611, %v4607
    %v4948 = vpack.c.b16 %v4612, %v4608
    %v4949 = vpack.c.b16 %v4613, %v4609
    %v4950 = vpack.c.b16 %v4618, %v4614
    %v4951 = vpack.c.b16 %v4619, %v4615
    %v4952 = vpack.c.b16 %v4620, %v4616
    %v4953 = vpack.c.b16 %v4621, %v4617
    %v4954 = vpack.c.b16 %v4626, %v4622
    %v4955 = vpack.c.b16 %v4627, %v4623
    %v4956 = vpack.c.b16 %v4628, %v4624
    %v4957 = vpack.c.b16 %v4629, %v4625
    %v4958 = vpack.c.b16 %v4634, %v4630
    %v4959 = vpack.c.b16 %v4635, %v4631
    %v4960 = vpack.c.b16 %v4636, %v4632
    %v4961 = vpack.c.b16 %v4637, %v4633
    %v4962 = vpack.c.b16 %v4642, %v4638
    %v4963 = vpack.c.b16 %v4643, %v4639
    %v4964 = vpack.c.b16 %v4644, %v4640
    %v4965 = vpack.c.b16 %v4645, %v4641
    %v4966 = vpack.c.b16 %v4650, %v4646
    %v4967 = vpack.c.b16 %v4651, %v4647
    %v4968 = vpack.c.b16 %v4652, %v4648
    %v4969 = vpack.c.b16 %v4653, %v4649
    %v4970 = vpack.c.b16 %v4658, %v4654
    %v4971 = vpack.c.b16 %v4659, %v4655
    %v4972 = vpack.c.b16 %v4660, %v4656
    %v4973 = vpack.c.b16 %v4661, %v4657
    %v4974 = vpack.c.b16 %v4666, %v4662
    %v4975 = vpack.c.b16 %v4667, %v4663
    %v4976 = vpack.c.b16 %v4668, %v4664
    %v4977 = vpack.c.b16 %v4669, %v4665
    %v4978 = vpack.c.b16 %v4674, %v4670
    %v4979 = vpack.c.b16 %v4675, %v4671
    %v4980 = vpack.c.b16 %v4676, %v4672
    %v4981 = vpack.c.b16 %v4677, %v4673
    %v4982 = vpack.c.b16 %v4682, %v4678
    %v4983 = vpack.c.b16 %v4683, %v4679
    %v4984 = vpack.c.b16 %v4684, %v4680
    %v4985 = vpack.c.b16 %v4685, %v4681
    %v4986 = vpack.c.b16 %v4690, %v4686
    %v4987 = vpack.c.b16 %v4691, %v4687
    %v4988 = vpack.c.b16 %v4692, %v4688
    %v4989 = vpack.c.b16 %v4693, %v4689
    %v4990 = vpack.c.b16 %v4698, %v4694
    %v4991 = vpack.c.b16 %v4699, %v4695
    %v4992 = vpack.c.b16 %v4700, %v4696
    %v4993 = vpack.c.b16 %v4701, %v4697
    %v4994 = vpack.c.b16 %v4706, %v4702
    %v4995 = vpack.c.b16 %v4707, %v4703
    %v4996 = vpack.c.b16 %v4708, %v4704
    %v4997 = vpack.c.b16 %v4709, %v4705
    %v4998 = vpack.c.b16 %v4714, %v4710
    %v4999 = vpack.c.b16 %v4715, %v4711
    %v5000 = vpack.c.b16 %v4716, %v4712
    %v5001 = vpack.c.b16 %v4717, %v4713
    %v5002 = vpack.c.b16 %v4722, %v4718
    %v5003 = vpack.c.b16 %v4723, %v4719
    %v5004 = vpack.c.b16 %v4724, %v4720
    %v5005 = vpack.c.b16 %v4725, %v4721
    %v5006 = vpack.c.b16 %v4730, %v4726
    %v5007 = vpack.c.b16 %v4731, %v4727
    %v5008 = vpack.c.b16 %v4732, %v4728
    %v5009 = vpack.c.b16 %v4733, %v4729
    %v5010 = vpack.c.b16 %v4738, %v4734
    %v5011 = vpack.c.b16 %v4739, %v4735
    %v5012 = vpack.c.b16 %v4740, %v4736
    %v5013 = vpack.c.b16 %v4741, %v4737
    %v5014 = vpack.c.b16 %v4746, %v4742
    %v5015 = vpack.c.b16 %v4747, %v4743
    %v5016 = vpack.c.b16 %v4748, %v4744
    %v5017 = vpack.c.b16 %v4749, %v4745
    %v5018 = vpack.c.b16 %v4754, %v4750
    %v5019 = vpack.c.b16 %v4755, %v4751
    %v5020 = vpack.c.b16 %v4756, %v4752
    %v5021 = vpack.c.b16 %v4757, %v4753
    %v5022 = vpack.c.b16 %v4762, %v4758
    %v5023 = vpack.c.b16 %v4763, %v4759
    %v5024 = vpack.c.b16 %v4764, %v4760
    %v5025 = vpack.c.b16 %v4765, %v4761
    %v5026 = vpack.c.b16 %v4770, %v4766
    %v5027 = vpack.c.b16 %v4771, %v4767
    %v5028 = vpack.c.b16 %v4772, %v4768
    %v5029 = vpack.c.b16 %v4773, %v4769
    %5286 = vmatprep.subr.bf16.mxu0 %v4775
    %5287 = vmatpush1.bf16.msra.mxu0 %v4774
    %5288 = vmatprep.subr.bf16.mxu0 %v4779
    %5289 = vmatpush1.bf16.msra.mxu0 %v4778
    %5290 = vmatprep.subr.bf16.mxu0 %v4783
    %5291 = vmatpush1.bf16.msra.mxu0 %v4782
    %5292 = vmatprep.subr.bf16.mxu0 %v4787
    %5293 = vmatpush1.bf16.msra.mxu0 %v4786
    %5294 = vmatprep.subr.bf16.mxu0 %v4791
    %5295 = vmatpush1.bf16.msra.mxu0 %v4790
    %5296 = vmatprep.subr.bf16.mxu0 %v4795
    %5297 = vmatpush1.bf16.msra.mxu0 %v4794
    %5298 = vmatprep.subr.bf16.mxu0 %v4799
    %5299 = vmatpush1.bf16.msra.mxu0 %v4798
    %5300 = vmatprep.subr.bf16.mxu0 %v4803
    %5301 = vmatpush1.bf16.msra.mxu0 %v4802
    %5302 = vmatprep.subr.bf16.mxu0 %v4807
    %5303 = vmatpush1.bf16.msra.mxu0 %v4806
    %5304 = vmatprep.subr.bf16.mxu0 %v4811
    %5305 = vmatpush1.bf16.msra.mxu0 %v4810
    %5306 = vmatprep.subr.bf16.mxu0 %v4815
    %5307 = vmatpush1.bf16.msra.mxu0 %v4814
    %5308 = vmatprep.subr.bf16.mxu0 %v4819
    %5309 = vmatpush1.bf16.msra.mxu0 %v4818
    %5310 = vmatprep.subr.bf16.mxu0 %v4823
    %5311 = vmatpush1.bf16.msra.mxu0 %v4822
    %5312 = vmatprep.subr.bf16.mxu0 %v4827
    %5313 = vmatpush1.bf16.msra.mxu0 %v4826
    %5314 = vmatprep.subr.bf16.mxu0 %v4831
    %5315 = vmatpush1.bf16.msra.mxu0 %v4830
    %5316 = vmatprep.subr.bf16.mxu0 %v4835
    %5317 = vmatpush1.bf16.msra.mxu0 %v4834
    %5318 = vmatprep.mubr.bf16.mxu0 %v3721
    %5319 = vmatmul.mubr.bf16.gmra.mrb[0].mxu0 %v3720
    %v5320 = vpop.f32.mrb[0].mxu0
    %v5321 = vadd.f32 %v3989, %v5320
    %v5322 = vpop.f32.mrb[0].mxu0
    %v5323 = vadd.f32 %v3993, %v5322
    %v5324 = vpop.f32.mrb[0].mxu0
    %v5325 = vpop.f32.mrb[0].mxu0
    %5326 = vdwg.mxu0
    %5327 = vmatprep.subr.bf16.mxu0 %v4839
    %5328 = vmatpush1.bf16.msra.mxu0 %v4838
    %5329 = vmatprep.subr.bf16.mxu0 %v4843
    %5330 = vmatpush1.bf16.msra.mxu0 %v4842
    %5331 = vmatprep.subr.bf16.mxu0 %v4847
    %5332 = vmatpush1.bf16.msra.mxu0 %v4846
    %5333 = vmatprep.subr.bf16.mxu0 %v4851
    %5334 = vmatpush1.bf16.msra.mxu0 %v4850
    %5335 = vmatprep.subr.bf16.mxu0 %v4855
    %5336 = vmatpush1.bf16.msra.mxu0 %v4854
    %5337 = vmatprep.subr.bf16.mxu0 %v4859
    %5338 = vmatpush1.bf16.msra.mxu0 %v4858
    %5339 = vmatprep.subr.bf16.mxu0 %v4863
    %5340 = vmatpush1.bf16.msra.mxu0 %v4862
    %5341 = vmatprep.subr.bf16.mxu0 %v4867
    %5342 = vmatpush1.bf16.msra.mxu0 %v4866
    %5343 = vmatprep.subr.bf16.mxu0 %v4871
    %5344 = vmatpush1.bf16.msra.mxu0 %v4870
    %5345 = vmatprep.subr.bf16.mxu0 %v4875
    %5346 = vmatpush1.bf16.msra.mxu0 %v4874
    %5347 = vmatprep.subr.bf16.mxu0 %v4879
    %5348 = vmatpush1.bf16.msra.mxu0 %v4878
    %5349 = vmatprep.subr.bf16.mxu0 %v4883
    %5350 = vmatpush1.bf16.msra.mxu0 %v4882
    %5351 = vmatprep.subr.bf16.mxu0 %v4887
    %5352 = vmatpush1.bf16.msra.mxu0 %v4886
    %5353 = vmatprep.subr.bf16.mxu0 %v4891
    %5354 = vmatpush1.bf16.msra.mxu0 %v4890
    %5355 = vmatprep.subr.bf16.mxu0 %v4895
    %5356 = vmatpush1.bf16.msra.mxu0 %v4894
    %5357 = vmatprep.subr.bf16.mxu0 %v4899
    %5358 = vmatpush1.bf16.msra.mxu0 %v4898
    %5359 = vmatprep.mubr.bf16.mxu0 %v3723
    %5360 = vmatmul.mubr.bf16.gmra.mrb[0].mxu0 %v3722
    %v5361 = vpop.f32.mrb[0].mxu0
    %v5362 = vadd.f32 %v5321, %v5361
    %v5363 = vpop.f32.mrb[0].mxu0
    %v5364 = vadd.f32 %v5323, %v5363
    %v5365 = vpop.f32.mrb[0].mxu0
    %v5366 = vpop.f32.mrb[0].mxu0
    %5367 = vdwg.mxu0
    %5368 = vmatprep.subr.bf16.mxu0 %v4903
    %5369 = vmatpush1.bf16.msra.mxu0 %v4902
    %5370 = vmatprep.subr.bf16.mxu0 %v4907
    %5371 = vmatpush1.bf16.msra.mxu0 %v4906
    %5372 = vmatprep.subr.bf16.mxu0 %v4911
    %5373 = vmatpush1.bf16.msra.mxu0 %v4910
    %5374 = vmatprep.subr.bf16.mxu0 %v4915
    %5375 = vmatpush1.bf16.msra.mxu0 %v4914
    %5376 = vmatprep.subr.bf16.mxu0 %v4919
    %5377 = vmatpush1.bf16.msra.mxu0 %v4918
    %5378 = vmatprep.subr.bf16.mxu0 %v4923
    %5379 = vmatpush1.bf16.msra.mxu0 %v4922
    %5380 = vmatprep.subr.bf16.mxu0 %v4927
    %5381 = vmatpush1.bf16.msra.mxu0 %v4926
    %5382 = vmatprep.subr.bf16.mxu0 %v4931
    %5383 = vmatpush1.bf16.msra.mxu0 %v4930
    %5384 = vmatprep.subr.bf16.mxu0 %v4935
    %5385 = vmatpush1.bf16.msra.mxu0 %v4934
    %5386 = vmatprep.subr.bf16.mxu0 %v4939
    %5387 = vmatpush1.bf16.msra.mxu0 %v4938
    %5388 = vmatprep.subr.bf16.mxu0 %v4943
    %5389 = vmatpush1.bf16.msra.mxu0 %v4942
    %5390 = vmatprep.subr.bf16.mxu0 %v4947
    %5391 = vmatpush1.bf16.msra.mxu0 %v4946
    %5392 = vmatprep.subr.bf16.mxu0 %v4951
    %5393 = vmatpush1.bf16.msra.mxu0 %v4950
    %5394 = vmatprep.subr.bf16.mxu0 %v4955
    %5395 = vmatpush1.bf16.msra.mxu0 %v4954
    %5396 = vmatprep.subr.bf16.mxu0 %v4959
    %5397 = vmatpush1.bf16.msra.mxu0 %v4958
    %5398 = vmatprep.subr.bf16.mxu0 %v4963
    %5399 = vmatpush1.bf16.msra.mxu0 %v4962
    %5400 = vmatprep.mubr.bf16.mxu0 %v3725
    %5401 = vmatmul.mubr.bf16.gmra.mrb[0].mxu0 %v3724
    %v5402 = vpop.f32.mrb[0].mxu0
    %v5403 = vadd.f32 %v5362, %v5402
    %v5404 = vpop.f32.mrb[0].mxu0
    %v5405 = vadd.f32 %v5364, %v5404
    %v5406 = vpop.f32.mrb[0].mxu0
    %v5407 = vpop.f32.mrb[0].mxu0
    %5408 = vdwg.mxu0
    %5409 = vmatprep.subr.bf16.mxu0 %v4967
    %5410 = vmatpush1.bf16.msra.mxu0 %v4966
    %5411 = vmatprep.subr.bf16.mxu0 %v4971
    %5412 = vmatpush1.bf16.msra.mxu0 %v4970
    %5413 = vmatprep.subr.bf16.mxu0 %v4975
    %5414 = vmatpush1.bf16.msra.mxu0 %v4974
    %5415 = vmatprep.subr.bf16.mxu0 %v4979
    %5416 = vmatpush1.bf16.msra.mxu0 %v4978
    %5417 = vmatprep.subr.bf16.mxu0 %v4983
    %5418 = vmatpush1.bf16.msra.mxu0 %v4982
    %5419 = vmatprep.subr.bf16.mxu0 %v4987
    %5420 = vmatpush1.bf16.msra.mxu0 %v4986
    %5421 = vmatprep.subr.bf16.mxu0 %v4991
    %5422 = vmatpush1.bf16.msra.mxu0 %v4990
    %5423 = vmatprep.subr.bf16.mxu0 %v4995
    %5424 = vmatpush1.bf16.msra.mxu0 %v4994
    %5425 = vmatprep.subr.bf16.mxu0 %v4999
    %5426 = vmatpush1.bf16.msra.mxu0 %v4998
    %5427 = vmatprep.subr.bf16.mxu0 %v5003
    %5428 = vmatpush1.bf16.msra.mxu0 %v5002
    %5429 = vmatprep.subr.bf16.mxu0 %v5007
    %5430 = vmatpush1.bf16.msra.mxu0 %v5006
    %5431 = vmatprep.subr.bf16.mxu0 %v5011
    %5432 = vmatpush1.bf16.msra.mxu0 %v5010
    %5433 = vmatprep.subr.bf16.mxu0 %v5015
    %5434 = vmatpush1.bf16.msra.mxu0 %v5014
    %5435 = vmatprep.subr.bf16.mxu0 %v5019
    %5436 = vmatpush1.bf16.msra.mxu0 %v5018
    %5437 = vmatprep.subr.bf16.mxu0 %v5023
    %5438 = vmatpush1.bf16.msra.mxu0 %v5022
    %5439 = vmatprep.subr.bf16.mxu0 %v5027
    %5440 = vmatpush1.bf16.msra.mxu0 %v5026
    %5441 = vmatprep.mubr.bf16.mxu0 %v3727
    %5442 = vmatmul.mubr.bf16.gmra.mrb[0].mxu0 %v3726
    %v5443 = vpop.f32.mrb[0].mxu0
    %v5444 = vadd.f32 %v5403, %v5443
    %v5445 = vpop.f32.mrb[0].mxu0
    %v5446 = vadd.f32 %v5405, %v5445
    %v5447 = vpop.f32.mrb[0].mxu0
    %v5448 = vpop.f32.mrb[0].mxu0
    %5449 = vdwg.mxu0
    %5450 = vmatprep.subr.bf16.mxu0 %v4777
    %5451 = vmatpush1.bf16.msra.mxu0 %v4776
    %5452 = vmatprep.subr.bf16.mxu0 %v4781
    %5453 = vmatpush1.bf16.msra.mxu0 %v4780
    %5454 = vmatprep.subr.bf16.mxu0 %v4785
    %5455 = vmatpush1.bf16.msra.mxu0 %v4784
    %5456 = vmatprep.subr.bf16.mxu0 %v4789
    %5457 = vmatpush1.bf16.msra.mxu0 %v4788
    %5458 = vmatprep.subr.bf16.mxu0 %v4793
    %5459 = vmatpush1.bf16.msra.mxu0 %v4792
    %5460 = vmatprep.subr.bf16.mxu0 %v4797
    %5461 = vmatpush1.bf16.msra.mxu0 %v4796
    %5462 = vmatprep.subr.bf16.mxu0 %v4801
    %5463 = vmatpush1.bf16.msra.mxu0 %v4800
    %5464 = vmatprep.subr.bf16.mxu0 %v4805
    %5465 = vmatpush1.bf16.msra.mxu0 %v4804
    %5466 = vmatprep.subr.bf16.mxu0 %v4809
    %5467 = vmatpush1.bf16.msra.mxu0 %v4808
    %5468 = vmatprep.subr.bf16.mxu0 %v4813
    %5469 = vmatpush1.bf16.msra.mxu0 %v4812
    %5470 = vmatprep.subr.bf16.mxu0 %v4817
    %5471 = vmatpush1.bf16.msra.mxu0 %v4816
    %5472 = vmatprep.subr.bf16.mxu0 %v4821
    %5473 = vmatpush1.bf16.msra.mxu0 %v4820
    %5474 = vmatprep.subr.bf16.mxu0 %v4825
    %5475 = vmatpush1.bf16.msra.mxu0 %v4824
    %5476 = vmatprep.subr.bf16.mxu0 %v4829
    %5477 = vmatpush1.bf16.msra.mxu0 %v4828
    %5478 = vmatprep.subr.bf16.mxu0 %v4833
    %5479 = vmatpush1.bf16.msra.mxu0 %v4832
    %5480 = vmatprep.subr.bf16.mxu0 %v4837
    %5481 = vmatpush1.bf16.msra.mxu0 %v4836
    %5482 = vmatprep.mubr.bf16.mxu0 %v3721
    %5483 = vmatmul.mubr.bf16.gmra.mrb[0].mxu0 %v3720
    %v5484 = vpop.f32.mrb[0].mxu0
    %v5485 = vadd.f32 %v3997, %v5484
    %v5486 = vpop.f32.mrb[0].mxu0
    %v5487 = vadd.f32 %v4001, %v5486
    %v5488 = vpop.f32.mrb[0].mxu0
    %v5489 = vpop.f32.mrb[0].mxu0
    %5490 = vdwg.mxu0
    %5491 = vmatprep.subr.bf16.mxu0 %v4841
    %5492 = vmatpush1.bf16.msra.mxu0 %v4840
    %5493 = vmatprep.subr.bf16.mxu0 %v4845
    %5494 = vmatpush1.bf16.msra.mxu0 %v4844
    %5495 = vmatprep.subr.bf16.mxu0 %v4849
    %5496 = vmatpush1.bf16.msra.mxu0 %v4848
    %5497 = vmatprep.subr.bf16.mxu0 %v4853
    %5498 = vmatpush1.bf16.msra.mxu0 %v4852
    %5499 = vmatprep.subr.bf16.mxu0 %v4857
    %5500 = vmatpush1.bf16.msra.mxu0 %v4856
    %5501 = vmatprep.subr.bf16.mxu0 %v4861
    %5502 = vmatpush1.bf16.msra.mxu0 %v4860
    %5503 = vmatprep.subr.bf16.mxu0 %v4865
    %5504 = vmatpush1.bf16.msra.mxu0 %v4864
    %5505 = vmatprep.subr.bf16.mxu0 %v4869
    %5506 = vmatpush1.bf16.msra.mxu0 %v4868
    %5507 = vmatprep.subr.bf16.mxu0 %v4873
    %5508 = vmatpush1.bf16.msra.mxu0 %v4872
    %5509 = vmatprep.subr.bf16.mxu0 %v4877
    %5510 = vmatpush1.bf16.msra.mxu0 %v4876
    %5511 = vmatprep.subr.bf16.mxu0 %v4881
    %5512 = vmatpush1.bf16.msra.mxu0 %v4880
    %5513 = vmatprep.subr.bf16.mxu0 %v4885
    %5514 = vmatpush1.bf16.msra.mxu0 %v4884
    %5515 = vmatprep.subr.bf16.mxu0 %v4889
    %5516 = vmatpush1.bf16.msra.mxu0 %v4888
    %5517 = vmatprep.subr.bf16.mxu0 %v4893
    %5518 = vmatpush1.bf16.msra.mxu0 %v4892
    %5519 = vmatprep.subr.bf16.mxu0 %v4897
    %5520 = vmatpush1.bf16.msra.mxu0 %v4896
    %5521 = vmatprep.subr.bf16.mxu0 %v4901
    %5522 = vmatpush1.bf16.msra.mxu0 %v4900
    %5523 = vmatprep.mubr.bf16.mxu0 %v3723
    %5524 = vmatmul.mubr.bf16.gmra.mrb[0].mxu0 %v3722
    %v5525 = vpop.f32.mrb[0].mxu0
    %v5526 = vadd.f32 %v5485, %v5525
    %v5527 = vpop.f32.mrb[0].mxu0
    %v5528 = vadd.f32 %v5487, %v5527
    %v5529 = vpop.f32.mrb[0].mxu0
    %v5530 = vpop.f32.mrb[0].mxu0
    %5531 = vdwg.mxu0
    %5532 = vmatprep.subr.bf16.mxu0 %v4905
    %5533 = vmatpush1.bf16.msra.mxu0 %v4904
    %5534 = vmatprep.subr.bf16.mxu0 %v4909
    %5535 = vmatpush1.bf16.msra.mxu0 %v4908
    %5536 = vmatprep.subr.bf16.mxu0 %v4913
    %5537 = vmatpush1.bf16.msra.mxu0 %v4912
    %5538 = vmatprep.subr.bf16.mxu0 %v4917
    %5539 = vmatpush1.bf16.msra.mxu0 %v4916
    %5540 = vmatprep.subr.bf16.mxu0 %v4921
    %5541 = vmatpush1.bf16.msra.mxu0 %v4920
    %5542 = vmatprep.subr.bf16.mxu0 %v4925
    %5543 = vmatpush1.bf16.msra.mxu0 %v4924
    %5544 = vmatprep.subr.bf16.mxu0 %v4929
    %5545 = vmatpush1.bf16.msra.mxu0 %v4928
    %5546 = vmatprep.subr.bf16.mxu0 %v4933
    %5547 = vmatpush1.bf16.msra.mxu0 %v4932
    %5548 = vmatprep.subr.bf16.mxu0 %v4937
    %5549 = vmatpush1.bf16.msra.mxu0 %v4936
    %5550 = vmatprep.subr.bf16.mxu0 %v4941
    %5551 = vmatpush1.bf16.msra.mxu0 %v4940
    %5552 = vmatprep.subr.bf16.mxu0 %v4945
    %5553 = vmatpush1.bf16.msra.mxu0 %v4944
    %5554 = vmatprep.subr.bf16.mxu0 %v4949
    %5555 = vmatpush1.bf16.msra.mxu0 %v4948
    %5556 = vmatprep.subr.bf16.mxu0 %v4953
    %5557 = vmatpush1.bf16.msra.mxu0 %v4952
    %5558 = vmatprep.subr.bf16.mxu0 %v4957
    %5559 = vmatpush1.bf16.msra.mxu0 %v4956
    %5560 = vmatprep.subr.bf16.mxu0 %v4961
    %5561 = vmatpush1.bf16.msra.mxu0 %v4960
    %5562 = vmatprep.subr.bf16.mxu0 %v4965
    %5563 = vmatpush1.bf16.msra.mxu0 %v4964
    %5564 = vmatprep.mubr.bf16.mxu0 %v3725
    %5565 = vmatmul.mubr.bf16.gmra.mrb[0].mxu0 %v3724
    %v5566 = vpop.f32.mrb[0].mxu0
    %v5567 = vadd.f32 %v5526, %v5566
    %v5568 = vpop.f32.mrb[0].mxu0
    %v5569 = vadd.f32 %v5528, %v5568
    %v5570 = vpop.f32.mrb[0].mxu0
    %v5571 = vpop.f32.mrb[0].mxu0
    %5572 = vdwg.mxu0
    %5573 = vmatprep.subr.bf16.mxu0 %v4969
    %5574 = vmatpush1.bf16.msra.mxu0 %v4968
    %5575 = vmatprep.subr.bf16.mxu0 %v4973
    %5576 = vmatpush1.bf16.msra.mxu0 %v4972
    %5577 = vmatprep.subr.bf16.mxu0 %v4977
    %5578 = vmatpush1.bf16.msra.mxu0 %v4976
    %5579 = vmatprep.subr.bf16.mxu0 %v4981
    %5580 = vmatpush1.bf16.msra.mxu0 %v4980
    %5581 = vmatprep.subr.bf16.mxu0 %v4985
    %5582 = vmatpush1.bf16.msra.mxu0 %v4984
    %5583 = vmatprep.subr.bf16.mxu0 %v4989
    %5584 = vmatpush1.bf16.msra.mxu0 %v4988
    %5585 = vmatprep.subr.bf16.mxu0 %v4993
    %5586 = vmatpush1.bf16.msra.mxu0 %v4992
    %5587 = vmatprep.subr.bf16.mxu0 %v4997
    %5588 = vmatpush1.bf16.msra.mxu0 %v4996
    %5589 = vmatprep.subr.bf16.mxu0 %v5001
    %5590 = vmatpush1.bf16.msra.mxu0 %v5000
    %5591 = vmatprep.subr.bf16.mxu0 %v5005
    %5592 = vmatpush1.bf16.msra.mxu0 %v5004
    %5593 = vmatprep.subr.bf16.mxu0 %v5009
    %5594 = vmatpush1.bf16.msra.mxu0 %v5008
    %5595 = vmatprep.subr.bf16.mxu0 %v5013
    %5596 = vmatpush1.bf16.msra.mxu0 %v5012
    %5597 = vmatprep.subr.bf16.mxu0 %v5017
    %5598 = vmatpush1.bf16.msra.mxu0 %v5016
    %5599 = vmatprep.subr.bf16.mxu0 %v5021
    %5600 = vmatpush1.bf16.msra.mxu0 %v5020
    %5601 = vmatprep.subr.bf16.mxu0 %v5025
    %5602 = vmatpush1.bf16.msra.mxu0 %v5024
    %5603 = vmatprep.subr.bf16.mxu0 %v5029
    %5604 = vmatpush1.bf16.msra.mxu0 %v5028
    %5605 = vmatprep.mubr.bf16.mxu0 %v3727
    %5606 = vmatmul.mubr.bf16.gmra.mrb[0].mxu0 %v3726
    %v5607 = vpop.f32.mrb[0].mxu0
    %v5608 = vadd.f32 %v5567, %v5607
    %v5609 = vpop.f32.mrb[0].mxu0
    %v5610 = vadd.f32 %v5569, %v5609
    %v5611 = vpop.f32.mrb[0].mxu0
    %v5612 = vpop.f32.mrb[0].mxu0
    %5613 = vdwg.mxu0
    %v5614 = vsel %vm3605, %v5444, 0.0
    %v5615 = vsel %vm3605, %v5446, 0.0
    %v5616 = vadd.f32 %v5614, %v5615
    %v5617 = vsel %vm3605, %v5608, 0.0
    %v5618 = vadd.f32 %v5616, %v5617
    %v5619 = vsel %vm3605, %v5610, 0.0
    %v5620 = vadd.f32 %v5618, %v5619
    %5621 = vadd.xlane.f32.xlu0 %v5620
    %v5622 = vpop.xlane.xlu0 %5621
    %v5623 = vrot.slane %v5622, 4
    %v5624 = vadd.f32 %v5622, %v5623
    %v5625 = vrot.slane %v5624, 2
    %v5626 = vadd.f32 %v5624, %v5625
    %v5627 = vrot.slane %v5626, 1
    %v5628 = vadd.f32 %v5626, %v5627
    %s5629 = vtos %v5628
    %s5630 = smul.f32 %s5629, 0.0009765625
    %v5631 = vstv %s5630
    %v5632 = vsub.f32 %v5444, %v5631
    %v5633 = vsub.f32 %v5446, %v5631
    %v5634 = vsub.f32 %v5608, %v5631
    %v5635 = vsub.f32 %v5610, %v5631
    %v5636 = vmul.f32 %v5632, %v5632
    %v5637 = vmul.f32 %v5633, %v5633
    %v5638 = vmul.f32 %v5634, %v5634
    %v5639 = vmul.f32 %v5635, %v5635
    %v5640 = vsel %vm3605, %v5636, 0.0
    %v5641 = vsel %vm3605, %v5637, 0.0
    %v5642 = vadd.f32 %v5640, %v5641
    %v5643 = vsel %vm3605, %v5638, 0.0
    %v5644 = vadd.f32 %v5642, %v5643
    %v5645 = vsel %vm3605, %v5639, 0.0
    %v5646 = vadd.f32 %v5644, %v5645
    %5647 = vadd.xlane.f32.xlu0 %v5646
    %v5648 = vpop.xlane.xlu0 %5647
    %v5649 = vrot.slane %v5648, 4
    %v5650 = vadd.f32 %v5648, %v5649
    %v5651 = vrot.slane %v5650, 2
    %v5652 = vadd.f32 %v5650, %v5651
    %v5653 = vrot.slane %v5652, 1
    %v5654 = vadd.f32 %v5652, %v5653
    %s5655 = vtos %v5654
    %s5656 = smul.f32 %s5655, 0.0009765625
    %s5657 = sadd.f32 %s5656, 1e-05
    %v5658 = vstv %s5657
    %v5659 = vrsqrt.pop %v5658
    %s5660 = vtos %v5659
    %s5661 = smul.f32 %s5660, %s203
    %v5662 = vstv %s5661
    %v5663 = vmul.f32 %v5632, %v5662
    %v5664 = vmul.f32 %v5633, %v5662
    %v5665 = vmul.f32 %v5634, %v5662
    %v5666 = vmul.f32 %v5635, %v5662
    %v5667 = vadd.f32 %v5663, %v3687
    %v5668 = vadd.f32 %v5664, %v3687
    %v5669 = vadd.f32 %v5665, %v3687
    %v5670 = vadd.f32 %v5666, %v3687
    %vm5671 = vcmp.gt.f32.partialorder %v5667, 0.0
    %vm5672 = vcmp.gt.f32.partialorder %v5668, 0.0
    %vm5673 = vcmp.gt.f32.partialorder %v5669, 0.0
    %vm5674 = vcmp.gt.f32.partialorder %v5670, 0.0
    %v5675 = vmul.f32 %v5667, 0.2
    %v5676 = vmul.f32 %v5668, 0.2
    %v5677 = vmul.f32 %v5669, 0.2
    %v5678 = vmul.f32 %v5670, 0.2
    %v5679 = vsel %vm5671, %v5667, %v5675
    %v5680 = vsel %vm5672, %v5668, %v5676
    %v5681 = vsel %vm5673, %v5669, %v5677
    %v5682 = vsel %vm5674, %v5670, %v5678
    %v5683 = vpack.c.bf16 %v5679, %v5679
    %v5684 = vpack.c.bf16 %v5680, %v5680
    %v5685 = vpack.c.bf16 %v5681, %v5681
    %v5686 = vpack.c.bf16 %v5682, %v5682
    %v5687 = vld [vmem:[#allocation16] sm:$0xff]
    %v5688 = vld [vmem:[#allocation16 + $0x8] sm:$0xff]
    %v5689 = vld [vmem:[#allocation16 + $0x10] sm:$0xff]
    %v5690 = vld [vmem:[#allocation16 + $0x18] sm:$0xff]
    %v5691 = vld [vmem:[#allocation16 + $0x20] sm:$0xff]
    %v5692 = vld [vmem:[#allocation16 + $0x28] sm:$0xff]
    %v5693 = vld [vmem:[#allocation16 + $0x30] sm:$0xff]
    %v5694 = vld [vmem:[#allocation16 + $0x38] sm:$0xff]
    %v5695 = vld [vmem:[#allocation16 + $0x40] sm:$0xff]
    %v5696 = vld [vmem:[#allocation16 + $0x48] sm:$0xff]
    %v5697 = vld [vmem:[#allocation16 + $0x50] sm:$0xff]
    %v5698 = vld [vmem:[#allocation16 + $0x58] sm:$0xff]
    %v5699 = vld [vmem:[#allocation16 + $0x60] sm:$0xff]
    %v5700 = vld [vmem:[#allocation16 + $0x68] sm:$0xff]
    %v5701 = vld [vmem:[#allocation16 + $0x70] sm:$0xff]
    %v5702 = vld [vmem:[#allocation16 + $0x78] sm:$0xff]
    %v5703 = vld [vmem:[#allocation16 + $0x80] sm:$0xff]
    %v5704 = vld [vmem:[#allocation16 + $0x88] sm:$0xff]
    %v5705 = vld [vmem:[#allocation16 + $0x90] sm:$0xff]
    %v5706 = vld [vmem:[#allocation16 + $0x98] sm:$0xff]
    %v5707 = vld [vmem:[#allocation16 + $0xa0] sm:$0xff]
    %v5708 = vld [vmem:[#allocation16 + $0xa8] sm:$0xff]
    %v5709 = vld [vmem:[#allocation16 + $0xb0] sm:$0xff]
    %v5710 = vld [vmem:[#allocation16 + $0xb8] sm:$0xff]
    %v5711 = vld [vmem:[#allocation16 + $0xc0] sm:$0xff]
    %v5712 = vld [vmem:[#allocation16 + $0xc8] sm:$0xff]
    %v5713 = vld [vmem:[#allocation16 + $0xd0] sm:$0xff]
    %v5714 = vld [vmem:[#allocation16 + $0xd8] sm:$0xff]
    %v5715 = vld [vmem:[#allocation16 + $0xe0] sm:$0xff]
    %v5716 = vld [vmem:[#allocation16 + $0xe8] sm:$0xff]
    %v5717 = vld [vmem:[#allocation16 + $0xf0] sm:$0xff]
    %v5718 = vld [vmem:[#allocation16 + $0xf8] sm:$0xff]
    %v5719 = vld [vmem:[#allocation16 + $0x100] sm:$0xff]
    %v5720 = vld [vmem:[#allocation16 + $0x108] sm:$0xff]
    %v5721 = vld [vmem:[#allocation16 + $0x110] sm:$0xff]
    %v5722 = vld [vmem:[#allocation16 + $0x118] sm:$0xff]
    %v5723 = vld [vmem:[#allocation16 + $0x120] sm:$0xff]
    %v5724 = vld [vmem:[#allocation16 + $0x128] sm:$0xff]
    %v5725 = vld [vmem:[#allocation16 + $0x130] sm:$0xff]
    %v5726 = vld [vmem:[#allocation16 + $0x138] sm:$0xff]
    %v5727 = vld [vmem:[#allocation16 + $0x140] sm:$0xff]
    %v5728 = vld [vmem:[#allocation16 + $0x148] sm:$0xff]
    %v5729 = vld [vmem:[#allocation16 + $0x150] sm:$0xff]
    %v5730 = vld [vmem:[#allocation16 + $0x158] sm:$0xff]
    %v5731 = vld [vmem:[#allocation16 + $0x160] sm:$0xff]
    %v5732 = vld [vmem:[#allocation16 + $0x168] sm:$0xff]
    %v5733 = vld [vmem:[#allocation16 + $0x170] sm:$0xff]
    %v5734 = vld [vmem:[#allocation16 + $0x178] sm:$0xff]
    %v5735 = vld [vmem:[#allocation16 + $0x180] sm:$0xff]
    %v5736 = vld [vmem:[#allocation16 + $0x188] sm:$0xff]
    %v5737 = vld [vmem:[#allocation16 + $0x190] sm:$0xff]
    %v5738 = vld [vmem:[#allocation16 + $0x198] sm:$0xff]
    %v5739 = vld [vmem:[#allocation16 + $0x1a0] sm:$0xff]
    %v5740 = vld [vmem:[#allocation16 + $0x1a8] sm:$0xff]
    %v5741 = vld [vmem:[#allocation16 + $0x1b0] sm:$0xff]
    %v5742 = vld [vmem:[#allocation16 + $0x1b8] sm:$0xff]
    %v5743 = vld [vmem:[#allocation16 + $0x1c0] sm:$0xff]
    %v5744 = vld [vmem:[#allocation16 + $0x1c8] sm:$0xff]
    %v5745 = vld [vmem:[#allocation16 + $0x1d0] sm:$0xff]
    %v5746 = vld [vmem:[#allocation16 + $0x1d8] sm:$0xff]
    %v5747 = vld [vmem:[#allocation16 + $0x1e0] sm:$0xff]
    %v5748 = vld [vmem:[#allocation16 + $0x1e8] sm:$0xff]
    %v5749 = vld [vmem:[#allocation16 + $0x1f0] sm:$0xff]
    %v5750 = vld [vmem:[#allocation16 + $0x1f8] sm:$0xff]
    %v5751 = vld [vmem:[#allocation18] sm:$0x3]
    %v5753 = vlaneseq
    %v5754 = vshrl.u32 %v5753, 7
    %v5755 = vsub.s32 0, %v5754
    %v5756 = vrot.slane %v5751, %v5755
    %v5757 = vlaneseq
    %v5758 = vshrl.u32 %v5757, 7
    %v5759 = vsub.s32 1, %v5758
    %v5760 = vrot.slane %v5751, %v5759
    %v5827 = vunpack.c.l.b16 %v5687
    %v5828 = vunpack.c.h.b16 %v5687
    %v5829 = vunpack.c.l.b16 %v5688
    %v5830 = vunpack.c.h.b16 %v5688
    %v5831 = vunpack.c.l.b16 %v5689
    %v5832 = vunpack.c.h.b16 %v5689
    %v5833 = vunpack.c.l.b16 %v5690
    %v5834 = vunpack.c.h.b16 %v5690
    %v5835 = vunpack.c.l.b16 %v5691
    %v5836 = vunpack.c.h.b16 %v5691
    %v5837 = vunpack.c.l.b16 %v5692
    %v5838 = vunpack.c.h.b16 %v5692
    %v5839 = vunpack.c.l.b16 %v5693
    %v5840 = vunpack.c.h.b16 %v5693
    %v5841 = vunpack.c.l.b16 %v5694
    %v5842 = vunpack.c.h.b16 %v5694
    %v5843 = vunpack.c.l.b16 %v5695
    %v5844 = vunpack.c.h.b16 %v5695
    %v5845 = vunpack.c.l.b16 %v5696
    %v5846 = vunpack.c.h.b16 %v5696
    %v5847 = vunpack.c.l.b16 %v5697
    %v5848 = vunpack.c.h.b16 %v5697
    %v5849 = vunpack.c.l.b16 %v5698
    %v5850 = vunpack.c.h.b16 %v5698
    %v5851 = vunpack.c.l.b16 %v5699
    %v5852 = vunpack.c.h.b16 %v5699
    %v5853 = vunpack.c.l.b16 %v5700
    %v5854 = vunpack.c.h.b16 %v5700
    %v5855 = vunpack.c.l.b16 %v5701
    %v5856 = vunpack.c.h.b16 %v5701
    %v5857 = vunpack.c.l.b16 %v5702
    %v5858 = vunpack.c.h.b16 %v5702
    %v5859 = vunpack.c.l.b16 %v5703
    %v5860 = vunpack.c.h.b16 %v5703
    %v5861 = vunpack.c.l.b16 %v5704
    %v5862 = vunpack.c.h.b16 %v5704
    %v5863 = vunpack.c.l.b16 %v5705
    %v5864 = vunpack.c.h.b16 %v5705
    %v5865 = vunpack.c.l.b16 %v5706
    %v5866 = vunpack.c.h.b16 %v5706
    %v5867 = vunpack.c.l.b16 %v5707
    %v5868 = vunpack.c.h.b16 %v5707
    %v5869 = vunpack.c.l.b16 %v5708
    %v5870 = vunpack.c.h.b16 %v5708
    %v5871 = vunpack.c.l.b16 %v5709
    %v5872 = vunpack.c.h.b16 %v5709
    %v5873 = vunpack.c.l.b16 %v5710
    %v5874 = vunpack.c.h.b16 %v5710
    %v5875 = vunpack.c.l.b16 %v5711
    %v5876 = vunpack.c.h.b16 %v5711
    %v5877 = vunpack.c.l.b16 %v5712
    %v5878 = vunpack.c.h.b16 %v5712
    %v5879 = vunpack.c.l.b16 %v5713
    %v5880 = vunpack.c.h.b16 %v5713
    %v5881 = vunpack.c.l.b16 %v5714
    %v5882 = vunpack.c.h.b16 %v5714
    %v5883 = vunpack.c.l.b16 %v5715
    %v5884 = vunpack.c.h.b16 %v5715
    %v5885 = vunpack.c.l.b16 %v5716
    %v5886 = vunpack.c.h.b16 %v5716
    %v5887 = vunpack.c.l.b16 %v5717
    %v5888 = vunpack.c.h.b16 %v5717
    %v5889 = vunpack.c.l.b16 %v5718
    %v5890 = vunpack.c.h.b16 %v5718
    %v5891 = vunpack.c.l.b16 %v5719
    %v5892 = vunpack.c.h.b16 %v5719
    %v5893 = vunpack.c.l.b16 %v5720
    %v5894 = vunpack.c.h.b16 %v5720
    %v5895 = vunpack.c.l.b16 %v5721
    %v5896 = vunpack.c.h.b16 %v5721
    %v5897 = vunpack.c.l.b16 %v5722
    %v5898 = vunpack.c.h.b16 %v5722
    %v5899 = vunpack.c.l.b16 %v5723
    %v5900 = vunpack.c.h.b16 %v5723
    %v5901 = vunpack.c.l.b16 %v5724
    %v5902 = vunpack.c.h.b16 %v5724
    %v5903 = vunpack.c.l.b16 %v5725
    %v5904 = vunpack.c.h.b16 %v5725
    %v5905 = vunpack.c.l.b16 %v5726
    %v5906 = vunpack.c.h.b16 %v5726
    %v5907 = vunpack.c.l.b16 %v5727
    %v5908 = vunpack.c.h.b16 %v5727
    %v5909 = vunpack.c.l.b16 %v5728
    %v5910 = vunpack.c.h.b16 %v5728
    %v5911 = vunpack.c.l.b16 %v5729
    %v5912 = vunpack.c.h.b16 %v5729
    %v5913 = vunpack.c.l.b16 %v5730
    %v5914 = vunpack.c.h.b16 %v5730
    %v5915 = vunpack.c.l.b16 %v5731
    %v5916 = vunpack.c.h.b16 %v5731
    %v5917 = vunpack.c.l.b16 %v5732
    %v5918 = vunpack.c.h.b16 %v5732
    %v5919 = vunpack.c.l.b16 %v5733
    %v5920 = vunpack.c.h.b16 %v5733
    %v5921 = vunpack.c.l.b16 %v5734
    %v5922 = vunpack.c.h.b16 %v5734
    %v5923 = vunpack.c.l.b16 %v5735
    %v5924 = vunpack.c.h.b16 %v5735
    %v5925 = vunpack.c.l.b16 %v5736
    %v5926 = vunpack.c.h.b16 %v5736
    %v5927 = vunpack.c.l.b16 %v5737
    %v5928 = vunpack.c.h.b16 %v5737
    %v5929 = vunpack.c.l.b16 %v5738
    %v5930 = vunpack.c.h.b16 %v5738
    %v5931 = vunpack.c.l.b16 %v5739
    %v5932 = vunpack.c.h.b16 %v5739
    %v5933 = vunpack.c.l.b16 %v5740
    %v5934 = vunpack.c.h.b16 %v5740
    %v5935 = vunpack.c.l.b16 %v5741
    %v5936 = vunpack.c.h.b16 %v5741
    %v5937 = vunpack.c.l.b16 %v5742
    %v5938 = vunpack.c.h.b16 %v5742
    %v5939 = vunpack.c.l.b16 %v5743
    %v5940 = vunpack.c.h.b16 %v5743
    %v5941 = vunpack.c.l.b16 %v5744
    %v5942 = vunpack.c.h.b16 %v5744
    %v5943 = vunpack.c.l.b16 %v5745
    %v5944 = vunpack.c.h.b16 %v5745
    %v5945 = vunpack.c.l.b16 %v5746
    %v5946 = vunpack.c.h.b16 %v5746
    %v5947 = vunpack.c.l.b16 %v5747
    %v5948 = vunpack.c.h.b16 %v5747
    %v5949 = vunpack.c.l.b16 %v5748
    %v5950 = vunpack.c.h.b16 %v5748
    %v5951 = vunpack.c.l.b16 %v5749
    %v5952 = vunpack.c.h.b16 %v5749
    %v5953 = vunpack.c.l.b16 %v5750
    %v5954 = vunpack.c.h.b16 %v5750
    %v5955 = vpack.c.b16 %v5829, %v5827
    %v5956 = vpack.c.b16 %v5830, %v5828
    %v5957 = vpack.c.b16 %v5833, %v5831
    %v5958 = vpack.c.b16 %v5834, %v5832
    %v5959 = vpack.c.b16 %v5837, %v5835
    %v5960 = vpack.c.b16 %v5838, %v5836
    %v5961 = vpack.c.b16 %v5841, %v5839
    %v5962 = vpack.c.b16 %v5842, %v5840
    %v5963 = vpack.c.b16 %v5845, %v5843
    %v5964 = vpack.c.b16 %v5846, %v5844
    %v5965 = vpack.c.b16 %v5849, %v5847
    %v5966 = vpack.c.b16 %v5850, %v5848
    %v5967 = vpack.c.b16 %v5853, %v5851
    %v5968 = vpack.c.b16 %v5854, %v5852
    %v5969 = vpack.c.b16 %v5857, %v5855
    %v5970 = vpack.c.b16 %v5858, %v5856
    %v5971 = vpack.c.b16 %v5861, %v5859
    %v5972 = vpack.c.b16 %v5862, %v5860
    %v5973 = vpack.c.b16 %v5865, %v5863
    %v5974 = vpack.c.b16 %v5866, %v5864
    %v5975 = vpack.c.b16 %v5869, %v5867
    %v5976 = vpack.c.b16 %v5870, %v5868
    %v5977 = vpack.c.b16 %v5873, %v5871
    %v5978 = vpack.c.b16 %v5874, %v5872
    %v5979 = vpack.c.b16 %v5877, %v5875
    %v5980 = vpack.c.b16 %v5878, %v5876
    %v5981 = vpack.c.b16 %v5881, %v5879
    %v5982 = vpack.c.b16 %v5882, %v5880
    %v5983 = vpack.c.b16 %v5885, %v5883
    %v5984 = vpack.c.b16 %v5886, %v5884
    %v5985 = vpack.c.b16 %v5889, %v5887
    %v5986 = vpack.c.b16 %v5890, %v5888
    %v5987 = vpack.c.b16 %v5893, %v5891
    %v5988 = vpack.c.b16 %v5894, %v5892
    %v5989 = vpack.c.b16 %v5897, %v5895
    %v5990 = vpack.c.b16 %v5898, %v5896
    %v5991 = vpack.c.b16 %v5901, %v5899
    %v5992 = vpack.c.b16 %v5902, %v5900
    %v5993 = vpack.c.b16 %v5905, %v5903
    %v5994 = vpack.c.b16 %v5906, %v5904
    %v5995 = vpack.c.b16 %v5909, %v5907
    %v5996 = vpack.c.b16 %v5910, %v5908
    %v5997 = vpack.c.b16 %v5913, %v5911
    %v5998 = vpack.c.b16 %v5914, %v5912
    %v5999 = vpack.c.b16 %v5917, %v5915
    %v6000 = vpack.c.b16 %v5918, %v5916
    %v6001 = vpack.c.b16 %v5921, %v5919
    %v6002 = vpack.c.b16 %v5922, %v5920
    %v6003 = vpack.c.b16 %v5925, %v5923
    %v6004 = vpack.c.b16 %v5926, %v5924
    %v6005 = vpack.c.b16 %v5929, %v5927
    %v6006 = vpack.c.b16 %v5930, %v5928
    %v6007 = vpack.c.b16 %v5933, %v5931
    %v6008 = vpack.c.b16 %v5934, %v5932
    %v6009 = vpack.c.b16 %v5937, %v5935
    %v6010 = vpack.c.b16 %v5938, %v5936
    %v6011 = vpack.c.b16 %v5941, %v5939
    %v6012 = vpack.c.b16 %v5942, %v5940
    %v6013 = vpack.c.b16 %v5945, %v5943
    %v6014 = vpack.c.b16 %v5946, %v5944
    %v6015 = vpack.c.b16 %v5949, %v5947
    %v6016 = vpack.c.b16 %v5950, %v5948
    %v6017 = vpack.c.b16 %v5953, %v5951
    %v6018 = vpack.c.b16 %v5954, %v5952
    %6083 = vmatprep.subr.bf16.mxu0 %v5956
    %6084 = vmatpush1.bf16.msra.mxu0 %v5955
    %6085 = vmatprep.subr.bf16.mxu0 %v5958
    %6086 = vmatpush1.bf16.msra.mxu0 %v5957
    %6087 = vmatprep.subr.bf16.mxu0 %v5960
    %6088 = vmatpush1.bf16.msra.mxu0 %v5959
    %6089 = vmatprep.subr.bf16.mxu0 %v5962
    %6090 = vmatpush1.bf16.msra.mxu0 %v5961
    %6091 = vmatprep.subr.bf16.mxu0 %v5964
    %6092 = vmatpush1.bf16.msra.mxu0 %v5963
    %6093 = vmatprep.subr.bf16.mxu0 %v5966
    %6094 = vmatpush1.bf16.msra.mxu0 %v5965
    %6095 = vmatprep.subr.bf16.mxu0 %v5968
    %6096 = vmatpush1.bf16.msra.mxu0 %v5967
    %6097 = vmatprep.subr.bf16.mxu0 %v5970
    %6098 = vmatpush1.bf16.msra.mxu0 %v5969
    %6099 = vmatprep.subr.bf16.mxu0 %v5972
    %6100 = vmatpush1.bf16.msra.mxu0 %v5971
    %6101 = vmatprep.subr.bf16.mxu0 %v5974
    %6102 = vmatpush1.bf16.msra.mxu0 %v5973
    %6103 = vmatprep.subr.bf16.mxu0 %v5976
    %6104 = vmatpush1.bf16.msra.mxu0 %v5975
    %6105 = vmatprep.subr.bf16.mxu0 %v5978
    %6106 = vmatpush1.bf16.msra.mxu0 %v5977
    %6107 = vmatprep.subr.bf16.mxu0 %v5980
    %6108 = vmatpush1.bf16.msra.mxu0 %v5979
    %6109 = vmatprep.subr.bf16.mxu0 %v5982
    %6110 = vmatpush1.bf16.msra.mxu0 %v5981
    %6111 = vmatprep.subr.bf16.mxu0 %v5984
    %6112 = vmatpush1.bf16.msra.mxu0 %v5983
    %6113 = vmatprep.subr.bf16.mxu0 %v5986
    %6114 = vmatpush1.bf16.msra.mxu0 %v5985
    %6115 = vmatprep.mubr.bf16.mxu0 %v5684
    %6116 = vmatmul.mubr.bf16.gmra.mrb[0].mxu0 %v5683
    %v6117 = vpop.f32.mrb[0].mxu0
    %v6118 = vadd.f32 %v5756, %v6117
    %v6119 = vpop.f32.mrb[0].mxu0
    %v6120 = vadd.f32 %v5760, %v6119
    %v6121 = vpop.f32.mrb[0].mxu0
    %v6122 = vpop.f32.mrb[0].mxu0
    %6123 = vdwg.mxu0
    %6124 = vmatprep.subr.bf16.mxu0 %v5988
    %6125 = vmatpush1.bf16.msra.mxu0 %v5987
    %6126 = vmatprep.subr.bf16.mxu0 %v5990
    %6127 = vmatpush1.bf16.msra.mxu0 %v5989
    %6128 = vmatprep.subr.bf16.mxu0 %v5992
    %6129 = vmatpush1.bf16.msra.mxu0 %v5991
    %6130 = vmatprep.subr.bf16.mxu0 %v5994
    %6131 = vmatpush1.bf16.msra.mxu0 %v5993
    %6132 = vmatprep.subr.bf16.mxu0 %v5996
    %6133 = vmatpush1.bf16.msra.mxu0 %v5995
    %6134 = vmatprep.subr.bf16.mxu0 %v5998
    %6135 = vmatpush1.bf16.msra.mxu0 %v5997
    %6136 = vmatprep.subr.bf16.mxu0 %v6000
    %6137 = vmatpush1.bf16.msra.mxu0 %v5999
    %6138 = vmatprep.subr.bf16.mxu0 %v6002
    %6139 = vmatpush1.bf16.msra.mxu0 %v6001
    %6140 = vmatprep.subr.bf16.mxu0 %v6004
    %6141 = vmatpush1.bf16.msra.mxu0 %v6003
    %6142 = vmatprep.subr.bf16.mxu0 %v6006
    %6143 = vmatpush1.bf16.msra.mxu0 %v6005
    %6144 = vmatprep.subr.bf16.mxu0 %v6008
    %6145 = vmatpush1.bf16.msra.mxu0 %v6007
    %6146 = vmatprep.subr.bf16.mxu0 %v6010
    %6147 = vmatpush1.bf16.msra.mxu0 %v6009
    %6148 = vmatprep.subr.bf16.mxu0 %v6012
    %6149 = vmatpush1.bf16.msra.mxu0 %v6011
    %6150 = vmatprep.subr.bf16.mxu0 %v6014
    %6151 = vmatpush1.bf16.msra.mxu0 %v6013
    %6152 = vmatprep.subr.bf16.mxu0 %v6016
    %6153 = vmatpush1.bf16.msra.mxu0 %v6015
    %6154 = vmatprep.subr.bf16.mxu0 %v6018
    %6155 = vmatpush1.bf16.msra.mxu0 %v6017
    %6156 = vmatprep.mubr.bf16.mxu0 %v5686
    %6157 = vmatmul.mubr.bf16.gmra.mrb[0].mxu0 %v5685
    %v6158 = vpop.f32.mrb[0].mxu0
    %v6159 = vadd.f32 %v6118, %v6158
    %v6160 = vpop.f32.mrb[0].mxu0
    %v6161 = vadd.f32 %v6120, %v6160
    %v6162 = vpop.f32.mrb[0].mxu0
    %v6163 = vpop.f32.mrb[0].mxu0
    %6164 = vdwg.mxu0
    %v6165 = vsel %vm3605, %v6159, 0.0
    %v6166 = vsel %vm3605, %v6161, 0.0
    %v6167 = vadd.f32 %v6165, %v6166
    %6168 = vadd.xlane.f32.xlu0 %v6167
    %v6169 = vpop.xlane.xlu0 %6168
    %v6170 = vrot.slane %v6169, 4
    %v6171 = vadd.f32 %v6169, %v6170
    %v6172 = vrot.slane %v6171, 2
    %v6173 = vadd.f32 %v6171, %v6172
    %v6174 = vrot.slane %v6173, 1
    %v6175 = vadd.f32 %v6173, %v6174
    %s6176 = vtos %v6175
    %s6177 = smul.f32 %s6176, 0.001953125
    %v6178 = vstv %s6177
    %v6179 = vsub.f32 %v6159, %v6178
    %v6180 = vsub.f32 %v6161, %v6178
    %v6181 = vmul.f32 %v6179, %v6179
    %v6182 = vmul.f32 %v6180, %v6180
    %v6183 = vsel %vm3605, %v6181, 0.0
    %v6184 = vsel %vm3605, %v6182, 0.0
    %v6185 = vadd.f32 %v6183, %v6184
    %6186 = vadd.xlane.f32.xlu0 %v6185
    %v6187 = vpop.xlane.xlu0 %6186
    %v6188 = vrot.slane %v6187, 4
    %v6189 = vadd.f32 %v6187, %v6188
    %v6190 = vrot.slane %v6189, 2
    %v6191 = vadd.f32 %v6189, %v6190
    %v6192 = vrot.slane %v6191, 1
    %v6193 = vadd.f32 %v6191, %v6192
    %s6194 = vtos %v6193
    %s6195 = smul.f32 %s6194, 0.001953125
    %s6196 = sadd.f32 %s6195, 1e-05
    %v6197 = vstv %s6196
    %v6198 = vrsqrt.pop %v6197
    %s6199 = vtos %v6198
    %s6200 = smul.f32 %s6199, %s203
    %v6201 = vstv %s6200
    %v6202 = vmul.f32 %v6179, %v6201
    %v6203 = vmul.f32 %v6180, %v6201
    %v6204 = vadd.f32 %v6202, %v3687
    %v6205 = vadd.f32 %v6203, %v3687
    %vm6206 = vcmp.gt.f32.partialorder %v6204, 0.0
    %vm6207 = vcmp.gt.f32.partialorder %v6205, 0.0
    %v6208 = vmul.f32 %v6204, 0.2
    %v6209 = vmul.f32 %v6205, 0.2
    %v6210 = vsel %vm6206, %v6204, %v6208
    %v6211 = vsel %vm6207, %v6205, %v6209
    %v6212 = vld [vmem:[#allocation19] sm:$0x3]
    %v6214 = vlaneseq
    %v6215 = vshrl.u32 %v6214, 7
    %v6216 = vsub.s32 0, %v6215
    %v6217 = vrot.slane %v6212, %v6216
    %v6218 = vlaneseq
    %v6219 = vshrl.u32 %v6218, 7
    %v6220 = vsub.s32 1, %v6219
    %v6221 = vrot.slane %v6212, %v6220
    %v6224 = vmul.f32 %v6210, %v6217
    %v6225 = vmul.f32 %v6211, %v6221
    %v6226 = vsel %vm3605, %v6224, 0.0
    %v6227 = vsel %vm3605, %v6225, 0.0
    %v6228 = vadd.f32 %v6226, %v6227
    %6229 = vadd.xlane.f32.xlu0 %v6228
    %v6230 = vpop.xlane.xlu0 %6229
    %v6231 = vstv %s202
    %v6232 = vadd.f32 %v6230, %v6231
    %v6233 = vxor.u32 %v6232, 2147483648
    %v6234 = vmul.f32 %v6233, 1.442695
    %v6235 = vpow.pop %v6234
    %v6236 = vadd.f32 %v6235, 1.0
    %v6237 = vrcp.pop %v6236
    %v6238 = vmul.f32 1.0, %v6237
    %s6239 = sld [smem:[#allocation21 + $0x1]]
    %s6240 = sld [smem:[#allocation22 + $0x1]]
    %v6241 = vlaneseq
    %v6242 = vshrl.u32 %v6241, 7
    %v6243 = vsub.s32 1, %v6242
    %v6244 = vrot.slane %v196, %v6243
    %v6245 = vlaneseq
    %v6246 = vshrl.u32 %v6245, 7
    %v6247 = vsub.s32 3, %v6246
    %v6248 = vrot.slane %v196, %v6247
    %v6249 = vlaneseq
    %v6250 = vshrl.u32 %v6249, 7
    %v6251 = vsub.s32 5, %v6250
    %v6252 = vrot.slane %v196, %v6251
    %v6253 = vlaneseq
    %v6254 = vshrl.u32 %v6253, 7
    %v6255 = vsub.s32 7, %v6254
    %v6256 = vrot.slane %v196, %v6255
    %v6257 = vlaneseq
    %v6258 = vshrl.u32 %v6257, 7
    %v6259 = vsub.s32 1, %v6258
    %v6260 = vrot.slane %v197, %v6259
    %v6261 = vlaneseq
    %v6262 = vshrl.u32 %v6261, 7
    %v6263 = vsub.s32 1, %v6262
    %v6264 = vrot.slane %v198, %v6263
    %v6265 = vlaneseq
    %v6266 = vshrl.u32 %v6265, 7
    %v6267 = vsub.s32 3, %v6266
    %v6268 = vrot.slane %v198, %v6267
    %v6269 = vlaneseq
    %v6270 = vshrl.u32 %v6269, 7
    %v6271 = vsub.s32 5, %v6270
    %v6272 = vrot.slane %v198, %v6271
    %v6273 = vlaneseq
    %v6274 = vshrl.u32 %v6273, 7
    %v6275 = vsub.s32 7, %v6274
    %v6276 = vrot.slane %v198, %v6275
    %v6277 = vlaneseq
    %v6278 = vshrl.u32 %v6277, 7
    %v6279 = vsub.s32 1, %v6278
    %v6280 = vrot.slane %v199, %v6279
    %v6291 = vpack.c.bf16 %v6244, %v6244
    %v6292 = vpack.c.bf16 %v6248, %v6248
    %v6293 = vpack.c.bf16 %v6252, %v6252
    %v6294 = vpack.c.bf16 %v6256, %v6256
    %v6295 = vpack.c.bf16 %v6260, %v6260
    %v6296 = vpack.c.bf16 %v6264, %v6264
    %v6297 = vpack.c.bf16 %v6268, %v6268
    %v6298 = vpack.c.bf16 %v6272, %v6272
    %v6299 = vpack.c.bf16 %v6276, %v6276
    %v6300 = vpack.c.bf16 %v6280, %v6280
    %v6301 = vlaneseq
    %v6302 = vshrl.u32 %v6301, 7
    %v6303 = vsub.s32 1, %v6302
    %v6304 = vrot.slane %v200, %v6303
    %v6305 = vlaneseq
    %v6306 = vshrl.u32 %v6305, 7
    %v6307 = vsub.s32 3, %v6306
    %v6308 = vrot.slane %v200, %v6307
    %v6309 = vlaneseq
    %v6310 = vshrl.u32 %v6309, 7
    %v6311 = vsub.s32 1, %v6310
    %v6312 = vrot.slane %v201, %v6311
    %v6313 = vlaneseq
    %v6314 = vshrl.u32 %v6313, 7
    %v6315 = vsub.s32 3, %v6314
    %v6316 = vrot.slane %v201, %v6315
    %v6321 = vpack.c.bf16 %v6304, %v6304
    %v6322 = vpack.c.bf16 %v6308, %v6308
    %v6323 = vpack.c.bf16 %v6312, %v6312
    %v6324 = vpack.c.bf16 %v6316, %v6316
    %v6329 = vunpack.c.l.b16 %v6321
    %v6330 = vunpack.c.l.b16 %v6322
    %v6331 = vunpack.c.l.b16 %v6323
    %v6332 = vunpack.c.l.b16 %v6324
    %v6333 = vrot.slane %v6329, 1
    %v6334 = vsel %vm728, %v6331, %v6333
    %v6335 = vrot.slane %v6330, 1
    %v6336 = vsel %vm728, %v6332, %v6335
    %v6337 = vpack.c.b16 %v6334, %v6334
    %v6338 = vpack.c.b16 %v6336, %v6336
    %6341 = vmatprep.subr.bf16.mxu0 %v1121
    %6342 = vmatpush1.bf16.msra.mxu0 %v1120
    %6343 = vmatprep.subr.bf16.mxu0 %v1129
    %6344 = vmatpush1.bf16.msra.mxu0 %v1128
    %6345 = vmatprep.subr.bf16.mxu0 %v1137
    %6346 = vmatpush1.bf16.msra.mxu0 %v1136
    %6347 = vmatprep.subr.bf16.mxu0 %v1145
    %6348 = vmatpush1.bf16.msra.mxu0 %v1144
    %6349 = vmatprep.subr.bf16.mxu0 %v1153
    %6350 = vmatpush1.bf16.msra.mxu0 %v1152
    %6351 = vmatprep.subr.bf16.mxu0 %v1161
    %6352 = vmatpush1.bf16.msra.mxu0 %v1160
    %6353 = vmatprep.subr.bf16.mxu0 %v1169
    %6354 = vmatpush1.bf16.msra.mxu0 %v1168
    %6355 = vmatprep.subr.bf16.mxu0 %v1177
    %6356 = vmatpush1.bf16.msra.mxu0 %v1176
    %6357 = vmatprep.subr.bf16.mxu0 %v1185
    %6358 = vmatpush1.bf16.msra.mxu0 %v1184
    %6359 = vmatprep.subr.bf16.mxu0 %v1193
    %6360 = vmatpush1.bf16.msra.mxu0 %v1192
    %6361 = vmatprep.subr.bf16.mxu0 %v1201
    %6362 = vmatpush1.bf16.msra.mxu0 %v1200
    %6363 = vmatprep.subr.bf16.mxu0 %v1209
    %6364 = vmatpush1.bf16.msra.mxu0 %v1208
    %6365 = vmatprep.subr.bf16.mxu0 %v1217
    %6366 = vmatpush1.bf16.msra.mxu0 %v1216
    %6367 = vmatprep.subr.bf16.mxu0 %v1225
    %6368 = vmatpush1.bf16.msra.mxu0 %v1224
    %6369 = vmatprep.subr.bf16.mxu0 %v1233
    %6370 = vmatpush1.bf16.msra.mxu0 %v1232
    %6371 = vmatprep.subr.bf16.mxu0 %v1241
    %6372 = vmatpush1.bf16.msra.mxu0 %v1240
    %6373 = vmatprep.mubr.bf16.mxu0 %v6338
    %6374 = vmatmul.mubr.bf16.gmra.mrb[0].mxu0 %v6337
    %v6375 = vpop.f32.mrb[0].mxu0
    %v6376 = vadd.f32 0.0, %v6375
    %v6377 = vpop.f32.mrb[0].mxu0
    %v6378 = vadd.f32 0.0, %v6377
    %v6379 = vpop.f32.mrb[0].mxu0
    %v6380 = vpop.f32.mrb[0].mxu0
    %6381 = vdwg.mxu0
    %6382 = vmatprep.subr.bf16.mxu0 %v1123
    %6383 = vmatpush1.bf16.msra.mxu0 %v1122
    %6384 = vmatprep.subr.bf16.mxu0 %v1131
    %6385 = vmatpush1.bf16.msra.mxu0 %v1130
    %6386 = vmatprep.subr.bf16.mxu0 %v1139
    %6387 = vmatpush1.bf16.msra.mxu0 %v1138
    %6388 = vmatprep.subr.bf16.mxu0 %v1147
    %6389 = vmatpush1.bf16.msra.mxu0 %v1146
    %6390 = vmatprep.subr.bf16.mxu0 %v1155
    %6391 = vmatpush1.bf16.msra.mxu0 %v1154
    %6392 = vmatprep.subr.bf16.mxu0 %v1163
    %6393 = vmatpush1.bf16.msra.mxu0 %v1162
    %6394 = vmatprep.subr.bf16.mxu0 %v1171
    %6395 = vmatpush1.bf16.msra.mxu0 %v1170
    %6396 = vmatprep.subr.bf16.mxu0 %v1179
    %6397 = vmatpush1.bf16.msra.mxu0 %v1178
    %6398 = vmatprep.subr.bf16.mxu0 %v1187
    %6399 = vmatpush1.bf16.msra.mxu0 %v1186
    %6400 = vmatprep.subr.bf16.mxu0 %v1195
    %6401 = vmatpush1.bf16.msra.mxu0 %v1194
    %6402 = vmatprep.subr.bf16.mxu0 %v1203
    %6403 = vmatpush1.bf16.msra.mxu0 %v1202
    %6404 = vmatprep.subr.bf16.mxu0 %v1211
    %6405 = vmatpush1.bf16.msra.mxu0 %v1210
    %6406 = vmatprep.subr.bf16.mxu0 %v1219
    %6407 = vmatpush1.bf16.msra.mxu0 %v1218
    %6408 = vmatprep.subr.bf16.mxu0 %v1227
    %6409 = vmatpush1.bf16.msra.mxu0 %v1226
    %6410 = vmatprep.subr.bf16.mxu0 %v1235
    %6411 = vmatpush1.bf16.msra.mxu0 %v1234
    %6412 = vmatprep.subr.bf16.mxu0 %v1243
    %6413 = vmatpush1.bf16.msra.mxu0 %v1242
    %6414 = vmatprep.mubr.bf16.mxu0 %v6338
    %6415 = vmatmul.mubr.bf16.gmra.mrb[0].mxu0 %v6337
    %v6416 = vpop.f32.mrb[0].mxu0
    %v6417 = vadd.f32 0.0, %v6416
    %v6418 = vpop.f32.mrb[0].mxu0
    %v6419 = vadd.f32 0.0, %v6418
    %v6420 = vpop.f32.mrb[0].mxu0
    %v6421 = vpop.f32.mrb[0].mxu0
    %6422 = vdwg.mxu0
    %6423 = vmatprep.subr.bf16.mxu0 %v1125
    %6424 = vmatpush1.bf16.msra.mxu0 %v1124
    %6425 = vmatprep.subr.bf16.mxu0 %v1133
    %6426 = vmatpush1.bf16.msra.mxu0 %v1132
    %6427 = vmatprep.subr.bf16.mxu0 %v1141
    %6428 = vmatpush1.bf16.msra.mxu0 %v1140
    %6429 = vmatprep.subr.bf16.mxu0 %v1149
    %6430 = vmatpush1.bf16.msra.mxu0 %v1148
    %6431 = vmatprep.subr.bf16.mxu0 %v1157
    %6432 = vmatpush1.bf16.msra.mxu0 %v1156
    %6433 = vmatprep.subr.bf16.mxu0 %v1165
    %6434 = vmatpush1.bf16.msra.mxu0 %v1164
    %6435 = vmatprep.subr.bf16.mxu0 %v1173
    %6436 = vmatpush1.bf16.msra.mxu0 %v1172
    %6437 = vmatprep.subr.bf16.mxu0 %v1181
    %6438 = vmatpush1.bf16.msra.mxu0 %v1180
    %6439 = vmatprep.subr.bf16.mxu0 %v1189
    %6440 = vmatpush1.bf16.msra.mxu0 %v1188
    %6441 = vmatprep.subr.bf16.mxu0 %v1197
    %6442 = vmatpush1.bf16.msra.mxu0 %v1196
    %6443 = vmatprep.subr.bf16.mxu0 %v1205
    %6444 = vmatpush1.bf16.msra.mxu0 %v1204
    %6445 = vmatprep.subr.bf16.mxu0 %v1213
    %6446 = vmatpush1.bf16.msra.mxu0 %v1212
    %6447 = vmatprep.subr.bf16.mxu0 %v1221
    %6448 = vmatpush1.bf16.msra.mxu0 %v1220
    %6449 = vmatprep.subr.bf16.mxu0 %v1229
    %6450 = vmatpush1.bf16.msra.mxu0 %v1228
    %6451 = vmatprep.subr.bf16.mxu0 %v1237
    %6452 = vmatpush1.bf16.msra.mxu0 %v1236
    %6453 = vmatprep.subr.bf16.mxu0 %v1245
    %6454 = vmatpush1.bf16.msra.mxu0 %v1244
    %6455 = vmatprep.mubr.bf16.mxu0 %v6338
    %6456 = vmatmul.mubr.bf16.gmra.mrb[0].mxu0 %v6337
    %v6457 = vpop.f32.mrb[0].mxu0
    %v6458 = vadd.f32 0.0, %v6457
    %v6459 = vpop.f32.mrb[0].mxu0
    %v6460 = vadd.f32 0.0, %v6459
    %v6461 = vpop.f32.mrb[0].mxu0
    %v6462 = vpop.f32.mrb[0].mxu0
    %6463 = vdwg.mxu0
    %6464 = vmatprep.subr.bf16.mxu0 %v1127
    %6465 = vmatpush1.bf16.msra.mxu0 %v1126
    %6466 = vmatprep.subr.bf16.mxu0 %v1135
    %6467 = vmatpush1.bf16.msra.mxu0 %v1134
    %6468 = vmatprep.subr.bf16.mxu0 %v1143
    %6469 = vmatpush1.bf16.msra.mxu0 %v1142
    %6470 = vmatprep.subr.bf16.mxu0 %v1151
    %6471 = vmatpush1.bf16.msra.mxu0 %v1150
    %6472 = vmatprep.subr.bf16.mxu0 %v1159
    %6473 = vmatpush1.bf16.msra.mxu0 %v1158
    %6474 = vmatprep.subr.bf16.mxu0 %v1167
    %6475 = vmatpush1.bf16.msra.mxu0 %v1166
    %6476 = vmatprep.subr.bf16.mxu0 %v1175
    %6477 = vmatpush1.bf16.msra.mxu0 %v1174
    %6478 = vmatprep.subr.bf16.mxu0 %v1183
    %6479 = vmatpush1.bf16.msra.mxu0 %v1182
    %6480 = vmatprep.subr.bf16.mxu0 %v1191
    %6481 = vmatpush1.bf16.msra.mxu0 %v1190
    %6482 = vmatprep.subr.bf16.mxu0 %v1199
    %6483 = vmatpush1.bf16.msra.mxu0 %v1198
    %6484 = vmatprep.subr.bf16.mxu0 %v1207
    %6485 = vmatpush1.bf16.msra.mxu0 %v1206
    %6486 = vmatprep.subr.bf16.mxu0 %v1215
    %6487 = vmatpush1.bf16.msra.mxu0 %v1214
    %6488 = vmatprep.subr.bf16.mxu0 %v1223
    %6489 = vmatpush1.bf16.msra.mxu0 %v1222
    %6490 = vmatprep.subr.bf16.mxu0 %v1231
    %6491 = vmatpush1.bf16.msra.mxu0 %v1230
    %6492 = vmatprep.subr.bf16.mxu0 %v1239
    %6493 = vmatpush1.bf16.msra.mxu0 %v1238
    %6494 = vmatprep.subr.bf16.mxu0 %v1247
    %6495 = vmatpush1.bf16.msra.mxu0 %v1246
    %6496 = vmatprep.mubr.bf16.mxu0 %v6338
    %6497 = vmatmul.mubr.bf16.gmra.mrb[0].mxu0 %v6337
    %v6498 = vpop.f32.mrb[0].mxu0
    %v6499 = vadd.f32 0.0, %v6498
    %v6500 = vpop.f32.mrb[0].mxu0
    %v6501 = vadd.f32 0.0, %v6500
    %v6502 = vpop.f32.mrb[0].mxu0
    %v6503 = vpop.f32.mrb[0].mxu0
    %6504 = vdwg.mxu0
    %v6515 = vunpack.c.l.b16 %v6291
    %v6516 = vunpack.c.l.b16 %v6292
    %v6517 = vunpack.c.l.b16 %v6293
    %v6518 = vunpack.c.l.b16 %v6294
    %v6519 = vunpack.c.l.b16 %v6295
    %v6520 = vunpack.c.l.b16 %v6296
    %v6521 = vunpack.c.l.b16 %v6297
    %v6522 = vunpack.c.l.b16 %v6298
    %v6523 = vunpack.c.l.b16 %v6299
    %v6524 = vunpack.c.l.b16 %v6300
    %v6525 = vrot.slane %v6515, 1
    %v6526 = vsel %vm728, %v6520, %v6525
    %v6527 = vrot.slane %v6516, 1
    %v6528 = vsel %vm728, %v6521, %v6527
    %v6529 = vrot.slane %v6517, 1
    %v6530 = vsel %vm728, %v6522, %v6529
    %v6531 = vrot.slane %v6518, 1
    %v6532 = vsel %vm728, %v6523, %v6531
    %v6533 = vrot.slane %v6519, 1
    %v6534 = vsel %vm728, %v6524, %v6533
    %v6535 = vpack.c.b16 %v6526, %v6526
    %v6536 = vpack.c.b16 %v6528, %v6528
    %v6537 = vpack.c.b16 %v6530, %v6530
    %v6538 = vpack.c.b16 %v6532, %v6532
    %v6539 = vpack.c.b16 %v6534, %v6534
    %v6545 = vsel %vm3059, %v6539, 0
    %6547 = vmatprep.subr.bf16.mxu0 %v2468
    %6548 = vmatpush1.bf16.msra.mxu0 %v2467
    %6549 = vmatprep.subr.bf16.mxu0 %v2476
    %6550 = vmatpush1.bf16.msra.mxu0 %v2475
    %6551 = vmatprep.subr.bf16.mxu0 %v2484
    %6552 = vmatpush1.bf16.msra.mxu0 %v2483
    %6553 = vmatprep.subr.bf16.mxu0 %v2492
    %6554 = vmatpush1.bf16.msra.mxu0 %v2491
    %6555 = vmatprep.subr.bf16.mxu0 %v2500
    %6556 = vmatpush1.bf16.msra.mxu0 %v2499
    %6557 = vmatprep.subr.bf16.mxu0 %v2508
    %6558 = vmatpush1.bf16.msra.mxu0 %v2507
    %6559 = vmatprep.subr.bf16.mxu0 %v2516
    %6560 = vmatpush1.bf16.msra.mxu0 %v2515
    %6561 = vmatprep.subr.bf16.mxu0 %v2524
    %6562 = vmatpush1.bf16.msra.mxu0 %v2523
    %6563 = vmatprep.subr.bf16.mxu0 %v2532
    %6564 = vmatpush1.bf16.msra.mxu0 %v2531
    %6565 = vmatprep.subr.bf16.mxu0 %v2540
    %6566 = vmatpush1.bf16.msra.mxu0 %v2539
    %6567 = vmatprep.subr.bf16.mxu0 %v2548
    %6568 = vmatpush1.bf16.msra.mxu0 %v2547
    %6569 = vmatprep.subr.bf16.mxu0 %v2556
    %6570 = vmatpush1.bf16.msra.mxu0 %v2555
    %6571 = vmatprep.subr.bf16.mxu0 %v2564
    %6572 = vmatpush1.bf16.msra.mxu0 %v2563
    %6573 = vmatprep.subr.bf16.mxu0 %v2572
    %6574 = vmatpush1.bf16.msra.mxu0 %v2571
    %6575 = vmatprep.subr.bf16.mxu0 %v2580
    %6576 = vmatpush1.bf16.msra.mxu0 %v2579
    %6577 = vmatprep.subr.bf16.mxu0 %v2588
    %6578 = vmatpush1.bf16.msra.mxu0 %v2587
    %6579 = vmatprep.mubr.bf16.mxu0 %v6536
    %6580 = vmatmul.mubr.bf16.gmra.mrb[0].mxu0 %v6535
    %v6581 = vpop.f32.mrb[0].mxu0
    %v6582 = vadd.f32 %v6376, %v6581
    %v6583 = vpop.f32.mrb[0].mxu0
    %v6584 = vadd.f32 %v6378, %v6583
    %v6585 = vpop.f32.mrb[0].mxu0
    %v6586 = vpop.f32.mrb[0].mxu0
    %6587 = vdwg.mxu0
    %6588 = vmatprep.subr.bf16.mxu0 %v2596
    %6589 = vmatpush1.bf16.msra.mxu0 %v2595
    %6590 = vmatprep.subr.bf16.mxu0 %v2604
    %6591 = vmatpush1.bf16.msra.mxu0 %v2603
    %6592 = vmatprep.subr.bf16.mxu0 %v2612
    %6593 = vmatpush1.bf16.msra.mxu0 %v2611
    %6594 = vmatprep.subr.bf16.mxu0 %v2620
    %6595 = vmatpush1.bf16.msra.mxu0 %v2619
    %6596 = vmatprep.subr.bf16.mxu0 %v2628
    %6597 = vmatpush1.bf16.msra.mxu0 %v2627
    %6598 = vmatprep.subr.bf16.mxu0 %v2636
    %6599 = vmatpush1.bf16.msra.mxu0 %v2635
    %6600 = vmatprep.subr.bf16.mxu0 %v2644
    %6601 = vmatpush1.bf16.msra.mxu0 %v2643
    %6602 = vmatprep.subr.bf16.mxu0 %v2652
    %6603 = vmatpush1.bf16.msra.mxu0 %v2651
    %6604 = vmatprep.subr.bf16.mxu0 %v2660
    %6605 = vmatpush1.bf16.msra.mxu0 %v2659
    %6606 = vmatprep.subr.bf16.mxu0 %v2668
    %6607 = vmatpush1.bf16.msra.mxu0 %v2667
    %6608 = vmatprep.subr.bf16.mxu0 %v2676
    %6609 = vmatpush1.bf16.msra.mxu0 %v2675
    %6610 = vmatprep.subr.bf16.mxu0 %v2684
    %6611 = vmatpush1.bf16.msra.mxu0 %v2683
    %6612 = vmatprep.subr.bf16.mxu0 %v2692
    %6613 = vmatpush1.bf16.msra.mxu0 %v2691
    %6614 = vmatprep.subr.bf16.mxu0 %v2700
    %6615 = vmatpush1.bf16.msra.mxu0 %v2699
    %6616 = vmatprep.subr.bf16.mxu0 %v2708
    %6617 = vmatpush1.bf16.msra.mxu0 %v2707
    %6618 = vmatprep.subr.bf16.mxu0 %v2716
    %6619 = vmatpush1.bf16.msra.mxu0 %v2715
    %6620 = vmatprep.mubr.bf16.mxu0 %v6538
    %6621 = vmatmul.mubr.bf16.gmra.mrb[0].mxu0 %v6537
    %v6622 = vpop.f32.mrb[0].mxu0
    %v6623 = vadd.f32 %v6582, %v6622
    %v6624 = vpop.f32.mrb[0].mxu0
    %v6625 = vadd.f32 %v6584, %v6624
    %v6626 = vpop.f32.mrb[0].mxu0
    %v6627 = vpop.f32.mrb[0].mxu0
    %6628 = vdwg.mxu0
    %6629 = vmatprep.subr.bf16.mxu0 %v2724
    %6630 = vmatpush1.bf16.msra.mxu0 %v2723
    %6631 = vmatprep.subr.bf16.mxu0 %v2732
    %6632 = vmatpush1.bf16.msra.mxu0 %v2731
    %6633 = vmatprep.subr.bf16.mxu0 %v2740
    %6634 = vmatpush1.bf16.msra.mxu0 %v2739
    %6635 = vmatprep.subr.bf16.mxu0 %v2748
    %6636 = vmatpush1.bf16.msra.mxu0 %v2747
    %6637 = vmatprep.subr.bf16.mxu0 %v2756
    %6638 = vmatpush1.bf16.msra.mxu0 %v2755
    %6639 = vmatprep.subr.bf16.mxu0 0
    %6640 = vmatpush1.bf16.msra.mxu0 0
    %6641 = vmatprep.subr.bf16.mxu0 0
    %6642 = vmatpush1.bf16.msra.mxu0 0
    %6643 = vmatprep.subr.bf16.mxu0 0
    %6644 = vmatpush1.bf16.msra.mxu0 0
    %6645 = vmatprep.subr.bf16.mxu0 0
    %6646 = vmatpush1.bf16.msra.mxu0 0
    %6647 = vmatprep.subr.bf16.mxu0 0
    %6648 = vmatpush1.bf16.msra.mxu0 0
    %6649 = vmatprep.subr.bf16.mxu0 0
    %6650 = vmatpush1.bf16.msra.mxu0 0
    %6651 = vmatprep.subr.bf16.mxu0 0
    %6652 = vmatpush1.bf16.msra.mxu0 0
    %6653 = vmatprep.subr.bf16.mxu0 0
    %6654 = vmatpush1.bf16.msra.mxu0 0
    %6655 = vmatprep.subr.bf16.mxu0 0
    %6656 = vmatpush1.bf16.msra.mxu0 0
    %6657 = vmatprep.subr.bf16.mxu0 0
    %6658 = vmatpush1.bf16.msra.mxu0 0
    %6659 = vmatprep.subr.bf16.mxu0 0
    %6660 = vmatpush1.bf16.msra.mxu0 0
    %6661 = vmatprep.mubr.bf16.mxu0 0
    %6662 = vmatmul.mubr.bf16.gmra.mrb[0].mxu0 %v6545
    %v6663 = vpop.f32.mrb[0].mxu0
    %v6664 = vadd.f32 %v6623, %v6663
    %v6665 = vpop.f32.mrb[0].mxu0
    %v6666 = vadd.f32 %v6625, %v6665
    %v6667 = vpop.f32.mrb[0].mxu0
    %v6668 = vpop.f32.mrb[0].mxu0
    %6669 = vdwg.mxu0
    %6670 = vmatprep.subr.bf16.mxu0 %v2470
    %6671 = vmatpush1.bf16.msra.mxu0 %v2469
    %6672 = vmatprep.subr.bf16.mxu0 %v2478
    %6673 = vmatpush1.bf16.msra.mxu0 %v2477
    %6674 = vmatprep.subr.bf16.mxu0 %v2486
    %6675 = vmatpush1.bf16.msra.mxu0 %v2485
    %6676 = vmatprep.subr.bf16.mxu0 %v2494
    %6677 = vmatpush1.bf16.msra.mxu0 %v2493
    %6678 = vmatprep.subr.bf16.mxu0 %v2502
    %6679 = vmatpush1.bf16.msra.mxu0 %v2501
    %6680 = vmatprep.subr.bf16.mxu0 %v2510
    %6681 = vmatpush1.bf16.msra.mxu0 %v2509
    %6682 = vmatprep.subr.bf16.mxu0 %v2518
    %6683 = vmatpush1.bf16.msra.mxu0 %v2517
    %6684 = vmatprep.subr.bf16.mxu0 %v2526
    %6685 = vmatpush1.bf16.msra.mxu0 %v2525
    %6686 = vmatprep.subr.bf16.mxu0 %v2534
    %6687 = vmatpush1.bf16.msra.mxu0 %v2533
    %6688 = vmatprep.subr.bf16.mxu0 %v2542
    %6689 = vmatpush1.bf16.msra.mxu0 %v2541
    %6690 = vmatprep.subr.bf16.mxu0 %v2550
    %6691 = vmatpush1.bf16.msra.mxu0 %v2549
    %6692 = vmatprep.subr.bf16.mxu0 %v2558
    %6693 = vmatpush1.bf16.msra.mxu0 %v2557
    %6694 = vmatprep.subr.bf16.mxu0 %v2566
    %6695 = vmatpush1.bf16.msra.mxu0 %v2565
    %6696 = vmatprep.subr.bf16.mxu0 %v2574
    %6697 = vmatpush1.bf16.msra.mxu0 %v2573
    %6698 = vmatprep.subr.bf16.mxu0 %v2582
    %6699 = vmatpush1.bf16.msra.mxu0 %v2581
    %6700 = vmatprep.subr.bf16.mxu0 %v2590
    %6701 = vmatpush1.bf16.msra.mxu0 %v2589
    %6702 = vmatprep.mubr.bf16.mxu0 %v6536
    %6703 = vmatmul.mubr.bf16.gmra.mrb[0].mxu0 %v6535
    %v6704 = vpop.f32.mrb[0].mxu0
    %v6705 = vadd.f32 %v6417, %v6704
    %v6706 = vpop.f32.mrb[0].mxu0
    %v6707 = vadd.f32 %v6419, %v6706
    %v6708 = vpop.f32.mrb[0].mxu0
    %v6709 = vpop.f32.mrb[0].mxu0
    %6710 = vdwg.mxu0
    %6711 = vmatprep.subr.bf16.mxu0 %v2598
    %6712 = vmatpush1.bf16.msra.mxu0 %v2597
    %6713 = vmatprep.subr.bf16.mxu0 %v2606
    %6714 = vmatpush1.bf16.msra.mxu0 %v2605
    %6715 = vmatprep.subr.bf16.mxu0 %v2614
    %6716 = vmatpush1.bf16.msra.mxu0 %v2613
    %6717 = vmatprep.subr.bf16.mxu0 %v2622
    %6718 = vmatpush1.bf16.msra.mxu0 %v2621
    %6719 = vmatprep.subr.bf16.mxu0 %v2630
    %6720 = vmatpush1.bf16.msra.mxu0 %v2629
    %6721 = vmatprep.subr.bf16.mxu0 %v2638
    %6722 = vmatpush1.bf16.msra.mxu0 %v2637
    %6723 = vmatprep.subr.bf16.mxu0 %v2646
    %6724 = vmatpush1.bf16.msra.mxu0 %v2645
    %6725 = vmatprep.subr.bf16.mxu0 %v2654
    %6726 = vmatpush1.bf16.msra.mxu0 %v2653
    %6727 = vmatprep.subr.bf16.mxu0 %v2662
    %6728 = vmatpush1.bf16.msra.mxu0 %v2661
    %6729 = vmatprep.subr.bf16.mxu0 %v2670
    %6730 = vmatpush1.bf16.msra.mxu0 %v2669
    %6731 = vmatprep.subr.bf16.mxu0 %v2678
    %6732 = vmatpush1.bf16.msra.mxu0 %v2677
    %6733 = vmatprep.subr.bf16.mxu0 %v2686
    %6734 = vmatpush1.bf16.msra.mxu0 %v2685
    %6735 = vmatprep.subr.bf16.mxu0 %v2694
    %6736 = vmatpush1.bf16.msra.mxu0 %v2693
    %6737 = vmatprep.subr.bf16.mxu0 %v2702
    %6738 = vmatpush1.bf16.msra.mxu0 %v2701
    %6739 = vmatprep.subr.bf16.mxu0 %v2710
    %6740 = vmatpush1.bf16.msra.mxu0 %v2709
    %6741 = vmatprep.subr.bf16.mxu0 %v2718
    %6742 = vmatpush1.bf16.msra.mxu0 %v2717
    %6743 = vmatprep.mubr.bf16.mxu0 %v6538
    %6744 = vmatmul.mubr.bf16.gmra.mrb[0].mxu0 %v6537
    %v6745 = vpop.f32.mrb[0].mxu0
    %v6746 = vadd.f32 %v6705, %v6745
    %v6747 = vpop.f32.mrb[0].mxu0
    %v6748 = vadd.f32 %v6707, %v6747
    %v6749 = vpop.f32.mrb[0].mxu0
    %v6750 = vpop.f32.mrb[0].mxu0
    %6751 = vdwg.mxu0
    %6752 = vmatprep.subr.bf16.mxu0 %v2726
    %6753 = vmatpush1.bf16.msra.mxu0 %v2725
    %6754 = vmatprep.subr.bf16.mxu0 %v2734
    %6755 = vmatpush1.bf16.msra.mxu0 %v2733
    %6756 = vmatprep.subr.bf16.mxu0 %v2742
    %6757 = vmatpush1.bf16.msra.mxu0 %v2741
    %6758 = vmatprep.subr.bf16.mxu0 %v2750
    %6759 = vmatpush1.bf16.msra.mxu0 %v2749
    %6760 = vmatprep.subr.bf16.mxu0 %v2758
    %6761 = vmatpush1.bf16.msra.mxu0 %v2757
    %6762 = vmatprep.subr.bf16.mxu0 0
    %6763 = vmatpush1.bf16.msra.mxu0 0
    %6764 = vmatprep.subr.bf16.mxu0 0
    %6765 = vmatpush1.bf16.msra.mxu0 0
    %6766 = vmatprep.subr.bf16.mxu0 0
    %6767 = vmatpush1.bf16.msra.mxu0 0
    %6768 = vmatprep.subr.bf16.mxu0 0
    %6769 = vmatpush1.bf16.msra.mxu0 0
    %6770 = vmatprep.subr.bf16.mxu0 0
    %6771 = vmatpush1.bf16.msra.mxu0 0
    %6772 = vmatprep.subr.bf16.mxu0 0
    %6773 = vmatpush1.bf16.msra.mxu0 0
    %6774 = vmatprep.subr.bf16.mxu0 0
    %6775 = vmatpush1.bf16.msra.mxu0 0
    %6776 = vmatprep.subr.bf16.mxu0 0
    %6777 = vmatpush1.bf16.msra.mxu0 0
    %6778 = vmatprep.subr.bf16.mxu0 0
    %6779 = vmatpush1.bf16.msra.mxu0 0
    %6780 = vmatprep.subr.bf16.mxu0 0
    %6781 = vmatpush1.bf16.msra.mxu0 0
    %6782 = vmatprep.subr.bf16.mxu0 0
    %6783 = vmatpush1.bf16.msra.mxu0 0
    %6784 = vmatprep.mubr.bf16.mxu0 0
    %6785 = vmatmul.mubr.bf16.gmra.mrb[0].mxu0 %v6545
    %v6786 = vpop.f32.mrb[0].mxu0
    %v6787 = vadd.f32 %v6746, %v6786
    %v6788 = vpop.f32.mrb[0].mxu0
    %v6789 = vadd.f32 %v6748, %v6788
    %v6790 = vpop.f32.mrb[0].mxu0
    %v6791 = vpop.f32.mrb[0].mxu0
    %6792 = vdwg.mxu0
    %6793 = vmatprep.subr.bf16.mxu0 %v2472
    %6794 = vmatpush1.bf16.msra.mxu0 %v2471
    %6795 = vmatprep.subr.bf16.mxu0 %v2480
    %6796 = vmatpush1.bf16.msra.mxu0 %v2479
    %6797 = vmatprep.subr.bf16.mxu0 %v2488
    %6798 = vmatpush1.bf16.msra.mxu0 %v2487
    %6799 = vmatprep.subr.bf16.mxu0 %v2496
    %6800 = vmatpush1.bf16.msra.mxu0 %v2495
    %6801 = vmatprep.subr.bf16.mxu0 %v2504
    %6802 = vmatpush1.bf16.msra.mxu0 %v2503
    %6803 = vmatprep.subr.bf16.mxu0 %v2512
    %6804 = vmatpush1.bf16.msra.mxu0 %v2511
    %6805 = vmatprep.subr.bf16.mxu0 %v2520
    %6806 = vmatpush1.bf16.msra.mxu0 %v2519
    %6807 = vmatprep.subr.bf16.mxu0 %v2528
    %6808 = vmatpush1.bf16.msra.mxu0 %v2527
    %6809 = vmatprep.subr.bf16.mxu0 %v2536
    %6810 = vmatpush1.bf16.msra.mxu0 %v2535
    %6811 = vmatprep.subr.bf16.mxu0 %v2544
    %6812 = vmatpush1.bf16.msra.mxu0 %v2543
    %6813 = vmatprep.subr.bf16.mxu0 %v2552
    %6814 = vmatpush1.bf16.msra.mxu0 %v2551
    %6815 = vmatprep.subr.bf16.mxu0 %v2560
    %6816 = vmatpush1.bf16.msra.mxu0 %v2559
    %6817 = vmatprep.subr.bf16.mxu0 %v2568
    %6818 = vmatpush1.bf16.msra.mxu0 %v2567
    %6819 = vmatprep.subr.bf16.mxu0 %v2576
    %6820 = vmatpush1.bf16.msra.mxu0 %v2575
    %6821 = vmatprep.subr.bf16.mxu0 %v2584
    %6822 = vmatpush1.bf16.msra.mxu0 %v2583
    %6823 = vmatprep.subr.bf16.mxu0 %v2592
    %6824 = vmatpush1.bf16.msra.mxu0 %v2591
    %6825 = vmatprep.mubr.bf16.mxu0 %v6536
    %6826 = vmatmul.mubr.bf16.gmra.mrb[0].mxu0 %v6535
    %v6827 = vpop.f32.mrb[0].mxu0
    %v6828 = vadd.f32 %v6458, %v6827
    %v6829 = vpop.f32.mrb[0].mxu0
    %v6830 = vadd.f32 %v6460, %v6829
    %v6831 = vpop.f32.mrb[0].mxu0
    %v6832 = vpop.f32.mrb[0].mxu0
    %6833 = vdwg.mxu0
    %6834 = vmatprep.subr.bf16.mxu0 %v2600
    %6835 = vmatpush1.bf16.msra.mxu0 %v2599
    %6836 = vmatprep.subr.bf16.mxu0 %v2608
    %6837 = vmatpush1.bf16.msra.mxu0 %v2607
    %6838 = vmatprep.subr.bf16.mxu0 %v2616
    %6839 = vmatpush1.bf16.msra.mxu0 %v2615
    %6840 = vmatprep.subr.bf16.mxu0 %v2624
    %6841 = vmatpush1.bf16.msra.mxu0 %v2623
    %6842 = vmatprep.subr.bf16.mxu0 %v2632
    %6843 = vmatpush1.bf16.msra.mxu0 %v2631
    %6844 = vmatprep.subr.bf16.mxu0 %v2640
    %6845 = vmatpush1.bf16.msra.mxu0 %v2639
    %6846 = vmatprep.subr.bf16.mxu0 %v2648
    %6847 = vmatpush1.bf16.msra.mxu0 %v2647
    %6848 = vmatprep.subr.bf16.mxu0 %v2656
    %6849 = vmatpush1.bf16.msra.mxu0 %v2655
    %6850 = vmatprep.subr.bf16.mxu0 %v2664
    %6851 = vmatpush1.bf16.msra.mxu0 %v2663
    %6852 = vmatprep.subr.bf16.mxu0 %v2672
    %6853 = vmatpush1.bf16.msra.mxu0 %v2671
    %6854 = vmatprep.subr.bf16.mxu0 %v2680
    %6855 = vmatpush1.bf16.msra.mxu0 %v2679
    %6856 = vmatprep.subr.bf16.mxu0 %v2688
    %6857 = vmatpush1.bf16.msra.mxu0 %v2687
    %6858 = vmatprep.subr.bf16.mxu0 %v2696
    %6859 = vmatpush1.bf16.msra.mxu0 %v2695
    %6860 = vmatprep.subr.bf16.mxu0 %v2704
    %6861 = vmatpush1.bf16.msra.mxu0 %v2703
    %6862 = vmatprep.subr.bf16.mxu0 %v2712
    %6863 = vmatpush1.bf16.msra.mxu0 %v2711
    %6864 = vmatprep.subr.bf16.mxu0 %v2720
    %6865 = vmatpush1.bf16.msra.mxu0 %v2719
    %6866 = vmatprep.mubr.bf16.mxu0 %v6538
    %6867 = vmatmul.mubr.bf16.gmra.mrb[0].mxu0 %v6537
    %v6868 = vpop.f32.mrb[0].mxu0
    %v6869 = vadd.f32 %v6828, %v6868
    %v6870 = vpop.f32.mrb[0].mxu0
    %v6871 = vadd.f32 %v6830, %v6870
    %v6872 = vpop.f32.mrb[0].mxu0
    %v6873 = vpop.f32.mrb[0].mxu0
    %6874 = vdwg.mxu0
    %6875 = vmatprep.subr.bf16.mxu0 %v2728
    %6876 = vmatpush1.bf16.msra.mxu0 %v2727
    %6877 = vmatprep.subr.bf16.mxu0 %v2736
    %6878 = vmatpush1.bf16.msra.mxu0 %v2735
    %6879 = vmatprep.subr.bf16.mxu0 %v2744
    %6880 = vmatpush1.bf16.msra.mxu0 %v2743
    %6881 = vmatprep.subr.bf16.mxu0 %v2752
    %6882 = vmatpush1.bf16.msra.mxu0 %v2751
    %6883 = vmatprep.subr.bf16.mxu0 %v2760
    %6884 = vmatpush1.bf16.msra.mxu0 %v2759
    %6885 = vmatprep.subr.bf16.mxu0 0
    %6886 = vmatpush1.bf16.msra.mxu0 0
    %6887 = vmatprep.subr.bf16.mxu0 0
    %6888 = vmatpush1.bf16.msra.mxu0 0
    %6889 = vmatprep.subr.bf16.mxu0 0
    %6890 = vmatpush1.bf16.msra.mxu0 0
    %6891 = vmatprep.subr.bf16.mxu0 0
    %6892 = vmatpush1.bf16.msra.mxu0 0
    %6893 = vmatprep.subr.bf16.mxu0 0
    %6894 = vmatpush1.bf16.msra.mxu0 0
    %6895 = vmatprep.subr.bf16.mxu0 0
    %6896 = vmatpush1.bf16.msra.mxu0 0
    %6897 = vmatprep.subr.bf16.mxu0 0
    %6898 = vmatpush1.bf16.msra.mxu0 0
    %6899 = vmatprep.subr.bf16.mxu0 0
    %6900 = vmatpush1.bf16.msra.mxu0 0
    %6901 = vmatprep.subr.bf16.mxu0 0
    %6902 = vmatpush1.bf16.msra.mxu0 0
    %6903 = vmatprep.subr.bf16.mxu0 0
    %6904 = vmatpush1.bf16.msra.mxu0 0
    %6905 = vmatprep.subr.bf16.mxu0 0
    %6906 = vmatpush1.bf16.msra.mxu0 0
    %6907 = vmatprep.mubr.bf16.mxu0 0
    %6908 = vmatmul.mubr.bf16.gmra.mrb[0].mxu0 %v6545
    %v6909 = vpop.f32.mrb[0].mxu0
    %v6910 = vadd.f32 %v6869, %v6909
    %v6911 = vpop.f32.mrb[0].mxu0
    %v6912 = vadd.f32 %v6871, %v6911
    %v6913 = vpop.f32.mrb[0].mxu0
    %v6914 = vpop.f32.mrb[0].mxu0
    %6915 = vdwg.mxu0
    %6916 = vmatprep.subr.bf16.mxu0 %v2474
    %6917 = vmatpush1.bf16.msra.mxu0 %v2473
    %6918 = vmatprep.subr.bf16.mxu0 %v2482
    %6919 = vmatpush1.bf16.msra.mxu0 %v2481
    %6920 = vmatprep.subr.bf16.mxu0 %v2490
    %6921 = vmatpush1.bf16.msra.mxu0 %v2489
    %6922 = vmatprep.subr.bf16.mxu0 %v2498
    %6923 = vmatpush1.bf16.msra.mxu0 %v2497
    %6924 = vmatprep.subr.bf16.mxu0 %v2506
    %6925 = vmatpush1.bf16.msra.mxu0 %v2505
    %6926 = vmatprep.subr.bf16.mxu0 %v2514
    %6927 = vmatpush1.bf16.msra.mxu0 %v2513
    %6928 = vmatprep.subr.bf16.mxu0 %v2522
    %6929 = vmatpush1.bf16.msra.mxu0 %v2521
    %6930 = vmatprep.subr.bf16.mxu0 %v2530
    %6931 = vmatpush1.bf16.msra.mxu0 %v2529
    %6932 = vmatprep.subr.bf16.mxu0 %v2538
    %6933 = vmatpush1.bf16.msra.mxu0 %v2537
    %6934 = vmatprep.subr.bf16.mxu0 %v2546
    %6935 = vmatpush1.bf16.msra.mxu0 %v2545
    %6936 = vmatprep.subr.bf16.mxu0 %v2554
    %6937 = vmatpush1.bf16.msra.mxu0 %v2553
    %6938 = vmatprep.subr.bf16.mxu0 %v2562
    %6939 = vmatpush1.bf16.msra.mxu0 %v2561
    %6940 = vmatprep.subr.bf16.mxu0 %v2570
    %6941 = vmatpush1.bf16.msra.mxu0 %v2569
    %6942 = vmatprep.subr.bf16.mxu0 %v2578
    %6943 = vmatpush1.bf16.msra.mxu0 %v2577
    %6944 = vmatprep.subr.bf16.mxu0 %v2586
    %6945 = vmatpush1.bf16.msra.mxu0 %v2585
    %6946 = vmatprep.subr.bf16.mxu0 %v2594
    %6947 = vmatpush1.bf16.msra.mxu0 %v2593
    %6948 = vmatprep.mubr.bf16.mxu0 %v6536
    %6949 = vmatmul.mubr.bf16.gmra.mrb[0].mxu0 %v6535
    %v6950 = vpop.f32.mrb[0].mxu0
    %v6951 = vadd.f32 %v6499, %v6950
    %v6952 = vpop.f32.mrb[0].mxu0
    %v6953 = vadd.f32 %v6501, %v6952
    %v6954 = vpop.f32.mrb[0].mxu0
    %v6955 = vpop.f32.mrb[0].mxu0
    %6956 = vdwg.mxu0
    %6957 = vmatprep.subr.bf16.mxu0 %v2602
    %6958 = vmatpush1.bf16.msra.mxu0 %v2601
    %6959 = vmatprep.subr.bf16.mxu0 %v2610
    %6960 = vmatpush1.bf16.msra.mxu0 %v2609
    %6961 = vmatprep.subr.bf16.mxu0 %v2618
    %6962 = vmatpush1.bf16.msra.mxu0 %v2617
    %6963 = vmatprep.subr.bf16.mxu0 %v2626
    %6964 = vmatpush1.bf16.msra.mxu0 %v2625
    %6965 = vmatprep.subr.bf16.mxu0 %v2634
    %6966 = vmatpush1.bf16.msra.mxu0 %v2633
    %6967 = vmatprep.subr.bf16.mxu0 %v2642
    %6968 = vmatpush1.bf16.msra.mxu0 %v2641
    %6969 = vmatprep.subr.bf16.mxu0 %v2650
    %6970 = vmatpush1.bf16.msra.mxu0 %v2649
    %6971 = vmatprep.subr.bf16.mxu0 %v2658
    %6972 = vmatpush1.bf16.msra.mxu0 %v2657
    %6973 = vmatprep.subr.bf16.mxu0 %v2666
    %6974 = vmatpush1.bf16.msra.mxu0 %v2665
    %6975 = vmatprep.subr.bf16.mxu0 %v2674
    %6976 = vmatpush1.bf16.msra.mxu0 %v2673
    %6977 = vmatprep.subr.bf16.mxu0 %v2682
    %6978 = vmatpush1.bf16.msra.mxu0 %v2681
    %6979 = vmatprep.subr.bf16.mxu0 %v2690
    %6980 = vmatpush1.bf16.msra.mxu0 %v2689
    %6981 = vmatprep.subr.bf16.mxu0 %v2698
    %6982 = vmatpush1.bf16.msra.mxu0 %v2697
    %6983 = vmatprep.subr.bf16.mxu0 %v2706
    %6984 = vmatpush1.bf16.msra.mxu0 %v2705
    %6985 = vmatprep.subr.bf16.mxu0 %v2714
    %6986 = vmatpush1.bf16.msra.mxu0 %v2713
    %6987 = vmatprep.subr.bf16.mxu0 %v2722
    %6988 = vmatpush1.bf16.msra.mxu0 %v2721
    %6989 = vmatprep.mubr.bf16.mxu0 %v6538
    %6990 = vmatmul.mubr.bf16.gmra.mrb[0].mxu0 %v6537
    %v6991 = vpop.f32.mrb[0].mxu0
    %v6992 = vadd.f32 %v6951, %v6991
    %v6993 = vpop.f32.mrb[0].mxu0
    %v6994 = vadd.f32 %v6953, %v6993
    %v6995 = vpop.f32.mrb[0].mxu0
    %v6996 = vpop.f32.mrb[0].mxu0
    %6997 = vdwg.mxu0
    %6998 = vmatprep.subr.bf16.mxu0 %v2730
    %6999 = vmatpush1.bf16.msra.mxu0 %v2729
    %7000 = vmatprep.subr.bf16.mxu0 %v2738
    %7001 = vmatpush1.bf16.msra.mxu0 %v2737
    %7002 = vmatprep.subr.bf16.mxu0 %v2746
    %7003 = vmatpush1.bf16.msra.mxu0 %v2745
    %7004 = vmatprep.subr.bf16.mxu0 %v2754
    %7005 = vmatpush1.bf16.msra.mxu0 %v2753
    %7006 = vmatprep.subr.bf16.mxu0 %v2762
    %7007 = vmatpush1.bf16.msra.mxu0 %v2761
    %7008 = vmatprep.subr.bf16.mxu0 0
    %7009 = vmatpush1.bf16.msra.mxu0 0
    %7010 = vmatprep.subr.bf16.mxu0 0
    %7011 = vmatpush1.bf16.msra.mxu0 0
    %7012 = vmatprep.subr.bf16.mxu0 0
    %7013 = vmatpush1.bf16.msra.mxu0 0
    %7014 = vmatprep.subr.bf16.mxu0 0
    %7015 = vmatpush1.bf16.msra.mxu0 0
    %7016 = vmatprep.subr.bf16.mxu0 0
    %7017 = vmatpush1.bf16.msra.mxu0 0
    %7018 = vmatprep.subr.bf16.mxu0 0
    %7019 = vmatpush1.bf16.msra.mxu0 0
    %7020 = vmatprep.subr.bf16.mxu0 0
    %7021 = vmatpush1.bf16.msra.mxu0 0
    %7022 = vmatprep.subr.bf16.mxu0 0
    %7023 = vmatpush1.bf16.msra.mxu0 0
    %7024 = vmatprep.subr.bf16.mxu0 0
    %7025 = vmatpush1.bf16.msra.mxu0 0
    %7026 = vmatprep.subr.bf16.mxu0 0
    %7027 = vmatpush1.bf16.msra.mxu0 0
    %7028 = vmatprep.subr.bf16.mxu0 0
    %7029 = vmatpush1.bf16.msra.mxu0 0
    %7030 = vmatprep.mubr.bf16.mxu0 0
    %7031 = vmatmul.mubr.bf16.gmra.mrb[0].mxu0 %v6545
    %v7032 = vpop.f32.mrb[0].mxu0
    %v7033 = vadd.f32 %v6992, %v7032
    %v7034 = vpop.f32.mrb[0].mxu0
    %v7035 = vadd.f32 %v6994, %v7034
    %v7036 = vpop.f32.mrb[0].mxu0
    %v7037 = vpop.f32.mrb[0].mxu0
    %7038 = vdwg.mxu0
    %v7039 = vadd.f32 %v6664, %v3560
    %v7040 = vadd.f32 %v6666, %v3564
    %v7041 = vadd.f32 %v6787, %v3568
    %v7042 = vadd.f32 %v6789, %v3572
    %v7043 = vadd.f32 %v6910, %v3576
    %v7044 = vadd.f32 %v6912, %v3580
    %v7045 = vadd.f32 %v7033, %v3584
    %v7046 = vadd.f32 %v7035, %v3588
    %v7047 = vsel %vm3605, %v7039, 0.0
    %v7048 = vsel %vm3605, %v7040, 0.0
    %v7049 = vadd.f32 %v7047, %v7048
    %v7050 = vsel %vm3605, %v7041, 0.0
    %v7051 = vadd.f32 %v7049, %v7050
    %v7052 = vsel %vm3605, %v7042, 0.0
    %v7053 = vadd.f32 %v7051, %v7052
    %v7054 = vsel %vm3605, %v7043, 0.0
    %v7055 = vadd.f32 %v7053, %v7054
    %v7056 = vsel %vm3605, %v7044, 0.0
    %v7057 = vadd.f32 %v7055, %v7056
    %v7058 = vsel %vm3605, %v7045, 0.0
    %v7059 = vadd.f32 %v7057, %v7058
    %v7060 = vsel %vm3605, %v7046, 0.0
    %v7061 = vadd.f32 %v7059, %v7060
    %7062 = vadd.xlane.f32.xlu0 %v7061
    %v7063 = vpop.xlane.xlu0 %7062
    %v7064 = vrot.slane %v7063, 4
    %v7065 = vadd.f32 %v7063, %v7064
    %v7066 = vrot.slane %v7065, 2
    %v7067 = vadd.f32 %v7065, %v7066
    %v7068 = vrot.slane %v7067, 1
    %v7069 = vadd.f32 %v7067, %v7068
    %s7070 = vtos %v7069
    %s7071 = smul.f32 %s7070, 0.00048828125
    %v7072 = vstv %s7071
    %v7073 = vsub.f32 %v7039, %v7072
    %v7074 = vsub.f32 %v7040, %v7072
    %v7075 = vsub.f32 %v7041, %v7072
    %v7076 = vsub.f32 %v7042, %v7072
    %v7077 = vsub.f32 %v7043, %v7072
    %v7078 = vsub.f32 %v7044, %v7072
    %v7079 = vsub.f32 %v7045, %v7072
    %v7080 = vsub.f32 %v7046, %v7072
    %v7081 = vmul.f32 %v7073, %v7073
    %v7082 = vmul.f32 %v7074, %v7074
    %v7083 = vmul.f32 %v7075, %v7075
    %v7084 = vmul.f32 %v7076, %v7076
    %v7085 = vmul.f32 %v7077, %v7077
    %v7086 = vmul.f32 %v7078, %v7078
    %v7087 = vmul.f32 %v7079, %v7079
    %v7088 = vmul.f32 %v7080, %v7080
    %v7089 = vsel %vm3605, %v7081, 0.0
    %v7090 = vsel %vm3605, %v7082, 0.0
    %v7091 = vadd.f32 %v7089, %v7090
    %v7092 = vsel %vm3605, %v7083, 0.0
    %v7093 = vadd.f32 %v7091, %v7092
    %v7094 = vsel %vm3605, %v7084, 0.0
    %v7095 = vadd.f32 %v7093, %v7094
    %v7096 = vsel %vm3605, %v7085, 0.0
    %v7097 = vadd.f32 %v7095, %v7096
    %v7098 = vsel %vm3605, %v7086, 0.0
    %v7099 = vadd.f32 %v7097, %v7098
    %v7100 = vsel %vm3605, %v7087, 0.0
    %v7101 = vadd.f32 %v7099, %v7100
    %v7102 = vsel %vm3605, %v7088, 0.0
    %v7103 = vadd.f32 %v7101, %v7102
    %7104 = vadd.xlane.f32.xlu0 %v7103
    %v7105 = vpop.xlane.xlu0 %7104
    %v7106 = vrot.slane %v7105, 4
    %v7107 = vadd.f32 %v7105, %v7106
    %v7108 = vrot.slane %v7107, 2
    %v7109 = vadd.f32 %v7107, %v7108
    %v7110 = vrot.slane %v7109, 1
    %v7111 = vadd.f32 %v7109, %v7110
    %s7112 = vtos %v7111
    %s7113 = smul.f32 %s7112, 0.00048828125
    %s7114 = sadd.f32 %s7113, 1e-05
    %v7115 = vstv %s7114
    %v7116 = vrsqrt.pop %v7115
    %s7117 = vtos %v7116
    %s7118 = smul.f32 %s7117, %s6239
    %v7119 = vstv %s7118
    %v7120 = vmul.f32 %v7073, %v7119
    %v7121 = vmul.f32 %v7074, %v7119
    %v7122 = vmul.f32 %v7075, %v7119
    %v7123 = vmul.f32 %v7076, %v7119
    %v7124 = vmul.f32 %v7077, %v7119
    %v7125 = vmul.f32 %v7078, %v7119
    %v7126 = vmul.f32 %v7079, %v7119
    %v7127 = vmul.f32 %v7080, %v7119
    %v7128 = vstv %s6240
    %v7129 = vadd.f32 %v7120, %v7128
    %v7130 = vadd.f32 %v7121, %v7128
    %v7131 = vadd.f32 %v7122, %v7128
    %v7132 = vadd.f32 %v7123, %v7128
    %v7133 = vadd.f32 %v7124, %v7128
    %v7134 = vadd.f32 %v7125, %v7128
    %v7135 = vadd.f32 %v7126, %v7128
    %v7136 = vadd.f32 %v7127, %v7128
    %vm7137 = vcmp.gt.f32.partialorder %v7129, 0.0
    %vm7138 = vcmp.gt.f32.partialorder %v7130, 0.0
    %vm7139 = vcmp.gt.f32.partialorder %v7131, 0.0
    %vm7140 = vcmp.gt.f32.partialorder %v7132, 0.0
    %vm7141 = vcmp.gt.f32.partialorder %v7133, 0.0
    %vm7142 = vcmp.gt.f32.partialorder %v7134, 0.0
    %vm7143 = vcmp.gt.f32.partialorder %v7135, 0.0
    %vm7144 = vcmp.gt.f32.partialorder %v7136, 0.0
    %v7145 = vmul.f32 %v7129, 0.2
    %v7146 = vmul.f32 %v7130, 0.2
    %v7147 = vmul.f32 %v7131, 0.2
    %v7148 = vmul.f32 %v7132, 0.2
    %v7149 = vmul.f32 %v7133, 0.2
    %v7150 = vmul.f32 %v7134, 0.2
    %v7151 = vmul.f32 %v7135, 0.2
    %v7152 = vmul.f32 %v7136, 0.2
    %v7153 = vsel %vm7137, %v7129, %v7145
    %v7154 = vsel %vm7138, %v7130, %v7146
    %v7155 = vsel %vm7139, %v7131, %v7147
    %v7156 = vsel %vm7140, %v7132, %v7148
    %v7157 = vsel %vm7141, %v7133, %v7149
    %v7158 = vsel %vm7142, %v7134, %v7150
    %v7159 = vsel %vm7143, %v7135, %v7151
    %v7160 = vsel %vm7144, %v7136, %v7152
    %v7161 = vpack.c.bf16 %v7153, %v7153
    %v7162 = vpack.c.bf16 %v7154, %v7154
    %v7163 = vpack.c.bf16 %v7155, %v7155
    %v7164 = vpack.c.bf16 %v7156, %v7156
    %v7165 = vpack.c.bf16 %v7157, %v7157
    %v7166 = vpack.c.bf16 %v7158, %v7158
    %v7167 = vpack.c.bf16 %v7159, %v7159
    %v7168 = vpack.c.bf16 %v7160, %v7160
    %7169 = vmatprep.subr.bf16.mxu0 %v4775
    %7170 = vmatpush1.bf16.msra.mxu0 %v4774
    %7171 = vmatprep.subr.bf16.mxu0 %v4779
    %7172 = vmatpush1.bf16.msra.mxu0 %v4778
    %7173 = vmatprep.subr.bf16.mxu0 %v4783
    %7174 = vmatpush1.bf16.msra.mxu0 %v4782
    %7175 = vmatprep.subr.bf16.mxu0 %v4787
    %7176 = vmatpush1.bf16.msra.mxu0 %v4786
    %7177 = vmatprep.subr.bf16.mxu0 %v4791
    %7178 = vmatpush1.bf16.msra.mxu0 %v4790
    %7179 = vmatprep.subr.bf16.mxu0 %v4795
    %7180 = vmatpush1.bf16.msra.mxu0 %v4794
    %7181 = vmatprep.subr.bf16.mxu0 %v4799
    %7182 = vmatpush1.bf16.msra.mxu0 %v4798
    %7183 = vmatprep.subr.bf16.mxu0 %v4803
    %7184 = vmatpush1.bf16.msra.mxu0 %v4802
    %7185 = vmatprep.subr.bf16.mxu0 %v4807
    %7186 = vmatpush1.bf16.msra.mxu0 %v4806
    %7187 = vmatprep.subr.bf16.mxu0 %v4811
    %7188 = vmatpush1.bf16.msra.mxu0 %v4810
    %7189 = vmatprep.subr.bf16.mxu0 %v4815
    %7190 = vmatpush1.bf16.msra.mxu0 %v4814
    %7191 = vmatprep.subr.bf16.mxu0 %v4819
    %7192 = vmatpush1.bf16.msra.mxu0 %v4818
    %7193 = vmatprep.subr.bf16.mxu0 %v4823
    %7194 = vmatpush1.bf16.msra.mxu0 %v4822
    %7195 = vmatprep.subr.bf16.mxu0 %v4827
    %7196 = vmatpush1.bf16.msra.mxu0 %v4826
    %7197 = vmatprep.subr.bf16.mxu0 %v4831
    %7198 = vmatpush1.bf16.msra.mxu0 %v4830
    %7199 = vmatprep.subr.bf16.mxu0 %v4835
    %7200 = vmatpush1.bf16.msra.mxu0 %v4834
    %7201 = vmatprep.mubr.bf16.mxu0 %v7162
    %7202 = vmatmul.mubr.bf16.gmra.mrb[0].mxu0 %v7161
    %v7203 = vpop.f32.mrb[0].mxu0
    %v7204 = vadd.f32 %v3989, %v7203
    %v7205 = vpop.f32.mrb[0].mxu0
    %v7206 = vadd.f32 %v3993, %v7205
    %v7207 = vpop.f32.mrb[0].mxu0
    %v7208 = vpop.f32.mrb[0].mxu0
    %7209 = vdwg.mxu0
    %7210 = vmatprep.subr.bf16.mxu0 %v4839
    %7211 = vmatpush1.bf16.msra.mxu0 %v4838
    %7212 = vmatprep.subr.bf16.mxu0 %v4843
    %7213 = vmatpush1.bf16.msra.mxu0 %v4842
    %7214 = vmatprep.subr.bf16.mxu0 %v4847
    %7215 = vmatpush1.bf16.msra.mxu0 %v4846
    %7216 = vmatprep.subr.bf16.mxu0 %v4851
    %7217 = vmatpush1.bf16.msra.mxu0 %v4850
    %7218 = vmatprep.subr.bf16.mxu0 %v4855
    %7219 = vmatpush1.bf16.msra.mxu0 %v4854
    %7220 = vmatprep.subr.bf16.mxu0 %v4859
    %7221 = vmatpush1.bf16.msra.mxu0 %v4858
    %7222 = vmatprep.subr.bf16.mxu0 %v4863
    %7223 = vmatpush1.bf16.msra.mxu0 %v4862
    %7224 = vmatprep.subr.bf16.mxu0 %v4867
    %7225 = vmatpush1.bf16.msra.mxu0 %v4866
    %7226 = vmatprep.subr.bf16.mxu0 %v4871
    %7227 = vmatpush1.bf16.msra.mxu0 %v4870
    %7228 = vmatprep.subr.bf16.mxu0 %v4875
    %7229 = vmatpush1.bf16.msra.mxu0 %v4874
    %7230 = vmatprep.subr.bf16.mxu0 %v4879
    %7231 = vmatpush1.bf16.msra.mxu0 %v4878
    %7232 = vmatprep.subr.bf16.mxu0 %v4883
    %7233 = vmatpush1.bf16.msra.mxu0 %v4882
    %7234 = vmatprep.subr.bf16.mxu0 %v4887
    %7235 = vmatpush1.bf16.msra.mxu0 %v4886
    %7236 = vmatprep.subr.bf16.mxu0 %v4891
    %7237 = vmatpush1.bf16.msra.mxu0 %v4890
    %7238 = vmatprep.subr.bf16.mxu0 %v4895
    %7239 = vmatpush1.bf16.msra.mxu0 %v4894
    %7240 = vmatprep.subr.bf16.mxu0 %v4899
    %7241 = vmatpush1.bf16.msra.mxu0 %v4898
    %7242 = vmatprep.mubr.bf16.mxu0 %v7164
    %7243 = vmatmul.mubr.bf16.gmra.mrb[0].mxu0 %v7163
    %v7244 = vpop.f32.mrb[0].mxu0
    %v7245 = vadd.f32 %v7204, %v7244
    %v7246 = vpop.f32.mrb[0].mxu0
    %v7247 = vadd.f32 %v7206, %v7246
    %v7248 = vpop.f32.mrb[0].mxu0
    %v7249 = vpop.f32.mrb[0].mxu0
    %7250 = vdwg.mxu0
    %7251 = vmatprep.subr.bf16.mxu0 %v4903
    %7252 = vmatpush1.bf16.msra.mxu0 %v4902
    %7253 = vmatprep.subr.bf16.mxu0 %v4907
    %7254 = vmatpush1.bf16.msra.mxu0 %v4906
    %7255 = vmatprep.subr.bf16.mxu0 %v4911
    %7256 = vmatpush1.bf16.msra.mxu0 %v4910
    %7257 = vmatprep.subr.bf16.mxu0 %v4915
    %7258 = vmatpush1.bf16.msra.mxu0 %v4914
    %7259 = vmatprep.subr.bf16.mxu0 %v4919
    %7260 = vmatpush1.bf16.msra.mxu0 %v4918
    %7261 = vmatprep.subr.bf16.mxu0 %v4923
    %7262 = vmatpush1.bf16.msra.mxu0 %v4922
    %7263 = vmatprep.subr.bf16.mxu0 %v4927
    %7264 = vmatpush1.bf16.msra.mxu0 %v4926
    %7265 = vmatprep.subr.bf16.mxu0 %v4931
    %7266 = vmatpush1.bf16.msra.mxu0 %v4930
    %7267 = vmatprep.subr.bf16.mxu0 %v4935
    %7268 = vmatpush1.bf16.msra.mxu0 %v4934
    %7269 = vmatprep.subr.bf16.mxu0 %v4939
    %7270 = vmatpush1.bf16.msra.mxu0 %v4938
    %7271 = vmatprep.subr.bf16.mxu0 %v4943
    %7272 = vmatpush1.bf16.msra.mxu0 %v4942
    %7273 = vmatprep.subr.bf16.mxu0 %v4947
    %7274 = vmatpush1.bf16.msra.mxu0 %v4946
    %7275 = vmatprep.subr.bf16.mxu0 %v4951
    %7276 = vmatpush1.bf16.msra.mxu0 %v4950
    %7277 = vmatprep.subr.bf16.mxu0 %v4955
    %7278 = vmatpush1.bf16.msra.mxu0 %v4954
    %7279 = vmatprep.subr.bf16.mxu0 %v4959
    %7280 = vmatpush1.bf16.msra.mxu0 %v4958
    %7281 = vmatprep.subr.bf16.mxu0 %v4963
    %7282 = vmatpush1.bf16.msra.mxu0 %v4962
    %7283 = vmatprep.mubr.bf16.mxu0 %v7166
    %7284 = vmatmul.mubr.bf16.gmra.mrb[0].mxu0 %v7165
    %v7285 = vpop.f32.mrb[0].mxu0
    %v7286 = vadd.f32 %v7245, %v7285
    %v7287 = vpop.f32.mrb[0].mxu0
    %v7288 = vadd.f32 %v7247, %v7287
    %v7289 = vpop.f32.mrb[0].mxu0
    %v7290 = vpop.f32.mrb[0].mxu0
    %7291 = vdwg.mxu0
    %7292 = vmatprep.subr.bf16.mxu0 %v4967
    %7293 = vmatpush1.bf16.msra.mxu0 %v4966
    %7294 = vmatprep.subr.bf16.mxu0 %v4971
    %7295 = vmatpush1.bf16.msra.mxu0 %v4970
    %7296 = vmatprep.subr.bf16.mxu0 %v4975
    %7297 = vmatpush1.bf16.msra.mxu0 %v4974
    %7298 = vmatprep.subr.bf16.mxu0 %v4979
    %7299 = vmatpush1.bf16.msra.mxu0 %v4978
    %7300 = vmatprep.subr.bf16.mxu0 %v4983
    %7301 = vmatpush1.bf16.msra.mxu0 %v4982
    %7302 = vmatprep.subr.bf16.mxu0 %v4987
    %7303 = vmatpush1.bf16.msra.mxu0 %v4986
    %7304 = vmatprep.subr.bf16.mxu0 %v4991
    %7305 = vmatpush1.bf16.msra.mxu0 %v4990
    %7306 = vmatprep.subr.bf16.mxu0 %v4995
    %7307 = vmatpush1.bf16.msra.mxu0 %v4994
    %7308 = vmatprep.subr.bf16.mxu0 %v4999
    %7309 = vmatpush1.bf16.msra.mxu0 %v4998
    %7310 = vmatprep.subr.bf16.mxu0 %v5003
    %7311 = vmatpush1.bf16.msra.mxu0 %v5002
    %7312 = vmatprep.subr.bf16.mxu0 %v5007
    %7313 = vmatpush1.bf16.msra.mxu0 %v5006
    %7314 = vmatprep.subr.bf16.mxu0 %v5011
    %7315 = vmatpush1.bf16.msra.mxu0 %v5010
    %7316 = vmatprep.subr.bf16.mxu0 %v5015
    %7317 = vmatpush1.bf16.msra.mxu0 %v5014
    %7318 = vmatprep.subr.bf16.mxu0 %v5019
    %7319 = vmatpush1.bf16.msra.mxu0 %v5018
    %7320 = vmatprep.subr.bf16.mxu0 %v5023
    %7321 = vmatpush1.bf16.msra.mxu0 %v5022
    %7322 = vmatprep.subr.bf16.mxu0 %v5027
    %7323 = vmatpush1.bf16.msra.mxu0 %v5026
    %7324 = vmatprep.mubr.bf16.mxu0 %v7168
    %7325 = vmatmul.mubr.bf16.gmra.mrb[0].mxu0 %v7167
    %v7326 = vpop.f32.mrb[0].mxu0
    %v7327 = vadd.f32 %v7286, %v7326
    %v7328 = vpop.f32.mrb[0].mxu0
    %v7329 = vadd.f32 %v7288, %v7328
    %v7330 = vpop.f32.mrb[0].mxu0
    %v7331 = vpop.f32.mrb[0].mxu0
    %7332 = vdwg.mxu0
    %7333 = vmatprep.subr.bf16.mxu0 %v4777
    %7334 = vmatpush1.bf16.msra.mxu0 %v4776
    %7335 = vmatprep.subr.bf16.mxu0 %v4781
    %7336 = vmatpush1.bf16.msra.mxu0 %v4780
    %7337 = vmatprep.subr.bf16.mxu0 %v4785
    %7338 = vmatpush1.bf16.msra.mxu0 %v4784
    %7339 = vmatprep.subr.bf16.mxu0 %v4789
    %7340 = vmatpush1.bf16.msra.mxu0 %v4788
    %7341 = vmatprep.subr.bf16.mxu0 %v4793
    %7342 = vmatpush1.bf16.msra.mxu0 %v4792
    %7343 = vmatprep.subr.bf16.mxu0 %v4797
    %7344 = vmatpush1.bf16.msra.mxu0 %v4796
    %7345 = vmatprep.subr.bf16.mxu0 %v4801
    %7346 = vmatpush1.bf16.msra.mxu0 %v4800
    %7347 = vmatprep.subr.bf16.mxu0 %v4805
    %7348 = vmatpush1.bf16.msra.mxu0 %v4804
    %7349 = vmatprep.subr.bf16.mxu0 %v4809
    %7350 = vmatpush1.bf16.msra.mxu0 %v4808
    %7351 = vmatprep.subr.bf16.mxu0 %v4813
    %7352 = vmatpush1.bf16.msra.mxu0 %v4812
    %7353 = vmatprep.subr.bf16.mxu0 %v4817
    %7354 = vmatpush1.bf16.msra.mxu0 %v4816
    %7355 = vmatprep.subr.bf16.mxu0 %v4821
    %7356 = vmatpush1.bf16.msra.mxu0 %v4820
    %7357 = vmatprep.subr.bf16.mxu0 %v4825
    %7358 = vmatpush1.bf16.msra.mxu0 %v4824
    %7359 = vmatprep.subr.bf16.mxu0 %v4829
    %7360 = vmatpush1.bf16.msra.mxu0 %v4828
    %7361 = vmatprep.subr.bf16.mxu0 %v4833
    %7362 = vmatpush1.bf16.msra.mxu0 %v4832
    %7363 = vmatprep.subr.bf16.mxu0 %v4837
    %7364 = vmatpush1.bf16.msra.mxu0 %v4836
    %7365 = vmatprep.mubr.bf16.mxu0 %v7162
    %7366 = vmatmul.mubr.bf16.gmra.mrb[0].mxu0 %v7161
    %v7367 = vpop.f32.mrb[0].mxu0
    %v7368 = vadd.f32 %v3997, %v7367
    %v7369 = vpop.f32.mrb[0].mxu0
    %v7370 = vadd.f32 %v4001, %v7369
    %v7371 = vpop.f32.mrb[0].mxu0
    %v7372 = vpop.f32.mrb[0].mxu0
    %7373 = vdwg.mxu0
    %7374 = vmatprep.subr.bf16.mxu0 %v4841
    %7375 = vmatpush1.bf16.msra.mxu0 %v4840
    %7376 = vmatprep.subr.bf16.mxu0 %v4845
    %7377 = vmatpush1.bf16.msra.mxu0 %v4844
    %7378 = vmatprep.subr.bf16.mxu0 %v4849
    %7379 = vmatpush1.bf16.msra.mxu0 %v4848
    %7380 = vmatprep.subr.bf16.mxu0 %v4853
    %7381 = vmatpush1.bf16.msra.mxu0 %v4852
    %7382 = vmatprep.subr.bf16.mxu0 %v4857
    %7383 = vmatpush1.bf16.msra.mxu0 %v4856
    %7384 = vmatprep.subr.bf16.mxu0 %v4861
    %7385 = vmatpush1.bf16.msra.mxu0 %v4860
    %7386 = vmatprep.subr.bf16.mxu0 %v4865
    %7387 = vmatpush1.bf16.msra.mxu0 %v4864
    %7388 = vmatprep.subr.bf16.mxu0 %v4869
    %7389 = vmatpush1.bf16.msra.mxu0 %v4868
    %7390 = vmatprep.subr.bf16.mxu0 %v4873
    %7391 = vmatpush1.bf16.msra.mxu0 %v4872
    %7392 = vmatprep.subr.bf16.mxu0 %v4877
    %7393 = vmatpush1.bf16.msra.mxu0 %v4876
    %7394 = vmatprep.subr.bf16.mxu0 %v4881
    %7395 = vmatpush1.bf16.msra.mxu0 %v4880
    %7396 = vmatprep.subr.bf16.mxu0 %v4885
    %7397 = vmatpush1.bf16.msra.mxu0 %v4884
    %7398 = vmatprep.subr.bf16.mxu0 %v4889
    %7399 = vmatpush1.bf16.msra.mxu0 %v4888
    %7400 = vmatprep.subr.bf16.mxu0 %v4893
    %7401 = vmatpush1.bf16.msra.mxu0 %v4892
    %7402 = vmatprep.subr.bf16.mxu0 %v4897
    %7403 = vmatpush1.bf16.msra.mxu0 %v4896
    %7404 = vmatprep.subr.bf16.mxu0 %v4901
    %7405 = vmatpush1.bf16.msra.mxu0 %v4900
    %7406 = vmatprep.mubr.bf16.mxu0 %v7164
    %7407 = vmatmul.mubr.bf16.gmra.mrb[0].mxu0 %v7163
    %v7408 = vpop.f32.mrb[0].mxu0
    %v7409 = vadd.f32 %v7368, %v7408
    %v7410 = vpop.f32.mrb[0].mxu0
    %v7411 = vadd.f32 %v7370, %v7410
    %v7412 = vpop.f32.mrb[0].mxu0
    %v7413 = vpop.f32.mrb[0].mxu0
    %7414 = vdwg.mxu0
    %7415 = vmatprep.subr.bf16.mxu0 %v4905
    %7416 = vmatpush1.bf16.msra.mxu0 %v4904
    %7417 = vmatprep.subr.bf16.mxu0 %v4909
    %7418 = vmatpush1.bf16.msra.mxu0 %v4908
    %7419 = vmatprep.subr.bf16.mxu0 %v4913
    %7420 = vmatpush1.bf16.msra.mxu0 %v4912
    %7421 = vmatprep.subr.bf16.mxu0 %v4917
    %7422 = vmatpush1.bf16.msra.mxu0 %v4916
    %7423 = vmatprep.subr.bf16.mxu0 %v4921
    %7424 = vmatpush1.bf16.msra.mxu0 %v4920
    %7425 = vmatprep.subr.bf16.mxu0 %v4925
    %7426 = vmatpush1.bf16.msra.mxu0 %v4924
    %7427 = vmatprep.subr.bf16.mxu0 %v4929
    %7428 = vmatpush1.bf16.msra.mxu0 %v4928
    %7429 = vmatprep.subr.bf16.mxu0 %v4933
    %7430 = vmatpush1.bf16.msra.mxu0 %v4932
    %7431 = vmatprep.subr.bf16.mxu0 %v4937
    %7432 = vmatpush1.bf16.msra.mxu0 %v4936
    %7433 = vmatprep.subr.bf16.mxu0 %v4941
    %7434 = vmatpush1.bf16.msra.mxu0 %v4940
    %7435 = vmatprep.subr.bf16.mxu0 %v4945
    %7436 = vmatpush1.bf16.msra.mxu0 %v4944
    %7437 = vmatprep.subr.bf16.mxu0 %v4949
    %7438 = vmatpush1.bf16.msra.mxu0 %v4948
    %7439 = vmatprep.subr.bf16.mxu0 %v4953
    %7440 = vmatpush1.bf16.msra.mxu0 %v4952
    %7441 = vmatprep.subr.bf16.mxu0 %v4957
    %7442 = vmatpush1.bf16.msra.mxu0 %v4956
    %7443 = vmatprep.subr.bf16.mxu0 %v4961
    %7444 = vmatpush1.bf16.msra.mxu0 %v4960
    %7445 = vmatprep.subr.bf16.mxu0 %v4965
    %7446 = vmatpush1.bf16.msra.mxu0 %v4964
    %7447 = vmatprep.mubr.bf16.mxu0 %v7166
    %7448 = vmatmul.mubr.bf16.gmra.mrb[0].mxu0 %v7165
    %v7449 = vpop.f32.mrb[0].mxu0
    %v7450 = vadd.f32 %v7409, %v7449
    %v7451 = vpop.f32.mrb[0].mxu0
    %v7452 = vadd.f32 %v7411, %v7451
    %v7453 = vpop.f32.mrb[0].mxu0
    %v7454 = vpop.f32.mrb[0].mxu0
    %7455 = vdwg.mxu0
    %7456 = vmatprep.subr.bf16.mxu0 %v4969
    %7457 = vmatpush1.bf16.msra.mxu0 %v4968
    %7458 = vmatprep.subr.bf16.mxu0 %v4973
    %7459 = vmatpush1.bf16.msra.mxu0 %v4972
    %7460 = vmatprep.subr.bf16.mxu0 %v4977
    %7461 = vmatpush1.bf16.msra.mxu0 %v4976
    %7462 = vmatprep.subr.bf16.mxu0 %v4981
    %7463 = vmatpush1.bf16.msra.mxu0 %v4980
    %7464 = vmatprep.subr.bf16.mxu0 %v4985
    %7465 = vmatpush1.bf16.msra.mxu0 %v4984
    %7466 = vmatprep.subr.bf16.mxu0 %v4989
    %7467 = vmatpush1.bf16.msra.mxu0 %v4988
    %7468 = vmatprep.subr.bf16.mxu0 %v4993
    %7469 = vmatpush1.bf16.msra.mxu0 %v4992
    %7470 = vmatprep.subr.bf16.mxu0 %v4997
    %7471 = vmatpush1.bf16.msra.mxu0 %v4996
    %7472 = vmatprep.subr.bf16.mxu0 %v5001
    %7473 = vmatpush1.bf16.msra.mxu0 %v5000
    %7474 = vmatprep.subr.bf16.mxu0 %v5005
    %7475 = vmatpush1.bf16.msra.mxu0 %v5004
    %7476 = vmatprep.subr.bf16.mxu0 %v5009
    %7477 = vmatpush1.bf16.msra.mxu0 %v5008
    %7478 = vmatprep.subr.bf16.mxu0 %v5013
    %7479 = vmatpush1.bf16.msra.mxu0 %v5012
    %7480 = vmatprep.subr.bf16.mxu0 %v5017
    %7481 = vmatpush1.bf16.msra.mxu0 %v5016
    %7482 = vmatprep.subr.bf16.mxu0 %v5021
    %7483 = vmatpush1.bf16.msra.mxu0 %v5020
    %7484 = vmatprep.subr.bf16.mxu0 %v5025
    %7485 = vmatpush1.bf16.msra.mxu0 %v5024
    %7486 = vmatprep.subr.bf16.mxu0 %v5029
    %7487 = vmatpush1.bf16.msra.mxu0 %v5028
    %7488 = vmatprep.mubr.bf16.mxu0 %v7168
    %7489 = vmatmul.mubr.bf16.gmra.mrb[0].mxu0 %v7167
    %v7490 = vpop.f32.mrb[0].mxu0
    %v7491 = vadd.f32 %v7450, %v7490
    %v7492 = vpop.f32.mrb[0].mxu0
    %v7493 = vadd.f32 %v7452, %v7492
    %v7494 = vpop.f32.mrb[0].mxu0
    %v7495 = vpop.f32.mrb[0].mxu0
    %7496 = vdwg.mxu0
    %v7497 = vsel %vm3605, %v7327, 0.0
    %v7498 = vsel %vm3605, %v7329, 0.0
    %v7499 = vadd.f32 %v7497, %v7498
    %v7500 = vsel %vm3605, %v7491, 0.0
    %v7501 = vadd.f32 %v7499, %v7500
    %v7502 = vsel %vm3605, %v7493, 0.0
    %v7503 = vadd.f32 %v7501, %v7502
    %7504 = vadd.xlane.f32.xlu0 %v7503
    %v7505 = vpop.xlane.xlu0 %7504
    %v7506 = vrot.slane %v7505, 4
    %v7507 = vadd.f32 %v7505, %v7506
    %v7508 = vrot.slane %v7507, 2
    %v7509 = vadd.f32 %v7507, %v7508
    %v7510 = vrot.slane %v7509, 1
    %v7511 = vadd.f32 %v7509, %v7510
    %s7512 = vtos %v7511
    %s7513 = smul.f32 %s7512, 0.0009765625
    %v7514 = vstv %s7513
    %v7515 = vsub.f32 %v7327, %v7514
    %v7516 = vsub.f32 %v7329, %v7514
    %v7517 = vsub.f32 %v7491, %v7514
    %v7518 = vsub.f32 %v7493, %v7514
    %v7519 = vmul.f32 %v7515, %v7515
    %v7520 = vmul.f32 %v7516, %v7516
    %v7521 = vmul.f32 %v7517, %v7517
    %v7522 = vmul.f32 %v7518, %v7518
    %v7523 = vsel %vm3605, %v7519, 0.0
    %v7524 = vsel %vm3605, %v7520, 0.0
    %v7525 = vadd.f32 %v7523, %v7524
    %v7526 = vsel %vm3605, %v7521, 0.0
    %v7527 = vadd.f32 %v7525, %v7526
    %v7528 = vsel %vm3605, %v7522, 0.0
    %v7529 = vadd.f32 %v7527, %v7528
    %7530 = vadd.xlane.f32.xlu0 %v7529
    %v7531 = vpop.xlane.xlu0 %7530
    %v7532 = vrot.slane %v7531, 4
    %v7533 = vadd.f32 %v7531, %v7532
    %v7534 = vrot.slane %v7533, 2
    %v7535 = vadd.f32 %v7533, %v7534
    %v7536 = vrot.slane %v7535, 1
    %v7537 = vadd.f32 %v7535, %v7536
    %s7538 = vtos %v7537
    %s7539 = smul.f32 %s7538, 0.0009765625
    %s7540 = sadd.f32 %s7539, 1e-05
    %v7541 = vstv %s7540
    %v7542 = vrsqrt.pop %v7541
    %s7543 = vtos %v7542
    %s7544 = smul.f32 %s7543, %s6239
    %v7545 = vstv %s7544
    %v7546 = vmul.f32 %v7515, %v7545
    %v7547 = vmul.f32 %v7516, %v7545
    %v7548 = vmul.f32 %v7517, %v7545
    %v7549 = vmul.f32 %v7518, %v7545
    %v7550 = vadd.f32 %v7546, %v7128
    %v7551 = vadd.f32 %v7547, %v7128
    %v7552 = vadd.f32 %v7548, %v7128
    %v7553 = vadd.f32 %v7549, %v7128
    %vm7554 = vcmp.gt.f32.partialorder %v7550, 0.0
    %vm7555 = vcmp.gt.f32.partialorder %v7551, 0.0
    %vm7556 = vcmp.gt.f32.partialorder %v7552, 0.0
    %vm7557 = vcmp.gt.f32.partialorder %v7553, 0.0
    %v7558 = vmul.f32 %v7550, 0.2
    %v7559 = vmul.f32 %v7551, 0.2
    %v7560 = vmul.f32 %v7552, 0.2
    %v7561 = vmul.f32 %v7553, 0.2
    %v7562 = vsel %vm7554, %v7550, %v7558
    %v7563 = vsel %vm7555, %v7551, %v7559
    %v7564 = vsel %vm7556, %v7552, %v7560
    %v7565 = vsel %vm7557, %v7553, %v7561
    %v7566 = vpack.c.bf16 %v7562, %v7562
    %v7567 = vpack.c.bf16 %v7563, %v7563
    %v7568 = vpack.c.bf16 %v7564, %v7564
    %v7569 = vpack.c.bf16 %v7565, %v7565
    %7570 = vmatprep.subr.bf16.mxu0 %v5956
    %7571 = vmatpush1.bf16.msra.mxu0 %v5955
    %7572 = vmatprep.subr.bf16.mxu0 %v5958
    %7573 = vmatpush1.bf16.msra.mxu0 %v5957
    %7574 = vmatprep.subr.bf16.mxu0 %v5960
    %7575 = vmatpush1.bf16.msra.mxu0 %v5959
    %7576 = vmatprep.subr.bf16.mxu0 %v5962
    %7577 = vmatpush1.bf16.msra.mxu0 %v5961
    %7578 = vmatprep.subr.bf16.mxu0 %v5964
    %7579 = vmatpush1.bf16.msra.mxu0 %v5963
    %7580 = vmatprep.subr.bf16.mxu0 %v5966
    %7581 = vmatpush1.bf16.msra.mxu0 %v5965
    %7582 = vmatprep.subr.bf16.mxu0 %v5968
    %7583 = vmatpush1.bf16.msra.mxu0 %v5967
    %7584 = vmatprep.subr.bf16.mxu0 %v5970
    %7585 = vmatpush1.bf16.msra.mxu0 %v5969
    %7586 = vmatprep.subr.bf16.mxu0 %v5972
    %7587 = vmatpush1.bf16.msra.mxu0 %v5971
    %7588 = vmatprep.subr.bf16.mxu0 %v5974
    %7589 = vmatpush1.bf16.msra.mxu0 %v5973
    %7590 = vmatprep.subr.bf16.mxu0 %v5976
    %7591 = vmatpush1.bf16.msra.mxu0 %v5975
    %7592 = vmatprep.subr.bf16.mxu0 %v5978
    %7593 = vmatpush1.bf16.msra.mxu0 %v5977
    %7594 = vmatprep.subr.bf16.mxu0 %v5980
    %7595 = vmatpush1.bf16.msra.mxu0 %v5979
    %7596 = vmatprep.subr.bf16.mxu0 %v5982
    %7597 = vmatpush1.bf16.msra.mxu0 %v5981
    %7598 = vmatprep.subr.bf16.mxu0 %v5984
    %7599 = vmatpush1.bf16.msra.mxu0 %v5983
    %7600 = vmatprep.subr.bf16.mxu0 %v5986
    %7601 = vmatpush1.bf16.msra.mxu0 %v5985
    %7602 = vmatprep.mubr.bf16.mxu0 %v7567
    %7603 = vmatmul.mubr.bf16.gmra.mrb[0].mxu0 %v7566
    %v7604 = vpop.f32.mrb[0].mxu0
    %v7605 = vadd.f32 %v5756, %v7604
    %v7606 = vpop.f32.mrb[0].mxu0
    %v7607 = vadd.f32 %v5760, %v7606
    %v7608 = vpop.f32.mrb[0].mxu0
    %v7609 = vpop.f32.mrb[0].mxu0
    %7610 = vdwg.mxu0
    %7611 = vmatprep.subr.bf16.mxu0 %v5988
    %7612 = vmatpush1.bf16.msra.mxu0 %v5987
    %7613 = vmatprep.subr.bf16.mxu0 %v5990
    %7614 = vmatpush1.bf16.msra.mxu0 %v5989
    %7615 = vmatprep.subr.bf16.mxu0 %v5992
    %7616 = vmatpush1.bf16.msra.mxu0 %v5991
    %7617 = vmatprep.subr.bf16.mxu0 %v5994
    %7618 = vmatpush1.bf16.msra.mxu0 %v5993
    %7619 = vmatprep.subr.bf16.mxu0 %v5996
    %7620 = vmatpush1.bf16.msra.mxu0 %v5995
    %7621 = vmatprep.subr.bf16.mxu0 %v5998
    %7622 = vmatpush1.bf16.msra.mxu0 %v5997
    %7623 = vmatprep.subr.bf16.mxu0 %v6000
    %7624 = vmatpush1.bf16.msra.mxu0 %v5999
    %7625 = vmatprep.subr.bf16.mxu0 %v6002
    %7626 = vmatpush1.bf16.msra.mxu0 %v6001
    %7627 = vmatprep.subr.bf16.mxu0 %v6004
    %7628 = vmatpush1.bf16.msra.mxu0 %v6003
    %7629 = vmatprep.subr.bf16.mxu0 %v6006
    %7630 = vmatpush1.bf16.msra.mxu0 %v6005
    %7631 = vmatprep.subr.bf16.mxu0 %v6008
    %7632 = vmatpush1.bf16.msra.mxu0 %v6007
    %7633 = vmatprep.subr.bf16.mxu0 %v6010
    %7634 = vmatpush1.bf16.msra.mxu0 %v6009
    %7635 = vmatprep.subr.bf16.mxu0 %v6012
    %7636 = vmatpush1.bf16.msra.mxu0 %v6011
    %7637 = vmatprep.subr.bf16.mxu0 %v6014
    %7638 = vmatpush1.bf16.msra.mxu0 %v6013
    %7639 = vmatprep.subr.bf16.mxu0 %v6016
    %7640 = vmatpush1.bf16.msra.mxu0 %v6015
    %7641 = vmatprep.subr.bf16.mxu0 %v6018
    %7642 = vmatpush1.bf16.msra.mxu0 %v6017
    %7643 = vmatprep.mubr.bf16.mxu0 %v7569
    %7644 = vmatmul.mubr.bf16.gmra.mrb[0].mxu0 %v7568
    %v7645 = vpop.f32.mrb[0].mxu0
    %v7646 = vadd.f32 %v7605, %v7645
    %v7647 = vpop.f32.mrb[0].mxu0
    %v7648 = vadd.f32 %v7607, %v7647
    %v7649 = vpop.f32.mrb[0].mxu0
    %v7650 = vpop.f32.mrb[0].mxu0
    %7651 = vdwg.mxu0
    %v7652 = vsel %vm3605, %v7646, 0.0
    %v7653 = vsel %vm3605, %v7648, 0.0
    %v7654 = vadd.f32 %v7652, %v7653
    %7655 = vadd.xlane.f32.xlu0 %v7654
    %v7656 = vpop.xlane.xlu0 %7655
    %v7657 = vrot.slane %v7656, 4
    %v7658 = vadd.f32 %v7656, %v7657
    %v7659 = vrot.slane %v7658, 2
    %v7660 = vadd.f32 %v7658, %v7659
    %v7661 = vrot.slane %v7660, 1
    %v7662 = vadd.f32 %v7660, %v7661
    %s7663 = vtos %v7662
    %s7664 = smul.f32 %s7663, 0.001953125
    %v7665 = vstv %s7664
    %v7666 = vsub.f32 %v7646, %v7665
    %v7667 = vsub.f32 %v7648, %v7665
    %v7668 = vmul.f32 %v7666, %v7666
    %v7669 = vmul.f32 %v7667, %v7667
    %v7670 = vsel %vm3605, %v7668, 0.0
    %v7671 = vsel %vm3605, %v7669, 0.0
    %v7672 = vadd.f32 %v7670, %v7671
    %7673 = vadd.xlane.f32.xlu0 %v7672
    %v7674 = vpop.xlane.xlu0 %7673
    %v7675 = vrot.slane %v7674, 4
    %v7676 = vadd.f32 %v7674, %v7675
    %v7677 = vrot.slane %v7676, 2
    %v7678 = vadd.f32 %v7676, %v7677
    %v7679 = vrot.slane %v7678, 1
    %v7680 = vadd.f32 %v7678, %v7679
    %s7681 = vtos %v7680
    %s7682 = smul.f32 %s7681, 0.001953125
    %s7683 = sadd.f32 %s7682, 1e-05
    %v7684 = vstv %s7683
    %v7685 = vrsqrt.pop %v7684
    %s7686 = vtos %v7685
    %s7687 = smul.f32 %s7686, %s6239
    %v7688 = vstv %s7687
    %v7689 = vmul.f32 %v7666, %v7688
    %v7690 = vmul.f32 %v7667, %v7688
    %v7691 = vadd.f32 %v7689, %v7128
    %v7692 = vadd.f32 %v7690, %v7128
    %vm7693 = vcmp.gt.f32.partialorder %v7691, 0.0
    %vm7694 = vcmp.gt.f32.partialorder %v7692, 0.0
    %v7695 = vmul.f32 %v7691, 0.2
    %v7696 = vmul.f32 %v7692, 0.2
    %v7697 = vsel %vm7693, %v7691, %v7695
    %v7698 = vsel %vm7694, %v7692, %v7696
    %v7699 = vmul.f32 %v7697, %v6217
    %v7700 = vmul.f32 %v7698, %v6221
    %v7701 = vsel %vm3605, %v7699, 0.0
    %v7702 = vsel %vm3605, %v7700, 0.0
    %v7703 = vadd.f32 %v7701, %v7702
    %7704 = vadd.xlane.f32.xlu0 %v7703
    %v7705 = vpop.xlane.xlu0 %7704
    %v7706 = vadd.f32 %v7705, %v6231
    %v7707 = vxor.u32 %v7706, 2147483648
    %v7708 = vmul.f32 %v7707, 1.442695
    %v7709 = vpow.pop %v7708
    %v7710 = vadd.f32 %v7709, 1.0
    %v7711 = vrcp.pop %v7710
    %v7712 = vmul.f32 1.0, %v7711
    %vm7713 = vcmask 7168
    %v7714 = vsel %vm7713, %v6238, %v7712
    %vm7715 = vcmask 9216
    %7716 = vst.msk [vmem:[#allocation24] sm:$0x3] %vm7715, %v7714
    // Predicated region
    $region102: #{tpu_custom_call.1} parent=1 // pred_check
      _
    $region103: #{tpu_custom_call.1} parent=1 // pred_check_branch
      %7718 = sbr.rel (0) target = $region105
    $region104: #{tpu_custom_call.1} parent=1 // pred_region
      %s7720 = ssub.s32 32, 32
      %7721 = vsyncadd [#allocation5], %s7720
      %s7723 = sshll.u32 [#allocation24], 4
      %s7724 = int_to_ptr.vmem [resolvable:$true] %s7723
      %7726 = dma.vmem_to_hbm [thread:$0]  %s7724, 32, %s13, [#allocation5]
    $region105: #{tpu_custom_call.1} parent=1 // pred_fallthru
      _
    // Predicated region
    $region106: #{tpu_custom_call.1} parent=1 // pred_check
      _
    $region107: #{tpu_custom_call.1} parent=1 // pred_check_branch
      %7728 = sbr.rel (0) target = $region109
    $region108: #{tpu_custom_call.1} parent=1 // pred_region
      %7729 = dma.done [#allocation5], 32
    $region109: #{tpu_custom_call.1} parent=1 // pred_fallthru
      _
    %7730 = vsyncpa [#allocation4], 1
    %7731 = vsyncpa [#allocation8], 1
    %7732 = vsyncpa [#allocation11], 1
    %7733 = vsyncpa [#allocation14], 1
    %7734 = vsyncpa [#allocation17], 1
    %7735 = vsyncpa [#allocation20], 1
    %7736 = vsyncpa [#allocation5], 1
    %7737 = vsyncpa [#allocation6], 1
    %7738 = vsyncpa [#allocation23], 1

</llo_original>
